<compile_context>
chip_gen: v7x
topology: tpu7x:2x2x1
jax: 0.10.0
libtpu: 0.0.40
codegen_flags: <defaults>
</compile_context>

<pallas_src>
import numpy as np
import jax
import jax.numpy as jnp
from jax.experimental import pallas as pl
from jax.experimental.pallas import tpu as pltpu  # noqa: F401  (TPU backend)


# ------------------------------ fused kernel --------------------------------


def _fused_net_kernel(x_ref, shifts_ref, w1_ref, b1_ref, w2_ref, b2_ref,
                      w3_ref, b3_ref, fcw_ref, seg_ref, fcb_ref, o_ref):
    """Whole EvalFuncConvoNet forward on an (S, C) activation resident in VMEM.

    x_ref      : (S, 16)        bf16  input activation, S = N*H*W (13 ch padded to 16)
    shifts_ref : (9, S, S)      bf16  0/1 spatial-shift matrices (one per 3x3 tap)
    w{l}_ref   : (9, Cin, Cout) bf16  BN-folded conv weights per tap
    b{l}_ref   : (1, Cout)      f32   BN-folded bias
    fcw_ref    : (S, 64)        f32   fc weight permuted to (hw, c) order, tiled over N
    seg_ref    : (N, S)         f32   0/1 per-sample segment-sum matrix
    fcb_ref    : (1, 1)         f32   fc bias
    o_ref      : (N, 1)         f32   sigmoid output
    """
    s = x_ref.shape[0]

    def conv_bn_relu(a_bf16, w_ref, b_ref):
        cout = w_ref.shape[-1]
        acc = jnp.zeros((s, cout), jnp.float32)
        for k in range(9):                                   # unrolled 9-tap loop (MXU)
            # (Shift_k @ A): row shuffle with zero padding -> exact in bf16.
            sa = jnp.dot(shifts_ref[k], a_bf16,
                         preferred_element_type=jnp.float32)          # (S, Cin)
            acc = acc + jnp.dot(sa.astype(jnp.bfloat16), w_ref[k],
                                preferred_element_type=jnp.float32)   # (S, Cout)
        # Folded-BN bias + ReLU, f32 epilogue.
        return jnp.maximum(acc + b_ref[...], 0.0)

    a1 = conv_bn_relu(x_ref[...], w1_ref, b1_ref)                     # (S, 16)
    a2 = conv_bn_relu(a1.astype(jnp.bfloat16), w2_ref, b2_ref)        # (S, 32)
    a3 = conv_bn_relu(a2.astype(jnp.bfloat16), w3_ref, b3_ref)        # (S, 64)

    # fc + sigmoid: elementwise multiply with the permuted fc weight (VPU),
    # per-sample segment sum (tiny matmul) + cross-lane reduce (XLU), sigmoid (EUP).
    prod = a3 * fcw_ref[...]                                          # (S, 64) f32
    z = jnp.dot(seg_ref[...], prod, preferred_element_type=jnp.float32)  # (N, 64)
    logit = jnp.sum(z, axis=1, keepdims=True) + fcb_ref[...]          # (N, 1)
    o_ref[...] = jax.nn.sigmoid(logit)


# ------------------------ trace-time constant builders ----------------------


def _shift_matrices(n, h, w):
    """(9, S, S) 0/1 matrices: Shift_k @ A == zero-padded 3x3-tap spatial shift."""
    s = n * h * w
    m = np.zeros((9, s, s), np.float32)
    for dy in range(3):
        for dx in range(3):
            k = dy * 3 + dx
            for ni in range(n):
                for hi in range(h):
                    hs = hi + dy - 1
                    if not 0 <= hs < h:
                        continue
                    for wi in range(w):
                        ws = wi + dx - 1
                        if not 0 <= ws < w:
                            continue
                        m[k, ni * h * w + hi * w + wi,
                             ni * h * w + hs * w + ws] = 1.0
    return jnp.asarray(m, jnp.bfloat16)          # 0/1 exact in bf16


def _segment_matrix(n, hw):
    """(N, N*HW) 0/1 matrix summing rows belonging to each sample."""
    m = np.zeros((n, n * hw), np.float32)
    for ni in range(n):
        m[ni, ni * hw:(ni + 1) * hw] = 1.0
    return jnp.asarray(m)


def _fold_conv_bn(conv, bn, cin_pad, eps=1e-5):
    """Fold eval-mode BatchNorm + conv bias into per-tap weights / bias."""
    w_hwio, conv_b = conv
    gamma, beta, mean, var = bn
    cin, cout = w_hwio.shape[2], w_hwio.shape[3]
    scale = gamma / jnp.sqrt(var + eps)
    w = (w_hwio * scale).reshape(9, cin, cout)              # (9, Cin, Cout)
    if cin_pad > cin:
        w = jnp.pad(w, ((0, 0), (0, cin_pad - cin), (0, 0)))
    bias = ((conv_b - mean) * scale + beta).reshape(1, cout)
    return w.astype(jnp.bfloat16), bias.astype(jnp.float32)


# --------------------------------- wrapper -----------------------------------


def _full_spec(a):
    nd = a.ndim
    return pl.BlockSpec(a.shape, lambda *_: (0,) * nd)


def eval_func_convo_net(x, params):
    """x: (N, 8, 8, 13) NHWC (the same tensor PyTorch's forward receives)."""
    n, h, w, cin = x.shape
    s = n * h * w
    cin_pad = 16      # pad 13 -> 16 input channels (zeros) for clean lane tiling

    # ---- trace-time constants / weight prep (tiny, operates on params only) ----
    shifts = _shift_matrices(n, h, w)                        # (9, S, S) bf16
    seg = _segment_matrix(n, h * w)                          # (N, S)   f32
    w1, b1 = _fold_conv_bn(params["conv1"], params["bn1"], cin_pad)
    w2, b2 = _fold_conv_bn(params["conv2"], params["bn2"], 16)
    w3, b3 = _fold_conv_bn(params["conv3"], params["bn3"], 32)
    cout3 = w3.shape[-1]
    # fc weight: torch.flatten(NCHW) order is c*HW + hw; permute once to (hw, c)
    # and tile over the batch so the kernel consumes the NHWC activation directly.
    fcw = params["fc_w"][:, 0].reshape(cout3, h * w).T       # (HW, C)
    fcw = jnp.tile(fcw, (n, 1)).astype(jnp.float32)          # (S, C)
    fcb = params["fc_b"].astype(jnp.float32)                 # (1, 1)

    x_mat = jnp.pad(x, ((0, 0), (0, 0), (0, 0), (0, cin_pad - cin)))
    x_mat = x_mat.reshape(s, cin_pad).astype(jnp.bfloat16)   # (S, 16) bf16

    args = (x_mat, shifts, w1, b1, w2, b2, w3, b3, fcw, seg, fcb)
    out = pl.pallas_call(
        _fused_net_kernel,
        out_shape=jax.ShapeDtypeStruct((n, 1), jnp.float32),
        in_specs=[_full_spec(a) for a in args],
        out_specs=pl.BlockSpec((n, 1), lambda *_: (0, 0)),
    )(*args)
    return out[:, 0]


# --------------------------- deterministic init ------------------------------


def init_params(key):
    def conv_p(k, cin, cout):
        kw, kb = jax.random.split(k)
        w = 0.05 * jax.random.normal(kw, (3, 3, cin, cout), jnp.float32)  # HWIO
        b = 0.05 * jax.random.normal(kb, (cout,), jnp.float32)
        return (w, b)

    def bn_p(k, c):
        k1, k2, k3, k4 = jax.random.split(k, 4)
        gamma = 1.0 + 0.1 * jax.random.normal(k1, (c,), jnp.float32)
        beta = 0.1 * jax.random.normal(k2, (c,), jnp.float32)
        mean = 0.1 * jax.random.normal(k3, (c,), jnp.float32)
        var = 1.0 + 0.1 * jnp.abs(jax.random.normal(k4, (c,), jnp.float32))
        return (gamma, beta, mean, var)

    ks = jax.random.split(key, 8)
    return {
        "conv1": conv_p(ks[0], 13, 16), "bn1": bn_p(ks[1], 16),
        "conv2": conv_p(ks[2], 16, 32), "bn2": bn_p(ks[3], 32),
        "conv3": conv_p(ks[4], 32, 64), "bn3": bn_p(ks[5], 64),
        "fc_w": 0.02 * jax.random.normal(ks[6], (64 * 8 * 8, 1), jnp.float32),
        "fc_b": 0.02 * jax.random.normal(ks[7], (1, 1), jnp.float32),
    }


# -------------------------------- reference ----------------------------------


def reference(x, params, eps=1e-5):
    def layer(h, conv, bn):
        w, b = conv
        gamma, beta, mean, var = bn
        y = jax.lax.conv_general_dilated(
            h, w, window_strides=(1, 1), padding="SAME",
            dimension_numbers=("NHWC", "HWIO", "NHWC")) + b
        s = gamma / jnp.sqrt(var + eps)
        return jnp.maximum(y * s + (beta - mean * s), 0.0)

    h = layer(x, params["conv1"], params["bn1"])
    h = layer(h, params["conv2"], params["bn2"])
    h = layer(h, params["conv3"], params["bn3"])
    flat = jnp.transpose(h, (0, 3, 1, 2)).reshape(x.shape[0], -1)
    return jax.nn.sigmoid(flat @ params["fc_w"] + params["fc_b"])[:, 0]


# ---------------------------------- main --------------------------------------


if __name__ == "__main__":
    key = jax.random.PRNGKey(0)
    k_x, k_p = jax.random.split(key)
    # Chess-board style input: batch=2, 8x8 board, 13 feature planes (NHWC).
    x = jax.random.normal(k_x, (2, 8, 8, 13), jnp.float32)
    params = init_params(k_p)

    out = jax.jit(eval_func_convo_net)(x, params)
    out = jax.block_until_ready(out)

    ref = jax.block_until_ready(reference(x, params))
    assert out.shape == (2,), out.shape
    assert float(jnp.max(jnp.abs(out - ref))) < 5e-2, (out, ref)

    print("KERNEL_OK")
</pallas_src>

<mosaic_0001>
module attributes {stable_mosaic.version = 11 : i64} {
  func.func @_fused_net_kernel(%arg0: memref<128x16xbf16, #tpu.memory_space<vmem>>, %arg1: memref<9x128x128xbf16, #tpu.memory_space<vmem>>, %arg2: memref<9x16x16xbf16, #tpu.memory_space<vmem>>, %arg3: memref<1x16xf32, #tpu.memory_space<vmem>>, %arg4: memref<9x16x32xbf16, #tpu.memory_space<vmem>>, %arg5: memref<1x32xf32, #tpu.memory_space<vmem>>, %arg6: memref<9x32x64xbf16, #tpu.memory_space<vmem>>, %arg7: memref<1x64xf32, #tpu.memory_space<vmem>>, %arg8: memref<128x64xf32, #tpu.memory_space<vmem>>, %arg9: memref<2x128xf32, #tpu.memory_space<vmem>>, %arg10: memref<1x1xf32, #tpu.memory_space<vmem>>, %arg11: memref<2x1xf32, #tpu.memory_space<vmem>>) attributes {dimension_semantics = [], scalar_prefetch = 0 : i64, scratch_operands = 0 : i64, tpu.core_type = #tpu.core_type<tc>} {
    %c0 = arith.constant 0 : index
    %c0_0 = arith.constant 0 : index
    %0 = vector.load %arg0[%c0, %c0_0] : memref<128x16xbf16, #tpu.memory_space<vmem>>, vector<128x16xbf16>
    %cst = arith.constant 0.000000e+00 : f32
    %1 = vector.broadcast %cst : f32 to vector<128x16xf32>
    %c0_1 = arith.constant 0 : index
    %c0_2 = arith.constant 0 : index
    %c0_3 = arith.constant 0 : index
    %2 = vector.load %arg1[%c0_1, %c0_2, %c0_3] : memref<9x128x128xbf16, #tpu.memory_space<vmem>>, vector<1x128x128xbf16>
    %3 = vector.shape_cast %2 : vector<1x128x128xbf16> to vector<128x128xbf16>
    %cst_4 = arith.constant dense<0.000000e+00> : vector<128x16xf32>
    %4 = tpu.matmul %3, %0, %cst_4 {dimension_numbers = #tpu.dot_dimension_numbers<[1], [0], [0], [1], [0, 0, 1, 1], [], []>} : vector<128x128xbf16>, vector<128x16xbf16>, vector<128x16xf32> -> vector<128x16xf32>
    %5 = arith.truncf %4 : vector<128x16xf32> to vector<128x16xbf16>
    %c0_5 = arith.constant 0 : index
    %c0_6 = arith.constant 0 : index
    %c0_7 = arith.constant 0 : index
    %6 = vector.load %arg2[%c0_5, %c0_6, %c0_7] : memref<9x16x16xbf16, #tpu.memory_space<vmem>>, vector<1x16x16xbf16>
    %7 = vector.shape_cast %6 : vector<1x16x16xbf16> to vector<16x16xbf16>
    %cst_8 = arith.constant dense<0.000000e+00> : vector<128x16xf32>
    %8 = tpu.matmul %5, %7, %cst_8 {dimension_numbers = #tpu.dot_dimension_numbers<[1], [0], [0], [1], [0, 0, 1, 1], [], []>} : vector<128x16xbf16>, vector<16x16xbf16>, vector<128x16xf32> -> vector<128x16xf32>
    %9 = arith.addf %1, %8 : vector<128x16xf32>
    %c1 = arith.constant 1 : index
    %c0_9 = arith.constant 0 : index
    %c0_10 = arith.constant 0 : index
    %10 = vector.load %arg1[%c1, %c0_9, %c0_10] : memref<9x128x128xbf16, #tpu.memory_space<vmem>>, vector<1x128x128xbf16>
    %11 = vector.shape_cast %10 : vector<1x128x128xbf16> to vector<128x128xbf16>
    %cst_11 = arith.constant dense<0.000000e+00> : vector<128x16xf32>
    %12 = tpu.matmul %11, %0, %cst_11 {dimension_numbers = #tpu.dot_dimension_numbers<[1], [0], [0], [1], [0, 0, 1, 1], [], []>} : vector<128x128xbf16>, vector<128x16xbf16>, vector<128x16xf32> -> vector<128x16xf32>
    %13 = arith.truncf %12 : vector<128x16xf32> to vector<128x16xbf16>
    %c1_12 = arith.constant 1 : index
    %c0_13 = arith.constant 0 : index
    %c0_14 = arith.constant 0 : index
    %14 = vector.load %arg2[%c1_12, %c0_13, %c0_14] : memref<9x16x16xbf16, #tpu.memory_space<vmem>>, vector<1x16x16xbf16>
    %15 = vector.shape_cast %14 : vector<1x16x16xbf16> to vector<16x16xbf16>
    %cst_15 = arith.constant dense<0.000000e+00> : vector<128x16xf32>
    %16 = tpu.matmul %13, %15, %cst_15 {dimension_numbers = #tpu.dot_dimension_numbers<[1], [0], [0], [1], [0, 0, 1, 1], [], []>} : vector<128x16xbf16>, vector<16x16xbf16>, vector<128x16xf32> -> vector<128x16xf32>
    %17 = arith.addf %9, %16 : vector<128x16xf32>
    %c2 = arith.constant 2 : index
    %c0_16 = arith.constant 0 : index
    %c0_17 = arith.constant 0 : index
    %18 = vector.load %arg1[%c2, %c0_16, %c0_17] : memref<9x128x128xbf16, #tpu.memory_space<vmem>>, vector<1x128x128xbf16>
    %19 = vector.shape_cast %18 : vector<1x128x128xbf16> to vector<128x128xbf16>
    %cst_18 = arith.constant dense<0.000000e+00> : vector<128x16xf32>
    %20 = tpu.matmul %19, %0, %cst_18 {dimension_numbers = #tpu.dot_dimension_numbers<[1], [0], [0], [1], [0, 0, 1, 1], [], []>} : vector<128x128xbf16>, vector<128x16xbf16>, vector<128x16xf32> -> vector<128x16xf32>
    %21 = arith.truncf %20 : vector<128x16xf32> to vector<128x16xbf16>
    %c2_19 = arith.constant 2 : index
    %c0_20 = arith.constant 0 : index
    %c0_21 = arith.constant 0 : index
    %22 = vector.load %arg2[%c2_19, %c0_20, %c0_21] : memref<9x16x16xbf16, #tpu.memory_space<vmem>>, vector<1x16x16xbf16>
    %23 = vector.shape_cast %22 : vector<1x16x16xbf16> to vector<16x16xbf16>
    %cst_22 = arith.constant dense<0.000000e+00> : vector<128x16xf32>
    %24 = tpu.matmul %21, %23, %cst_22 {dimension_numbers = #tpu.dot_dimension_numbers<[1], [0], [0], [1], [0, 0, 1, 1], [], []>} : vector<128x16xbf16>, vector<16x16xbf16>, vector<128x16xf32> -> vector<128x16xf32>
    %25 = arith.addf %17, %24 : vector<128x16xf32>
    %c3 = arith.constant 3 : index
    %c0_23 = arith.constant 0 : index
    %c0_24 = arith.constant 0 : index
    %26 = vector.load %arg1[%c3, %c0_23, %c0_24] : memref<9x128x128xbf16, #tpu.memory_space<vmem>>, vector<1x128x128xbf16>
    %27 = vector.shape_cast %26 : vector<1x128x128xbf16> to vector<128x128xbf16>
    %cst_25 = arith.constant dense<0.000000e+00> : vector<128x16xf32>
    %28 = tpu.matmul %27, %0, %cst_25 {dimension_numbers = #tpu.dot_dimension_numbers<[1], [0], [0], [1], [0, 0, 1, 1], [], []>} : vector<128x128xbf16>, vector<128x16xbf16>, vector<128x16xf32> -> vector<128x16xf32>
    %29 = arith.truncf %28 : vector<128x16xf32> to vector<128x16xbf16>
    %c3_26 = arith.constant 3 : index
    %c0_27 = arith.constant 0 : index
    %c0_28 = arith.constant 0 : index
    %30 = vector.load %arg2[%c3_26, %c0_27, %c0_28] : memref<9x16x16xbf16, #tpu.memory_space<vmem>>, vector<1x16x16xbf16>
    %31 = vector.shape_cast %30 : vector<1x16x16xbf16> to vector<16x16xbf16>
    %cst_29 = arith.constant dense<0.000000e+00> : vector<128x16xf32>
    %32 = tpu.matmul %29, %31, %cst_29 {dimension_numbers = #tpu.dot_dimension_numbers<[1], [0], [0], [1], [0, 0, 1, 1], [], []>} : vector<128x16xbf16>, vector<16x16xbf16>, vector<128x16xf32> -> vector<128x16xf32>
    %33 = arith.addf %25, %32 : vector<128x16xf32>
    %c4 = arith.constant 4 : index
    %c0_30 = arith.constant 0 : index
    %c0_31 = arith.constant 0 : index
    %34 = vector.load %arg1[%c4, %c0_30, %c0_31] : memref<9x128x128xbf16, #tpu.memory_space<vmem>>, vector<1x128x128xbf16>
    %35 = vector.shape_cast %34 : vector<1x128x128xbf16> to vector<128x128xbf16>
    %cst_32 = arith.constant dense<0.000000e+00> : vector<128x16xf32>
    %36 = tpu.matmul %35, %0, %cst_32 {dimension_numbers = #tpu.dot_dimension_numbers<[1], [0], [0], [1], [0, 0, 1, 1], [], []>} : vector<128x128xbf16>, vector<128x16xbf16>, vector<128x16xf32> -> vector<128x16xf32>
    %37 = arith.truncf %36 : vector<128x16xf32> to vector<128x16xbf16>
    %c4_33 = arith.constant 4 : index
    %c0_34 = arith.constant 0 : index
    %c0_35 = arith.constant 0 : index
    %38 = vector.load %arg2[%c4_33, %c0_34, %c0_35] : memref<9x16x16xbf16, #tpu.memory_space<vmem>>, vector<1x16x16xbf16>
    %39 = vector.shape_cast %38 : vector<1x16x16xbf16> to vector<16x16xbf16>
    %cst_36 = arith.constant dense<0.000000e+00> : vector<128x16xf32>
    %40 = tpu.matmul %37, %39, %cst_36 {dimension_numbers = #tpu.dot_dimension_numbers<[1], [0], [0], [1], [0, 0, 1, 1], [], []>} : vector<128x16xbf16>, vector<16x16xbf16>, vector<128x16xf32> -> vector<128x16xf32>
    %41 = arith.addf %33, %40 : vector<128x16xf32>
    %c5 = arith.constant 5 : index
    %c0_37 = arith.constant 0 : index
    %c0_38 = arith.constant 0 : index
    %42 = vector.load %arg1[%c5, %c0_37, %c0_38] : memref<9x128x128xbf16, #tpu.memory_space<vmem>>, vector<1x128x128xbf16>
    %43 = vector.shape_cast %42 : vector<1x128x128xbf16> to vector<128x128xbf16>
    %cst_39 = arith.constant dense<0.000000e+00> : vector<128x16xf32>
    %44 = tpu.matmul %43, %0, %cst_39 {dimension_numbers = #tpu.dot_dimension_numbers<[1], [0], [0], [1], [0, 0, 1, 1], [], []>} : vector<128x128xbf16>, vector<128x16xbf16>, vector<128x16xf32> -> vector<128x16xf32>
    %45 = arith.truncf %44 : vector<128x16xf32> to vector<128x16xbf16>
    %c5_40 = arith.constant 5 : index
    %c0_41 = arith.constant 0 : index
    %c0_42 = arith.constant 0 : index
    %46 = vector.load %arg2[%c5_40, %c0_41, %c0_42] : memref<9x16x16xbf16, #tpu.memory_space<vmem>>, vector<1x16x16xbf16>
    %47 = vector.shape_cast %46 : vector<1x16x16xbf16> to vector<16x16xbf16>
    %cst_43 = arith.constant dense<0.000000e+00> : vector<128x16xf32>
    %48 = tpu.matmul %45, %47, %cst_43 {dimension_numbers = #tpu.dot_dimension_numbers<[1], [0], [0], [1], [0, 0, 1, 1], [], []>} : vector<128x16xbf16>, vector<16x16xbf16>, vector<128x16xf32> -> vector<128x16xf32>
    %49 = arith.addf %41, %48 : vector<128x16xf32>
    %c6 = arith.constant 6 : index
    %c0_44 = arith.constant 0 : index
    %c0_45 = arith.constant 0 : index
    %50 = vector.load %arg1[%c6, %c0_44, %c0_45] : memref<9x128x128xbf16, #tpu.memory_space<vmem>>, vector<1x128x128xbf16>
    %51 = vector.shape_cast %50 : vector<1x128x128xbf16> to vector<128x128xbf16>
    %cst_46 = arith.constant dense<0.000000e+00> : vector<128x16xf32>
    %52 = tpu.matmul %51, %0, %cst_46 {dimension_numbers = #tpu.dot_dimension_numbers<[1], [0], [0], [1], [0, 0, 1, 1], [], []>} : vector<128x128xbf16>, vector<128x16xbf16>, vector<128x16xf32> -> vector<128x16xf32>
    %53 = arith.truncf %52 : vector<128x16xf32> to vector<128x16xbf16>
    %c6_47 = arith.constant 6 : index
    %c0_48 = arith.constant 0 : index
    %c0_49 = arith.constant 0 : index
    %54 = vector.load %arg2[%c6_47, %c0_48, %c0_49] : memref<9x16x16xbf16, #tpu.memory_space<vmem>>, vector<1x16x16xbf16>
    %55 = vector.shape_cast %54 : vector<1x16x16xbf16> to vector<16x16xbf16>
    %cst_50 = arith.constant dense<0.000000e+00> : vector<128x16xf32>
    %56 = tpu.matmul %53, %55, %cst_50 {dimension_numbers = #tpu.dot_dimension_numbers<[1], [0], [0], [1], [0, 0, 1, 1], [], []>} : vector<128x16xbf16>, vector<16x16xbf16>, vector<128x16xf32> -> vector<128x16xf32>
    %57 = arith.addf %49, %56 : vector<128x16xf32>
    %c7 = arith.constant 7 : index
    %c0_51 = arith.constant 0 : index
    %c0_52 = arith.constant 0 : index
    %58 = vector.load %arg1[%c7, %c0_51, %c0_52] : memref<9x128x128xbf16, #tpu.memory_space<vmem>>, vector<1x128x128xbf16>
    %59 = vector.shape_cast %58 : vector<1x128x128xbf16> to vector<128x128xbf16>
    %cst_53 = arith.constant dense<0.000000e+00> : vector<128x16xf32>
    %60 = tpu.matmul %59, %0, %cst_53 {dimension_numbers = #tpu.dot_dimension_numbers<[1], [0], [0], [1], [0, 0, 1, 1], [], []>} : vector<128x128xbf16>, vector<128x16xbf16>, vector<128x16xf32> -> vector<128x16xf32>
    %61 = arith.truncf %60 : vector<128x16xf32> to vector<128x16xbf16>
    %c7_54 = arith.constant 7 : index
    %c0_55 = arith.constant 0 : index
    %c0_56 = arith.constant 0 : index
    %62 = vector.load %arg2[%c7_54, %c0_55, %c0_56] : memref<9x16x16xbf16, #tpu.memory_space<vmem>>, vector<1x16x16xbf16>
    %63 = vector.shape_cast %62 : vector<1x16x16xbf16> to vector<16x16xbf16>
    %cst_57 = arith.constant dense<0.000000e+00> : vector<128x16xf32>
    %64 = tpu.matmul %61, %63, %cst_57 {dimension_numbers = #tpu.dot_dimension_numbers<[1], [0], [0], [1], [0, 0, 1, 1], [], []>} : vector<128x16xbf16>, vector<16x16xbf16>, vector<128x16xf32> -> vector<128x16xf32>
    %65 = arith.addf %57, %64 : vector<128x16xf32>
    %c8 = arith.constant 8 : index
    %c0_58 = arith.constant 0 : index
    %c0_59 = arith.constant 0 : index
    %66 = vector.load %arg1[%c8, %c0_58, %c0_59] : memref<9x128x128xbf16, #tpu.memory_space<vmem>>, vector<1x128x128xbf16>
    %67 = vector.shape_cast %66 : vector<1x128x128xbf16> to vector<128x128xbf16>
    %cst_60 = arith.constant dense<0.000000e+00> : vector<128x16xf32>
    %68 = tpu.matmul %67, %0, %cst_60 {dimension_numbers = #tpu.dot_dimension_numbers<[1], [0], [0], [1], [0, 0, 1, 1], [], []>} : vector<128x128xbf16>, vector<128x16xbf16>, vector<128x16xf32> -> vector<128x16xf32>
    %69 = arith.truncf %68 : vector<128x16xf32> to vector<128x16xbf16>
    %c8_61 = arith.constant 8 : index
    %c0_62 = arith.constant 0 : index
    %c0_63 = arith.constant 0 : index
    %70 = vector.load %arg2[%c8_61, %c0_62, %c0_63] : memref<9x16x16xbf16, #tpu.memory_space<vmem>>, vector<1x16x16xbf16>
    %71 = vector.shape_cast %70 : vector<1x16x16xbf16> to vector<16x16xbf16>
    %cst_64 = arith.constant dense<0.000000e+00> : vector<128x16xf32>
    %72 = tpu.matmul %69, %71, %cst_64 {dimension_numbers = #tpu.dot_dimension_numbers<[1], [0], [0], [1], [0, 0, 1, 1], [], []>} : vector<128x16xbf16>, vector<16x16xbf16>, vector<128x16xf32> -> vector<128x16xf32>
    %73 = arith.addf %65, %72 : vector<128x16xf32>
    %c0_65 = arith.constant 0 : index
    %c0_66 = arith.constant 0 : index
    %74 = vector.load %arg3[%c0_65, %c0_66] : memref<1x16xf32, #tpu.memory_space<vmem>>, vector<1x16xf32>
    %75 = vector.broadcast %74 : vector<1x16xf32> to vector<128x16xf32>
    %76 = arith.addf %73, %75 : vector<128x16xf32>
    %cst_67 = arith.constant 0.000000e+00 : f32
    %77 = vector.broadcast %cst_67 : f32 to vector<128x16xf32>
    %78 = arith.maximumf %76, %77 : vector<128x16xf32>
    %79 = arith.truncf %78 : vector<128x16xf32> to vector<128x16xbf16>
    %cst_68 = arith.constant 0.000000e+00 : f32
    %80 = vector.broadcast %cst_68 : f32 to vector<128x32xf32>
    %c0_69 = arith.constant 0 : index
    %c0_70 = arith.constant 0 : index
    %c0_71 = arith.constant 0 : index
    %81 = vector.load %arg1[%c0_69, %c0_70, %c0_71] : memref<9x128x128xbf16, #tpu.memory_space<vmem>>, vector<1x128x128xbf16>
    %82 = vector.shape_cast %81 : vector<1x128x128xbf16> to vector<128x128xbf16>
    %cst_72 = arith.constant dense<0.000000e+00> : vector<128x16xf32>
    %83 = tpu.matmul %82, %79, %cst_72 {dimension_numbers = #tpu.dot_dimension_numbers<[1], [0], [0], [1], [0, 0, 1, 1], [], []>} : vector<128x128xbf16>, vector<128x16xbf16>, vector<128x16xf32> -> vector<128x16xf32>
    %84 = arith.truncf %83 : vector<128x16xf32> to vector<128x16xbf16>
    %c0_73 = arith.constant 0 : index
    %c0_74 = arith.constant 0 : index
    %c0_75 = arith.constant 0 : index
    %85 = vector.load %arg4[%c0_73, %c0_74, %c0_75] : memref<9x16x32xbf16, #tpu.memory_space<vmem>>, vector<1x16x32xbf16>
    %86 = vector.shape_cast %85 : vector<1x16x32xbf16> to vector<16x32xbf16>
    %cst_76 = arith.constant dense<0.000000e+00> : vector<128x32xf32>
    %87 = tpu.matmul %84, %86, %cst_76 {dimension_numbers = #tpu.dot_dimension_numbers<[1], [0], [0], [1], [0, 0, 1, 1], [], []>} : vector<128x16xbf16>, vector<16x32xbf16>, vector<128x32xf32> -> vector<128x32xf32>
    %88 = arith.addf %80, %87 : vector<128x32xf32>
    %c1_77 = arith.constant 1 : index
    %c0_78 = arith.constant 0 : index
    %c0_79 = arith.constant 0 : index
    %89 = vector.load %arg1[%c1_77, %c0_78, %c0_79] : memref<9x128x128xbf16, #tpu.memory_space<vmem>>, vector<1x128x128xbf16>
    %90 = vector.shape_cast %89 : vector<1x128x128xbf16> to vector<128x128xbf16>
    %cst_80 = arith.constant dense<0.000000e+00> : vector<128x16xf32>
    %91 = tpu.matmul %90, %79, %cst_80 {dimension_numbers = #tpu.dot_dimension_numbers<[1], [0], [0], [1], [0, 0, 1, 1], [], []>} : vector<128x128xbf16>, vector<128x16xbf16>, vector<128x16xf32> -> vector<128x16xf32>
    %92 = arith.truncf %91 : vector<128x16xf32> to vector<128x16xbf16>
    %c1_81 = arith.constant 1 : index
    %c0_82 = arith.constant 0 : index
    %c0_83 = arith.constant 0 : index
    %93 = vector.load %arg4[%c1_81, %c0_82, %c0_83] : memref<9x16x32xbf16, #tpu.memory_space<vmem>>, vector<1x16x32xbf16>
    %94 = vector.shape_cast %93 : vector<1x16x32xbf16> to vector<16x32xbf16>
    %cst_84 = arith.constant dense<0.000000e+00> : vector<128x32xf32>
    %95 = tpu.matmul %92, %94, %cst_84 {dimension_numbers = #tpu.dot_dimension_numbers<[1], [0], [0], [1], [0, 0, 1, 1], [], []>} : vector<128x16xbf16>, vector<16x32xbf16>, vector<128x32xf32> -> vector<128x32xf32>
    %96 = arith.addf %88, %95 : vector<128x32xf32>
    %c2_85 = arith.constant 2 : index
    %c0_86 = arith.constant 0 : index
    %c0_87 = arith.constant 0 : index
    %97 = vector.load %arg1[%c2_85, %c0_86, %c0_87] : memref<9x128x128xbf16, #tpu.memory_space<vmem>>, vector<1x128x128xbf16>
    %98 = vector.shape_cast %97 : vector<1x128x128xbf16> to vector<128x128xbf16>
    %cst_88 = arith.constant dense<0.000000e+00> : vector<128x16xf32>
    %99 = tpu.matmul %98, %79, %cst_88 {dimension_numbers = #tpu.dot_dimension_numbers<[1], [0], [0], [1], [0, 0, 1, 1], [], []>} : vector<128x128xbf16>, vector<128x16xbf16>, vector<128x16xf32> -> vector<128x16xf32>
    %100 = arith.truncf %99 : vector<128x16xf32> to vector<128x16xbf16>
    %c2_89 = arith.constant 2 : index
    %c0_90 = arith.constant 0 : index
    %c0_91 = arith.constant 0 : index
    %101 = vector.load %arg4[%c2_89, %c0_90, %c0_91] : memref<9x16x32xbf16, #tpu.memory_space<vmem>>, vector<1x16x32xbf16>
    %102 = vector.shape_cast %101 : vector<1x16x32xbf16> to vector<16x32xbf16>
    %cst_92 = arith.constant dense<0.000000e+00> : vector<128x32xf32>
    %103 = tpu.matmul %100, %102, %cst_92 {dimension_numbers = #tpu.dot_dimension_numbers<[1], [0], [0], [1], [0, 0, 1, 1], [], []>} : vector<128x16xbf16>, vector<16x32xbf16>, vector<128x32xf32> -> vector<128x32xf32>
    %104 = arith.addf %96, %103 : vector<128x32xf32>
    %c3_93 = arith.constant 3 : index
    %c0_94 = arith.constant 0 : index
    %c0_95 = arith.constant 0 : index
    %105 = vector.load %arg1[%c3_93, %c0_94, %c0_95] : memref<9x128x128xbf16, #tpu.memory_space<vmem>>, vector<1x128x128xbf16>
    %106 = vector.shape_cast %105 : vector<1x128x128xbf16> to vector<128x128xbf16>
    %cst_96 = arith.constant dense<0.000000e+00> : vector<128x16xf32>
    %107 = tpu.matmul %106, %79, %cst_96 {dimension_numbers = #tpu.dot_dimension_numbers<[1], [0], [0], [1], [0, 0, 1, 1], [], []>} : vector<128x128xbf16>, vector<128x16xbf16>, vector<128x16xf32> -> vector<128x16xf32>
    %108 = arith.truncf %107 : vector<128x16xf32> to vector<128x16xbf16>
    %c3_97 = arith.constant 3 : index
    %c0_98 = arith.constant 0 : index
    %c0_99 = arith.constant 0 : index
    %109 = vector.load %arg4[%c3_97, %c0_98, %c0_99] : memref<9x16x32xbf16, #tpu.memory_space<vmem>>, vector<1x16x32xbf16>
    %110 = vector.shape_cast %109 : vector<1x16x32xbf16> to vector<16x32xbf16>
    %cst_100 = arith.constant dense<0.000000e+00> : vector<128x32xf32>
    %111 = tpu.matmul %108, %110, %cst_100 {dimension_numbers = #tpu.dot_dimension_numbers<[1], [0], [0], [1], [0, 0, 1, 1], [], []>} : vector<128x16xbf16>, vector<16x32xbf16>, vector<128x32xf32> -> vector<128x32xf32>
    %112 = arith.addf %104, %111 : vector<128x32xf32>
    %c4_101 = arith.constant 4 : index
    %c0_102 = arith.constant 0 : index
    %c0_103 = arith.constant 0 : index
    %113 = vector.load %arg1[%c4_101, %c0_102, %c0_103] : memref<9x128x128xbf16, #tpu.memory_space<vmem>>, vector<1x128x128xbf16>
    %114 = vector.shape_cast %113 : vector<1x128x128xbf16> to vector<128x128xbf16>
    %cst_104 = arith.constant dense<0.000000e+00> : vector<128x16xf32>
    %115 = tpu.matmul %114, %79, %cst_104 {dimension_numbers = #tpu.dot_dimension_numbers<[1], [0], [0], [1], [0, 0, 1, 1], [], []>} : vector<128x128xbf16>, vector<128x16xbf16>, vector<128x16xf32> -> vector<128x16xf32>
    %116 = arith.truncf %115 : vector<128x16xf32> to vector<128x16xbf16>
    %c4_105 = arith.constant 4 : index
    %c0_106 = arith.constant 0 : index
    %c0_107 = arith.constant 0 : index
    %117 = vector.load %arg4[%c4_105, %c0_106, %c0_107] : memref<9x16x32xbf16, #tpu.memory_space<vmem>>, vector<1x16x32xbf16>
    %118 = vector.shape_cast %117 : vector<1x16x32xbf16> to vector<16x32xbf16>
    %cst_108 = arith.constant dense<0.000000e+00> : vector<128x32xf32>
    %119 = tpu.matmul %116, %118, %cst_108 {dimension_numbers = #tpu.dot_dimension_numbers<[1], [0], [0], [1], [0, 0, 1, 1], [], []>} : vector<128x16xbf16>, vector<16x32xbf16>, vector<128x32xf32> -> vector<128x32xf32>
    %120 = arith.addf %112, %119 : vector<128x32xf32>
    %c5_109 = arith.constant 5 : index
    %c0_110 = arith.constant 0 : index
    %c0_111 = arith.constant 0 : index
    %121 = vector.load %arg1[%c5_109, %c0_110, %c0_111] : memref<9x128x128xbf16, #tpu.memory_space<vmem>>, vector<1x128x128xbf16>
    %122 = vector.shape_cast %121 : vector<1x128x128xbf16> to vector<128x128xbf16>
    %cst_112 = arith.constant dense<0.000000e+00> : vector<128x16xf32>
    %123 = tpu.matmul %122, %79, %cst_112 {dimension_numbers = #tpu.dot_dimension_numbers<[1], [0], [0], [1], [0, 0, 1, 1], [], []>} : vector<128x128xbf16>, vector<128x16xbf16>, vector<128x16xf32> -> vector<128x16xf32>
    %124 = arith.truncf %123 : vector<128x16xf32> to vector<128x16xbf16>
    %c5_113 = arith.constant 5 : index
    %c0_114 = arith.constant 0 : index
    %c0_115 = arith.constant 0 : index
    %125 = vector.load %arg4[%c5_113, %c0_114, %c0_115] : memref<9x16x32xbf16, #tpu.memory_space<vmem>>, vector<1x16x32xbf16>
    %126 = vector.shape_cast %125 : vector<1x16x32xbf16> to vector<16x32xbf16>
    %cst_116 = arith.constant dense<0.000000e+00> : vector<128x32xf32>
    %127 = tpu.matmul %124, %126, %cst_116 {dimension_numbers = #tpu.dot_dimension_numbers<[1], [0], [0], [1], [0, 0, 1, 1], [], []>} : vector<128x16xbf16>, vector<16x32xbf16>, vector<128x32xf32> -> vector<128x32xf32>
    %128 = arith.addf %120, %127 : vector<128x32xf32>
    %c6_117 = arith.constant 6 : index
    %c0_118 = arith.constant 0 : index
    %c0_119 = arith.constant 0 : index
    %129 = vector.load %arg1[%c6_117, %c0_118, %c0_119] : memref<9x128x128xbf16, #tpu.memory_space<vmem>>, vector<1x128x128xbf16>
    %130 = vector.shape_cast %129 : vector<1x128x128xbf16> to vector<128x128xbf16>
    %cst_120 = arith.constant dense<0.000000e+00> : vector<128x16xf32>
    %131 = tpu.matmul %130, %79, %cst_120 {dimension_numbers = #tpu.dot_dimension_numbers<[1], [0], [0], [1], [0, 0, 1, 1], [], []>} : vector<128x128xbf16>, vector<128x16xbf16>, vector<128x16xf32> -> vector<128x16xf32>
    %132 = arith.truncf %131 : vector<128x16xf32> to vector<128x16xbf16>
    %c6_121 = arith.constant 6 : index
    %c0_122 = arith.constant 0 : index
    %c0_123 = arith.constant 0 : index
    %133 = vector.load %arg4[%c6_121, %c0_122, %c0_123] : memref<9x16x32xbf16, #tpu.memory_space<vmem>>, vector<1x16x32xbf16>
    %134 = vector.shape_cast %133 : vector<1x16x32xbf16> to vector<16x32xbf16>
    %cst_124 = arith.constant dense<0.000000e+00> : vector<128x32xf32>
    %135 = tpu.matmul %132, %134, %cst_124 {dimension_numbers = #tpu.dot_dimension_numbers<[1], [0], [0], [1], [0, 0, 1, 1], [], []>} : vector<128x16xbf16>, vector<16x32xbf16>, vector<128x32xf32> -> vector<128x32xf32>
    %136 = arith.addf %128, %135 : vector<128x32xf32>
    %c7_125 = arith.constant 7 : index
    %c0_126 = arith.constant 0 : index
    %c0_127 = arith.constant 0 : index
    %137 = vector.load %arg1[%c7_125, %c0_126, %c0_127] : memref<9x128x128xbf16, #tpu.memory_space<vmem>>, vector<1x128x128xbf16>
    %138 = vector.shape_cast %137 : vector<1x128x128xbf16> to vector<128x128xbf16>
    %cst_128 = arith.constant dense<0.000000e+00> : vector<128x16xf32>
    %139 = tpu.matmul %138, %79, %cst_128 {dimension_numbers = #tpu.dot_dimension_numbers<[1], [0], [0], [1], [0, 0, 1, 1], [], []>} : vector<128x128xbf16>, vector<128x16xbf16>, vector<128x16xf32> -> vector<128x16xf32>
    %140 = arith.truncf %139 : vector<128x16xf32> to vector<128x16xbf16>
    %c7_129 = arith.constant 7 : index
    %c0_130 = arith.constant 0 : index
    %c0_131 = arith.constant 0 : index
    %141 = vector.load %arg4[%c7_129, %c0_130, %c0_131] : memref<9x16x32xbf16, #tpu.memory_space<vmem>>, vector<1x16x32xbf16>
    %142 = vector.shape_cast %141 : vector<1x16x32xbf16> to vector<16x32xbf16>
    %cst_132 = arith.constant dense<0.000000e+00> : vector<128x32xf32>
    %143 = tpu.matmul %140, %142, %cst_132 {dimension_numbers = #tpu.dot_dimension_numbers<[1], [0], [0], [1], [0, 0, 1, 1], [], []>} : vector<128x16xbf16>, vector<16x32xbf16>, vector<128x32xf32> -> vector<128x32xf32>
    %144 = arith.addf %136, %143 : vector<128x32xf32>
    %c8_133 = arith.constant 8 : index
    %c0_134 = arith.constant 0 : index
    %c0_135 = arith.constant 0 : index
    %145 = vector.load %arg1[%c8_133, %c0_134, %c0_135] : memref<9x128x128xbf16, #tpu.memory_space<vmem>>, vector<1x128x128xbf16>
    %146 = vector.shape_cast %145 : vector<1x128x128xbf16> to vector<128x128xbf16>
    %cst_136 = arith.constant dense<0.000000e+00> : vector<128x16xf32>
    %147 = tpu.matmul %146, %79, %cst_136 {dimension_numbers = #tpu.dot_dimension_numbers<[1], [0], [0], [1], [0, 0, 1, 1], [], []>} : vector<128x128xbf16>, vector<128x16xbf16>, vector<128x16xf32> -> vector<128x16xf32>
    %148 = arith.truncf %147 : vector<128x16xf32> to vector<128x16xbf16>
    %c8_137 = arith.constant 8 : index
    %c0_138 = arith.constant 0 : index
    %c0_139 = arith.constant 0 : index
    %149 = vector.load %arg4[%c8_137, %c0_138, %c0_139] : memref<9x16x32xbf16, #tpu.memory_space<vmem>>, vector<1x16x32xbf16>
    %150 = vector.shape_cast %149 : vector<1x16x32xbf16> to vector<16x32xbf16>
    %cst_140 = arith.constant dense<0.000000e+00> : vector<128x32xf32>
    %151 = tpu.matmul %148, %150, %cst_140 {dimension_numbers = #tpu.dot_dimension_numbers<[1], [0], [0], [1], [0, 0, 1, 1], [], []>} : vector<128x16xbf16>, vector<16x32xbf16>, vector<128x32xf32> -> vector<128x32xf32>
    %152 = arith.addf %144, %151 : vector<128x32xf32>
    %c0_141 = arith.constant 0 : index
    %c0_142 = arith.constant 0 : index
    %153 = vector.load %arg5[%c0_141, %c0_142] : memref<1x32xf32, #tpu.memory_space<vmem>>, vector<1x32xf32>
    %154 = vector.broadcast %153 : vector<1x32xf32> to vector<128x32xf32>
    %155 = arith.addf %152, %154 : vector<128x32xf32>
    %cst_143 = arith.constant 0.000000e+00 : f32
    %156 = vector.broadcast %cst_143 : f32 to vector<128x32xf32>
    %157 = arith.maximumf %155, %156 : vector<128x32xf32>
    %158 = arith.truncf %157 : vector<128x32xf32> to vector<128x32xbf16>
    %cst_144 = arith.constant 0.000000e+00 : f32
    %159 = vector.broadcast %cst_144 : f32 to vector<128x64xf32>
    %c0_145 = arith.constant 0 : index
    %c0_146 = arith.constant 0 : index
    %c0_147 = arith.constant 0 : index
    %160 = vector.load %arg1[%c0_145, %c0_146, %c0_147] : memref<9x128x128xbf16, #tpu.memory_space<vmem>>, vector<1x128x128xbf16>
    %161 = vector.shape_cast %160 : vector<1x128x128xbf16> to vector<128x128xbf16>
    %cst_148 = arith.constant dense<0.000000e+00> : vector<128x32xf32>
    %162 = tpu.matmul %161, %158, %cst_148 {dimension_numbers = #tpu.dot_dimension_numbers<[1], [0], [0], [1], [0, 0, 1, 1], [], []>} : vector<128x128xbf16>, vector<128x32xbf16>, vector<128x32xf32> -> vector<128x32xf32>
    %163 = arith.truncf %162 : vector<128x32xf32> to vector<128x32xbf16>
    %c0_149 = arith.constant 0 : index
    %c0_150 = arith.constant 0 : index
    %c0_151 = arith.constant 0 : index
    %164 = vector.load %arg6[%c0_149, %c0_150, %c0_151] : memref<9x32x64xbf16, #tpu.memory_space<vmem>>, vector<1x32x64xbf16>
    %165 = vector.shape_cast %164 : vector<1x32x64xbf16> to vector<32x64xbf16>
    %cst_152 = arith.constant dense<0.000000e+00> : vector<128x64xf32>
    %166 = tpu.matmul %163, %165, %cst_152 {dimension_numbers = #tpu.dot_dimension_numbers<[1], [0], [0], [1], [0, 0, 1, 1], [], []>} : vector<128x32xbf16>, vector<32x64xbf16>, vector<128x64xf32> -> vector<128x64xf32>
    %167 = arith.addf %159, %166 : vector<128x64xf32>
    %c1_153 = arith.constant 1 : index
    %c0_154 = arith.constant 0 : index
    %c0_155 = arith.constant 0 : index
    %168 = vector.load %arg1[%c1_153, %c0_154, %c0_155] : memref<9x128x128xbf16, #tpu.memory_space<vmem>>, vector<1x128x128xbf16>
    %169 = vector.shape_cast %168 : vector<1x128x128xbf16> to vector<128x128xbf16>
    %cst_156 = arith.constant dense<0.000000e+00> : vector<128x32xf32>
    %170 = tpu.matmul %169, %158, %cst_156 {dimension_numbers = #tpu.dot_dimension_numbers<[1], [0], [0], [1], [0, 0, 1, 1], [], []>} : vector<128x128xbf16>, vector<128x32xbf16>, vector<128x32xf32> -> vector<128x32xf32>
    %171 = arith.truncf %170 : vector<128x32xf32> to vector<128x32xbf16>
    %c1_157 = arith.constant 1 : index
    %c0_158 = arith.constant 0 : index
    %c0_159 = arith.constant 0 : index
    %172 = vector.load %arg6[%c1_157, %c0_158, %c0_159] : memref<9x32x64xbf16, #tpu.memory_space<vmem>>, vector<1x32x64xbf16>
    %173 = vector.shape_cast %172 : vector<1x32x64xbf16> to vector<32x64xbf16>
    %cst_160 = arith.constant dense<0.000000e+00> : vector<128x64xf32>
    %174 = tpu.matmul %171, %173, %cst_160 {dimension_numbers = #tpu.dot_dimension_numbers<[1], [0], [0], [1], [0, 0, 1, 1], [], []>} : vector<128x32xbf16>, vector<32x64xbf16>, vector<128x64xf32> -> vector<128x64xf32>
    %175 = arith.addf %167, %174 : vector<128x64xf32>
    %c2_161 = arith.constant 2 : index
    %c0_162 = arith.constant 0 : index
    %c0_163 = arith.constant 0 : index
    %176 = vector.load %arg1[%c2_161, %c0_162, %c0_163] : memref<9x128x128xbf16, #tpu.memory_space<vmem>>, vector<1x128x128xbf16>
    %177 = vector.shape_cast %176 : vector<1x128x128xbf16> to vector<128x128xbf16>
    %cst_164 = arith.constant dense<0.000000e+00> : vector<128x32xf32>
    %178 = tpu.matmul %177, %158, %cst_164 {dimension_numbers = #tpu.dot_dimension_numbers<[1], [0], [0], [1], [0, 0, 1, 1], [], []>} : vector<128x128xbf16>, vector<128x32xbf16>, vector<128x32xf32> -> vector<128x32xf32>
    %179 = arith.truncf %178 : vector<128x32xf32> to vector<128x32xbf16>
    %c2_165 = arith.constant 2 : index
    %c0_166 = arith.constant 0 : index
    %c0_167 = arith.constant 0 : index
    %180 = vector.load %arg6[%c2_165, %c0_166, %c0_167] : memref<9x32x64xbf16, #tpu.memory_space<vmem>>, vector<1x32x64xbf16>
    %181 = vector.shape_cast %180 : vector<1x32x64xbf16> to vector<32x64xbf16>
    %cst_168 = arith.constant dense<0.000000e+00> : vector<128x64xf32>
    %182 = tpu.matmul %179, %181, %cst_168 {dimension_numbers = #tpu.dot_dimension_numbers<[1], [0], [0], [1], [0, 0, 1, 1], [], []>} : vector<128x32xbf16>, vector<32x64xbf16>, vector<128x64xf32> -> vector<128x64xf32>
    %183 = arith.addf %175, %182 : vector<128x64xf32>
    %c3_169 = arith.constant 3 : index
    %c0_170 = arith.constant 0 : index
    %c0_171 = arith.constant 0 : index
    %184 = vector.load %arg1[%c3_169, %c0_170, %c0_171] : memref<9x128x128xbf16, #tpu.memory_space<vmem>>, vector<1x128x128xbf16>
    %185 = vector.shape_cast %184 : vector<1x128x128xbf16> to vector<128x128xbf16>
    %cst_172 = arith.constant dense<0.000000e+00> : vector<128x32xf32>
    %186 = tpu.matmul %185, %158, %cst_172 {dimension_numbers = #tpu.dot_dimension_numbers<[1], [0], [0], [1], [0, 0, 1, 1], [], []>} : vector<128x128xbf16>, vector<128x32xbf16>, vector<128x32xf32> -> vector<128x32xf32>
    %187 = arith.truncf %186 : vector<128x32xf32> to vector<128x32xbf16>
    %c3_173 = arith.constant 3 : index
    %c0_174 = arith.constant 0 : index
    %c0_175 = arith.constant 0 : index
    %188 = vector.load %arg6[%c3_173, %c0_174, %c0_175] : memref<9x32x64xbf16, #tpu.memory_space<vmem>>, vector<1x32x64xbf16>
    %189 = vector.shape_cast %188 : vector<1x32x64xbf16> to vector<32x64xbf16>
    %cst_176 = arith.constant dense<0.000000e+00> : vector<128x64xf32>
    %190 = tpu.matmul %187, %189, %cst_176 {dimension_numbers = #tpu.dot_dimension_numbers<[1], [0], [0], [1], [0, 0, 1, 1], [], []>} : vector<128x32xbf16>, vector<32x64xbf16>, vector<128x64xf32> -> vector<128x64xf32>
    %191 = arith.addf %183, %190 : vector<128x64xf32>
    %c4_177 = arith.constant 4 : index
    %c0_178 = arith.constant 0 : index
    %c0_179 = arith.constant 0 : index
    %192 = vector.load %arg1[%c4_177, %c0_178, %c0_179] : memref<9x128x128xbf16, #tpu.memory_space<vmem>>, vector<1x128x128xbf16>
    %193 = vector.shape_cast %192 : vector<1x128x128xbf16> to vector<128x128xbf16>
    %cst_180 = arith.constant dense<0.000000e+00> : vector<128x32xf32>
    %194 = tpu.matmul %193, %158, %cst_180 {dimension_numbers = #tpu.dot_dimension_numbers<[1], [0], [0], [1], [0, 0, 1, 1], [], []>} : vector<128x128xbf16>, vector<128x32xbf16>, vector<128x32xf32> -> vector<128x32xf32>
    %195 = arith.truncf %194 : vector<128x32xf32> to vector<128x32xbf16>
    %c4_181 = arith.constant 4 : index
    %c0_182 = arith.constant 0 : index
    %c0_183 = arith.constant 0 : index
    %196 = vector.load %arg6[%c4_181, %c0_182, %c0_183] : memref<9x32x64xbf16, #tpu.memory_space<vmem>>, vector<1x32x64xbf16>
    %197 = vector.shape_cast %196 : vector<1x32x64xbf16> to vector<32x64xbf16>
    %cst_184 = arith.constant dense<0.000000e+00> : vector<128x64xf32>
    %198 = tpu.matmul %195, %197, %cst_184 {dimension_numbers = #tpu.dot_dimension_numbers<[1], [0], [0], [1], [0, 0, 1, 1], [], []>} : vector<128x32xbf16>, vector<32x64xbf16>, vector<128x64xf32> -> vector<128x64xf32>
    %199 = arith.addf %191, %198 : vector<128x64xf32>
    %c5_185 = arith.constant 5 : index
    %c0_186 = arith.constant 0 : index
    %c0_187 = arith.constant 0 : index
    %200 = vector.load %arg1[%c5_185, %c0_186, %c0_187] : memref<9x128x128xbf16, #tpu.memory_space<vmem>>, vector<1x128x128xbf16>
    %201 = vector.shape_cast %200 : vector<1x128x128xbf16> to vector<128x128xbf16>
    %cst_188 = arith.constant dense<0.000000e+00> : vector<128x32xf32>
    %202 = tpu.matmul %201, %158, %cst_188 {dimension_numbers = #tpu.dot_dimension_numbers<[1], [0], [0], [1], [0, 0, 1, 1], [], []>} : vector<128x128xbf16>, vector<128x32xbf16>, vector<128x32xf32> -> vector<128x32xf32>
    %203 = arith.truncf %202 : vector<128x32xf32> to vector<128x32xbf16>
    %c5_189 = arith.constant 5 : index
    %c0_190 = arith.constant 0 : index
    %c0_191 = arith.constant 0 : index
    %204 = vector.load %arg6[%c5_189, %c0_190, %c0_191] : memref<9x32x64xbf16, #tpu.memory_space<vmem>>, vector<1x32x64xbf16>
    %205 = vector.shape_cast %204 : vector<1x32x64xbf16> to vector<32x64xbf16>
    %cst_192 = arith.constant dense<0.000000e+00> : vector<128x64xf32>
    %206 = tpu.matmul %203, %205, %cst_192 {dimension_numbers = #tpu.dot_dimension_numbers<[1], [0], [0], [1], [0, 0, 1, 1], [], []>} : vector<128x32xbf16>, vector<32x64xbf16>, vector<128x64xf32> -> vector<128x64xf32>
    %207 = arith.addf %199, %206 : vector<128x64xf32>
    %c6_193 = arith.constant 6 : index
    %c0_194 = arith.constant 0 : index
    %c0_195 = arith.constant 0 : index
    %208 = vector.load %arg1[%c6_193, %c0_194, %c0_195] : memref<9x128x128xbf16, #tpu.memory_space<vmem>>, vector<1x128x128xbf16>
    %209 = vector.shape_cast %208 : vector<1x128x128xbf16> to vector<128x128xbf16>
    %cst_196 = arith.constant dense<0.000000e+00> : vector<128x32xf32>
    %210 = tpu.matmul %209, %158, %cst_196 {dimension_numbers = #tpu.dot_dimension_numbers<[1], [0], [0], [1], [0, 0, 1, 1], [], []>} : vector<128x128xbf16>, vector<128x32xbf16>, vector<128x32xf32> -> vector<128x32xf32>
    %211 = arith.truncf %210 : vector<128x32xf32> to vector<128x32xbf16>
    %c6_197 = arith.constant 6 : index
    %c0_198 = arith.constant 0 : index
    %c0_199 = arith.constant 0 : index
    %212 = vector.load %arg6[%c6_197, %c0_198, %c0_199] : memref<9x32x64xbf16, #tpu.memory_space<vmem>>, vector<1x32x64xbf16>
    %213 = vector.shape_cast %212 : vector<1x32x64xbf16> to vector<32x64xbf16>
    %cst_200 = arith.constant dense<0.000000e+00> : vector<128x64xf32>
    %214 = tpu.matmul %211, %213, %cst_200 {dimension_numbers = #tpu.dot_dimension_numbers<[1], [0], [0], [1], [0, 0, 1, 1], [], []>} : vector<128x32xbf16>, vector<32x64xbf16>, vector<128x64xf32> -> vector<128x64xf32>
    %215 = arith.addf %207, %214 : vector<128x64xf32>
    %c7_201 = arith.constant 7 : index
    %c0_202 = arith.constant 0 : index
    %c0_203 = arith.constant 0 : index
    %216 = vector.load %arg1[%c7_201, %c0_202, %c0_203] : memref<9x128x128xbf16, #tpu.memory_space<vmem>>, vector<1x128x128xbf16>
    %217 = vector.shape_cast %216 : vector<1x128x128xbf16> to vector<128x128xbf16>
    %cst_204 = arith.constant dense<0.000000e+00> : vector<128x32xf32>
    %218 = tpu.matmul %217, %158, %cst_204 {dimension_numbers = #tpu.dot_dimension_numbers<[1], [0], [0], [1], [0, 0, 1, 1], [], []>} : vector<128x128xbf16>, vector<128x32xbf16>, vector<128x32xf32> -> vector<128x32xf32>
    %219 = arith.truncf %218 : vector<128x32xf32> to vector<128x32xbf16>
    %c7_205 = arith.constant 7 : index
    %c0_206 = arith.constant 0 : index
    %c0_207 = arith.constant 0 : index
    %220 = vector.load %arg6[%c7_205, %c0_206, %c0_207] : memref<9x32x64xbf16, #tpu.memory_space<vmem>>, vector<1x32x64xbf16>
    %221 = vector.shape_cast %220 : vector<1x32x64xbf16> to vector<32x64xbf16>
    %cst_208 = arith.constant dense<0.000000e+00> : vector<128x64xf32>
    %222 = tpu.matmul %219, %221, %cst_208 {dimension_numbers = #tpu.dot_dimension_numbers<[1], [0], [0], [1], [0, 0, 1, 1], [], []>} : vector<128x32xbf16>, vector<32x64xbf16>, vector<128x64xf32> -> vector<128x64xf32>
    %223 = arith.addf %215, %222 : vector<128x64xf32>
    %c8_209 = arith.constant 8 : index
    %c0_210 = arith.constant 0 : index
    %c0_211 = arith.constant 0 : index
    %224 = vector.load %arg1[%c8_209, %c0_210, %c0_211] : memref<9x128x128xbf16, #tpu.memory_space<vmem>>, vector<1x128x128xbf16>
    %225 = vector.shape_cast %224 : vector<1x128x128xbf16> to vector<128x128xbf16>
    %cst_212 = arith.constant dense<0.000000e+00> : vector<128x32xf32>
    %226 = tpu.matmul %225, %158, %cst_212 {dimension_numbers = #tpu.dot_dimension_numbers<[1], [0], [0], [1], [0, 0, 1, 1], [], []>} : vector<128x128xbf16>, vector<128x32xbf16>, vector<128x32xf32> -> vector<128x32xf32>
    %227 = arith.truncf %226 : vector<128x32xf32> to vector<128x32xbf16>
    %c8_213 = arith.constant 8 : index
    %c0_214 = arith.constant 0 : index
    %c0_215 = arith.constant 0 : index
    %228 = vector.load %arg6[%c8_213, %c0_214, %c0_215] : memref<9x32x64xbf16, #tpu.memory_space<vmem>>, vector<1x32x64xbf16>
    %229 = vector.shape_cast %228 : vector<1x32x64xbf16> to vector<32x64xbf16>
    %cst_216 = arith.constant dense<0.000000e+00> : vector<128x64xf32>
    %230 = tpu.matmul %227, %229, %cst_216 {dimension_numbers = #tpu.dot_dimension_numbers<[1], [0], [0], [1], [0, 0, 1, 1], [], []>} : vector<128x32xbf16>, vector<32x64xbf16>, vector<128x64xf32> -> vector<128x64xf32>
    %231 = arith.addf %223, %230 : vector<128x64xf32>
    %c0_217 = arith.constant 0 : index
    %c0_218 = arith.constant 0 : index
    %232 = vector.load %arg7[%c0_217, %c0_218] : memref<1x64xf32, #tpu.memory_space<vmem>>, vector<1x64xf32>
    %233 = vector.broadcast %232 : vector<1x64xf32> to vector<128x64xf32>
    %234 = arith.addf %231, %233 : vector<128x64xf32>
    %cst_219 = arith.constant 0.000000e+00 : f32
    %235 = vector.broadcast %cst_219 : f32 to vector<128x64xf32>
    %236 = arith.maximumf %234, %235 : vector<128x64xf32>
    %c0_220 = arith.constant 0 : index
    %c0_221 = arith.constant 0 : index
    %237 = vector.load %arg8[%c0_220, %c0_221] : memref<128x64xf32, #tpu.memory_space<vmem>>, vector<128x64xf32>
    %238 = arith.mulf %236, %237 : vector<128x64xf32>
    %c0_222 = arith.constant 0 : index
    %c0_223 = arith.constant 0 : index
    %239 = vector.load %arg9[%c0_222, %c0_223] : memref<2x128xf32, #tpu.memory_space<vmem>>, vector<2x128xf32>
    %cst_224 = arith.constant dense<0.000000e+00> : vector<2x64xf32>
    %240 = tpu.matmul %239, %238, %cst_224 {dimension_numbers = #tpu.dot_dimension_numbers<[1], [0], [0], [1], [0, 0, 1, 1], [], []>} : vector<2x128xf32>, vector<128x64xf32>, vector<2x64xf32> -> vector<2x64xf32>
    %cst_225 = arith.constant dense<0.000000e+00> : vector<2xf32>
    %241 = vector.multi_reduction <add>, %240, %cst_225 [1] : vector<2x64xf32> to vector<2xf32>
    %242 = vector.shape_cast %241 : vector<2xf32> to vector<2x1xf32>
    %c0_226 = arith.constant 0 : index
    %c0_227 = arith.constant 0 : index
    %243 = vector.load %arg10[%c0_226, %c0_227] : memref<1x1xf32, #tpu.memory_space<vmem>>, vector<1x1xf32>
    %244 = vector.broadcast %243 : vector<1x1xf32> to vector<2x1xf32>
    %245 = arith.addf %242, %244 : vector<2x1xf32>
    %246 = arith.negf %245 : vector<2x1xf32>
    %247 = math.exp %246 : vector<2x1xf32>
    %cst_228 = arith.constant 1.000000e+00 : f32
    %248 = vector.broadcast %cst_228 : f32 to vector<2x1xf32>
    %249 = arith.addf %248, %247 : vector<2x1xf32>
    %250 = arith.divf %248, %249 : vector<2x1xf32>
    %c0_229 = arith.constant 0 : index
    %c0_230 = arith.constant 0 : index
    %251 = vector.load %arg11[%c0_229, %c0_230] : memref<2x1xf32, #tpu.memory_space<vmem>>, vector<2x1xf32>
    tpu.vector_store %arg11[%c0_229, %c0_230], %250 {strides = array<i32>} : memref<2x1xf32, #tpu.memory_space<vmem>>, vector<2x1xf32>,
    return
  }
}

</mosaic_0001>

<llo_original>
// kernel: squeeze.2
$region0: #{squeeze.2}
  %s0 = inlined_call_operand.vmem [shape: f32[4096], index: 0, kind: input, shape index: {}]
  %s1 = inlined_call_operand.vmem [shape: f32[64,64], index: 1, kind: output, shape index: {}]
  %v2 = vld [vmem:[%s0] sm:$0xff]
  %vm3 = vcmask 523264
  %4 = vst.msk [vmem:[%s1] ss:$2 sm:$0xff] %vm3, %v2
  %s5 = scalar_lea.vmem %s0, 8
  %v6 = vld [vmem:[%s5] sm:$0xff]
  %vm7 = vcmask 523264
  %s8 = scalar_lea.vmem %s1, 16
  %9 = vst.msk [vmem:[%s8] ss:$2 sm:$0xff] %vm7, %v6
  %s10 = scalar_lea.vmem %s0, 16
  %v11 = vld [vmem:[%s10] sm:$0xff]
  %vm12 = vcmask 523264
  %s13 = scalar_lea.vmem %s1, 32
  %14 = vst.msk [vmem:[%s13] ss:$2 sm:$0xff] %vm12, %v11
  %s15 = scalar_lea.vmem %s0, 24
  %v16 = vld [vmem:[%s15] sm:$0xff]
  %vm17 = vcmask 523264
  %s18 = scalar_lea.vmem %s1, 48
  %19 = vst.msk [vmem:[%s18] ss:$2 sm:$0xff] %vm17, %v16
  %v20 = vld [vmem:[%s0] sm:$0xff]
  %21 = vrot.lane.b32.xlu0 %v20, 64
  %v22 = vpop.permute.xlu0 %21
  %vm23 = vcmask 523264
  %s24 = scalar_lea.vmem %s1, 1
  %25 = vst.msk [vmem:[%s24] ss:$2 sm:$0xff] %vm23, %v22
  %s26 = scalar_lea.vmem %s0, 16
  %v27 = vld [vmem:[%s26] sm:$0xff]
  %28 = vrot.lane.b32.xlu0 %v27, 64
  %v29 = vpop.permute.xlu0 %28
  %vm30 = vcmask 523264
  %s31 = scalar_lea.vmem %s1, 33
  %32 = vst.msk [vmem:[%s31] ss:$2 sm:$0xff] %vm30, %v29
  %s33 = scalar_lea.vmem %s0, 8
  %v34 = vld [vmem:[%s33] sm:$0xff]
  %35 = vrot.lane.b32.xlu0 %v34, 64
  %v36 = vpop.permute.xlu0 %35
  %vm37 = vcmask 523264
  %s38 = scalar_lea.vmem %s1, 17
  %39 = vst.msk [vmem:[%s38] ss:$2 sm:$0xff] %vm37, %v36
  %s40 = scalar_lea.vmem %s0, 24
  %v41 = vld [vmem:[%s40] sm:$0xff]
  %42 = vrot.lane.b32.xlu0 %v41, 64
  %v43 = vpop.permute.xlu0 %42
  %vm44 = vcmask 523264
  %s45 = scalar_lea.vmem %s1, 49
  %46 = vst.msk [vmem:[%s45] ss:$2 sm:$0xff] %vm44, %v43

// kernel: eval_func_convo_net.1
$region0: #{eval_func_convo_net.1}
  #allocation0 [shape = 'u32[]', space=smem, size = 0x4, offset = 0x4, fixed_abs, tag = 'smem constant byte address 0x4 - core index']
  #allocation1 [shape = 'u32[144,128]{1,0:T(1,128)}', space=vmem, size = 0x12000, scoped, tag = 'internal scratch']
  #allocation2 [shape = 'f32[1,1]{1,0:T(1,128)S(1)}', space=vmem, size = 0x200, scoped, tag = 'scoped memory for eval_func_convo_net.1']
  %s0 = inlined_call_operand.vmem [shape: bf16[128,16], index: 0, kind: input, shape index: {}]
  %s1 = inlined_call_operand.vmem [shape: bf16[9,128,128], index: 1, kind: input, shape index: {}]
  %s2 = inlined_call_operand.vmem [shape: bf16[9,16,16], index: 2, kind: input, shape index: {}]
  %s3 = inlined_call_operand.vmem [shape: f32[1,16], index: 3, kind: input, shape index: {}]
  %s4 = inlined_call_operand.vmem [shape: bf16[9,16,32], index: 4, kind: input, shape index: {}]
  %s5 = inlined_call_operand.vmem [shape: f32[1,32], index: 5, kind: input, shape index: {}]
  %s6 = inlined_call_operand.vmem [shape: bf16[9,32,64], index: 6, kind: input, shape index: {}]
  %s7 = inlined_call_operand.vmem [shape: f32[1,64], index: 7, kind: input, shape index: {}]
  %s8 = inlined_call_operand.vmem [shape: f32[128,64], index: 8, kind: input, shape index: {}]
  %s9 = inlined_call_operand.vmem [shape: f32[2,128], index: 9, kind: input, shape index: {}]
  %s10 = inlined_call_operand.<no memory space> [shape: f32[1,1], index: 10, kind: input, shape index: {}]
  %s11 = inlined_call_operand.vmem [shape: f32[2,1], index: 11, kind: output, shape index: {}]
  %s12 = sld [smem:[#allocation0]]
  $region54: #{eval_func_convo_net.1} parent=0
    _
  %s14 = ssub.s32 1, %s12
  %s15 = scalar_select 0, %s14, %s12
  %v16 = vstv %s10
  %17 = vst [vmem:[#allocation2] sm:$0x1] %v16
  // Predicated region
  $region2: #{eval_func_convo_net.1} parent=0 // pred_check
    _
  $region3: #{eval_func_convo_net.1} parent=0 // pred_check_branch
    %19 = sbr.rel (0) target = $region5
  $region4: #{eval_func_convo_net.1} parent=0 // pred_region
    _
  $region5: #{eval_func_convo_net.1} parent=0 // pred_fallthru
    _
  // Predicated region
  $region6: #{eval_func_convo_net.1} parent=0 // pred_check
    _
  $region7: #{eval_func_convo_net.1} parent=0 // pred_check_branch
    %21 = sbr.rel (0) target = $region9
  $region8: #{eval_func_convo_net.1} parent=0 // pred_region
    _
  $region9: #{eval_func_convo_net.1} parent=0 // pred_fallthru
    _
  // Predicated region
  $region10: #{eval_func_convo_net.1} parent=0 // pred_check
    _
  $region11: #{eval_func_convo_net.1} parent=0 // pred_check_branch
    %23 = sbr.rel (0) target = $region13
  $region12: #{eval_func_convo_net.1} parent=0 // pred_region
    _
  $region13: #{eval_func_convo_net.1} parent=0 // pred_fallthru
    _
  // Predicated region
  $region14: #{eval_func_convo_net.1} parent=0 // pred_check
    _
  $region15: #{eval_func_convo_net.1} parent=0 // pred_check_branch
    %25 = sbr.rel (0) target = $region17
  $region16: #{eval_func_convo_net.1} parent=0 // pred_region
    _
  $region17: #{eval_func_convo_net.1} parent=0 // pred_fallthru
    _
  // Predicated region
  $region18: #{eval_func_convo_net.1} parent=0 // pred_check
    _
  $region19: #{eval_func_convo_net.1} parent=0 // pred_check_branch
    %27 = sbr.rel (0) target = $region21
  $region20: #{eval_func_convo_net.1} parent=0 // pred_region
    _
  $region21: #{eval_func_convo_net.1} parent=0 // pred_fallthru
    _
  // Predicated region
  $region22: #{eval_func_convo_net.1} parent=0 // pred_check
    _
  $region23: #{eval_func_convo_net.1} parent=0 // pred_check_branch
    %29 = sbr.rel (0) target = $region25
  $region24: #{eval_func_convo_net.1} parent=0 // pred_region
    _
  $region25: #{eval_func_convo_net.1} parent=0 // pred_fallthru
    _
  // Predicated region
  $region26: #{eval_func_convo_net.1} parent=0 // pred_check
    _
  $region27: #{eval_func_convo_net.1} parent=0 // pred_check_branch
    %31 = sbr.rel (0) target = $region29
  $region28: #{eval_func_convo_net.1} parent=0 // pred_region
    _
  $region29: #{eval_func_convo_net.1} parent=0 // pred_fallthru
    _
  // Predicated region
  $region30: #{eval_func_convo_net.1} parent=0 // pred_check
    _
  $region31: #{eval_func_convo_net.1} parent=0 // pred_check_branch
    %33 = sbr.rel (0) target = $region33
  $region32: #{eval_func_convo_net.1} parent=0 // pred_region
    _
  $region33: #{eval_func_convo_net.1} parent=0 // pred_fallthru
    _
  // Predicated region
  $region34: #{eval_func_convo_net.1} parent=0 // pred_check
    _
  $region35: #{eval_func_convo_net.1} parent=0 // pred_check_branch
    %35 = sbr.rel (0) target = $region37
  $region36: #{eval_func_convo_net.1} parent=0 // pred_region
    _
  $region37: #{eval_func_convo_net.1} parent=0 // pred_fallthru
    _
  // Predicated region
  $region38: #{eval_func_convo_net.1} parent=0 // pred_check
    _
  $region39: #{eval_func_convo_net.1} parent=0 // pred_check_branch
    %37 = sbr.rel (0) target = $region41
  $region40: #{eval_func_convo_net.1} parent=0 // pred_region
    _
  $region41: #{eval_func_convo_net.1} parent=0 // pred_fallthru
    _
  // Predicated region
  $region42: #{eval_func_convo_net.1} parent=0 // pred_check
    _
  $region43: #{eval_func_convo_net.1} parent=0 // pred_check_branch
    %39 = sbr.rel (0) target = $region45
  $region44: #{eval_func_convo_net.1} parent=0 // pred_region
    _
  $region45: #{eval_func_convo_net.1} parent=0 // pred_fallthru
    _
  %v41 = vld [vmem:[%s0] sm:$0xf]
  %v42 = vld [vmem:[%s0 + $0x4] sm:$0xf]
  %v43 = vld [vmem:[%s0 + $0x8] sm:$0xf]
  %v44 = vld [vmem:[%s0 + $0xc] sm:$0xf]
  %v45 = vld [vmem:[%s0 + $0x10] sm:$0xf]
  %v46 = vld [vmem:[%s0 + $0x14] sm:$0xf]
  %v47 = vld [vmem:[%s0 + $0x18] sm:$0xf]
  %v48 = vld [vmem:[%s0 + $0x1c] sm:$0xf]
  %v49 = vld [vmem:[%s0 + $0x20] sm:$0xf]
  %v50 = vld [vmem:[%s0 + $0x24] sm:$0xf]
  %v51 = vld [vmem:[%s0 + $0x28] sm:$0xf]
  %v52 = vld [vmem:[%s0 + $0x2c] sm:$0xf]
  %v53 = vld [vmem:[%s0 + $0x30] sm:$0xf]
  %v54 = vld [vmem:[%s0 + $0x34] sm:$0xf]
  %v55 = vld [vmem:[%s0 + $0x38] sm:$0xf]
  %v56 = vld [vmem:[%s0 + $0x3c] sm:$0xf]
  %v57 = vld [vmem:[%s1] sm:$0xf]
  %v58 = vld [vmem:[%s1 + $0x4] sm:$0xf]
  %v59 = vld [vmem:[%s1 + $0x8] sm:$0xf]
  %v60 = vld [vmem:[%s1 + $0xc] sm:$0xf]
  %v61 = vld [vmem:[%s1 + $0x10] sm:$0xf]
  %v62 = vld [vmem:[%s1 + $0x14] sm:$0xf]
  %v63 = vld [vmem:[%s1 + $0x18] sm:$0xf]
  %v64 = vld [vmem:[%s1 + $0x1c] sm:$0xf]
  %v65 = vld [vmem:[%s1 + $0x20] sm:$0xf]
  %v66 = vld [vmem:[%s1 + $0x24] sm:$0xf]
  %v67 = vld [vmem:[%s1 + $0x28] sm:$0xf]
  %v68 = vld [vmem:[%s1 + $0x2c] sm:$0xf]
  %v69 = vld [vmem:[%s1 + $0x30] sm:$0xf]
  %v70 = vld [vmem:[%s1 + $0x34] sm:$0xf]
  %v71 = vld [vmem:[%s1 + $0x38] sm:$0xf]
  %v72 = vld [vmem:[%s1 + $0x3c] sm:$0xf]
  %v89 = vunpack.c.l.b16 %v57
  %v90 = vunpack.c.l.b16 %v58
  %v91 = vunpack.c.l.b16 %v59
  %v92 = vunpack.c.l.b16 %v60
  %v93 = vunpack.c.l.b16 %v61
  %v94 = vunpack.c.l.b16 %v62
  %v95 = vunpack.c.l.b16 %v63
  %v96 = vunpack.c.l.b16 %v64
  %v97 = vunpack.c.l.b16 %v65
  %v98 = vunpack.c.l.b16 %v66
  %v99 = vunpack.c.l.b16 %v67
  %v100 = vunpack.c.l.b16 %v68
  %v101 = vunpack.c.l.b16 %v69
  %v102 = vunpack.c.l.b16 %v70
  %v103 = vunpack.c.l.b16 %v71
  %v104 = vunpack.c.l.b16 %v72
  %v105 = vpack.c.b16 %v90, %v89
  %v106 = vpack.c.b16 %v92, %v91
  %v107 = vpack.c.b16 %v94, %v93
  %v108 = vpack.c.b16 %v96, %v95
  %v109 = vpack.c.b16 %v98, %v97
  %v110 = vpack.c.b16 %v100, %v99
  %v111 = vpack.c.b16 %v102, %v101
  %v112 = vpack.c.b16 %v104, %v103
  %v137 = vunpack.c.l.b16 %v41
  %v138 = vunpack.c.l.b16 %v42
  %v139 = vunpack.c.l.b16 %v43
  %v140 = vunpack.c.l.b16 %v44
  %v141 = vunpack.c.l.b16 %v45
  %v142 = vunpack.c.l.b16 %v46
  %v143 = vunpack.c.l.b16 %v47
  %v144 = vunpack.c.l.b16 %v48
  %v145 = vunpack.c.l.b16 %v49
  %v146 = vunpack.c.l.b16 %v50
  %v147 = vunpack.c.l.b16 %v51
  %v148 = vunpack.c.l.b16 %v52
  %v149 = vunpack.c.l.b16 %v53
  %v150 = vunpack.c.l.b16 %v54
  %v151 = vunpack.c.l.b16 %v55
  %v152 = vunpack.c.l.b16 %v56
  %v153 = vpack.c.b16 %v138, %v137
  %v154 = vpack.c.b16 %v140, %v139
  %v155 = vpack.c.b16 %v142, %v141
  %v156 = vpack.c.b16 %v144, %v143
  %v157 = vpack.c.b16 %v146, %v145
  %v158 = vpack.c.b16 %v148, %v147
  %v159 = vpack.c.b16 %v150, %v149
  %v160 = vpack.c.b16 %v152, %v151
  %169 = vmatprep.subr.bf16.mxu0 0
  %170 = vmatpush1.bf16.msra.mxu0 %v153
  %171 = vmatprep.subr.bf16.mxu0 0
  %172 = vmatpush1.bf16.msra.mxu0 %v154
  %173 = vmatprep.subr.bf16.mxu0 0
  %174 = vmatpush1.bf16.msra.mxu0 %v155
  %175 = vmatprep.subr.bf16.mxu0 0
  %176 = vmatpush1.bf16.msra.mxu0 %v156
  %177 = vmatprep.subr.bf16.mxu0 0
  %178 = vmatpush1.bf16.msra.mxu0 %v157
  %179 = vmatprep.subr.bf16.mxu0 0
  %180 = vmatpush1.bf16.msra.mxu0 %v158
  %181 = vmatprep.subr.bf16.mxu0 0
  %182 = vmatpush1.bf16.msra.mxu0 %v159
  %183 = vmatprep.subr.bf16.mxu0 0
  %184 = vmatpush1.bf16.msra.mxu0 %v160
  %185 = vmatprep.subr.bf16.mxu0 0
  %186 = vmatpush1.bf16.msra.mxu0 0
  %187 = vmatprep.subr.bf16.mxu0 0
  %188 = vmatpush1.bf16.msra.mxu0 0
  %189 = vmatprep.subr.bf16.mxu0 0
  %190 = vmatpush1.bf16.msra.mxu0 0
  %191 = vmatprep.subr.bf16.mxu0 0
  %192 = vmatpush1.bf16.msra.mxu0 0
  %193 = vmatprep.subr.bf16.mxu0 0
  %194 = vmatpush1.bf16.msra.mxu0 0
  %195 = vmatprep.subr.bf16.mxu0 0
  %196 = vmatpush1.bf16.msra.mxu0 0
  %197 = vmatprep.subr.bf16.mxu0 0
  %198 = vmatpush1.bf16.msra.mxu0 0
  %199 = vmatprep.subr.bf16.mxu0 0
  %200 = vmatpush1.bf16.msra.mxu0 0
  %201 = vmatprep.mubr.bf16.mxu0 0
  %202 = vmatmul.mubr.bf16.gmra.mrb[0].mxu0 %v105
  %v203 = vpop.f32.mrb[0].mxu0
  %v204 = vadd.f32 0.0, %v203
  %v205 = vpop.f32.mrb[0].mxu0
  %v206 = vpop.f32.mrb[0].mxu0
  %v207 = vadd.f32 0.0, %v206
  %v208 = vpop.f32.mrb[0].mxu0
  %209 = vmatprep.mubr.bf16.mxu0 0
  %210 = vmatmul.mubr.bf16.gmra.mrb[0].mxu0 %v106
  %v211 = vpop.f32.mrb[0].mxu0
  %v212 = vadd.f32 0.0, %v211
  %v213 = vpop.f32.mrb[0].mxu0
  %v214 = vpop.f32.mrb[0].mxu0
  %v215 = vadd.f32 0.0, %v214
  %v216 = vpop.f32.mrb[0].mxu0
  %217 = vmatprep.mubr.bf16.mxu0 0
  %218 = vmatmul.mubr.bf16.gmra.mrb[0].mxu0 %v107
  %v219 = vpop.f32.mrb[0].mxu0
  %v220 = vadd.f32 0.0, %v219
  %v221 = vpop.f32.mrb[0].mxu0
  %v222 = vpop.f32.mrb[0].mxu0
  %v223 = vadd.f32 0.0, %v222
  %v224 = vpop.f32.mrb[0].mxu0
  %225 = vmatprep.mubr.bf16.mxu0 0
  %226 = vmatmul.mubr.bf16.gmra.mrb[0].mxu0 %v108
  %v227 = vpop.f32.mrb[0].mxu0
  %v228 = vadd.f32 0.0, %v227
  %v229 = vpop.f32.mrb[0].mxu0
  %v230 = vpop.f32.mrb[0].mxu0
  %v231 = vadd.f32 0.0, %v230
  %v232 = vpop.f32.mrb[0].mxu0
  %233 = vmatprep.mubr.bf16.mxu0 0
  %234 = vmatmul.mubr.bf16.gmra.mrb[0].mxu0 %v109
  %v235 = vpop.f32.mrb[0].mxu0
  %v236 = vadd.f32 0.0, %v235
  %v237 = vpop.f32.mrb[0].mxu0
  %v238 = vpop.f32.mrb[0].mxu0
  %v239 = vadd.f32 0.0, %v238
  %v240 = vpop.f32.mrb[0].mxu0
  %241 = vmatprep.mubr.bf16.mxu0 0
  %242 = vmatmul.mubr.bf16.gmra.mrb[0].mxu0 %v110
  %v243 = vpop.f32.mrb[0].mxu0
  %v244 = vadd.f32 0.0, %v243
  %v245 = vpop.f32.mrb[0].mxu0
  %v246 = vpop.f32.mrb[0].mxu0
  %v247 = vadd.f32 0.0, %v246
  %v248 = vpop.f32.mrb[0].mxu0
  %249 = vmatprep.mubr.bf16.mxu0 0
  %250 = vmatmul.mubr.bf16.gmra.mrb[0].mxu0 %v111
  %v251 = vpop.f32.mrb[0].mxu0
  %v252 = vadd.f32 0.0, %v251
  %v253 = vpop.f32.mrb[0].mxu0
  %v254 = vpop.f32.mrb[0].mxu0
  %v255 = vadd.f32 0.0, %v254
  %v256 = vpop.f32.mrb[0].mxu0
  %257 = vmatprep.mubr.bf16.mxu0 0
  %258 = vmatmul.mubr.bf16.gmra.mrb[0].mxu0 %v112
  %v259 = vpop.f32.mrb[0].mxu0
  %v260 = vadd.f32 0.0, %v259
  %v261 = vpop.f32.mrb[0].mxu0
  %v262 = vpop.f32.mrb[0].mxu0
  %v263 = vadd.f32 0.0, %v262
  %v264 = vpop.f32.mrb[0].mxu0
  %265 = vdwg.mxu0
  %v266 = vpack.c.bf16 %v207, %v204
  %v267 = vpack.c.bf16 %v215, %v212
  %v268 = vpack.c.bf16 %v223, %v220
  %v269 = vpack.c.bf16 %v231, %v228
  %v270 = vpack.c.bf16 %v239, %v236
  %v271 = vpack.c.bf16 %v247, %v244
  %v272 = vpack.c.bf16 %v255, %v252
  %v273 = vpack.c.bf16 %v263, %v260
  %v274 = vld [vmem:[%s2] sm:$0xf]
  %v275 = vld [vmem:[%s2 + $0x4] sm:$0xf]
  %s276 = scalar_lea.vmem %s1, 64
  %v277 = vld [vmem:[%s276] sm:$0xf]
  %v278 = vld [vmem:[%s276 + $0x4] sm:$0xf]
  %v279 = vld [vmem:[%s276 + $0x8] sm:$0xf]
  %v280 = vld [vmem:[%s276 + $0xc] sm:$0xf]
  %v281 = vld [vmem:[%s276 + $0x10] sm:$0xf]
  %v282 = vld [vmem:[%s276 + $0x14] sm:$0xf]
  %v283 = vld [vmem:[%s276 + $0x18] sm:$0xf]
  %v284 = vld [vmem:[%s276 + $0x1c] sm:$0xf]
  %v285 = vld [vmem:[%s276 + $0x20] sm:$0xf]
  %v286 = vld [vmem:[%s276 + $0x24] sm:$0xf]
  %v287 = vld [vmem:[%s276 + $0x28] sm:$0xf]
  %v288 = vld [vmem:[%s276 + $0x2c] sm:$0xf]
  %v289 = vld [vmem:[%s276 + $0x30] sm:$0xf]
  %v290 = vld [vmem:[%s276 + $0x34] sm:$0xf]
  %v291 = vld [vmem:[%s276 + $0x38] sm:$0xf]
  %v292 = vld [vmem:[%s276 + $0x3c] sm:$0xf]
  %v309 = vunpack.c.l.b16 %v277
  %v310 = vunpack.c.l.b16 %v278
  %v311 = vunpack.c.l.b16 %v279
  %v312 = vunpack.c.l.b16 %v280
  %v313 = vunpack.c.l.b16 %v281
  %v314 = vunpack.c.l.b16 %v282
  %v315 = vunpack.c.l.b16 %v283
  %v316 = vunpack.c.l.b16 %v284
  %v317 = vunpack.c.l.b16 %v285
  %v318 = vunpack.c.l.b16 %v286
  %v319 = vunpack.c.l.b16 %v287
  %v320 = vunpack.c.l.b16 %v288
  %v321 = vunpack.c.l.b16 %v289
  %v322 = vunpack.c.l.b16 %v290
  %v323 = vunpack.c.l.b16 %v291
  %v324 = vunpack.c.l.b16 %v292
  %v325 = vpack.c.b16 %v310, %v309
  %v326 = vpack.c.b16 %v312, %v311
  %v327 = vpack.c.b16 %v314, %v313
  %v328 = vpack.c.b16 %v316, %v315
  %v329 = vpack.c.b16 %v318, %v317
  %v330 = vpack.c.b16 %v320, %v319
  %v331 = vpack.c.b16 %v322, %v321
  %v332 = vpack.c.b16 %v324, %v323
  %341 = vmatprep.subr.bf16.mxu0 0
  %342 = vmatpush1.bf16.msra.mxu0 %v153
  %343 = vmatprep.subr.bf16.mxu0 0
  %344 = vmatpush1.bf16.msra.mxu0 %v154
  %345 = vmatprep.subr.bf16.mxu0 0
  %346 = vmatpush1.bf16.msra.mxu0 %v155
  %347 = vmatprep.subr.bf16.mxu0 0
  %348 = vmatpush1.bf16.msra.mxu0 %v156
  %349 = vmatprep.subr.bf16.mxu0 0
  %350 = vmatpush1.bf16.msra.mxu0 %v157
  %351 = vmatprep.subr.bf16.mxu0 0
  %352 = vmatpush1.bf16.msra.mxu0 %v158
  %353 = vmatprep.subr.bf16.mxu0 0
  %354 = vmatpush1.bf16.msra.mxu0 %v159
  %355 = vmatprep.subr.bf16.mxu0 0
  %356 = vmatpush1.bf16.msra.mxu0 %v160
  %357 = vmatprep.subr.bf16.mxu0 0
  %358 = vmatpush1.bf16.msra.mxu0 0
  %359 = vmatprep.subr.bf16.mxu0 0
  %360 = vmatpush1.bf16.msra.mxu0 0
  %361 = vmatprep.subr.bf16.mxu0 0
  %362 = vmatpush1.bf16.msra.mxu0 0
  %363 = vmatprep.subr.bf16.mxu0 0
  %364 = vmatpush1.bf16.msra.mxu0 0
  %365 = vmatprep.subr.bf16.mxu0 0
  %366 = vmatpush1.bf16.msra.mxu0 0
  %367 = vmatprep.subr.bf16.mxu0 0
  %368 = vmatpush1.bf16.msra.mxu0 0
  %369 = vmatprep.subr.bf16.mxu0 0
  %370 = vmatpush1.bf16.msra.mxu0 0
  %371 = vmatprep.subr.bf16.mxu0 0
  %372 = vmatpush1.bf16.msra.mxu0 0
  %373 = vmatprep.mubr.bf16.mxu0 0
  %374 = vmatmul.mubr.bf16.gmra.mrb[0].mxu0 %v325
  %v375 = vpop.f32.mrb[0].mxu0
  %v376 = vadd.f32 0.0, %v375
  %v377 = vpop.f32.mrb[0].mxu0
  %v378 = vpop.f32.mrb[0].mxu0
  %v379 = vadd.f32 0.0, %v378
  %v380 = vpop.f32.mrb[0].mxu0
  %381 = vmatprep.mubr.bf16.mxu0 0
  %382 = vmatmul.mubr.bf16.gmra.mrb[0].mxu0 %v326
  %v383 = vpop.f32.mrb[0].mxu0
  %v384 = vadd.f32 0.0, %v383
  %v385 = vpop.f32.mrb[0].mxu0
  %v386 = vpop.f32.mrb[0].mxu0
  %v387 = vadd.f32 0.0, %v386
  %v388 = vpop.f32.mrb[0].mxu0
  %389 = vmatprep.mubr.bf16.mxu0 0
  %390 = vmatmul.mubr.bf16.gmra.mrb[0].mxu0 %v327
  %v391 = vpop.f32.mrb[0].mxu0
  %v392 = vadd.f32 0.0, %v391
  %v393 = vpop.f32.mrb[0].mxu0
  %v394 = vpop.f32.mrb[0].mxu0
  %v395 = vadd.f32 0.0, %v394
  %v396 = vpop.f32.mrb[0].mxu0
  %397 = vmatprep.mubr.bf16.mxu0 0
  %398 = vmatmul.mubr.bf16.gmra.mrb[0].mxu0 %v328
  %v399 = vpop.f32.mrb[0].mxu0
  %v400 = vadd.f32 0.0, %v399
  %v401 = vpop.f32.mrb[0].mxu0
  %v402 = vpop.f32.mrb[0].mxu0
  %v403 = vadd.f32 0.0, %v402
  %v404 = vpop.f32.mrb[0].mxu0
  %405 = vmatprep.mubr.bf16.mxu0 0
  %406 = vmatmul.mubr.bf16.gmra.mrb[0].mxu0 %v329
  %v407 = vpop.f32.mrb[0].mxu0
  %v408 = vadd.f32 0.0, %v407
  %v409 = vpop.f32.mrb[0].mxu0
  %v410 = vpop.f32.mrb[0].mxu0
  %v411 = vadd.f32 0.0, %v410
  %v412 = vpop.f32.mrb[0].mxu0
  %413 = vmatprep.mubr.bf16.mxu0 0
  %414 = vmatmul.mubr.bf16.gmra.mrb[0].mxu0 %v330
  %v415 = vpop.f32.mrb[0].mxu0
  %v416 = vadd.f32 0.0, %v415
  %v417 = vpop.f32.mrb[0].mxu0
  %v418 = vpop.f32.mrb[0].mxu0
  %v419 = vadd.f32 0.0, %v418
  %v420 = vpop.f32.mrb[0].mxu0
  %421 = vmatprep.mubr.bf16.mxu0 0
  %422 = vmatmul.mubr.bf16.gmra.mrb[0].mxu0 %v331
  %v423 = vpop.f32.mrb[0].mxu0
  %v424 = vadd.f32 0.0, %v423
  %v425 = vpop.f32.mrb[0].mxu0
  %v426 = vpop.f32.mrb[0].mxu0
  %v427 = vadd.f32 0.0, %v426
  %v428 = vpop.f32.mrb[0].mxu0
  %429 = vmatprep.mubr.bf16.mxu0 0
  %430 = vmatmul.mubr.bf16.gmra.mrb[0].mxu0 %v332
  %v431 = vpop.f32.mrb[0].mxu0
  %v432 = vadd.f32 0.0, %v431
  %v433 = vpop.f32.mrb[0].mxu0
  %v434 = vpop.f32.mrb[0].mxu0
  %v435 = vadd.f32 0.0, %v434
  %v436 = vpop.f32.mrb[0].mxu0
  %437 = vdwg.mxu0
  %v438 = vpack.c.bf16 %v379, %v376
  %v439 = vpack.c.bf16 %v387, %v384
  %v440 = vpack.c.bf16 %v395, %v392
  %v441 = vpack.c.bf16 %v403, %v400
  %v442 = vpack.c.bf16 %v411, %v408
  %v443 = vpack.c.bf16 %v419, %v416
  %v444 = vpack.c.bf16 %v427, %v424
  %v445 = vpack.c.bf16 %v435, %v432
  %s446 = scalar_lea.vmem %s2, 8
  %v447 = vld [vmem:[%s446] sm:$0xf]
  %v448 = vld [vmem:[%s446 + $0x4] sm:$0xf]
  %v451 = vunpack.c.l.b16 %v447
  %v452 = vunpack.c.l.b16 %v448
  %v453 = vpack.c.b16 %v452, %v451
  %vm455 = vcmask 130048
  %v457 = vsel %vm455, %v438, 0
  %v460 = vsel %vm455, %v439, 0
  %v463 = vsel %vm455, %v440, 0
  %v466 = vsel %vm455, %v441, 0
  %v469 = vsel %vm455, %v442, 0
  %v472 = vsel %vm455, %v443, 0
  %v475 = vsel %vm455, %v444, 0
  %v478 = vsel %vm455, %v445, 0
  %480 = vmatprep.subr.bf16.mxu0 0
  %481 = vmatpush1.bf16.msra.mxu0 %v453
  %482 = vmatprep.subr.bf16.mxu0 0
  %483 = vmatpush1.bf16.msra.mxu0 0
  %484 = vmatprep.subr.bf16.mxu0 0
  %485 = vmatpush1.bf16.msra.mxu0 0
  %486 = vmatprep.subr.bf16.mxu0 0
  %487 = vmatpush1.bf16.msra.mxu0 0
  %488 = vmatprep.subr.bf16.mxu0 0
  %489 = vmatpush1.bf16.msra.mxu0 0
  %490 = vmatprep.subr.bf16.mxu0 0
  %491 = vmatpush1.bf16.msra.mxu0 0
  %492 = vmatprep.subr.bf16.mxu0 0
  %493 = vmatpush1.bf16.msra.mxu0 0
  %494 = vmatprep.subr.bf16.mxu0 0
  %495 = vmatpush1.bf16.msra.mxu0 0
  %496 = vmatprep.subr.bf16.mxu0 0
  %497 = vmatpush1.bf16.msra.mxu0 0
  %498 = vmatprep.subr.bf16.mxu0 0
  %499 = vmatpush1.bf16.msra.mxu0 0
  %500 = vmatprep.subr.bf16.mxu0 0
  %501 = vmatpush1.bf16.msra.mxu0 0
  %502 = vmatprep.subr.bf16.mxu0 0
  %503 = vmatpush1.bf16.msra.mxu0 0
  %504 = vmatprep.subr.bf16.mxu0 0
  %505 = vmatpush1.bf16.msra.mxu0 0
  %506 = vmatprep.subr.bf16.mxu0 0
  %507 = vmatpush1.bf16.msra.mxu0 0
  %508 = vmatprep.subr.bf16.mxu0 0
  %509 = vmatpush1.bf16.msra.mxu0 0
  %510 = vmatprep.subr.bf16.mxu0 0
  %511 = vmatpush1.bf16.msra.mxu0 0
  %512 = vmatprep.mubr.bf16.mxu0 0
  %513 = vmatmul.mubr.bf16.gmra.mrb[0].mxu0 %v457
  %v514 = vpop.f32.mrb[0].mxu0
  %v515 = vadd.f32 0.0, %v514
  %v516 = vpop.f32.mrb[0].mxu0
  %v517 = vpop.f32.mrb[0].mxu0
  %v518 = vadd.f32 0.0, %v517
  %v519 = vpop.f32.mrb[0].mxu0
  %520 = vmatprep.mubr.bf16.mxu0 0
  %521 = vmatmul.mubr.bf16.gmra.mrb[0].mxu0 %v460
  %v522 = vpop.f32.mrb[0].mxu0
  %v523 = vadd.f32 0.0, %v522
  %v524 = vpop.f32.mrb[0].mxu0
  %v525 = vpop.f32.mrb[0].mxu0
  %v526 = vadd.f32 0.0, %v525
  %v527 = vpop.f32.mrb[0].mxu0
  %528 = vmatprep.mubr.bf16.mxu0 0
  %529 = vmatmul.mubr.bf16.gmra.mrb[0].mxu0 %v463
  %v530 = vpop.f32.mrb[0].mxu0
  %v531 = vadd.f32 0.0, %v530
  %v532 = vpop.f32.mrb[0].mxu0
  %v533 = vpop.f32.mrb[0].mxu0
  %v534 = vadd.f32 0.0, %v533
  %v535 = vpop.f32.mrb[0].mxu0
  %536 = vmatprep.mubr.bf16.mxu0 0
  %537 = vmatmul.mubr.bf16.gmra.mrb[0].mxu0 %v466
  %v538 = vpop.f32.mrb[0].mxu0
  %v539 = vadd.f32 0.0, %v538
  %v540 = vpop.f32.mrb[0].mxu0
  %v541 = vpop.f32.mrb[0].mxu0
  %v542 = vadd.f32 0.0, %v541
  %v543 = vpop.f32.mrb[0].mxu0
  %544 = vmatprep.mubr.bf16.mxu0 0
  %545 = vmatmul.mubr.bf16.gmra.mrb[0].mxu0 %v469
  %v546 = vpop.f32.mrb[0].mxu0
  %v547 = vadd.f32 0.0, %v546
  %v548 = vpop.f32.mrb[0].mxu0
  %v549 = vpop.f32.mrb[0].mxu0
  %v550 = vadd.f32 0.0, %v549
  %v551 = vpop.f32.mrb[0].mxu0
  %552 = vmatprep.mubr.bf16.mxu0 0
  %553 = vmatmul.mubr.bf16.gmra.mrb[0].mxu0 %v472
  %v554 = vpop.f32.mrb[0].mxu0
  %v555 = vadd.f32 0.0, %v554
  %v556 = vpop.f32.mrb[0].mxu0
  %v557 = vpop.f32.mrb[0].mxu0
  %v558 = vadd.f32 0.0, %v557
  %v559 = vpop.f32.mrb[0].mxu0
  %560 = vmatprep.mubr.bf16.mxu0 0
  %561 = vmatmul.mubr.bf16.gmra.mrb[0].mxu0 %v475
  %v562 = vpop.f32.mrb[0].mxu0
  %v563 = vadd.f32 0.0, %v562
  %v564 = vpop.f32.mrb[0].mxu0
  %v565 = vpop.f32.mrb[0].mxu0
  %v566 = vadd.f32 0.0, %v565
  %v567 = vpop.f32.mrb[0].mxu0
  %568 = vmatprep.mubr.bf16.mxu0 0
  %569 = vmatmul.mubr.bf16.gmra.mrb[0].mxu0 %v478
  %v570 = vpop.f32.mrb[0].mxu0
  %v571 = vadd.f32 0.0, %v570
  %v572 = vpop.f32.mrb[0].mxu0
  %v573 = vpop.f32.mrb[0].mxu0
  %v574 = vadd.f32 0.0, %v573
  %v575 = vpop.f32.mrb[0].mxu0
  %576 = vdwg.mxu0
  %v579 = vunpack.c.l.b16 %v274
  %v580 = vunpack.c.l.b16 %v275
  %v581 = vpack.c.b16 %v580, %v579
  %v584 = vsel %vm455, %v266, 0
  %v587 = vsel %vm455, %v267, 0
  %v590 = vsel %vm455, %v268, 0
  %v593 = vsel %vm455, %v269, 0
  %v596 = vsel %vm455, %v270, 0
  %v599 = vsel %vm455, %v271, 0
  %v602 = vsel %vm455, %v272, 0
  %v605 = vsel %vm455, %v273, 0
  %607 = vmatprep.subr.bf16.mxu0 0
  %608 = vmatpush1.bf16.msra.mxu0 %v581
  %609 = vmatprep.subr.bf16.mxu0 0
  %610 = vmatpush1.bf16.msra.mxu0 0
  %611 = vmatprep.subr.bf16.mxu0 0
  %612 = vmatpush1.bf16.msra.mxu0 0
  %613 = vmatprep.subr.bf16.mxu0 0
  %614 = vmatpush1.bf16.msra.mxu0 0
  %615 = vmatprep.subr.bf16.mxu0 0
  %616 = vmatpush1.bf16.msra.mxu0 0
  %617 = vmatprep.subr.bf16.mxu0 0
  %618 = vmatpush1.bf16.msra.mxu0 0
  %619 = vmatprep.subr.bf16.mxu0 0
  %620 = vmatpush1.bf16.msra.mxu0 0
  %621 = vmatprep.subr.bf16.mxu0 0
  %622 = vmatpush1.bf16.msra.mxu0 0
  %623 = vmatprep.subr.bf16.mxu0 0
  %624 = vmatpush1.bf16.msra.mxu0 0
  %625 = vmatprep.subr.bf16.mxu0 0
  %626 = vmatpush1.bf16.msra.mxu0 0
  %627 = vmatprep.subr.bf16.mxu0 0
  %628 = vmatpush1.bf16.msra.mxu0 0
  %629 = vmatprep.subr.bf16.mxu0 0
  %630 = vmatpush1.bf16.msra.mxu0 0
  %631 = vmatprep.subr.bf16.mxu0 0
  %632 = vmatpush1.bf16.msra.mxu0 0
  %633 = vmatprep.subr.bf16.mxu0 0
  %634 = vmatpush1.bf16.msra.mxu0 0
  %635 = vmatprep.subr.bf16.mxu0 0
  %636 = vmatpush1.bf16.msra.mxu0 0
  %637 = vmatprep.subr.bf16.mxu0 0
  %638 = vmatpush1.bf16.msra.mxu0 0
  %639 = vmatprep.mubr.bf16.mxu0 0
  %640 = vmatmul.mubr.bf16.gmra.mrb[0].mxu0 %v584
  %v641 = vpop.f32.mrb[0].mxu0
  %v642 = vadd.f32 %v515, %v641
  %v643 = vpop.f32.mrb[0].mxu0
  %v644 = vpop.f32.mrb[0].mxu0
  %v645 = vadd.f32 %v518, %v644
  %v646 = vpop.f32.mrb[0].mxu0
  %647 = vmatprep.mubr.bf16.mxu0 0
  %648 = vmatmul.mubr.bf16.gmra.mrb[0].mxu0 %v587
  %v649 = vpop.f32.mrb[0].mxu0
  %v650 = vadd.f32 %v523, %v649
  %v651 = vpop.f32.mrb[0].mxu0
  %v652 = vpop.f32.mrb[0].mxu0
  %v653 = vadd.f32 %v526, %v652
  %v654 = vpop.f32.mrb[0].mxu0
  %655 = vmatprep.mubr.bf16.mxu0 0
  %656 = vmatmul.mubr.bf16.gmra.mrb[0].mxu0 %v590
  %v657 = vpop.f32.mrb[0].mxu0
  %v658 = vadd.f32 %v531, %v657
  %v659 = vpop.f32.mrb[0].mxu0
  %v660 = vpop.f32.mrb[0].mxu0
  %v661 = vadd.f32 %v534, %v660
  %v662 = vpop.f32.mrb[0].mxu0
  %663 = vmatprep.mubr.bf16.mxu0 0
  %664 = vmatmul.mubr.bf16.gmra.mrb[0].mxu0 %v593
  %v665 = vpop.f32.mrb[0].mxu0
  %v666 = vadd.f32 %v539, %v665
  %v667 = vpop.f32.mrb[0].mxu0
  %v668 = vpop.f32.mrb[0].mxu0
  %v669 = vadd.f32 %v542, %v668
  %v670 = vpop.f32.mrb[0].mxu0
  %671 = vmatprep.mubr.bf16.mxu0 0
  %672 = vmatmul.mubr.bf16.gmra.mrb[0].mxu0 %v596
  %v673 = vpop.f32.mrb[0].mxu0
  %v674 = vadd.f32 %v547, %v673
  %v675 = vpop.f32.mrb[0].mxu0
  %v676 = vpop.f32.mrb[0].mxu0
  %v677 = vadd.f32 %v550, %v676
  %v678 = vpop.f32.mrb[0].mxu0
  %679 = vmatprep.mubr.bf16.mxu0 0
  %680 = vmatmul.mubr.bf16.gmra.mrb[0].mxu0 %v599
  %v681 = vpop.f32.mrb[0].mxu0
  %v682 = vadd.f32 %v555, %v681
  %v683 = vpop.f32.mrb[0].mxu0
  %v684 = vpop.f32.mrb[0].mxu0
  %v685 = vadd.f32 %v558, %v684
  %v686 = vpop.f32.mrb[0].mxu0
  %687 = vmatprep.mubr.bf16.mxu0 0
  %688 = vmatmul.mubr.bf16.gmra.mrb[0].mxu0 %v602
  %v689 = vpop.f32.mrb[0].mxu0
  %v690 = vadd.f32 %v563, %v689
  %v691 = vpop.f32.mrb[0].mxu0
  %v692 = vpop.f32.mrb[0].mxu0
  %v693 = vadd.f32 %v566, %v692
  %v694 = vpop.f32.mrb[0].mxu0
  %695 = vmatprep.mubr.bf16.mxu0 0
  %696 = vmatmul.mubr.bf16.gmra.mrb[0].mxu0 %v605
  %v697 = vpop.f32.mrb[0].mxu0
  %v698 = vadd.f32 %v571, %v697
  %v699 = vpop.f32.mrb[0].mxu0
  %v700 = vpop.f32.mrb[0].mxu0
  %v701 = vadd.f32 %v574, %v700
  %v702 = vpop.f32.mrb[0].mxu0
  %703 = vdwg.mxu0
  %s704 = scalar_lea.vmem %s1, 128
  %v705 = vld [vmem:[%s704] sm:$0xf]
  %v706 = vld [vmem:[%s704 + $0x4] sm:$0xf]
  %v707 = vld [vmem:[%s704 + $0x8] sm:$0xf]
  %v708 = vld [vmem:[%s704 + $0xc] sm:$0xf]
  %v709 = vld [vmem:[%s704 + $0x10] sm:$0xf]
  %v710 = vld [vmem:[%s704 + $0x14] sm:$0xf]
  %v711 = vld [vmem:[%s704 + $0x18] sm:$0xf]
  %v712 = vld [vmem:[%s704 + $0x1c] sm:$0xf]
  %v713 = vld [vmem:[%s704 + $0x20] sm:$0xf]
  %v714 = vld [vmem:[%s704 + $0x24] sm:$0xf]
  %v715 = vld [vmem:[%s704 + $0x28] sm:$0xf]
  %v716 = vld [vmem:[%s704 + $0x2c] sm:$0xf]
  %v717 = vld [vmem:[%s704 + $0x30] sm:$0xf]
  %v718 = vld [vmem:[%s704 + $0x34] sm:$0xf]
  %v719 = vld [vmem:[%s704 + $0x38] sm:$0xf]
  %v720 = vld [vmem:[%s704 + $0x3c] sm:$0xf]
  %v737 = vunpack.c.l.b16 %v705
  %v738 = vunpack.c.l.b16 %v706
  %v739 = vunpack.c.l.b16 %v707
  %v740 = vunpack.c.l.b16 %v708
  %v741 = vunpack.c.l.b16 %v709
  %v742 = vunpack.c.l.b16 %v710
  %v743 = vunpack.c.l.b16 %v711
  %v744 = vunpack.c.l.b16 %v712
  %v745 = vunpack.c.l.b16 %v713
  %v746 = vunpack.c.l.b16 %v714
  %v747 = vunpack.c.l.b16 %v715
  %v748 = vunpack.c.l.b16 %v716
  %v749 = vunpack.c.l.b16 %v717
  %v750 = vunpack.c.l.b16 %v718
  %v751 = vunpack.c.l.b16 %v719
  %v752 = vunpack.c.l.b16 %v720
  %v753 = vpack.c.b16 %v738, %v737
  %v754 = vpack.c.b16 %v740, %v739
  %v755 = vpack.c.b16 %v742, %v741
  %v756 = vpack.c.b16 %v744, %v743
  %v757 = vpack.c.b16 %v746, %v745
  %v758 = vpack.c.b16 %v748, %v747
  %v759 = vpack.c.b16 %v750, %v749
  %v760 = vpack.c.b16 %v752, %v751
  %769 = vmatprep.subr.bf16.mxu0 0
  %770 = vmatpush1.bf16.msra.mxu0 %v153
  %771 = vmatprep.subr.bf16.mxu0 0
  %772 = vmatpush1.bf16.msra.mxu0 %v154
  %773 = vmatprep.subr.bf16.mxu0 0
  %774 = vmatpush1.bf16.msra.mxu0 %v155
  %775 = vmatprep.subr.bf16.mxu0 0
  %776 = vmatpush1.bf16.msra.mxu0 %v156
  %777 = vmatprep.subr.bf16.mxu0 0
  %778 = vmatpush1.bf16.msra.mxu0 %v157
  %779 = vmatprep.subr.bf16.mxu0 0
  %780 = vmatpush1.bf16.msra.mxu0 %v158
  %781 = vmatprep.subr.bf16.mxu0 0
  %782 = vmatpush1.bf16.msra.mxu0 %v159
  %783 = vmatprep.subr.bf16.mxu0 0
  %784 = vmatpush1.bf16.msra.mxu0 %v160
  %785 = vmatprep.subr.bf16.mxu0 0
  %786 = vmatpush1.bf16.msra.mxu0 0
  %787 = vmatprep.subr.bf16.mxu0 0
  %788 = vmatpush1.bf16.msra.mxu0 0
  %789 = vmatprep.subr.bf16.mxu0 0
  %790 = vmatpush1.bf16.msra.mxu0 0
  %791 = vmatprep.subr.bf16.mxu0 0
  %792 = vmatpush1.bf16.msra.mxu0 0
  %793 = vmatprep.subr.bf16.mxu0 0
  %794 = vmatpush1.bf16.msra.mxu0 0
  %795 = vmatprep.subr.bf16.mxu0 0
  %796 = vmatpush1.bf16.msra.mxu0 0
  %797 = vmatprep.subr.bf16.mxu0 0
  %798 = vmatpush1.bf16.msra.mxu0 0
  %799 = vmatprep.subr.bf16.mxu0 0
  %800 = vmatpush1.bf16.msra.mxu0 0
  %801 = vmatprep.mubr.bf16.mxu0 0
  %802 = vmatmul.mubr.bf16.gmra.mrb[0].mxu0 %v753
  %v803 = vpop.f32.mrb[0].mxu0
  %v804 = vadd.f32 0.0, %v803
  %v805 = vpop.f32.mrb[0].mxu0
  %v806 = vpop.f32.mrb[0].mxu0
  %v807 = vadd.f32 0.0, %v806
  %v808 = vpop.f32.mrb[0].mxu0
  %809 = vmatprep.mubr.bf16.mxu0 0
  %810 = vmatmul.mubr.bf16.gmra.mrb[0].mxu0 %v754
  %v811 = vpop.f32.mrb[0].mxu0
  %v812 = vadd.f32 0.0, %v811
  %v813 = vpop.f32.mrb[0].mxu0
  %v814 = vpop.f32.mrb[0].mxu0
  %v815 = vadd.f32 0.0, %v814
  %v816 = vpop.f32.mrb[0].mxu0
  %817 = vmatprep.mubr.bf16.mxu0 0
  %818 = vmatmul.mubr.bf16.gmra.mrb[0].mxu0 %v755
  %v819 = vpop.f32.mrb[0].mxu0
  %v820 = vadd.f32 0.0, %v819
  %v821 = vpop.f32.mrb[0].mxu0
  %v822 = vpop.f32.mrb[0].mxu0
  %v823 = vadd.f32 0.0, %v822
  %v824 = vpop.f32.mrb[0].mxu0
  %825 = vmatprep.mubr.bf16.mxu0 0
  %826 = vmatmul.mubr.bf16.gmra.mrb[0].mxu0 %v756
  %v827 = vpop.f32.mrb[0].mxu0
  %v828 = vadd.f32 0.0, %v827
  %v829 = vpop.f32.mrb[0].mxu0
  %v830 = vpop.f32.mrb[0].mxu0
  %v831 = vadd.f32 0.0, %v830
  %v832 = vpop.f32.mrb[0].mxu0
  %833 = vmatprep.mubr.bf16.mxu0 0
  %834 = vmatmul.mubr.bf16.gmra.mrb[0].mxu0 %v757
  %v835 = vpop.f32.mrb[0].mxu0
  %v836 = vadd.f32 0.0, %v835
  %v837 = vpop.f32.mrb[0].mxu0
  %v838 = vpop.f32.mrb[0].mxu0
  %v839 = vadd.f32 0.0, %v838
  %v840 = vpop.f32.mrb[0].mxu0
  %841 = vmatprep.mubr.bf16.mxu0 0
  %842 = vmatmul.mubr.bf16.gmra.mrb[0].mxu0 %v758
  %v843 = vpop.f32.mrb[0].mxu0
  %v844 = vadd.f32 0.0, %v843
  %v845 = vpop.f32.mrb[0].mxu0
  %v846 = vpop.f32.mrb[0].mxu0
  %v847 = vadd.f32 0.0, %v846
  %v848 = vpop.f32.mrb[0].mxu0
  %849 = vmatprep.mubr.bf16.mxu0 0
  %850 = vmatmul.mubr.bf16.gmra.mrb[0].mxu0 %v759
  %v851 = vpop.f32.mrb[0].mxu0
  %v852 = vadd.f32 0.0, %v851
  %v853 = vpop.f32.mrb[0].mxu0
  %v854 = vpop.f32.mrb[0].mxu0
  %v855 = vadd.f32 0.0, %v854
  %v856 = vpop.f32.mrb[0].mxu0
  %857 = vmatprep.mubr.bf16.mxu0 0
  %858 = vmatmul.mubr.bf16.gmra.mrb[0].mxu0 %v760
  %v859 = vpop.f32.mrb[0].mxu0
  %v860 = vadd.f32 0.0, %v859
  %v861 = vpop.f32.mrb[0].mxu0
  %v862 = vpop.f32.mrb[0].mxu0
  %v863 = vadd.f32 0.0, %v862
  %v864 = vpop.f32.mrb[0].mxu0
  %865 = vdwg.mxu0
  %v866 = vpack.c.bf16 %v807, %v804
  %v867 = vpack.c.bf16 %v815, %v812
  %v868 = vpack.c.bf16 %v823, %v820
  %v869 = vpack.c.bf16 %v831, %v828
  %v870 = vpack.c.bf16 %v839, %v836
  %v871 = vpack.c.bf16 %v847, %v844
  %v872 = vpack.c.bf16 %v855, %v852
  %v873 = vpack.c.bf16 %v863, %v860
  %s874 = scalar_lea.vmem %s2, 16
  %v875 = vld [vmem:[%s874] sm:$0xf]
  %v876 = vld [vmem:[%s874 + $0x4] sm:$0xf]
  %v879 = vunpack.c.l.b16 %v875
  %v880 = vunpack.c.l.b16 %v876
  %v881 = vpack.c.b16 %v880, %v879
  %v884 = vsel %vm455, %v866, 0
  %v887 = vsel %vm455, %v867, 0
  %v890 = vsel %vm455, %v868, 0
  %v893 = vsel %vm455, %v869, 0
  %v896 = vsel %vm455, %v870, 0
  %v899 = vsel %vm455, %v871, 0
  %v902 = vsel %vm455, %v872, 0
  %v905 = vsel %vm455, %v873, 0
  %907 = vmatprep.subr.bf16.mxu0 0
  %908 = vmatpush1.bf16.msra.mxu0 %v881
  %909 = vmatprep.subr.bf16.mxu0 0
  %910 = vmatpush1.bf16.msra.mxu0 0
  %911 = vmatprep.subr.bf16.mxu0 0
  %912 = vmatpush1.bf16.msra.mxu0 0
  %913 = vmatprep.subr.bf16.mxu0 0
  %914 = vmatpush1.bf16.msra.mxu0 0
  %915 = vmatprep.subr.bf16.mxu0 0
  %916 = vmatpush1.bf16.msra.mxu0 0
  %917 = vmatprep.subr.bf16.mxu0 0
  %918 = vmatpush1.bf16.msra.mxu0 0
  %919 = vmatprep.subr.bf16.mxu0 0
  %920 = vmatpush1.bf16.msra.mxu0 0
  %921 = vmatprep.subr.bf16.mxu0 0
  %922 = vmatpush1.bf16.msra.mxu0 0
  %923 = vmatprep.subr.bf16.mxu0 0
  %924 = vmatpush1.bf16.msra.mxu0 0
  %925 = vmatprep.subr.bf16.mxu0 0
  %926 = vmatpush1.bf16.msra.mxu0 0
  %927 = vmatprep.subr.bf16.mxu0 0
  %928 = vmatpush1.bf16.msra.mxu0 0
  %929 = vmatprep.subr.bf16.mxu0 0
  %930 = vmatpush1.bf16.msra.mxu0 0
  %931 = vmatprep.subr.bf16.mxu0 0
  %932 = vmatpush1.bf16.msra.mxu0 0
  %933 = vmatprep.subr.bf16.mxu0 0
  %934 = vmatpush1.bf16.msra.mxu0 0
  %935 = vmatprep.subr.bf16.mxu0 0
  %936 = vmatpush1.bf16.msra.mxu0 0
  %937 = vmatprep.subr.bf16.mxu0 0
  %938 = vmatpush1.bf16.msra.mxu0 0
  %939 = vmatprep.mubr.bf16.mxu0 0
  %940 = vmatmul.mubr.bf16.gmra.mrb[0].mxu0 %v884
  %v941 = vpop.f32.mrb[0].mxu0
  %v942 = vadd.f32 0.0, %v941
  %v943 = vpop.f32.mrb[0].mxu0
  %v944 = vpop.f32.mrb[0].mxu0
  %v945 = vadd.f32 0.0, %v944
  %v946 = vpop.f32.mrb[0].mxu0
  %947 = vmatprep.mubr.bf16.mxu0 0
  %948 = vmatmul.mubr.bf16.gmra.mrb[0].mxu0 %v887
  %v949 = vpop.f32.mrb[0].mxu0
  %v950 = vadd.f32 0.0, %v949
  %v951 = vpop.f32.mrb[0].mxu0
  %v952 = vpop.f32.mrb[0].mxu0
  %v953 = vadd.f32 0.0, %v952
  %v954 = vpop.f32.mrb[0].mxu0
  %955 = vmatprep.mubr.bf16.mxu0 0
  %956 = vmatmul.mubr.bf16.gmra.mrb[0].mxu0 %v890
  %v957 = vpop.f32.mrb[0].mxu0
  %v958 = vadd.f32 0.0, %v957
  %v959 = vpop.f32.mrb[0].mxu0
  %v960 = vpop.f32.mrb[0].mxu0
  %v961 = vadd.f32 0.0, %v960
  %v962 = vpop.f32.mrb[0].mxu0
  %963 = vmatprep.mubr.bf16.mxu0 0
  %964 = vmatmul.mubr.bf16.gmra.mrb[0].mxu0 %v893
  %v965 = vpop.f32.mrb[0].mxu0
  %v966 = vadd.f32 0.0, %v965
  %v967 = vpop.f32.mrb[0].mxu0
  %v968 = vpop.f32.mrb[0].mxu0
  %v969 = vadd.f32 0.0, %v968
  %v970 = vpop.f32.mrb[0].mxu0
  %971 = vmatprep.mubr.bf16.mxu0 0
  %972 = vmatmul.mubr.bf16.gmra.mrb[0].mxu0 %v896
  %v973 = vpop.f32.mrb[0].mxu0
  %v974 = vadd.f32 0.0, %v973
  %v975 = vpop.f32.mrb[0].mxu0
  %v976 = vpop.f32.mrb[0].mxu0
  %v977 = vadd.f32 0.0, %v976
  %v978 = vpop.f32.mrb[0].mxu0
  %979 = vmatprep.mubr.bf16.mxu0 0
  %980 = vmatmul.mubr.bf16.gmra.mrb[0].mxu0 %v899
  %v981 = vpop.f32.mrb[0].mxu0
  %v982 = vadd.f32 0.0, %v981
  %v983 = vpop.f32.mrb[0].mxu0
  %v984 = vpop.f32.mrb[0].mxu0
  %v985 = vadd.f32 0.0, %v984
  %v986 = vpop.f32.mrb[0].mxu0
  %987 = vmatprep.mubr.bf16.mxu0 0
  %988 = vmatmul.mubr.bf16.gmra.mrb[0].mxu0 %v902
  %v989 = vpop.f32.mrb[0].mxu0
  %v990 = vadd.f32 0.0, %v989
  %v991 = vpop.f32.mrb[0].mxu0
  %v992 = vpop.f32.mrb[0].mxu0
  %v993 = vadd.f32 0.0, %v992
  %v994 = vpop.f32.mrb[0].mxu0
  %995 = vmatprep.mubr.bf16.mxu0 0
  %996 = vmatmul.mubr.bf16.gmra.mrb[0].mxu0 %v905
  %v997 = vpop.f32.mrb[0].mxu0
  %v998 = vadd.f32 0.0, %v997
  %v999 = vpop.f32.mrb[0].mxu0
  %v1000 = vpop.f32.mrb[0].mxu0
  %v1001 = vadd.f32 0.0, %v1000
  %v1002 = vpop.f32.mrb[0].mxu0
  %1003 = vdwg.mxu0
  %v1004 = vadd.f32 %v642, %v942
  %v1005 = vadd.f32 %v645, %v945
  %v1006 = vadd.f32 %v650, %v950
  %v1007 = vadd.f32 %v653, %v953
  %v1008 = vadd.f32 %v658, %v958
  %v1009 = vadd.f32 %v661, %v961
  %v1010 = vadd.f32 %v666, %v966
  %v1011 = vadd.f32 %v669, %v969
  %v1012 = vadd.f32 %v674, %v974
  %v1013 = vadd.f32 %v677, %v977
  %v1014 = vadd.f32 %v682, %v982
  %v1015 = vadd.f32 %v685, %v985
  %v1016 = vadd.f32 %v690, %v990
  %v1017 = vadd.f32 %v693, %v993
  %v1018 = vadd.f32 %v698, %v998
  %v1019 = vadd.f32 %v701, %v1001
  %s1020 = scalar_lea.vmem %s1, 192
  %v1021 = vld [vmem:[%s1020] sm:$0xf]
  %v1022 = vld [vmem:[%s1020 + $0x4] sm:$0xf]
  %v1023 = vld [vmem:[%s1020 + $0x8] sm:$0xf]
  %v1024 = vld [vmem:[%s1020 + $0xc] sm:$0xf]
  %v1025 = vld [vmem:[%s1020 + $0x10] sm:$0xf]
  %v1026 = vld [vmem:[%s1020 + $0x14] sm:$0xf]
  %v1027 = vld [vmem:[%s1020 + $0x18] sm:$0xf]
  %v1028 = vld [vmem:[%s1020 + $0x1c] sm:$0xf]
  %v1029 = vld [vmem:[%s1020 + $0x20] sm:$0xf]
  %v1030 = vld [vmem:[%s1020 + $0x24] sm:$0xf]
  %v1031 = vld [vmem:[%s1020 + $0x28] sm:$0xf]
  %v1032 = vld [vmem:[%s1020 + $0x2c] sm:$0xf]
  %v1033 = vld [vmem:[%s1020 + $0x30] sm:$0xf]
  %v1034 = vld [vmem:[%s1020 + $0x34] sm:$0xf]
  %v1035 = vld [vmem:[%s1020 + $0x38] sm:$0xf]
  %v1036 = vld [vmem:[%s1020 + $0x3c] sm:$0xf]
  %v1053 = vunpack.c.l.b16 %v1021
  %v1054 = vunpack.c.l.b16 %v1022
  %v1055 = vunpack.c.l.b16 %v1023
  %v1056 = vunpack.c.l.b16 %v1024
  %v1057 = vunpack.c.l.b16 %v1025
  %v1058 = vunpack.c.l.b16 %v1026
  %v1059 = vunpack.c.l.b16 %v1027
  %v1060 = vunpack.c.l.b16 %v1028
  %v1061 = vunpack.c.l.b16 %v1029
  %v1062 = vunpack.c.l.b16 %v1030
  %v1063 = vunpack.c.l.b16 %v1031
  %v1064 = vunpack.c.l.b16 %v1032
  %v1065 = vunpack.c.l.b16 %v1033
  %v1066 = vunpack.c.l.b16 %v1034
  %v1067 = vunpack.c.l.b16 %v1035
  %v1068 = vunpack.c.l.b16 %v1036
  %v1069 = vpack.c.b16 %v1054, %v1053
  %v1070 = vpack.c.b16 %v1056, %v1055
  %v1071 = vpack.c.b16 %v1058, %v1057
  %v1072 = vpack.c.b16 %v1060, %v1059
  %v1073 = vpack.c.b16 %v1062, %v1061
  %v1074 = vpack.c.b16 %v1064, %v1063
  %v1075 = vpack.c.b16 %v1066, %v1065
  %v1076 = vpack.c.b16 %v1068, %v1067
  %1085 = vmatprep.subr.bf16.mxu0 0
  %1086 = vmatpush1.bf16.msra.mxu0 %v153
  %1087 = vmatprep.subr.bf16.mxu0 0
  %1088 = vmatpush1.bf16.msra.mxu0 %v154
  %1089 = vmatprep.subr.bf16.mxu0 0
  %1090 = vmatpush1.bf16.msra.mxu0 %v155
  %1091 = vmatprep.subr.bf16.mxu0 0
  %1092 = vmatpush1.bf16.msra.mxu0 %v156
  %1093 = vmatprep.subr.bf16.mxu0 0
  %1094 = vmatpush1.bf16.msra.mxu0 %v157
  %1095 = vmatprep.subr.bf16.mxu0 0
  %1096 = vmatpush1.bf16.msra.mxu0 %v158
  %1097 = vmatprep.subr.bf16.mxu0 0
  %1098 = vmatpush1.bf16.msra.mxu0 %v159
  %1099 = vmatprep.subr.bf16.mxu0 0
  %1100 = vmatpush1.bf16.msra.mxu0 %v160
  %1101 = vmatprep.subr.bf16.mxu0 0
  %1102 = vmatpush1.bf16.msra.mxu0 0
  %1103 = vmatprep.subr.bf16.mxu0 0
  %1104 = vmatpush1.bf16.msra.mxu0 0
  %1105 = vmatprep.subr.bf16.mxu0 0
  %1106 = vmatpush1.bf16.msra.mxu0 0
  %1107 = vmatprep.subr.bf16.mxu0 0
  %1108 = vmatpush1.bf16.msra.mxu0 0
  %1109 = vmatprep.subr.bf16.mxu0 0
  %1110 = vmatpush1.bf16.msra.mxu0 0
  %1111 = vmatprep.subr.bf16.mxu0 0
  %1112 = vmatpush1.bf16.msra.mxu0 0
  %1113 = vmatprep.subr.bf16.mxu0 0
  %1114 = vmatpush1.bf16.msra.mxu0 0
  %1115 = vmatprep.subr.bf16.mxu0 0
  %1116 = vmatpush1.bf16.msra.mxu0 0
  %1117 = vmatprep.mubr.bf16.mxu0 0
  %1118 = vmatmul.mubr.bf16.gmra.mrb[0].mxu0 %v1069
  %v1119 = vpop.f32.mrb[0].mxu0
  %v1120 = vadd.f32 0.0, %v1119
  %v1121 = vpop.f32.mrb[0].mxu0
  %v1122 = vpop.f32.mrb[0].mxu0
  %v1123 = vadd.f32 0.0, %v1122
  %v1124 = vpop.f32.mrb[0].mxu0
  %1125 = vmatprep.mubr.bf16.mxu0 0
  %1126 = vmatmul.mubr.bf16.gmra.mrb[0].mxu0 %v1070
  %v1127 = vpop.f32.mrb[0].mxu0
  %v1128 = vadd.f32 0.0, %v1127
  %v1129 = vpop.f32.mrb[0].mxu0
  %v1130 = vpop.f32.mrb[0].mxu0
  %v1131 = vadd.f32 0.0, %v1130
  %v1132 = vpop.f32.mrb[0].mxu0
  %1133 = vmatprep.mubr.bf16.mxu0 0
  %1134 = vmatmul.mubr.bf16.gmra.mrb[0].mxu0 %v1071
  %v1135 = vpop.f32.mrb[0].mxu0
  %v1136 = vadd.f32 0.0, %v1135
  %v1137 = vpop.f32.mrb[0].mxu0
  %v1138 = vpop.f32.mrb[0].mxu0
  %v1139 = vadd.f32 0.0, %v1138
  %v1140 = vpop.f32.mrb[0].mxu0
  %1141 = vmatprep.mubr.bf16.mxu0 0
  %1142 = vmatmul.mubr.bf16.gmra.mrb[0].mxu0 %v1072
  %v1143 = vpop.f32.mrb[0].mxu0
  %v1144 = vadd.f32 0.0, %v1143
  %v1145 = vpop.f32.mrb[0].mxu0
  %v1146 = vpop.f32.mrb[0].mxu0
  %v1147 = vadd.f32 0.0, %v1146
  %v1148 = vpop.f32.mrb[0].mxu0
  %1149 = vmatprep.mubr.bf16.mxu0 0
  %1150 = vmatmul.mubr.bf16.gmra.mrb[0].mxu0 %v1073
  %v1151 = vpop.f32.mrb[0].mxu0
  %v1152 = vadd.f32 0.0, %v1151
  %v1153 = vpop.f32.mrb[0].mxu0
  %v1154 = vpop.f32.mrb[0].mxu0
  %v1155 = vadd.f32 0.0, %v1154
  %v1156 = vpop.f32.mrb[0].mxu0
  %1157 = vmatprep.mubr.bf16.mxu0 0
  %1158 = vmatmul.mubr.bf16.gmra.mrb[0].mxu0 %v1074
  %v1159 = vpop.f32.mrb[0].mxu0
  %v1160 = vadd.f32 0.0, %v1159
  %v1161 = vpop.f32.mrb[0].mxu0
  %v1162 = vpop.f32.mrb[0].mxu0
  %v1163 = vadd.f32 0.0, %v1162
  %v1164 = vpop.f32.mrb[0].mxu0
  %1165 = vmatprep.mubr.bf16.mxu0 0
  %1166 = vmatmul.mubr.bf16.gmra.mrb[0].mxu0 %v1075
  %v1167 = vpop.f32.mrb[0].mxu0
  %v1168 = vadd.f32 0.0, %v1167
  %v1169 = vpop.f32.mrb[0].mxu0
  %v1170 = vpop.f32.mrb[0].mxu0
  %v1171 = vadd.f32 0.0, %v1170
  %v1172 = vpop.f32.mrb[0].mxu0
  %1173 = vmatprep.mubr.bf16.mxu0 0
  %1174 = vmatmul.mubr.bf16.gmra.mrb[0].mxu0 %v1076
  %v1175 = vpop.f32.mrb[0].mxu0
  %v1176 = vadd.f32 0.0, %v1175
  %v1177 = vpop.f32.mrb[0].mxu0
  %v1178 = vpop.f32.mrb[0].mxu0
  %v1179 = vadd.f32 0.0, %v1178
  %v1180 = vpop.f32.mrb[0].mxu0
  %1181 = vdwg.mxu0
  %v1182 = vpack.c.bf16 %v1123, %v1120
  %v1183 = vpack.c.bf16 %v1131, %v1128
  %v1184 = vpack.c.bf16 %v1139, %v1136
  %v1185 = vpack.c.bf16 %v1147, %v1144
  %v1186 = vpack.c.bf16 %v1155, %v1152
  %v1187 = vpack.c.bf16 %v1163, %v1160
  %v1188 = vpack.c.bf16 %v1171, %v1168
  %v1189 = vpack.c.bf16 %v1179, %v1176
  %s1190 = scalar_lea.vmem %s2, 24
  %v1191 = vld [vmem:[%s1190] sm:$0xf]
  %v1192 = vld [vmem:[%s1190 + $0x4] sm:$0xf]
  %v1195 = vunpack.c.l.b16 %v1191
  %v1196 = vunpack.c.l.b16 %v1192
  %v1197 = vpack.c.b16 %v1196, %v1195
  %v1200 = vsel %vm455, %v1182, 0
  %v1203 = vsel %vm455, %v1183, 0
  %v1206 = vsel %vm455, %v1184, 0
  %v1209 = vsel %vm455, %v1185, 0
  %v1212 = vsel %vm455, %v1186, 0
  %v1215 = vsel %vm455, %v1187, 0
  %v1218 = vsel %vm455, %v1188, 0
  %v1221 = vsel %vm455, %v1189, 0
  %1223 = vmatprep.subr.bf16.mxu0 0
  %1224 = vmatpush1.bf16.msra.mxu0 %v1197
  %1225 = vmatprep.subr.bf16.mxu0 0
  %1226 = vmatpush1.bf16.msra.mxu0 0
  %1227 = vmatprep.subr.bf16.mxu0 0
  %1228 = vmatpush1.bf16.msra.mxu0 0
  %1229 = vmatprep.subr.bf16.mxu0 0
  %1230 = vmatpush1.bf16.msra.mxu0 0
  %1231 = vmatprep.subr.bf16.mxu0 0
  %1232 = vmatpush1.bf16.msra.mxu0 0
  %1233 = vmatprep.subr.bf16.mxu0 0
  %1234 = vmatpush1.bf16.msra.mxu0 0
  %1235 = vmatprep.subr.bf16.mxu0 0
  %1236 = vmatpush1.bf16.msra.mxu0 0
  %1237 = vmatprep.subr.bf16.mxu0 0
  %1238 = vmatpush1.bf16.msra.mxu0 0
  %1239 = vmatprep.subr.bf16.mxu0 0
  %1240 = vmatpush1.bf16.msra.mxu0 0
  %1241 = vmatprep.subr.bf16.mxu0 0
  %1242 = vmatpush1.bf16.msra.mxu0 0
  %1243 = vmatprep.subr.bf16.mxu0 0
  %1244 = vmatpush1.bf16.msra.mxu0 0
  %1245 = vmatprep.subr.bf16.mxu0 0
  %1246 = vmatpush1.bf16.msra.mxu0 0
  %1247 = vmatprep.subr.bf16.mxu0 0
  %1248 = vmatpush1.bf16.msra.mxu0 0
  %1249 = vmatprep.subr.bf16.mxu0 0
  %1250 = vmatpush1.bf16.msra.mxu0 0
  %1251 = vmatprep.subr.bf16.mxu0 0
  %1252 = vmatpush1.bf16.msra.mxu0 0
  %1253 = vmatprep.subr.bf16.mxu0 0
  %1254 = vmatpush1.bf16.msra.mxu0 0
  %1255 = vmatprep.mubr.bf16.mxu0 0
  %1256 = vmatmul.mubr.bf16.gmra.mrb[0].mxu0 %v1200
  %v1257 = vpop.f32.mrb[0].mxu0
  %v1258 = vadd.f32 0.0, %v1257
  %v1259 = vpop.f32.mrb[0].mxu0
  %v1260 = vpop.f32.mrb[0].mxu0
  %v1261 = vadd.f32 0.0, %v1260
  %v1262 = vpop.f32.mrb[0].mxu0
  %1263 = vmatprep.mubr.bf16.mxu0 0
  %1264 = vmatmul.mubr.bf16.gmra.mrb[0].mxu0 %v1203
  %v1265 = vpop.f32.mrb[0].mxu0
  %v1266 = vadd.f32 0.0, %v1265
  %v1267 = vpop.f32.mrb[0].mxu0
  %v1268 = vpop.f32.mrb[0].mxu0
  %v1269 = vadd.f32 0.0, %v1268
  %v1270 = vpop.f32.mrb[0].mxu0
  %1271 = vmatprep.mubr.bf16.mxu0 0
  %1272 = vmatmul.mubr.bf16.gmra.mrb[0].mxu0 %v1206
  %v1273 = vpop.f32.mrb[0].mxu0
  %v1274 = vadd.f32 0.0, %v1273
  %v1275 = vpop.f32.mrb[0].mxu0
  %v1276 = vpop.f32.mrb[0].mxu0
  %v1277 = vadd.f32 0.0, %v1276
  %v1278 = vpop.f32.mrb[0].mxu0
  %1279 = vmatprep.mubr.bf16.mxu0 0
  %1280 = vmatmul.mubr.bf16.gmra.mrb[0].mxu0 %v1209
  %v1281 = vpop.f32.mrb[0].mxu0
  %v1282 = vadd.f32 0.0, %v1281
  %v1283 = vpop.f32.mrb[0].mxu0
  %v1284 = vpop.f32.mrb[0].mxu0
  %v1285 = vadd.f32 0.0, %v1284
  %v1286 = vpop.f32.mrb[0].mxu0
  %1287 = vmatprep.mubr.bf16.mxu0 0
  %1288 = vmatmul.mubr.bf16.gmra.mrb[0].mxu0 %v1212
  %v1289 = vpop.f32.mrb[0].mxu0
  %v1290 = vadd.f32 0.0, %v1289
  %v1291 = vpop.f32.mrb[0].mxu0
  %v1292 = vpop.f32.mrb[0].mxu0
  %v1293 = vadd.f32 0.0, %v1292
  %v1294 = vpop.f32.mrb[0].mxu0
  %1295 = vmatprep.mubr.bf16.mxu0 0
  %1296 = vmatmul.mubr.bf16.gmra.mrb[0].mxu0 %v1215
  %v1297 = vpop.f32.mrb[0].mxu0
  %v1298 = vadd.f32 0.0, %v1297
  %v1299 = vpop.f32.mrb[0].mxu0
  %v1300 = vpop.f32.mrb[0].mxu0
  %v1301 = vadd.f32 0.0, %v1300
  %v1302 = vpop.f32.mrb[0].mxu0
  %1303 = vmatprep.mubr.bf16.mxu0 0
  %1304 = vmatmul.mubr.bf16.gmra.mrb[0].mxu0 %v1218
  %v1305 = vpop.f32.mrb[0].mxu0
  %v1306 = vadd.f32 0.0, %v1305
  %v1307 = vpop.f32.mrb[0].mxu0
  %v1308 = vpop.f32.mrb[0].mxu0
  %v1309 = vadd.f32 0.0, %v1308
  %v1310 = vpop.f32.mrb[0].mxu0
  %1311 = vmatprep.mubr.bf16.mxu0 0
  %1312 = vmatmul.mubr.bf16.gmra.mrb[0].mxu0 %v1221
  %v1313 = vpop.f32.mrb[0].mxu0
  %v1314 = vadd.f32 0.0, %v1313
  %v1315 = vpop.f32.mrb[0].mxu0
  %v1316 = vpop.f32.mrb[0].mxu0
  %v1317 = vadd.f32 0.0, %v1316
  %v1318 = vpop.f32.mrb[0].mxu0
  %1319 = vdwg.mxu0
  %v1320 = vadd.f32 %v1004, %v1258
  %v1321 = vadd.f32 %v1005, %v1261
  %v1322 = vadd.f32 %v1006, %v1266
  %v1323 = vadd.f32 %v1007, %v1269
  %v1324 = vadd.f32 %v1008, %v1274
  %v1325 = vadd.f32 %v1009, %v1277
  %v1326 = vadd.f32 %v1010, %v1282
  %v1327 = vadd.f32 %v1011, %v1285
  %v1328 = vadd.f32 %v1012, %v1290
  %v1329 = vadd.f32 %v1013, %v1293
  %v1330 = vadd.f32 %v1014, %v1298
  %v1331 = vadd.f32 %v1015, %v1301
  %v1332 = vadd.f32 %v1016, %v1306
  %v1333 = vadd.f32 %v1017, %v1309
  %v1334 = vadd.f32 %v1018, %v1314
  %v1335 = vadd.f32 %v1019, %v1317
  %s1336 = scalar_lea.vmem %s1, 256
  %v1337 = vld [vmem:[%s1336] sm:$0xf]
  %v1338 = vld [vmem:[%s1336 + $0x4] sm:$0xf]
  %v1339 = vld [vmem:[%s1336 + $0x8] sm:$0xf]
  %v1340 = vld [vmem:[%s1336 + $0xc] sm:$0xf]
  %v1341 = vld [vmem:[%s1336 + $0x10] sm:$0xf]
  %v1342 = vld [vmem:[%s1336 + $0x14] sm:$0xf]
  %v1343 = vld [vmem:[%s1336 + $0x18] sm:$0xf]
  %v1344 = vld [vmem:[%s1336 + $0x1c] sm:$0xf]
  %v1345 = vld [vmem:[%s1336 + $0x20] sm:$0xf]
  %v1346 = vld [vmem:[%s1336 + $0x24] sm:$0xf]
  %v1347 = vld [vmem:[%s1336 + $0x28] sm:$0xf]
  %v1348 = vld [vmem:[%s1336 + $0x2c] sm:$0xf]
  %v1349 = vld [vmem:[%s1336 + $0x30] sm:$0xf]
  %v1350 = vld [vmem:[%s1336 + $0x34] sm:$0xf]
  %v1351 = vld [vmem:[%s1336 + $0x38] sm:$0xf]
  %v1352 = vld [vmem:[%s1336 + $0x3c] sm:$0xf]
  %v1369 = vunpack.c.l.b16 %v1337
  %v1370 = vunpack.c.l.b16 %v1338
  %v1371 = vunpack.c.l.b16 %v1339
  %v1372 = vunpack.c.l.b16 %v1340
  %v1373 = vunpack.c.l.b16 %v1341
  %v1374 = vunpack.c.l.b16 %v1342
  %v1375 = vunpack.c.l.b16 %v1343
  %v1376 = vunpack.c.l.b16 %v1344
  %v1377 = vunpack.c.l.b16 %v1345
  %v1378 = vunpack.c.l.b16 %v1346
  %v1379 = vunpack.c.l.b16 %v1347
  %v1380 = vunpack.c.l.b16 %v1348
  %v1381 = vunpack.c.l.b16 %v1349
  %v1382 = vunpack.c.l.b16 %v1350
  %v1383 = vunpack.c.l.b16 %v1351
  %v1384 = vunpack.c.l.b16 %v1352
  %v1385 = vpack.c.b16 %v1370, %v1369
  %v1386 = vpack.c.b16 %v1372, %v1371
  %v1387 = vpack.c.b16 %v1374, %v1373
  %v1388 = vpack.c.b16 %v1376, %v1375
  %v1389 = vpack.c.b16 %v1378, %v1377
  %v1390 = vpack.c.b16 %v1380, %v1379
  %v1391 = vpack.c.b16 %v1382, %v1381
  %v1392 = vpack.c.b16 %v1384, %v1383
  %1401 = vmatprep.subr.bf16.mxu0 0
  %1402 = vmatpush1.bf16.msra.mxu0 %v153
  %1403 = vmatprep.subr.bf16.mxu0 0
  %1404 = vmatpush1.bf16.msra.mxu0 %v154
  %1405 = vmatprep.subr.bf16.mxu0 0
  %1406 = vmatpush1.bf16.msra.mxu0 %v155
  %1407 = vmatprep.subr.bf16.mxu0 0
  %1408 = vmatpush1.bf16.msra.mxu0 %v156
  %1409 = vmatprep.subr.bf16.mxu0 0
  %1410 = vmatpush1.bf16.msra.mxu0 %v157
  %1411 = vmatprep.subr.bf16.mxu0 0
  %1412 = vmatpush1.bf16.msra.mxu0 %v158
  %1413 = vmatprep.subr.bf16.mxu0 0
  %1414 = vmatpush1.bf16.msra.mxu0 %v159
  %1415 = vmatprep.subr.bf16.mxu0 0
  %1416 = vmatpush1.bf16.msra.mxu0 %v160
  %1417 = vmatprep.subr.bf16.mxu0 0
  %1418 = vmatpush1.bf16.msra.mxu0 0
  %1419 = vmatprep.subr.bf16.mxu0 0
  %1420 = vmatpush1.bf16.msra.mxu0 0
  %1421 = vmatprep.subr.bf16.mxu0 0
  %1422 = vmatpush1.bf16.msra.mxu0 0
  %1423 = vmatprep.subr.bf16.mxu0 0
  %1424 = vmatpush1.bf16.msra.mxu0 0
  %1425 = vmatprep.subr.bf16.mxu0 0
  %1426 = vmatpush1.bf16.msra.mxu0 0
  %1427 = vmatprep.subr.bf16.mxu0 0
  %1428 = vmatpush1.bf16.msra.mxu0 0
  %1429 = vmatprep.subr.bf16.mxu0 0
  %1430 = vmatpush1.bf16.msra.mxu0 0
  %1431 = vmatprep.subr.bf16.mxu0 0
  %1432 = vmatpush1.bf16.msra.mxu0 0
  %1433 = vmatprep.mubr.bf16.mxu0 0
  %1434 = vmatmul.mubr.bf16.gmra.mrb[0].mxu0 %v1385
  %v1435 = vpop.f32.mrb[0].mxu0
  %v1436 = vadd.f32 0.0, %v1435
  %v1437 = vpop.f32.mrb[0].mxu0
  %v1438 = vpop.f32.mrb[0].mxu0
  %v1439 = vadd.f32 0.0, %v1438
  %v1440 = vpop.f32.mrb[0].mxu0
  %1441 = vmatprep.mubr.bf16.mxu0 0
  %1442 = vmatmul.mubr.bf16.gmra.mrb[0].mxu0 %v1386
  %v1443 = vpop.f32.mrb[0].mxu0
  %v1444 = vadd.f32 0.0, %v1443
  %v1445 = vpop.f32.mrb[0].mxu0
  %v1446 = vpop.f32.mrb[0].mxu0
  %v1447 = vadd.f32 0.0, %v1446
  %v1448 = vpop.f32.mrb[0].mxu0
  %1449 = vmatprep.mubr.bf16.mxu0 0
  %1450 = vmatmul.mubr.bf16.gmra.mrb[0].mxu0 %v1387
  %v1451 = vpop.f32.mrb[0].mxu0
  %v1452 = vadd.f32 0.0, %v1451
  %v1453 = vpop.f32.mrb[0].mxu0
  %v1454 = vpop.f32.mrb[0].mxu0
  %v1455 = vadd.f32 0.0, %v1454
  %v1456 = vpop.f32.mrb[0].mxu0
  %1457 = vmatprep.mubr.bf16.mxu0 0
  %1458 = vmatmul.mubr.bf16.gmra.mrb[0].mxu0 %v1388
  %v1459 = vpop.f32.mrb[0].mxu0
  %v1460 = vadd.f32 0.0, %v1459
  %v1461 = vpop.f32.mrb[0].mxu0
  %v1462 = vpop.f32.mrb[0].mxu0
  %v1463 = vadd.f32 0.0, %v1462
  %v1464 = vpop.f32.mrb[0].mxu0
  %1465 = vmatprep.mubr.bf16.mxu0 0
  %1466 = vmatmul.mubr.bf16.gmra.mrb[0].mxu0 %v1389
  %v1467 = vpop.f32.mrb[0].mxu0
  %v1468 = vadd.f32 0.0, %v1467
  %v1469 = vpop.f32.mrb[0].mxu0
  %v1470 = vpop.f32.mrb[0].mxu0
  %v1471 = vadd.f32 0.0, %v1470
  %v1472 = vpop.f32.mrb[0].mxu0
  %1473 = vmatprep.mubr.bf16.mxu0 0
  %1474 = vmatmul.mubr.bf16.gmra.mrb[0].mxu0 %v1390
  %v1475 = vpop.f32.mrb[0].mxu0
  %v1476 = vadd.f32 0.0, %v1475
  %v1477 = vpop.f32.mrb[0].mxu0
  %v1478 = vpop.f32.mrb[0].mxu0
  %v1479 = vadd.f32 0.0, %v1478
  %v1480 = vpop.f32.mrb[0].mxu0
  %1481 = vmatprep.mubr.bf16.mxu0 0
  %1482 = vmatmul.mubr.bf16.gmra.mrb[0].mxu0 %v1391
  %v1483 = vpop.f32.mrb[0].mxu0
  %v1484 = vadd.f32 0.0, %v1483
  %v1485 = vpop.f32.mrb[0].mxu0
  %v1486 = vpop.f32.mrb[0].mxu0
  %v1487 = vadd.f32 0.0, %v1486
  %v1488 = vpop.f32.mrb[0].mxu0
  %1489 = vmatprep.mubr.bf16.mxu0 0
  %1490 = vmatmul.mubr.bf16.gmra.mrb[0].mxu0 %v1392
  %v1491 = vpop.f32.mrb[0].mxu0
  %v1492 = vadd.f32 0.0, %v1491
  %v1493 = vpop.f32.mrb[0].mxu0
  %v1494 = vpop.f32.mrb[0].mxu0
  %v1495 = vadd.f32 0.0, %v1494
  %v1496 = vpop.f32.mrb[0].mxu0
  %1497 = vdwg.mxu0
  %v1498 = vpack.c.bf16 %v1439, %v1436
  %v1499 = vpack.c.bf16 %v1447, %v1444
  %v1500 = vpack.c.bf16 %v1455, %v1452
  %v1501 = vpack.c.bf16 %v1463, %v1460
  %v1502 = vpack.c.bf16 %v1471, %v1468
  %v1503 = vpack.c.bf16 %v1479, %v1476
  %v1504 = vpack.c.bf16 %v1487, %v1484
  %v1505 = vpack.c.bf16 %v1495, %v1492
  %s1506 = scalar_lea.vmem %s2, 32
  %v1507 = vld [vmem:[%s1506] sm:$0xf]
  %v1508 = vld [vmem:[%s1506 + $0x4] sm:$0xf]
  %v1511 = vunpack.c.l.b16 %v1507
  %v1512 = vunpack.c.l.b16 %v1508
  %v1513 = vpack.c.b16 %v1512, %v1511
  %v1516 = vsel %vm455, %v1498, 0
  %v1519 = vsel %vm455, %v1499, 0
  %v1522 = vsel %vm455, %v1500, 0
  %v1525 = vsel %vm455, %v1501, 0
  %v1528 = vsel %vm455, %v1502, 0
  %v1531 = vsel %vm455, %v1503, 0
  %v1534 = vsel %vm455, %v1504, 0
  %v1537 = vsel %vm455, %v1505, 0
  %1539 = vmatprep.subr.bf16.mxu0 0
  %1540 = vmatpush1.bf16.msra.mxu0 %v1513
  %1541 = vmatprep.subr.bf16.mxu0 0
  %1542 = vmatpush1.bf16.msra.mxu0 0
  %1543 = vmatprep.subr.bf16.mxu0 0
  %1544 = vmatpush1.bf16.msra.mxu0 0
  %1545 = vmatprep.subr.bf16.mxu0 0
  %1546 = vmatpush1.bf16.msra.mxu0 0
  %1547 = vmatprep.subr.bf16.mxu0 0
  %1548 = vmatpush1.bf16.msra.mxu0 0
  %1549 = vmatprep.subr.bf16.mxu0 0
  %1550 = vmatpush1.bf16.msra.mxu0 0
  %1551 = vmatprep.subr.bf16.mxu0 0
  %1552 = vmatpush1.bf16.msra.mxu0 0
  %1553 = vmatprep.subr.bf16.mxu0 0
  %1554 = vmatpush1.bf16.msra.mxu0 0
  %1555 = vmatprep.subr.bf16.mxu0 0
  %1556 = vmatpush1.bf16.msra.mxu0 0
  %1557 = vmatprep.subr.bf16.mxu0 0
  %1558 = vmatpush1.bf16.msra.mxu0 0
  %1559 = vmatprep.subr.bf16.mxu0 0
  %1560 = vmatpush1.bf16.msra.mxu0 0
  %1561 = vmatprep.subr.bf16.mxu0 0
  %1562 = vmatpush1.bf16.msra.mxu0 0
  %1563 = vmatprep.subr.bf16.mxu0 0
  %1564 = vmatpush1.bf16.msra.mxu0 0
  %1565 = vmatprep.subr.bf16.mxu0 0
  %1566 = vmatpush1.bf16.msra.mxu0 0
  %1567 = vmatprep.subr.bf16.mxu0 0
  %1568 = vmatpush1.bf16.msra.mxu0 0
  %1569 = vmatprep.subr.bf16.mxu0 0
  %1570 = vmatpush1.bf16.msra.mxu0 0
  %1571 = vmatprep.mubr.bf16.mxu0 0
  %1572 = vmatmul.mubr.bf16.gmra.mrb[0].mxu0 %v1516
  %v1573 = vpop.f32.mrb[0].mxu0
  %v1574 = vadd.f32 0.0, %v1573
  %v1575 = vpop.f32.mrb[0].mxu0
  %v1576 = vpop.f32.mrb[0].mxu0
  %v1577 = vadd.f32 0.0, %v1576
  %v1578 = vpop.f32.mrb[0].mxu0
  %1579 = vmatprep.mubr.bf16.mxu0 0
  %1580 = vmatmul.mubr.bf16.gmra.mrb[0].mxu0 %v1519
  %v1581 = vpop.f32.mrb[0].mxu0
  %v1582 = vadd.f32 0.0, %v1581
  %v1583 = vpop.f32.mrb[0].mxu0
  %v1584 = vpop.f32.mrb[0].mxu0
  %v1585 = vadd.f32 0.0, %v1584
  %v1586 = vpop.f32.mrb[0].mxu0
  %1587 = vmatprep.mubr.bf16.mxu0 0
  %1588 = vmatmul.mubr.bf16.gmra.mrb[0].mxu0 %v1522
  %v1589 = vpop.f32.mrb[0].mxu0
  %v1590 = vadd.f32 0.0, %v1589
  %v1591 = vpop.f32.mrb[0].mxu0
  %v1592 = vpop.f32.mrb[0].mxu0
  %v1593 = vadd.f32 0.0, %v1592
  %v1594 = vpop.f32.mrb[0].mxu0
  %1595 = vmatprep.mubr.bf16.mxu0 0
  %1596 = vmatmul.mubr.bf16.gmra.mrb[0].mxu0 %v1525
  %v1597 = vpop.f32.mrb[0].mxu0
  %v1598 = vadd.f32 0.0, %v1597
  %v1599 = vpop.f32.mrb[0].mxu0
  %v1600 = vpop.f32.mrb[0].mxu0
  %v1601 = vadd.f32 0.0, %v1600
  %v1602 = vpop.f32.mrb[0].mxu0
  %1603 = vmatprep.mubr.bf16.mxu0 0
  %1604 = vmatmul.mubr.bf16.gmra.mrb[0].mxu0 %v1528
  %v1605 = vpop.f32.mrb[0].mxu0
  %v1606 = vadd.f32 0.0, %v1605
  %v1607 = vpop.f32.mrb[0].mxu0
  %v1608 = vpop.f32.mrb[0].mxu0
  %v1609 = vadd.f32 0.0, %v1608
  %v1610 = vpop.f32.mrb[0].mxu0
  %1611 = vmatprep.mubr.bf16.mxu0 0
  %1612 = vmatmul.mubr.bf16.gmra.mrb[0].mxu0 %v1531
  %v1613 = vpop.f32.mrb[0].mxu0
  %v1614 = vadd.f32 0.0, %v1613
  %v1615 = vpop.f32.mrb[0].mxu0
  %v1616 = vpop.f32.mrb[0].mxu0
  %v1617 = vadd.f32 0.0, %v1616
  %v1618 = vpop.f32.mrb[0].mxu0
  %1619 = vmatprep.mubr.bf16.mxu0 0
  %1620 = vmatmul.mubr.bf16.gmra.mrb[0].mxu0 %v1534
  %v1621 = vpop.f32.mrb[0].mxu0
  %v1622 = vadd.f32 0.0, %v1621
  %v1623 = vpop.f32.mrb[0].mxu0
  %v1624 = vpop.f32.mrb[0].mxu0
  %v1625 = vadd.f32 0.0, %v1624
  %v1626 = vpop.f32.mrb[0].mxu0
  %1627 = vmatprep.mubr.bf16.mxu0 0
  %1628 = vmatmul.mubr.bf16.gmra.mrb[0].mxu0 %v1537
  %v1629 = vpop.f32.mrb[0].mxu0
  %v1630 = vadd.f32 0.0, %v1629
  %v1631 = vpop.f32.mrb[0].mxu0
  %v1632 = vpop.f32.mrb[0].mxu0
  %v1633 = vadd.f32 0.0, %v1632
  %v1634 = vpop.f32.mrb[0].mxu0
  %1635 = vdwg.mxu0
  %v1636 = vadd.f32 %v1320, %v1574
  %v1637 = vadd.f32 %v1321, %v1577
  %v1638 = vadd.f32 %v1322, %v1582
  %v1639 = vadd.f32 %v1323, %v1585
  %v1640 = vadd.f32 %v1324, %v1590
  %v1641 = vadd.f32 %v1325, %v1593
  %v1642 = vadd.f32 %v1326, %v1598
  %v1643 = vadd.f32 %v1327, %v1601
  %v1644 = vadd.f32 %v1328, %v1606
  %v1645 = vadd.f32 %v1329, %v1609
  %v1646 = vadd.f32 %v1330, %v1614
  %v1647 = vadd.f32 %v1331, %v1617
  %v1648 = vadd.f32 %v1332, %v1622
  %v1649 = vadd.f32 %v1333, %v1625
  %v1650 = vadd.f32 %v1334, %v1630
  %v1651 = vadd.f32 %v1335, %v1633
  %s1652 = scalar_lea.vmem %s1, 320
  %v1653 = vld [vmem:[%s1652] sm:$0xf]
  %v1654 = vld [vmem:[%s1652 + $0x4] sm:$0xf]
  %v1655 = vld [vmem:[%s1652 + $0x8] sm:$0xf]
  %v1656 = vld [vmem:[%s1652 + $0xc] sm:$0xf]
  %v1657 = vld [vmem:[%s1652 + $0x10] sm:$0xf]
  %v1658 = vld [vmem:[%s1652 + $0x14] sm:$0xf]
  %v1659 = vld [vmem:[%s1652 + $0x18] sm:$0xf]
  %v1660 = vld [vmem:[%s1652 + $0x1c] sm:$0xf]
  %v1661 = vld [vmem:[%s1652 + $0x20] sm:$0xf]
  %v1662 = vld [vmem:[%s1652 + $0x24] sm:$0xf]
  %v1663 = vld [vmem:[%s1652 + $0x28] sm:$0xf]
  %v1664 = vld [vmem:[%s1652 + $0x2c] sm:$0xf]
  %v1665 = vld [vmem:[%s1652 + $0x30] sm:$0xf]
  %v1666 = vld [vmem:[%s1652 + $0x34] sm:$0xf]
  %v1667 = vld [vmem:[%s1652 + $0x38] sm:$0xf]
  %v1668 = vld [vmem:[%s1652 + $0x3c] sm:$0xf]
  %v1685 = vunpack.c.l.b16 %v1653
  %v1686 = vunpack.c.l.b16 %v1654
  %v1687 = vunpack.c.l.b16 %v1655
  %v1688 = vunpack.c.l.b16 %v1656
  %v1689 = vunpack.c.l.b16 %v1657
  %v1690 = vunpack.c.l.b16 %v1658
  %v1691 = vunpack.c.l.b16 %v1659
  %v1692 = vunpack.c.l.b16 %v1660
  %v1693 = vunpack.c.l.b16 %v1661
  %v1694 = vunpack.c.l.b16 %v1662
  %v1695 = vunpack.c.l.b16 %v1663
  %v1696 = vunpack.c.l.b16 %v1664
  %v1697 = vunpack.c.l.b16 %v1665
  %v1698 = vunpack.c.l.b16 %v1666
  %v1699 = vunpack.c.l.b16 %v1667
  %v1700 = vunpack.c.l.b16 %v1668
  %v1701 = vpack.c.b16 %v1686, %v1685
  %v1702 = vpack.c.b16 %v1688, %v1687
  %v1703 = vpack.c.b16 %v1690, %v1689
  %v1704 = vpack.c.b16 %v1692, %v1691
  %v1705 = vpack.c.b16 %v1694, %v1693
  %v1706 = vpack.c.b16 %v1696, %v1695
  %v1707 = vpack.c.b16 %v1698, %v1697
  %v1708 = vpack.c.b16 %v1700, %v1699
  %1717 = vmatprep.subr.bf16.mxu0 0
  %1718 = vmatpush1.bf16.msra.mxu0 %v153
  %1719 = vmatprep.subr.bf16.mxu0 0
  %1720 = vmatpush1.bf16.msra.mxu0 %v154
  %1721 = vmatprep.subr.bf16.mxu0 0
  %1722 = vmatpush1.bf16.msra.mxu0 %v155
  %1723 = vmatprep.subr.bf16.mxu0 0
  %1724 = vmatpush1.bf16.msra.mxu0 %v156
  %1725 = vmatprep.subr.bf16.mxu0 0
  %1726 = vmatpush1.bf16.msra.mxu0 %v157
  %1727 = vmatprep.subr.bf16.mxu0 0
  %1728 = vmatpush1.bf16.msra.mxu0 %v158
  %1729 = vmatprep.subr.bf16.mxu0 0
  %1730 = vmatpush1.bf16.msra.mxu0 %v159
  %1731 = vmatprep.subr.bf16.mxu0 0
  %1732 = vmatpush1.bf16.msra.mxu0 %v160
  %1733 = vmatprep.subr.bf16.mxu0 0
  %1734 = vmatpush1.bf16.msra.mxu0 0
  %1735 = vmatprep.subr.bf16.mxu0 0
  %1736 = vmatpush1.bf16.msra.mxu0 0
  %1737 = vmatprep.subr.bf16.mxu0 0
  %1738 = vmatpush1.bf16.msra.mxu0 0
  %1739 = vmatprep.subr.bf16.mxu0 0
  %1740 = vmatpush1.bf16.msra.mxu0 0
  %1741 = vmatprep.subr.bf16.mxu0 0
  %1742 = vmatpush1.bf16.msra.mxu0 0
  %1743 = vmatprep.subr.bf16.mxu0 0
  %1744 = vmatpush1.bf16.msra.mxu0 0
  %1745 = vmatprep.subr.bf16.mxu0 0
  %1746 = vmatpush1.bf16.msra.mxu0 0
  %1747 = vmatprep.subr.bf16.mxu0 0
  %1748 = vmatpush1.bf16.msra.mxu0 0
  %1749 = vmatprep.mubr.bf16.mxu0 0
  %1750 = vmatmul.mubr.bf16.gmra.mrb[0].mxu0 %v1701
  %v1751 = vpop.f32.mrb[0].mxu0
  %v1752 = vadd.f32 0.0, %v1751
  %v1753 = vpop.f32.mrb[0].mxu0
  %v1754 = vpop.f32.mrb[0].mxu0
  %v1755 = vadd.f32 0.0, %v1754
  %v1756 = vpop.f32.mrb[0].mxu0
  %1757 = vmatprep.mubr.bf16.mxu0 0
  %1758 = vmatmul.mubr.bf16.gmra.mrb[0].mxu0 %v1702
  %v1759 = vpop.f32.mrb[0].mxu0
  %v1760 = vadd.f32 0.0, %v1759
  %v1761 = vpop.f32.mrb[0].mxu0
  %v1762 = vpop.f32.mrb[0].mxu0
  %v1763 = vadd.f32 0.0, %v1762
  %v1764 = vpop.f32.mrb[0].mxu0
  %1765 = vmatprep.mubr.bf16.mxu0 0
  %1766 = vmatmul.mubr.bf16.gmra.mrb[0].mxu0 %v1703
  %v1767 = vpop.f32.mrb[0].mxu0
  %v1768 = vadd.f32 0.0, %v1767
  %v1769 = vpop.f32.mrb[0].mxu0
  %v1770 = vpop.f32.mrb[0].mxu0
  %v1771 = vadd.f32 0.0, %v1770
  %v1772 = vpop.f32.mrb[0].mxu0
  %1773 = vmatprep.mubr.bf16.mxu0 0
  %1774 = vmatmul.mubr.bf16.gmra.mrb[0].mxu0 %v1704
  %v1775 = vpop.f32.mrb[0].mxu0
  %v1776 = vadd.f32 0.0, %v1775
  %v1777 = vpop.f32.mrb[0].mxu0
  %v1778 = vpop.f32.mrb[0].mxu0
  %v1779 = vadd.f32 0.0, %v1778
  %v1780 = vpop.f32.mrb[0].mxu0
  %1781 = vmatprep.mubr.bf16.mxu0 0
  %1782 = vmatmul.mubr.bf16.gmra.mrb[0].mxu0 %v1705
  %v1783 = vpop.f32.mrb[0].mxu0
  %v1784 = vadd.f32 0.0, %v1783
  %v1785 = vpop.f32.mrb[0].mxu0
  %v1786 = vpop.f32.mrb[0].mxu0
  %v1787 = vadd.f32 0.0, %v1786
  %v1788 = vpop.f32.mrb[0].mxu0
  %1789 = vmatprep.mubr.bf16.mxu0 0
  %1790 = vmatmul.mubr.bf16.gmra.mrb[0].mxu0 %v1706
  %v1791 = vpop.f32.mrb[0].mxu0
  %v1792 = vadd.f32 0.0, %v1791
  %v1793 = vpop.f32.mrb[0].mxu0
  %v1794 = vpop.f32.mrb[0].mxu0
  %v1795 = vadd.f32 0.0, %v1794
  %v1796 = vpop.f32.mrb[0].mxu0
  %1797 = vmatprep.mubr.bf16.mxu0 0
  %1798 = vmatmul.mubr.bf16.gmra.mrb[0].mxu0 %v1707
  %v1799 = vpop.f32.mrb[0].mxu0
  %v1800 = vadd.f32 0.0, %v1799
  %v1801 = vpop.f32.mrb[0].mxu0
  %v1802 = vpop.f32.mrb[0].mxu0
  %v1803 = vadd.f32 0.0, %v1802
  %v1804 = vpop.f32.mrb[0].mxu0
  %1805 = vmatprep.mubr.bf16.mxu0 0
  %1806 = vmatmul.mubr.bf16.gmra.mrb[0].mxu0 %v1708
  %v1807 = vpop.f32.mrb[0].mxu0
  %v1808 = vadd.f32 0.0, %v1807
  %v1809 = vpop.f32.mrb[0].mxu0
  %v1810 = vpop.f32.mrb[0].mxu0
  %v1811 = vadd.f32 0.0, %v1810
  %v1812 = vpop.f32.mrb[0].mxu0
  %1813 = vdwg.mxu0
  %v1814 = vpack.c.bf16 %v1755, %v1752
  %v1815 = vpack.c.bf16 %v1763, %v1760
  %v1816 = vpack.c.bf16 %v1771, %v1768
  %v1817 = vpack.c.bf16 %v1779, %v1776
  %v1818 = vpack.c.bf16 %v1787, %v1784
  %v1819 = vpack.c.bf16 %v1795, %v1792
  %v1820 = vpack.c.bf16 %v1803, %v1800
  %v1821 = vpack.c.bf16 %v1811, %v1808
  %s1822 = scalar_lea.vmem %s2, 40
  %v1823 = vld [vmem:[%s1822] sm:$0xf]
  %v1824 = vld [vmem:[%s1822 + $0x4] sm:$0xf]
  %v1827 = vunpack.c.l.b16 %v1823
  %v1828 = vunpack.c.l.b16 %v1824
  %v1829 = vpack.c.b16 %v1828, %v1827
  %v1832 = vsel %vm455, %v1814, 0
  %v1835 = vsel %vm455, %v1815, 0
  %v1838 = vsel %vm455, %v1816, 0
  %v1841 = vsel %vm455, %v1817, 0
  %v1844 = vsel %vm455, %v1818, 0
  %v1847 = vsel %vm455, %v1819, 0
  %v1850 = vsel %vm455, %v1820, 0
  %v1853 = vsel %vm455, %v1821, 0
  %1855 = vmatprep.subr.bf16.mxu0 0
  %1856 = vmatpush1.bf16.msra.mxu0 %v1829
  %1857 = vmatprep.subr.bf16.mxu0 0
  %1858 = vmatpush1.bf16.msra.mxu0 0
  %1859 = vmatprep.subr.bf16.mxu0 0
  %1860 = vmatpush1.bf16.msra.mxu0 0
  %1861 = vmatprep.subr.bf16.mxu0 0
  %1862 = vmatpush1.bf16.msra.mxu0 0
  %1863 = vmatprep.subr.bf16.mxu0 0
  %1864 = vmatpush1.bf16.msra.mxu0 0
  %1865 = vmatprep.subr.bf16.mxu0 0
  %1866 = vmatpush1.bf16.msra.mxu0 0
  %1867 = vmatprep.subr.bf16.mxu0 0
  %1868 = vmatpush1.bf16.msra.mxu0 0
  %1869 = vmatprep.subr.bf16.mxu0 0
  %1870 = vmatpush1.bf16.msra.mxu0 0
  %1871 = vmatprep.subr.bf16.mxu0 0
  %1872 = vmatpush1.bf16.msra.mxu0 0
  %1873 = vmatprep.subr.bf16.mxu0 0
  %1874 = vmatpush1.bf16.msra.mxu0 0
  %1875 = vmatprep.subr.bf16.mxu0 0
  %1876 = vmatpush1.bf16.msra.mxu0 0
  %1877 = vmatprep.subr.bf16.mxu0 0
  %1878 = vmatpush1.bf16.msra.mxu0 0
  %1879 = vmatprep.subr.bf16.mxu0 0
  %1880 = vmatpush1.bf16.msra.mxu0 0
  %1881 = vmatprep.subr.bf16.mxu0 0
  %1882 = vmatpush1.bf16.msra.mxu0 0
  %1883 = vmatprep.subr.bf16.mxu0 0
  %1884 = vmatpush1.bf16.msra.mxu0 0
  %1885 = vmatprep.subr.bf16.mxu0 0
  %1886 = vmatpush1.bf16.msra.mxu0 0
  %1887 = vmatprep.mubr.bf16.mxu0 0
  %1888 = vmatmul.mubr.bf16.gmra.mrb[0].mxu0 %v1832
  %v1889 = vpop.f32.mrb[0].mxu0
  %v1890 = vadd.f32 0.0, %v1889
  %v1891 = vpop.f32.mrb[0].mxu0
  %v1892 = vpop.f32.mrb[0].mxu0
  %v1893 = vadd.f32 0.0, %v1892
  %v1894 = vpop.f32.mrb[0].mxu0
  %1895 = vmatprep.mubr.bf16.mxu0 0
  %1896 = vmatmul.mubr.bf16.gmra.mrb[0].mxu0 %v1835
  %v1897 = vpop.f32.mrb[0].mxu0
  %v1898 = vadd.f32 0.0, %v1897
  %v1899 = vpop.f32.mrb[0].mxu0
  %v1900 = vpop.f32.mrb[0].mxu0
  %v1901 = vadd.f32 0.0, %v1900
  %v1902 = vpop.f32.mrb[0].mxu0
  %1903 = vmatprep.mubr.bf16.mxu0 0
  %1904 = vmatmul.mubr.bf16.gmra.mrb[0].mxu0 %v1838
  %v1905 = vpop.f32.mrb[0].mxu0
  %v1906 = vadd.f32 0.0, %v1905
  %v1907 = vpop.f32.mrb[0].mxu0
  %v1908 = vpop.f32.mrb[0].mxu0
  %v1909 = vadd.f32 0.0, %v1908
  %v1910 = vpop.f32.mrb[0].mxu0
  %1911 = vmatprep.mubr.bf16.mxu0 0
  %1912 = vmatmul.mubr.bf16.gmra.mrb[0].mxu0 %v1841
  %v1913 = vpop.f32.mrb[0].mxu0
  %v1914 = vadd.f32 0.0, %v1913
  %v1915 = vpop.f32.mrb[0].mxu0
  %v1916 = vpop.f32.mrb[0].mxu0
  %v1917 = vadd.f32 0.0, %v1916
  %v1918 = vpop.f32.mrb[0].mxu0
  %1919 = vmatprep.mubr.bf16.mxu0 0
  %1920 = vmatmul.mubr.bf16.gmra.mrb[0].mxu0 %v1844
  %v1921 = vpop.f32.mrb[0].mxu0
  %v1922 = vadd.f32 0.0, %v1921
  %v1923 = vpop.f32.mrb[0].mxu0
  %v1924 = vpop.f32.mrb[0].mxu0
  %v1925 = vadd.f32 0.0, %v1924
  %v1926 = vpop.f32.mrb[0].mxu0
  %1927 = vmatprep.mubr.bf16.mxu0 0
  %1928 = vmatmul.mubr.bf16.gmra.mrb[0].mxu0 %v1847
  %v1929 = vpop.f32.mrb[0].mxu0
  %v1930 = vadd.f32 0.0, %v1929
  %v1931 = vpop.f32.mrb[0].mxu0
  %v1932 = vpop.f32.mrb[0].mxu0
  %v1933 = vadd.f32 0.0, %v1932
  %v1934 = vpop.f32.mrb[0].mxu0
  %1935 = vmatprep.mubr.bf16.mxu0 0
  %1936 = vmatmul.mubr.bf16.gmra.mrb[0].mxu0 %v1850
  %v1937 = vpop.f32.mrb[0].mxu0
  %v1938 = vadd.f32 0.0, %v1937
  %v1939 = vpop.f32.mrb[0].mxu0
  %v1940 = vpop.f32.mrb[0].mxu0
  %v1941 = vadd.f32 0.0, %v1940
  %v1942 = vpop.f32.mrb[0].mxu0
  %1943 = vmatprep.mubr.bf16.mxu0 0
  %1944 = vmatmul.mubr.bf16.gmra.mrb[0].mxu0 %v1853
  %v1945 = vpop.f32.mrb[0].mxu0
  %v1946 = vadd.f32 0.0, %v1945
  %v1947 = vpop.f32.mrb[0].mxu0
  %v1948 = vpop.f32.mrb[0].mxu0
  %v1949 = vadd.f32 0.0, %v1948
  %v1950 = vpop.f32.mrb[0].mxu0
  %1951 = vdwg.mxu0
  %v1952 = vadd.f32 %v1636, %v1890
  %v1953 = vadd.f32 %v1637, %v1893
  %v1954 = vadd.f32 %v1638, %v1898
  %v1955 = vadd.f32 %v1639, %v1901
  %v1956 = vadd.f32 %v1640, %v1906
  %v1957 = vadd.f32 %v1641, %v1909
  %v1958 = vadd.f32 %v1642, %v1914
  %v1959 = vadd.f32 %v1643, %v1917
  %v1960 = vadd.f32 %v1644, %v1922
  %v1961 = vadd.f32 %v1645, %v1925
  %v1962 = vadd.f32 %v1646, %v1930
  %v1963 = vadd.f32 %v1647, %v1933
  %v1964 = vadd.f32 %v1648, %v1938
  %v1965 = vadd.f32 %v1649, %v1941
  %v1966 = vadd.f32 %v1650, %v1946
  %v1967 = vadd.f32 %v1651, %v1949
  %s1968 = scalar_lea.vmem %s1, 384
  %v1969 = vld [vmem:[%s1968] sm:$0xf]
  %v1970 = vld [vmem:[%s1968 + $0x4] sm:$0xf]
  %v1971 = vld [vmem:[%s1968 + $0x8] sm:$0xf]
  %v1972 = vld [vmem:[%s1968 + $0xc] sm:$0xf]
  %v1973 = vld [vmem:[%s1968 + $0x10] sm:$0xf]
  %v1974 = vld [vmem:[%s1968 + $0x14] sm:$0xf]
  %v1975 = vld [vmem:[%s1968 + $0x18] sm:$0xf]
  %v1976 = vld [vmem:[%s1968 + $0x1c] sm:$0xf]
  %v1977 = vld [vmem:[%s1968 + $0x20] sm:$0xf]
  %v1978 = vld [vmem:[%s1968 + $0x24] sm:$0xf]
  %v1979 = vld [vmem:[%s1968 + $0x28] sm:$0xf]
  %v1980 = vld [vmem:[%s1968 + $0x2c] sm:$0xf]
  %v1981 = vld [vmem:[%s1968 + $0x30] sm:$0xf]
  %v1982 = vld [vmem:[%s1968 + $0x34] sm:$0xf]
  %v1983 = vld [vmem:[%s1968 + $0x38] sm:$0xf]
  %v1984 = vld [vmem:[%s1968 + $0x3c] sm:$0xf]
  %v2001 = vunpack.c.l.b16 %v1969
  %v2002 = vunpack.c.l.b16 %v1970
  %v2003 = vunpack.c.l.b16 %v1971
  %v2004 = vunpack.c.l.b16 %v1972
  %v2005 = vunpack.c.l.b16 %v1973
  %v2006 = vunpack.c.l.b16 %v1974
  %v2007 = vunpack.c.l.b16 %v1975
  %v2008 = vunpack.c.l.b16 %v1976
  %v2009 = vunpack.c.l.b16 %v1977
  %v2010 = vunpack.c.l.b16 %v1978
  %v2011 = vunpack.c.l.b16 %v1979
  %v2012 = vunpack.c.l.b16 %v1980
  %v2013 = vunpack.c.l.b16 %v1981
  %v2014 = vunpack.c.l.b16 %v1982
  %v2015 = vunpack.c.l.b16 %v1983
  %v2016 = vunpack.c.l.b16 %v1984
  %v2017 = vpack.c.b16 %v2002, %v2001
  %v2018 = vpack.c.b16 %v2004, %v2003
  %v2019 = vpack.c.b16 %v2006, %v2005
  %v2020 = vpack.c.b16 %v2008, %v2007
  %v2021 = vpack.c.b16 %v2010, %v2009
  %v2022 = vpack.c.b16 %v2012, %v2011
  %v2023 = vpack.c.b16 %v2014, %v2013
  %v2024 = vpack.c.b16 %v2016, %v2015
  %2033 = vmatprep.subr.bf16.mxu0 0
  %2034 = vmatpush1.bf16.msra.mxu0 %v153
  %2035 = vmatprep.subr.bf16.mxu0 0
  %2036 = vmatpush1.bf16.msra.mxu0 %v154
  %2037 = vmatprep.subr.bf16.mxu0 0
  %2038 = vmatpush1.bf16.msra.mxu0 %v155
  %2039 = vmatprep.subr.bf16.mxu0 0
  %2040 = vmatpush1.bf16.msra.mxu0 %v156
  %2041 = vmatprep.subr.bf16.mxu0 0
  %2042 = vmatpush1.bf16.msra.mxu0 %v157
  %2043 = vmatprep.subr.bf16.mxu0 0
  %2044 = vmatpush1.bf16.msra.mxu0 %v158
  %2045 = vmatprep.subr.bf16.mxu0 0
  %2046 = vmatpush1.bf16.msra.mxu0 %v159
  %2047 = vmatprep.subr.bf16.mxu0 0
  %2048 = vmatpush1.bf16.msra.mxu0 %v160
  %2049 = vmatprep.subr.bf16.mxu0 0
  %2050 = vmatpush1.bf16.msra.mxu0 0
  %2051 = vmatprep.subr.bf16.mxu0 0
  %2052 = vmatpush1.bf16.msra.mxu0 0
  %2053 = vmatprep.subr.bf16.mxu0 0
  %2054 = vmatpush1.bf16.msra.mxu0 0
  %2055 = vmatprep.subr.bf16.mxu0 0
  %2056 = vmatpush1.bf16.msra.mxu0 0
  %2057 = vmatprep.subr.bf16.mxu0 0
  %2058 = vmatpush1.bf16.msra.mxu0 0
  %2059 = vmatprep.subr.bf16.mxu0 0
  %2060 = vmatpush1.bf16.msra.mxu0 0
  %2061 = vmatprep.subr.bf16.mxu0 0
  %2062 = vmatpush1.bf16.msra.mxu0 0
  %2063 = vmatprep.subr.bf16.mxu0 0
  %2064 = vmatpush1.bf16.msra.mxu0 0
  %2065 = vmatprep.mubr.bf16.mxu0 0
  %2066 = vmatmul.mubr.bf16.gmra.mrb[0].mxu0 %v2017
  %v2067 = vpop.f32.mrb[0].mxu0
  %v2068 = vadd.f32 0.0, %v2067
  %v2069 = vpop.f32.mrb[0].mxu0
  %v2070 = vpop.f32.mrb[0].mxu0
  %v2071 = vadd.f32 0.0, %v2070
  %v2072 = vpop.f32.mrb[0].mxu0
  %2073 = vmatprep.mubr.bf16.mxu0 0
  %2074 = vmatmul.mubr.bf16.gmra.mrb[0].mxu0 %v2018
  %v2075 = vpop.f32.mrb[0].mxu0
  %v2076 = vadd.f32 0.0, %v2075
  %v2077 = vpop.f32.mrb[0].mxu0
  %v2078 = vpop.f32.mrb[0].mxu0
  %v2079 = vadd.f32 0.0, %v2078
  %v2080 = vpop.f32.mrb[0].mxu0
  %2081 = vmatprep.mubr.bf16.mxu0 0
  %2082 = vmatmul.mubr.bf16.gmra.mrb[0].mxu0 %v2019
  %v2083 = vpop.f32.mrb[0].mxu0
  %v2084 = vadd.f32 0.0, %v2083
  %v2085 = vpop.f32.mrb[0].mxu0
  %v2086 = vpop.f32.mrb[0].mxu0
  %v2087 = vadd.f32 0.0, %v2086
  %v2088 = vpop.f32.mrb[0].mxu0
  %2089 = vmatprep.mubr.bf16.mxu0 0
  %2090 = vmatmul.mubr.bf16.gmra.mrb[0].mxu0 %v2020
  %v2091 = vpop.f32.mrb[0].mxu0
  %v2092 = vadd.f32 0.0, %v2091
  %v2093 = vpop.f32.mrb[0].mxu0
  %v2094 = vpop.f32.mrb[0].mxu0
  %v2095 = vadd.f32 0.0, %v2094
  %v2096 = vpop.f32.mrb[0].mxu0
  %2097 = vmatprep.mubr.bf16.mxu0 0
  %2098 = vmatmul.mubr.bf16.gmra.mrb[0].mxu0 %v2021
  %v2099 = vpop.f32.mrb[0].mxu0
  %v2100 = vadd.f32 0.0, %v2099
  %v2101 = vpop.f32.mrb[0].mxu0
  %v2102 = vpop.f32.mrb[0].mxu0
  %v2103 = vadd.f32 0.0, %v2102
  %v2104 = vpop.f32.mrb[0].mxu0
  %2105 = vmatprep.mubr.bf16.mxu0 0
  %2106 = vmatmul.mubr.bf16.gmra.mrb[0].mxu0 %v2022
  %v2107 = vpop.f32.mrb[0].mxu0
  %v2108 = vadd.f32 0.0, %v2107
  %v2109 = vpop.f32.mrb[0].mxu0
  %v2110 = vpop.f32.mrb[0].mxu0
  %v2111 = vadd.f32 0.0, %v2110
  %v2112 = vpop.f32.mrb[0].mxu0
  %2113 = vmatprep.mubr.bf16.mxu0 0
  %2114 = vmatmul.mubr.bf16.gmra.mrb[0].mxu0 %v2023
  %v2115 = vpop.f32.mrb[0].mxu0
  %v2116 = vadd.f32 0.0, %v2115
  %v2117 = vpop.f32.mrb[0].mxu0
  %v2118 = vpop.f32.mrb[0].mxu0
  %v2119 = vadd.f32 0.0, %v2118
  %v2120 = vpop.f32.mrb[0].mxu0
  %2121 = vmatprep.mubr.bf16.mxu0 0
  %2122 = vmatmul.mubr.bf16.gmra.mrb[0].mxu0 %v2024
  %v2123 = vpop.f32.mrb[0].mxu0
  %v2124 = vadd.f32 0.0, %v2123
  %v2125 = vpop.f32.mrb[0].mxu0
  %v2126 = vpop.f32.mrb[0].mxu0
  %v2127 = vadd.f32 0.0, %v2126
  %v2128 = vpop.f32.mrb[0].mxu0
  %2129 = vdwg.mxu0
  %v2130 = vpack.c.bf16 %v2071, %v2068
  %v2131 = vpack.c.bf16 %v2079, %v2076
  %v2132 = vpack.c.bf16 %v2087, %v2084
  %v2133 = vpack.c.bf16 %v2095, %v2092
  %v2134 = vpack.c.bf16 %v2103, %v2100
  %v2135 = vpack.c.bf16 %v2111, %v2108
  %v2136 = vpack.c.bf16 %v2119, %v2116
  %v2137 = vpack.c.bf16 %v2127, %v2124
  %s2138 = scalar_lea.vmem %s2, 48
  %v2139 = vld [vmem:[%s2138] sm:$0xf]
  %v2140 = vld [vmem:[%s2138 + $0x4] sm:$0xf]
  %v2143 = vunpack.c.l.b16 %v2139
  %v2144 = vunpack.c.l.b16 %v2140
  %v2145 = vpack.c.b16 %v2144, %v2143
  %v2148 = vsel %vm455, %v2130, 0
  %v2151 = vsel %vm455, %v2131, 0
  %v2154 = vsel %vm455, %v2132, 0
  %v2157 = vsel %vm455, %v2133, 0
  %v2160 = vsel %vm455, %v2134, 0
  %v2163 = vsel %vm455, %v2135, 0
  %v2166 = vsel %vm455, %v2136, 0
  %v2169 = vsel %vm455, %v2137, 0
  %2171 = vmatprep.subr.bf16.mxu0 0
  %2172 = vmatpush1.bf16.msra.mxu0 %v2145
  %2173 = vmatprep.subr.bf16.mxu0 0
  %2174 = vmatpush1.bf16.msra.mxu0 0
  %2175 = vmatprep.subr.bf16.mxu0 0
  %2176 = vmatpush1.bf16.msra.mxu0 0
  %2177 = vmatprep.subr.bf16.mxu0 0
  %2178 = vmatpush1.bf16.msra.mxu0 0
  %2179 = vmatprep.subr.bf16.mxu0 0
  %2180 = vmatpush1.bf16.msra.mxu0 0
  %2181 = vmatprep.subr.bf16.mxu0 0
  %2182 = vmatpush1.bf16.msra.mxu0 0
  %2183 = vmatprep.subr.bf16.mxu0 0
  %2184 = vmatpush1.bf16.msra.mxu0 0
  %2185 = vmatprep.subr.bf16.mxu0 0
  %2186 = vmatpush1.bf16.msra.mxu0 0
  %2187 = vmatprep.subr.bf16.mxu0 0
  %2188 = vmatpush1.bf16.msra.mxu0 0
  %2189 = vmatprep.subr.bf16.mxu0 0
  %2190 = vmatpush1.bf16.msra.mxu0 0
  %2191 = vmatprep.subr.bf16.mxu0 0
  %2192 = vmatpush1.bf16.msra.mxu0 0
  %2193 = vmatprep.subr.bf16.mxu0 0
  %2194 = vmatpush1.bf16.msra.mxu0 0
  %2195 = vmatprep.subr.bf16.mxu0 0
  %2196 = vmatpush1.bf16.msra.mxu0 0
  %2197 = vmatprep.subr.bf16.mxu0 0
  %2198 = vmatpush1.bf16.msra.mxu0 0
  %2199 = vmatprep.subr.bf16.mxu0 0
  %2200 = vmatpush1.bf16.msra.mxu0 0
  %2201 = vmatprep.subr.bf16.mxu0 0
  %2202 = vmatpush1.bf16.msra.mxu0 0
  %2203 = vmatprep.mubr.bf16.mxu0 0
  %2204 = vmatmul.mubr.bf16.gmra.mrb[0].mxu0 %v2148
  %v2205 = vpop.f32.mrb[0].mxu0
  %v2206 = vadd.f32 0.0, %v2205
  %v2207 = vpop.f32.mrb[0].mxu0
  %v2208 = vpop.f32.mrb[0].mxu0
  %v2209 = vadd.f32 0.0, %v2208
  %v2210 = vpop.f32.mrb[0].mxu0
  %2211 = vmatprep.mubr.bf16.mxu0 0
  %2212 = vmatmul.mubr.bf16.gmra.mrb[0].mxu0 %v2151
  %v2213 = vpop.f32.mrb[0].mxu0
  %v2214 = vadd.f32 0.0, %v2213
  %v2215 = vpop.f32.mrb[0].mxu0
  %v2216 = vpop.f32.mrb[0].mxu0
  %v2217 = vadd.f32 0.0, %v2216
  %v2218 = vpop.f32.mrb[0].mxu0
  %2219 = vmatprep.mubr.bf16.mxu0 0
  %2220 = vmatmul.mubr.bf16.gmra.mrb[0].mxu0 %v2154
  %v2221 = vpop.f32.mrb[0].mxu0
  %v2222 = vadd.f32 0.0, %v2221
  %v2223 = vpop.f32.mrb[0].mxu0
  %v2224 = vpop.f32.mrb[0].mxu0
  %v2225 = vadd.f32 0.0, %v2224
  %v2226 = vpop.f32.mrb[0].mxu0
  %2227 = vmatprep.mubr.bf16.mxu0 0
  %2228 = vmatmul.mubr.bf16.gmra.mrb[0].mxu0 %v2157
  %v2229 = vpop.f32.mrb[0].mxu0
  %v2230 = vadd.f32 0.0, %v2229
  %v2231 = vpop.f32.mrb[0].mxu0
  %v2232 = vpop.f32.mrb[0].mxu0
  %v2233 = vadd.f32 0.0, %v2232
  %v2234 = vpop.f32.mrb[0].mxu0
  %2235 = vmatprep.mubr.bf16.mxu0 0
  %2236 = vmatmul.mubr.bf16.gmra.mrb[0].mxu0 %v2160
  %v2237 = vpop.f32.mrb[0].mxu0
  %v2238 = vadd.f32 0.0, %v2237
  %v2239 = vpop.f32.mrb[0].mxu0
  %v2240 = vpop.f32.mrb[0].mxu0
  %v2241 = vadd.f32 0.0, %v2240
  %v2242 = vpop.f32.mrb[0].mxu0
  %2243 = vmatprep.mubr.bf16.mxu0 0
  %2244 = vmatmul.mubr.bf16.gmra.mrb[0].mxu0 %v2163
  %v2245 = vpop.f32.mrb[0].mxu0
  %v2246 = vadd.f32 0.0, %v2245
  %v2247 = vpop.f32.mrb[0].mxu0
  %v2248 = vpop.f32.mrb[0].mxu0
  %v2249 = vadd.f32 0.0, %v2248
  %v2250 = vpop.f32.mrb[0].mxu0
  %2251 = vmatprep.mubr.bf16.mxu0 0
  %2252 = vmatmul.mubr.bf16.gmra.mrb[0].mxu0 %v2166
  %v2253 = vpop.f32.mrb[0].mxu0
  %v2254 = vadd.f32 0.0, %v2253
  %v2255 = vpop.f32.mrb[0].mxu0
  %v2256 = vpop.f32.mrb[0].mxu0
  %v2257 = vadd.f32 0.0, %v2256
  %v2258 = vpop.f32.mrb[0].mxu0
  %2259 = vmatprep.mubr.bf16.mxu0 0
  %2260 = vmatmul.mubr.bf16.gmra.mrb[0].mxu0 %v2169
  %v2261 = vpop.f32.mrb[0].mxu0
  %v2262 = vadd.f32 0.0, %v2261
  %v2263 = vpop.f32.mrb[0].mxu0
  %v2264 = vpop.f32.mrb[0].mxu0
  %v2265 = vadd.f32 0.0, %v2264
  %v2266 = vpop.f32.mrb[0].mxu0
  %2267 = vdwg.mxu0
  %v2268 = vadd.f32 %v1952, %v2206
  %v2269 = vadd.f32 %v1953, %v2209
  %v2270 = vadd.f32 %v1954, %v2214
  %v2271 = vadd.f32 %v1955, %v2217
  %v2272 = vadd.f32 %v1956, %v2222
  %v2273 = vadd.f32 %v1957, %v2225
  %v2274 = vadd.f32 %v1958, %v2230
  %v2275 = vadd.f32 %v1959, %v2233
  %v2276 = vadd.f32 %v1960, %v2238
  %v2277 = vadd.f32 %v1961, %v2241
  %v2278 = vadd.f32 %v1962, %v2246
  %v2279 = vadd.f32 %v1963, %v2249
  %v2280 = vadd.f32 %v1964, %v2254
  %v2281 = vadd.f32 %v1965, %v2257
  %v2282 = vadd.f32 %v1966, %v2262
  %v2283 = vadd.f32 %v1967, %v2265
  %s2284 = scalar_lea.vmem %s1, 448
  %v2285 = vld [vmem:[%s2284] sm:$0xf]
  %v2286 = vld [vmem:[%s2284 + $0x4] sm:$0xf]
  %v2287 = vld [vmem:[%s2284 + $0x8] sm:$0xf]
  %v2288 = vld [vmem:[%s2284 + $0xc] sm:$0xf]
  %v2289 = vld [vmem:[%s2284 + $0x10] sm:$0xf]
  %v2290 = vld [vmem:[%s2284 + $0x14] sm:$0xf]
  %v2291 = vld [vmem:[%s2284 + $0x18] sm:$0xf]
  %v2292 = vld [vmem:[%s2284 + $0x1c] sm:$0xf]
  %v2293 = vld [vmem:[%s2284 + $0x20] sm:$0xf]
  %v2294 = vld [vmem:[%s2284 + $0x24] sm:$0xf]
  %v2295 = vld [vmem:[%s2284 + $0x28] sm:$0xf]
  %v2296 = vld [vmem:[%s2284 + $0x2c] sm:$0xf]
  %v2297 = vld [vmem:[%s2284 + $0x30] sm:$0xf]
  %v2298 = vld [vmem:[%s2284 + $0x34] sm:$0xf]
  %v2299 = vld [vmem:[%s2284 + $0x38] sm:$0xf]
  %v2300 = vld [vmem:[%s2284 + $0x3c] sm:$0xf]
  %v2317 = vunpack.c.l.b16 %v2285
  %v2318 = vunpack.c.l.b16 %v2286
  %v2319 = vunpack.c.l.b16 %v2287
  %v2320 = vunpack.c.l.b16 %v2288
  %v2321 = vunpack.c.l.b16 %v2289
  %v2322 = vunpack.c.l.b16 %v2290
  %v2323 = vunpack.c.l.b16 %v2291
  %v2324 = vunpack.c.l.b16 %v2292
  %v2325 = vunpack.c.l.b16 %v2293
  %v2326 = vunpack.c.l.b16 %v2294
  %v2327 = vunpack.c.l.b16 %v2295
  %v2328 = vunpack.c.l.b16 %v2296
  %v2329 = vunpack.c.l.b16 %v2297
  %v2330 = vunpack.c.l.b16 %v2298
  %v2331 = vunpack.c.l.b16 %v2299
  %v2332 = vunpack.c.l.b16 %v2300
  %v2333 = vpack.c.b16 %v2318, %v2317
  %v2334 = vpack.c.b16 %v2320, %v2319
  %v2335 = vpack.c.b16 %v2322, %v2321
  %v2336 = vpack.c.b16 %v2324, %v2323
  %v2337 = vpack.c.b16 %v2326, %v2325
  %v2338 = vpack.c.b16 %v2328, %v2327
  %v2339 = vpack.c.b16 %v2330, %v2329
  %v2340 = vpack.c.b16 %v2332, %v2331
  %2349 = vmatprep.subr.bf16.mxu0 0
  %2350 = vmatpush1.bf16.msra.mxu0 %v153
  %2351 = vmatprep.subr.bf16.mxu0 0
  %2352 = vmatpush1.bf16.msra.mxu0 %v154
  %2353 = vmatprep.subr.bf16.mxu0 0
  %2354 = vmatpush1.bf16.msra.mxu0 %v155
  %2355 = vmatprep.subr.bf16.mxu0 0
  %2356 = vmatpush1.bf16.msra.mxu0 %v156
  %2357 = vmatprep.subr.bf16.mxu0 0
  %2358 = vmatpush1.bf16.msra.mxu0 %v157
  %2359 = vmatprep.subr.bf16.mxu0 0
  %2360 = vmatpush1.bf16.msra.mxu0 %v158
  %2361 = vmatprep.subr.bf16.mxu0 0
  %2362 = vmatpush1.bf16.msra.mxu0 %v159
  %2363 = vmatprep.subr.bf16.mxu0 0
  %2364 = vmatpush1.bf16.msra.mxu0 %v160
  %2365 = vmatprep.subr.bf16.mxu0 0
  %2366 = vmatpush1.bf16.msra.mxu0 0
  %2367 = vmatprep.subr.bf16.mxu0 0
  %2368 = vmatpush1.bf16.msra.mxu0 0
  %2369 = vmatprep.subr.bf16.mxu0 0
  %2370 = vmatpush1.bf16.msra.mxu0 0
  %2371 = vmatprep.subr.bf16.mxu0 0
  %2372 = vmatpush1.bf16.msra.mxu0 0
  %2373 = vmatprep.subr.bf16.mxu0 0
  %2374 = vmatpush1.bf16.msra.mxu0 0
  %2375 = vmatprep.subr.bf16.mxu0 0
  %2376 = vmatpush1.bf16.msra.mxu0 0
  %2377 = vmatprep.subr.bf16.mxu0 0
  %2378 = vmatpush1.bf16.msra.mxu0 0
  %2379 = vmatprep.subr.bf16.mxu0 0
  %2380 = vmatpush1.bf16.msra.mxu0 0
  %2381 = vmatprep.mubr.bf16.mxu0 0
  %2382 = vmatmul.mubr.bf16.gmra.mrb[0].mxu0 %v2333
  %v2383 = vpop.f32.mrb[0].mxu0
  %v2384 = vadd.f32 0.0, %v2383
  %v2385 = vpop.f32.mrb[0].mxu0
  %v2386 = vpop.f32.mrb[0].mxu0
  %v2387 = vadd.f32 0.0, %v2386
  %v2388 = vpop.f32.mrb[0].mxu0
  %2389 = vmatprep.mubr.bf16.mxu0 0
  %2390 = vmatmul.mubr.bf16.gmra.mrb[0].mxu0 %v2334
  %v2391 = vpop.f32.mrb[0].mxu0
  %v2392 = vadd.f32 0.0, %v2391
  %v2393 = vpop.f32.mrb[0].mxu0
  %v2394 = vpop.f32.mrb[0].mxu0
  %v2395 = vadd.f32 0.0, %v2394
  %v2396 = vpop.f32.mrb[0].mxu0
  %2397 = vmatprep.mubr.bf16.mxu0 0
  %2398 = vmatmul.mubr.bf16.gmra.mrb[0].mxu0 %v2335
  %v2399 = vpop.f32.mrb[0].mxu0
  %v2400 = vadd.f32 0.0, %v2399
  %v2401 = vpop.f32.mrb[0].mxu0
  %v2402 = vpop.f32.mrb[0].mxu0
  %v2403 = vadd.f32 0.0, %v2402
  %v2404 = vpop.f32.mrb[0].mxu0
  %2405 = vmatprep.mubr.bf16.mxu0 0
  %2406 = vmatmul.mubr.bf16.gmra.mrb[0].mxu0 %v2336
  %v2407 = vpop.f32.mrb[0].mxu0
  %v2408 = vadd.f32 0.0, %v2407
  %v2409 = vpop.f32.mrb[0].mxu0
  %v2410 = vpop.f32.mrb[0].mxu0
  %v2411 = vadd.f32 0.0, %v2410
  %v2412 = vpop.f32.mrb[0].mxu0
  %2413 = vmatprep.mubr.bf16.mxu0 0
  %2414 = vmatmul.mubr.bf16.gmra.mrb[0].mxu0 %v2337
  %v2415 = vpop.f32.mrb[0].mxu0
  %v2416 = vadd.f32 0.0, %v2415
  %v2417 = vpop.f32.mrb[0].mxu0
  %v2418 = vpop.f32.mrb[0].mxu0
  %v2419 = vadd.f32 0.0, %v2418
  %v2420 = vpop.f32.mrb[0].mxu0
  %2421 = vmatprep.mubr.bf16.mxu0 0
  %2422 = vmatmul.mubr.bf16.gmra.mrb[0].mxu0 %v2338
  %v2423 = vpop.f32.mrb[0].mxu0
  %v2424 = vadd.f32 0.0, %v2423
  %v2425 = vpop.f32.mrb[0].mxu0
  %v2426 = vpop.f32.mrb[0].mxu0
  %v2427 = vadd.f32 0.0, %v2426
  %v2428 = vpop.f32.mrb[0].mxu0
  %2429 = vmatprep.mubr.bf16.mxu0 0
  %2430 = vmatmul.mubr.bf16.gmra.mrb[0].mxu0 %v2339
  %v2431 = vpop.f32.mrb[0].mxu0
  %v2432 = vadd.f32 0.0, %v2431
  %v2433 = vpop.f32.mrb[0].mxu0
  %v2434 = vpop.f32.mrb[0].mxu0
  %v2435 = vadd.f32 0.0, %v2434
  %v2436 = vpop.f32.mrb[0].mxu0
  %2437 = vmatprep.mubr.bf16.mxu0 0
  %2438 = vmatmul.mubr.bf16.gmra.mrb[0].mxu0 %v2340
  %v2439 = vpop.f32.mrb[0].mxu0
  %v2440 = vadd.f32 0.0, %v2439
  %v2441 = vpop.f32.mrb[0].mxu0
  %v2442 = vpop.f32.mrb[0].mxu0
  %v2443 = vadd.f32 0.0, %v2442
  %v2444 = vpop.f32.mrb[0].mxu0
  %2445 = vdwg.mxu0
  %v2446 = vpack.c.bf16 %v2387, %v2384
  %v2447 = vpack.c.bf16 %v2395, %v2392
  %v2448 = vpack.c.bf16 %v2403, %v2400
  %v2449 = vpack.c.bf16 %v2411, %v2408
  %v2450 = vpack.c.bf16 %v2419, %v2416
  %v2451 = vpack.c.bf16 %v2427, %v2424
  %v2452 = vpack.c.bf16 %v2435, %v2432
  %v2453 = vpack.c.bf16 %v2443, %v2440
  %s2454 = scalar_lea.vmem %s2, 56
  %v2455 = vld [vmem:[%s2454] sm:$0xf]
  %v2456 = vld [vmem:[%s2454 + $0x4] sm:$0xf]
  %v2459 = vunpack.c.l.b16 %v2455
  %v2460 = vunpack.c.l.b16 %v2456
  %v2461 = vpack.c.b16 %v2460, %v2459
  %v2464 = vsel %vm455, %v2446, 0
  %v2467 = vsel %vm455, %v2447, 0
  %v2470 = vsel %vm455, %v2448, 0
  %v2473 = vsel %vm455, %v2449, 0
  %v2476 = vsel %vm455, %v2450, 0
  %v2479 = vsel %vm455, %v2451, 0
  %v2482 = vsel %vm455, %v2452, 0
  %v2485 = vsel %vm455, %v2453, 0
  %2487 = vmatprep.subr.bf16.mxu0 0
  %2488 = vmatpush1.bf16.msra.mxu0 %v2461
  %2489 = vmatprep.subr.bf16.mxu0 0
  %2490 = vmatpush1.bf16.msra.mxu0 0
  %2491 = vmatprep.subr.bf16.mxu0 0
  %2492 = vmatpush1.bf16.msra.mxu0 0
  %2493 = vmatprep.subr.bf16.mxu0 0
  %2494 = vmatpush1.bf16.msra.mxu0 0
  %2495 = vmatprep.subr.bf16.mxu0 0
  %2496 = vmatpush1.bf16.msra.mxu0 0
  %2497 = vmatprep.subr.bf16.mxu0 0
  %2498 = vmatpush1.bf16.msra.mxu0 0
  %2499 = vmatprep.subr.bf16.mxu0 0
  %2500 = vmatpush1.bf16.msra.mxu0 0
  %2501 = vmatprep.subr.bf16.mxu0 0
  %2502 = vmatpush1.bf16.msra.mxu0 0
  %2503 = vmatprep.subr.bf16.mxu0 0
  %2504 = vmatpush1.bf16.msra.mxu0 0
  %2505 = vmatprep.subr.bf16.mxu0 0
  %2506 = vmatpush1.bf16.msra.mxu0 0
  %2507 = vmatprep.subr.bf16.mxu0 0
  %2508 = vmatpush1.bf16.msra.mxu0 0
  %2509 = vmatprep.subr.bf16.mxu0 0
  %2510 = vmatpush1.bf16.msra.mxu0 0
  %2511 = vmatprep.subr.bf16.mxu0 0
  %2512 = vmatpush1.bf16.msra.mxu0 0
  %2513 = vmatprep.subr.bf16.mxu0 0
  %2514 = vmatpush1.bf16.msra.mxu0 0
  %2515 = vmatprep.subr.bf16.mxu0 0
  %2516 = vmatpush1.bf16.msra.mxu0 0
  %2517 = vmatprep.subr.bf16.mxu0 0
  %2518 = vmatpush1.bf16.msra.mxu0 0
  %2519 = vmatprep.mubr.bf16.mxu0 0
  %2520 = vmatmul.mubr.bf16.gmra.mrb[0].mxu0 %v2464
  %v2521 = vpop.f32.mrb[0].mxu0
  %v2522 = vadd.f32 0.0, %v2521
  %v2523 = vpop.f32.mrb[0].mxu0
  %v2524 = vpop.f32.mrb[0].mxu0
  %v2525 = vadd.f32 0.0, %v2524
  %v2526 = vpop.f32.mrb[0].mxu0
  %2527 = vmatprep.mubr.bf16.mxu0 0
  %2528 = vmatmul.mubr.bf16.gmra.mrb[0].mxu0 %v2467
  %v2529 = vpop.f32.mrb[0].mxu0
  %v2530 = vadd.f32 0.0, %v2529
  %v2531 = vpop.f32.mrb[0].mxu0
  %v2532 = vpop.f32.mrb[0].mxu0
  %v2533 = vadd.f32 0.0, %v2532
  %v2534 = vpop.f32.mrb[0].mxu0
  %2535 = vmatprep.mubr.bf16.mxu0 0
  %2536 = vmatmul.mubr.bf16.gmra.mrb[0].mxu0 %v2470
  %v2537 = vpop.f32.mrb[0].mxu0
  %v2538 = vadd.f32 0.0, %v2537
  %v2539 = vpop.f32.mrb[0].mxu0
  %v2540 = vpop.f32.mrb[0].mxu0
  %v2541 = vadd.f32 0.0, %v2540
  %v2542 = vpop.f32.mrb[0].mxu0
  %2543 = vmatprep.mubr.bf16.mxu0 0
  %2544 = vmatmul.mubr.bf16.gmra.mrb[0].mxu0 %v2473
  %v2545 = vpop.f32.mrb[0].mxu0
  %v2546 = vadd.f32 0.0, %v2545
  %v2547 = vpop.f32.mrb[0].mxu0
  %v2548 = vpop.f32.mrb[0].mxu0
  %v2549 = vadd.f32 0.0, %v2548
  %v2550 = vpop.f32.mrb[0].mxu0
  %2551 = vmatprep.mubr.bf16.mxu0 0
  %2552 = vmatmul.mubr.bf16.gmra.mrb[0].mxu0 %v2476
  %v2553 = vpop.f32.mrb[0].mxu0
  %v2554 = vadd.f32 0.0, %v2553
  %v2555 = vpop.f32.mrb[0].mxu0
  %v2556 = vpop.f32.mrb[0].mxu0
  %v2557 = vadd.f32 0.0, %v2556
  %v2558 = vpop.f32.mrb[0].mxu0
  %2559 = vmatprep.mubr.bf16.mxu0 0
  %2560 = vmatmul.mubr.bf16.gmra.mrb[0].mxu0 %v2479
  %v2561 = vpop.f32.mrb[0].mxu0
  %v2562 = vadd.f32 0.0, %v2561
  %v2563 = vpop.f32.mrb[0].mxu0
  %v2564 = vpop.f32.mrb[0].mxu0
  %v2565 = vadd.f32 0.0, %v2564
  %v2566 = vpop.f32.mrb[0].mxu0
  %2567 = vmatprep.mubr.bf16.mxu0 0
  %2568 = vmatmul.mubr.bf16.gmra.mrb[0].mxu0 %v2482
  %v2569 = vpop.f32.mrb[0].mxu0
  %v2570 = vadd.f32 0.0, %v2569
  %v2571 = vpop.f32.mrb[0].mxu0
  %v2572 = vpop.f32.mrb[0].mxu0
  %v2573 = vadd.f32 0.0, %v2572
  %v2574 = vpop.f32.mrb[0].mxu0
  %2575 = vmatprep.mubr.bf16.mxu0 0
  %2576 = vmatmul.mubr.bf16.gmra.mrb[0].mxu0 %v2485
  %v2577 = vpop.f32.mrb[0].mxu0
  %v2578 = vadd.f32 0.0, %v2577
  %v2579 = vpop.f32.mrb[0].mxu0
  %v2580 = vpop.f32.mrb[0].mxu0
  %v2581 = vadd.f32 0.0, %v2580
  %v2582 = vpop.f32.mrb[0].mxu0
  %2583 = vdwg.mxu0
  %v2584 = vadd.f32 %v2268, %v2522
  %v2585 = vadd.f32 %v2269, %v2525
  %v2586 = vadd.f32 %v2270, %v2530
  %v2587 = vadd.f32 %v2271, %v2533
  %v2588 = vadd.f32 %v2272, %v2538
  %v2589 = vadd.f32 %v2273, %v2541
  %v2590 = vadd.f32 %v2274, %v2546
  %v2591 = vadd.f32 %v2275, %v2549
  %v2592 = vadd.f32 %v2276, %v2554
  %v2593 = vadd.f32 %v2277, %v2557
  %v2594 = vadd.f32 %v2278, %v2562
  %v2595 = vadd.f32 %v2279, %v2565
  %v2596 = vadd.f32 %v2280, %v2570
  %v2597 = vadd.f32 %v2281, %v2573
  %v2598 = vadd.f32 %v2282, %v2578
  %v2599 = vadd.f32 %v2283, %v2581
  %s2600 = scalar_lea.vmem %s1, 512
  %v2601 = vld [vmem:[%s2600] sm:$0xf]
  %v2602 = vld [vmem:[%s2600 + $0x4] sm:$0xf]
  %v2603 = vld [vmem:[%s2600 + $0x8] sm:$0xf]
  %v2604 = vld [vmem:[%s2600 + $0xc] sm:$0xf]
  %v2605 = vld [vmem:[%s2600 + $0x10] sm:$0xf]
  %v2606 = vld [vmem:[%s2600 + $0x14] sm:$0xf]
  %v2607 = vld [vmem:[%s2600 + $0x18] sm:$0xf]
  %v2608 = vld [vmem:[%s2600 + $0x1c] sm:$0xf]
  %v2609 = vld [vmem:[%s2600 + $0x20] sm:$0xf]
  %v2610 = vld [vmem:[%s2600 + $0x24] sm:$0xf]
  %v2611 = vld [vmem:[%s2600 + $0x28] sm:$0xf]
  %v2612 = vld [vmem:[%s2600 + $0x2c] sm:$0xf]
  %v2613 = vld [vmem:[%s2600 + $0x30] sm:$0xf]
  %v2614 = vld [vmem:[%s2600 + $0x34] sm:$0xf]
  %v2615 = vld [vmem:[%s2600 + $0x38] sm:$0xf]
  %v2616 = vld [vmem:[%s2600 + $0x3c] sm:$0xf]
  %v2633 = vunpack.c.l.b16 %v2601
  %v2634 = vunpack.c.l.b16 %v2602
  %v2635 = vunpack.c.l.b16 %v2603
  %v2636 = vunpack.c.l.b16 %v2604
  %v2637 = vunpack.c.l.b16 %v2605
  %v2638 = vunpack.c.l.b16 %v2606
  %v2639 = vunpack.c.l.b16 %v2607
  %v2640 = vunpack.c.l.b16 %v2608
  %v2641 = vunpack.c.l.b16 %v2609
  %v2642 = vunpack.c.l.b16 %v2610
  %v2643 = vunpack.c.l.b16 %v2611
  %v2644 = vunpack.c.l.b16 %v2612
  %v2645 = vunpack.c.l.b16 %v2613
  %v2646 = vunpack.c.l.b16 %v2614
  %v2647 = vunpack.c.l.b16 %v2615
  %v2648 = vunpack.c.l.b16 %v2616
  %v2649 = vpack.c.b16 %v2634, %v2633
  %v2650 = vpack.c.b16 %v2636, %v2635
  %v2651 = vpack.c.b16 %v2638, %v2637
  %v2652 = vpack.c.b16 %v2640, %v2639
  %v2653 = vpack.c.b16 %v2642, %v2641
  %v2654 = vpack.c.b16 %v2644, %v2643
  %v2655 = vpack.c.b16 %v2646, %v2645
  %v2656 = vpack.c.b16 %v2648, %v2647
  %2665 = vmatprep.subr.bf16.mxu0 0
  %2666 = vmatpush1.bf16.msra.mxu0 %v153
  %2667 = vmatprep.subr.bf16.mxu0 0
  %2668 = vmatpush1.bf16.msra.mxu0 %v154
  %2669 = vmatprep.subr.bf16.mxu0 0
  %2670 = vmatpush1.bf16.msra.mxu0 %v155
  %2671 = vmatprep.subr.bf16.mxu0 0
  %2672 = vmatpush1.bf16.msra.mxu0 %v156
  %2673 = vmatprep.subr.bf16.mxu0 0
  %2674 = vmatpush1.bf16.msra.mxu0 %v157
  %2675 = vmatprep.subr.bf16.mxu0 0
  %2676 = vmatpush1.bf16.msra.mxu0 %v158
  %2677 = vmatprep.subr.bf16.mxu0 0
  %2678 = vmatpush1.bf16.msra.mxu0 %v159
  %2679 = vmatprep.subr.bf16.mxu0 0
  %2680 = vmatpush1.bf16.msra.mxu0 %v160
  %2681 = vmatprep.subr.bf16.mxu0 0
  %2682 = vmatpush1.bf16.msra.mxu0 0
  %2683 = vmatprep.subr.bf16.mxu0 0
  %2684 = vmatpush1.bf16.msra.mxu0 0
  %2685 = vmatprep.subr.bf16.mxu0 0
  %2686 = vmatpush1.bf16.msra.mxu0 0
  %2687 = vmatprep.subr.bf16.mxu0 0
  %2688 = vmatpush1.bf16.msra.mxu0 0
  %2689 = vmatprep.subr.bf16.mxu0 0
  %2690 = vmatpush1.bf16.msra.mxu0 0
  %2691 = vmatprep.subr.bf16.mxu0 0
  %2692 = vmatpush1.bf16.msra.mxu0 0
  %2693 = vmatprep.subr.bf16.mxu0 0
  %2694 = vmatpush1.bf16.msra.mxu0 0
  %2695 = vmatprep.subr.bf16.mxu0 0
  %2696 = vmatpush1.bf16.msra.mxu0 0
  %2697 = vmatprep.mubr.bf16.mxu0 0
  %2698 = vmatmul.mubr.bf16.gmra.mrb[0].mxu0 %v2649
  %v2699 = vpop.f32.mrb[0].mxu0
  %v2700 = vadd.f32 0.0, %v2699
  %v2701 = vpop.f32.mrb[0].mxu0
  %v2702 = vpop.f32.mrb[0].mxu0
  %v2703 = vadd.f32 0.0, %v2702
  %v2704 = vpop.f32.mrb[0].mxu0
  %2705 = vmatprep.mubr.bf16.mxu0 0
  %2706 = vmatmul.mubr.bf16.gmra.mrb[0].mxu0 %v2650
  %v2707 = vpop.f32.mrb[0].mxu0
  %v2708 = vadd.f32 0.0, %v2707
  %v2709 = vpop.f32.mrb[0].mxu0
  %v2710 = vpop.f32.mrb[0].mxu0
  %v2711 = vadd.f32 0.0, %v2710
  %v2712 = vpop.f32.mrb[0].mxu0
  %2713 = vmatprep.mubr.bf16.mxu0 0
  %2714 = vmatmul.mubr.bf16.gmra.mrb[0].mxu0 %v2651
  %v2715 = vpop.f32.mrb[0].mxu0
  %v2716 = vadd.f32 0.0, %v2715
  %v2717 = vpop.f32.mrb[0].mxu0
  %v2718 = vpop.f32.mrb[0].mxu0
  %v2719 = vadd.f32 0.0, %v2718
  %v2720 = vpop.f32.mrb[0].mxu0
  %2721 = vmatprep.mubr.bf16.mxu0 0
  %2722 = vmatmul.mubr.bf16.gmra.mrb[0].mxu0 %v2652
  %v2723 = vpop.f32.mrb[0].mxu0
  %v2724 = vadd.f32 0.0, %v2723
  %v2725 = vpop.f32.mrb[0].mxu0
  %v2726 = vpop.f32.mrb[0].mxu0
  %v2727 = vadd.f32 0.0, %v2726
  %v2728 = vpop.f32.mrb[0].mxu0
  %2729 = vmatprep.mubr.bf16.mxu0 0
  %2730 = vmatmul.mubr.bf16.gmra.mrb[0].mxu0 %v2653
  %v2731 = vpop.f32.mrb[0].mxu0
  %v2732 = vadd.f32 0.0, %v2731
  %v2733 = vpop.f32.mrb[0].mxu0
  %v2734 = vpop.f32.mrb[0].mxu0
  %v2735 = vadd.f32 0.0, %v2734
  %v2736 = vpop.f32.mrb[0].mxu0
  %2737 = vmatprep.mubr.bf16.mxu0 0
  %2738 = vmatmul.mubr.bf16.gmra.mrb[0].mxu0 %v2654
  %v2739 = vpop.f32.mrb[0].mxu0
  %v2740 = vadd.f32 0.0, %v2739
  %v2741 = vpop.f32.mrb[0].mxu0
  %v2742 = vpop.f32.mrb[0].mxu0
  %v2743 = vadd.f32 0.0, %v2742
  %v2744 = vpop.f32.mrb[0].mxu0
  %2745 = vmatprep.mubr.bf16.mxu0 0
  %2746 = vmatmul.mubr.bf16.gmra.mrb[0].mxu0 %v2655
  %v2747 = vpop.f32.mrb[0].mxu0
  %v2748 = vadd.f32 0.0, %v2747
  %v2749 = vpop.f32.mrb[0].mxu0
  %v2750 = vpop.f32.mrb[0].mxu0
  %v2751 = vadd.f32 0.0, %v2750
  %v2752 = vpop.f32.mrb[0].mxu0
  %2753 = vmatprep.mubr.bf16.mxu0 0
  %2754 = vmatmul.mubr.bf16.gmra.mrb[0].mxu0 %v2656
  %v2755 = vpop.f32.mrb[0].mxu0
  %v2756 = vadd.f32 0.0, %v2755
  %v2757 = vpop.f32.mrb[0].mxu0
  %v2758 = vpop.f32.mrb[0].mxu0
  %v2759 = vadd.f32 0.0, %v2758
  %v2760 = vpop.f32.mrb[0].mxu0
  %2761 = vdwg.mxu0
  %v2762 = vpack.c.bf16 %v2703, %v2700
  %v2763 = vpack.c.bf16 %v2711, %v2708
  %v2764 = vpack.c.bf16 %v2719, %v2716
  %v2765 = vpack.c.bf16 %v2727, %v2724
  %v2766 = vpack.c.bf16 %v2735, %v2732
  %v2767 = vpack.c.bf16 %v2743, %v2740
  %v2768 = vpack.c.bf16 %v2751, %v2748
  %v2769 = vpack.c.bf16 %v2759, %v2756
  %s2770 = scalar_lea.vmem %s2, 64
  %v2771 = vld [vmem:[%s2770] sm:$0xf]
  %v2772 = vld [vmem:[%s2770 + $0x4] sm:$0xf]
  %v2775 = vunpack.c.l.b16 %v2771
  %v2776 = vunpack.c.l.b16 %v2772
  %v2777 = vpack.c.b16 %v2776, %v2775
  %v2780 = vsel %vm455, %v2762, 0
  %v2783 = vsel %vm455, %v2763, 0
  %v2786 = vsel %vm455, %v2764, 0
  %v2789 = vsel %vm455, %v2765, 0
  %v2792 = vsel %vm455, %v2766, 0
  %v2795 = vsel %vm455, %v2767, 0
  %v2798 = vsel %vm455, %v2768, 0
  %v2801 = vsel %vm455, %v2769, 0
  %2803 = vmatprep.subr.bf16.mxu0 0
  %2804 = vmatpush1.bf16.msra.mxu0 %v2777
  %2805 = vmatprep.subr.bf16.mxu0 0
  %2806 = vmatpush1.bf16.msra.mxu0 0
  %2807 = vmatprep.subr.bf16.mxu0 0
  %2808 = vmatpush1.bf16.msra.mxu0 0
  %2809 = vmatprep.subr.bf16.mxu0 0
  %2810 = vmatpush1.bf16.msra.mxu0 0
  %2811 = vmatprep.subr.bf16.mxu0 0
  %2812 = vmatpush1.bf16.msra.mxu0 0
  %2813 = vmatprep.subr.bf16.mxu0 0
  %2814 = vmatpush1.bf16.msra.mxu0 0
  %2815 = vmatprep.subr.bf16.mxu0 0
  %2816 = vmatpush1.bf16.msra.mxu0 0
  %2817 = vmatprep.subr.bf16.mxu0 0
  %2818 = vmatpush1.bf16.msra.mxu0 0
  %2819 = vmatprep.subr.bf16.mxu0 0
  %2820 = vmatpush1.bf16.msra.mxu0 0
  %2821 = vmatprep.subr.bf16.mxu0 0
  %2822 = vmatpush1.bf16.msra.mxu0 0
  %2823 = vmatprep.subr.bf16.mxu0 0
  %2824 = vmatpush1.bf16.msra.mxu0 0
  %2825 = vmatprep.subr.bf16.mxu0 0
  %2826 = vmatpush1.bf16.msra.mxu0 0
  %2827 = vmatprep.subr.bf16.mxu0 0
  %2828 = vmatpush1.bf16.msra.mxu0 0
  %2829 = vmatprep.subr.bf16.mxu0 0
  %2830 = vmatpush1.bf16.msra.mxu0 0
  %2831 = vmatprep.subr.bf16.mxu0 0
  %2832 = vmatpush1.bf16.msra.mxu0 0
  %2833 = vmatprep.subr.bf16.mxu0 0
  %2834 = vmatpush1.bf16.msra.mxu0 0
  %2835 = vmatprep.mubr.bf16.mxu0 0
  %2836 = vmatmul.mubr.bf16.gmra.mrb[0].mxu0 %v2780
  %v2837 = vpop.f32.mrb[0].mxu0
  %v2838 = vadd.f32 0.0, %v2837
  %v2839 = vpop.f32.mrb[0].mxu0
  %v2840 = vpop.f32.mrb[0].mxu0
  %v2841 = vadd.f32 0.0, %v2840
  %v2842 = vpop.f32.mrb[0].mxu0
  %2843 = vmatprep.mubr.bf16.mxu0 0
  %2844 = vmatmul.mubr.bf16.gmra.mrb[0].mxu0 %v2783
  %v2845 = vpop.f32.mrb[0].mxu0
  %v2846 = vadd.f32 0.0, %v2845
  %v2847 = vpop.f32.mrb[0].mxu0
  %v2848 = vpop.f32.mrb[0].mxu0
  %v2849 = vadd.f32 0.0, %v2848
  %v2850 = vpop.f32.mrb[0].mxu0
  %2851 = vmatprep.mubr.bf16.mxu0 0
  %2852 = vmatmul.mubr.bf16.gmra.mrb[0].mxu0 %v2786
  %v2853 = vpop.f32.mrb[0].mxu0
  %v2854 = vadd.f32 0.0, %v2853
  %v2855 = vpop.f32.mrb[0].mxu0
  %v2856 = vpop.f32.mrb[0].mxu0
  %v2857 = vadd.f32 0.0, %v2856
  %v2858 = vpop.f32.mrb[0].mxu0
  %2859 = vmatprep.mubr.bf16.mxu0 0
  %2860 = vmatmul.mubr.bf16.gmra.mrb[0].mxu0 %v2789
  %v2861 = vpop.f32.mrb[0].mxu0
  %v2862 = vadd.f32 0.0, %v2861
  %v2863 = vpop.f32.mrb[0].mxu0
  %v2864 = vpop.f32.mrb[0].mxu0
  %v2865 = vadd.f32 0.0, %v2864
  %v2866 = vpop.f32.mrb[0].mxu0
  %2867 = vmatprep.mubr.bf16.mxu0 0
  %2868 = vmatmul.mubr.bf16.gmra.mrb[0].mxu0 %v2792
  %v2869 = vpop.f32.mrb[0].mxu0
  %v2870 = vadd.f32 0.0, %v2869
  %v2871 = vpop.f32.mrb[0].mxu0
  %v2872 = vpop.f32.mrb[0].mxu0
  %v2873 = vadd.f32 0.0, %v2872
  %v2874 = vpop.f32.mrb[0].mxu0
  %2875 = vmatprep.mubr.bf16.mxu0 0
  %2876 = vmatmul.mubr.bf16.gmra.mrb[0].mxu0 %v2795
  %v2877 = vpop.f32.mrb[0].mxu0
  %v2878 = vadd.f32 0.0, %v2877
  %v2879 = vpop.f32.mrb[0].mxu0
  %v2880 = vpop.f32.mrb[0].mxu0
  %v2881 = vadd.f32 0.0, %v2880
  %v2882 = vpop.f32.mrb[0].mxu0
  %2883 = vmatprep.mubr.bf16.mxu0 0
  %2884 = vmatmul.mubr.bf16.gmra.mrb[0].mxu0 %v2798
  %v2885 = vpop.f32.mrb[0].mxu0
  %v2886 = vadd.f32 0.0, %v2885
  %v2887 = vpop.f32.mrb[0].mxu0
  %v2888 = vpop.f32.mrb[0].mxu0
  %v2889 = vadd.f32 0.0, %v2888
  %v2890 = vpop.f32.mrb[0].mxu0
  %2891 = vmatprep.mubr.bf16.mxu0 0
  %2892 = vmatmul.mubr.bf16.gmra.mrb[0].mxu0 %v2801
  %v2893 = vpop.f32.mrb[0].mxu0
  %v2894 = vadd.f32 0.0, %v2893
  %v2895 = vpop.f32.mrb[0].mxu0
  %v2896 = vpop.f32.mrb[0].mxu0
  %v2897 = vadd.f32 0.0, %v2896
  %v2898 = vpop.f32.mrb[0].mxu0
  %2899 = vdwg.mxu0
  %v2900 = vadd.f32 %v2584, %v2838
  %v2901 = vadd.f32 %v2585, %v2841
  %v2902 = vadd.f32 %v2586, %v2846
  %v2903 = vadd.f32 %v2587, %v2849
  %v2904 = vadd.f32 %v2588, %v2854
  %v2905 = vadd.f32 %v2589, %v2857
  %v2906 = vadd.f32 %v2590, %v2862
  %v2907 = vadd.f32 %v2591, %v2865
  %v2908 = vadd.f32 %v2592, %v2870
  %v2909 = vadd.f32 %v2593, %v2873
  %v2910 = vadd.f32 %v2594, %v2878
  %v2911 = vadd.f32 %v2595, %v2881
  %v2912 = vadd.f32 %v2596, %v2886
  %v2913 = vadd.f32 %v2597, %v2889
  %v2914 = vadd.f32 %v2598, %v2894
  %v2915 = vadd.f32 %v2599, %v2897
  %v2916 = vld [vmem:[%s3] sm:$0x1]
  %v2918 = vlaneseq
  %v2919 = vshrl.u32 %v2918, 7
  %v2920 = vsub.s32 0, %v2919
  %v2921 = vrot.slane %v2916, %v2920
  %v2923 = vadd.f32 %v2900, %v2921
  %v2924 = vadd.f32 %v2901, %v2921
  %v2925 = vadd.f32 %v2902, %v2921
  %v2926 = vadd.f32 %v2903, %v2921
  %v2927 = vadd.f32 %v2904, %v2921
  %v2928 = vadd.f32 %v2905, %v2921
  %v2929 = vadd.f32 %v2906, %v2921
  %v2930 = vadd.f32 %v2907, %v2921
  %v2931 = vadd.f32 %v2908, %v2921
  %v2932 = vadd.f32 %v2909, %v2921
  %v2933 = vadd.f32 %v2910, %v2921
  %v2934 = vadd.f32 %v2911, %v2921
  %v2935 = vadd.f32 %v2912, %v2921
  %v2936 = vadd.f32 %v2913, %v2921
  %v2937 = vadd.f32 %v2914, %v2921
  %v2938 = vadd.f32 %v2915, %v2921
  %v2939 = vmax.f32 %v2923, 0.0
  %v2940 = vmax.f32 %v2924, 0.0
  %v2941 = vmax.f32 %v2925, 0.0
  %v2942 = vmax.f32 %v2926, 0.0
  %v2943 = vmax.f32 %v2927, 0.0
  %v2944 = vmax.f32 %v2928, 0.0
  %v2945 = vmax.f32 %v2929, 0.0
  %v2946 = vmax.f32 %v2930, 0.0
  %v2947 = vmax.f32 %v2931, 0.0
  %v2948 = vmax.f32 %v2932, 0.0
  %v2949 = vmax.f32 %v2933, 0.0
  %v2950 = vmax.f32 %v2934, 0.0
  %v2951 = vmax.f32 %v2935, 0.0
  %v2952 = vmax.f32 %v2936, 0.0
  %v2953 = vmax.f32 %v2937, 0.0
  %v2954 = vmax.f32 %v2938, 0.0
  %v2955 = vpack.c.bf16 %v2940, %v2939
  %v2956 = vpack.c.bf16 %v2942, %v2941
  %v2957 = vpack.c.bf16 %v2944, %v2943
  %v2958 = vpack.c.bf16 %v2946, %v2945
  %v2959 = vpack.c.bf16 %v2948, %v2947
  %v2960 = vpack.c.bf16 %v2950, %v2949
  %v2961 = vpack.c.bf16 %v2952, %v2951
  %v2962 = vpack.c.bf16 %v2954, %v2953
  %2963 = vmatprep.subr.bf16.mxu0 0
  %2964 = vmatpush1.bf16.msra.mxu0 %v2955
  %2965 = vmatprep.subr.bf16.mxu0 0
  %2966 = vmatpush1.bf16.msra.mxu0 %v2956
  %2967 = vmatprep.subr.bf16.mxu0 0
  %2968 = vmatpush1.bf16.msra.mxu0 %v2957
  %2969 = vmatprep.subr.bf16.mxu0 0
  %2970 = vmatpush1.bf16.msra.mxu0 %v2958
  %2971 = vmatprep.subr.bf16.mxu0 0
  %2972 = vmatpush1.bf16.msra.mxu0 %v2959
  %2973 = vmatprep.subr.bf16.mxu0 0
  %2974 = vmatpush1.bf16.msra.mxu0 %v2960
  %2975 = vmatprep.subr.bf16.mxu0 0
  %2976 = vmatpush1.bf16.msra.mxu0 %v2961
  %2977 = vmatprep.subr.bf16.mxu0 0
  %2978 = vmatpush1.bf16.msra.mxu0 %v2962
  %2979 = vmatprep.subr.bf16.mxu0 0
  %2980 = vmatpush1.bf16.msra.mxu0 0
  %2981 = vmatprep.subr.bf16.mxu0 0
  %2982 = vmatpush1.bf16.msra.mxu0 0
  %2983 = vmatprep.subr.bf16.mxu0 0
  %2984 = vmatpush1.bf16.msra.mxu0 0
  %2985 = vmatprep.subr.bf16.mxu0 0
  %2986 = vmatpush1.bf16.msra.mxu0 0
  %2987 = vmatprep.subr.bf16.mxu0 0
  %2988 = vmatpush1.bf16.msra.mxu0 0
  %2989 = vmatprep.subr.bf16.mxu0 0
  %2990 = vmatpush1.bf16.msra.mxu0 0
  %2991 = vmatprep.subr.bf16.mxu0 0
  %2992 = vmatpush1.bf16.msra.mxu0 0
  %2993 = vmatprep.subr.bf16.mxu0 0
  %2994 = vmatpush1.bf16.msra.mxu0 0
  %2995 = vmatprep.mubr.bf16.mxu0 0
  %2996 = vmatmul.mubr.bf16.gmra.mrb[0].mxu0 %v105
  %v2997 = vpop.f32.mrb[0].mxu0
  %v2998 = vadd.f32 0.0, %v2997
  %v2999 = vpop.f32.mrb[0].mxu0
  %v3000 = vpop.f32.mrb[0].mxu0
  %v3001 = vadd.f32 0.0, %v3000
  %v3002 = vpop.f32.mrb[0].mxu0
  %3003 = vmatprep.mubr.bf16.mxu0 0
  %3004 = vmatmul.mubr.bf16.gmra.mrb[0].mxu0 %v106
  %v3005 = vpop.f32.mrb[0].mxu0
  %v3006 = vadd.f32 0.0, %v3005
  %v3007 = vpop.f32.mrb[0].mxu0
  %v3008 = vpop.f32.mrb[0].mxu0
  %v3009 = vadd.f32 0.0, %v3008
  %v3010 = vpop.f32.mrb[0].mxu0
  %3011 = vmatprep.mubr.bf16.mxu0 0
  %3012 = vmatmul.mubr.bf16.gmra.mrb[0].mxu0 %v107
  %v3013 = vpop.f32.mrb[0].mxu0
  %v3014 = vadd.f32 0.0, %v3013
  %v3015 = vpop.f32.mrb[0].mxu0
  %v3016 = vpop.f32.mrb[0].mxu0
  %v3017 = vadd.f32 0.0, %v3016
  %v3018 = vpop.f32.mrb[0].mxu0
  %3019 = vmatprep.mubr.bf16.mxu0 0
  %3020 = vmatmul.mubr.bf16.gmra.mrb[0].mxu0 %v108
  %v3021 = vpop.f32.mrb[0].mxu0
  %v3022 = vadd.f32 0.0, %v3021
  %v3023 = vpop.f32.mrb[0].mxu0
  %v3024 = vpop.f32.mrb[0].mxu0
  %v3025 = vadd.f32 0.0, %v3024
  %v3026 = vpop.f32.mrb[0].mxu0
  %3027 = vmatprep.mubr.bf16.mxu0 0
  %3028 = vmatmul.mubr.bf16.gmra.mrb[0].mxu0 %v109
  %v3029 = vpop.f32.mrb[0].mxu0
  %v3030 = vadd.f32 0.0, %v3029
  %v3031 = vpop.f32.mrb[0].mxu0
  %v3032 = vpop.f32.mrb[0].mxu0
  %v3033 = vadd.f32 0.0, %v3032
  %v3034 = vpop.f32.mrb[0].mxu0
  %3035 = vmatprep.mubr.bf16.mxu0 0
  %3036 = vmatmul.mubr.bf16.gmra.mrb[0].mxu0 %v110
  %v3037 = vpop.f32.mrb[0].mxu0
  %v3038 = vadd.f32 0.0, %v3037
  %v3039 = vpop.f32.mrb[0].mxu0
  %v3040 = vpop.f32.mrb[0].mxu0
  %v3041 = vadd.f32 0.0, %v3040
  %v3042 = vpop.f32.mrb[0].mxu0
  %3043 = vmatprep.mubr.bf16.mxu0 0
  %3044 = vmatmul.mubr.bf16.gmra.mrb[0].mxu0 %v111
  %v3045 = vpop.f32.mrb[0].mxu0
  %v3046 = vadd.f32 0.0, %v3045
  %v3047 = vpop.f32.mrb[0].mxu0
  %v3048 = vpop.f32.mrb[0].mxu0
  %v3049 = vadd.f32 0.0, %v3048
  %v3050 = vpop.f32.mrb[0].mxu0
  %3051 = vmatprep.mubr.bf16.mxu0 0
  %3052 = vmatmul.mubr.bf16.gmra.mrb[0].mxu0 %v112
  %v3053 = vpop.f32.mrb[0].mxu0
  %v3054 = vadd.f32 0.0, %v3053
  %v3055 = vpop.f32.mrb[0].mxu0
  %v3056 = vpop.f32.mrb[0].mxu0
  %v3057 = vadd.f32 0.0, %v3056
  %v3058 = vpop.f32.mrb[0].mxu0
  %3059 = vdwg.mxu0
  %v3060 = vpack.c.bf16 %v3001, %v2998
  %v3061 = vpack.c.bf16 %v3009, %v3006
  %v3062 = vpack.c.bf16 %v3017, %v3014
  %v3063 = vpack.c.bf16 %v3025, %v3022
  %v3064 = vpack.c.bf16 %v3033, %v3030
  %v3065 = vpack.c.bf16 %v3041, %v3038
  %v3066 = vpack.c.bf16 %v3049, %v3046
  %v3067 = vpack.c.bf16 %v3057, %v3054
  %v3068 = vld [vmem:[%s4] sm:$0xf]
  %v3069 = vld [vmem:[%s4 + $0x4] sm:$0xf]
  %3070 = vmatprep.subr.bf16.mxu0 0
  %3071 = vmatpush1.bf16.msra.mxu0 %v2955
  %3072 = vmatprep.subr.bf16.mxu0 0
  %3073 = vmatpush1.bf16.msra.mxu0 %v2956
  %3074 = vmatprep.subr.bf16.mxu0 0
  %3075 = vmatpush1.bf16.msra.mxu0 %v2957
  %3076 = vmatprep.subr.bf16.mxu0 0
  %3077 = vmatpush1.bf16.msra.mxu0 %v2958
  %3078 = vmatprep.subr.bf16.mxu0 0
  %3079 = vmatpush1.bf16.msra.mxu0 %v2959
  %3080 = vmatprep.subr.bf16.mxu0 0
  %3081 = vmatpush1.bf16.msra.mxu0 %v2960
  %3082 = vmatprep.subr.bf16.mxu0 0
  %3083 = vmatpush1.bf16.msra.mxu0 %v2961
  %3084 = vmatprep.subr.bf16.mxu0 0
  %3085 = vmatpush1.bf16.msra.mxu0 %v2962
  %3086 = vmatprep.subr.bf16.mxu0 0
  %3087 = vmatpush1.bf16.msra.mxu0 0
  %3088 = vmatprep.subr.bf16.mxu0 0
  %3089 = vmatpush1.bf16.msra.mxu0 0
  %3090 = vmatprep.subr.bf16.mxu0 0
  %3091 = vmatpush1.bf16.msra.mxu0 0
  %3092 = vmatprep.subr.bf16.mxu0 0
  %3093 = vmatpush1.bf16.msra.mxu0 0
  %3094 = vmatprep.subr.bf16.mxu0 0
  %3095 = vmatpush1.bf16.msra.mxu0 0
  %3096 = vmatprep.subr.bf16.mxu0 0
  %3097 = vmatpush1.bf16.msra.mxu0 0
  %3098 = vmatprep.subr.bf16.mxu0 0
  %3099 = vmatpush1.bf16.msra.mxu0 0
  %3100 = vmatprep.subr.bf16.mxu0 0
  %3101 = vmatpush1.bf16.msra.mxu0 0
  %3102 = vmatprep.mubr.bf16.mxu0 0
  %3103 = vmatmul.mubr.bf16.gmra.mrb[0].mxu0 %v325
  %v3104 = vpop.f32.mrb[0].mxu0
  %v3105 = vadd.f32 0.0, %v3104
  %v3106 = vpop.f32.mrb[0].mxu0
  %v3107 = vpop.f32.mrb[0].mxu0
  %v3108 = vadd.f32 0.0, %v3107
  %v3109 = vpop.f32.mrb[0].mxu0
  %3110 = vmatprep.mubr.bf16.mxu0 0
  %3111 = vmatmul.mubr.bf16.gmra.mrb[0].mxu0 %v326
  %v3112 = vpop.f32.mrb[0].mxu0
  %v3113 = vadd.f32 0.0, %v3112
  %v3114 = vpop.f32.mrb[0].mxu0
  %v3115 = vpop.f32.mrb[0].mxu0
  %v3116 = vadd.f32 0.0, %v3115
  %v3117 = vpop.f32.mrb[0].mxu0
  %3118 = vmatprep.mubr.bf16.mxu0 0
  %3119 = vmatmul.mubr.bf16.gmra.mrb[0].mxu0 %v327
  %v3120 = vpop.f32.mrb[0].mxu0
  %v3121 = vadd.f32 0.0, %v3120
  %v3122 = vpop.f32.mrb[0].mxu0
  %v3123 = vpop.f32.mrb[0].mxu0
  %v3124 = vadd.f32 0.0, %v3123
  %v3125 = vpop.f32.mrb[0].mxu0
  %3126 = vmatprep.mubr.bf16.mxu0 0
  %3127 = vmatmul.mubr.bf16.gmra.mrb[0].mxu0 %v328
  %v3128 = vpop.f32.mrb[0].mxu0
  %v3129 = vadd.f32 0.0, %v3128
  %v3130 = vpop.f32.mrb[0].mxu0
  %v3131 = vpop.f32.mrb[0].mxu0
  %v3132 = vadd.f32 0.0, %v3131
  %v3133 = vpop.f32.mrb[0].mxu0
  %3134 = vmatprep.mubr.bf16.mxu0 0
  %3135 = vmatmul.mubr.bf16.gmra.mrb[0].mxu0 %v329
  %v3136 = vpop.f32.mrb[0].mxu0
  %v3137 = vadd.f32 0.0, %v3136
  %v3138 = vpop.f32.mrb[0].mxu0
  %v3139 = vpop.f32.mrb[0].mxu0
  %v3140 = vadd.f32 0.0, %v3139
  %v3141 = vpop.f32.mrb[0].mxu0
  %3142 = vmatprep.mubr.bf16.mxu0 0
  %3143 = vmatmul.mubr.bf16.gmra.mrb[0].mxu0 %v330
  %v3144 = vpop.f32.mrb[0].mxu0
  %v3145 = vadd.f32 0.0, %v3144
  %v3146 = vpop.f32.mrb[0].mxu0
  %v3147 = vpop.f32.mrb[0].mxu0
  %v3148 = vadd.f32 0.0, %v3147
  %v3149 = vpop.f32.mrb[0].mxu0
  %3150 = vmatprep.mubr.bf16.mxu0 0
  %3151 = vmatmul.mubr.bf16.gmra.mrb[0].mxu0 %v331
  %v3152 = vpop.f32.mrb[0].mxu0
  %v3153 = vadd.f32 0.0, %v3152
  %v3154 = vpop.f32.mrb[0].mxu0
  %v3155 = vpop.f32.mrb[0].mxu0
  %v3156 = vadd.f32 0.0, %v3155
  %v3157 = vpop.f32.mrb[0].mxu0
  %3158 = vmatprep.mubr.bf16.mxu0 0
  %3159 = vmatmul.mubr.bf16.gmra.mrb[0].mxu0 %v332
  %v3160 = vpop.f32.mrb[0].mxu0
  %v3161 = vadd.f32 0.0, %v3160
  %v3162 = vpop.f32.mrb[0].mxu0
  %v3163 = vpop.f32.mrb[0].mxu0
  %v3164 = vadd.f32 0.0, %v3163
  %v3165 = vpop.f32.mrb[0].mxu0
  %3166 = vdwg.mxu0
  %v3167 = vpack.c.bf16 %v3108, %v3105
  %v3168 = vpack.c.bf16 %v3116, %v3113
  %v3169 = vpack.c.bf16 %v3124, %v3121
  %v3170 = vpack.c.bf16 %v3132, %v3129
  %v3171 = vpack.c.bf16 %v3140, %v3137
  %v3172 = vpack.c.bf16 %v3148, %v3145
  %v3173 = vpack.c.bf16 %v3156, %v3153
  %v3174 = vpack.c.bf16 %v3164, %v3161
  %s3175 = scalar_lea.vmem %s4, 8
  %v3176 = vld [vmem:[%s3175] sm:$0xf]
  %v3177 = vld [vmem:[%s3175 + $0x4] sm:$0xf]
  %v3180 = vunpack.c.l.b16 %v3176
  %v3181 = vunpack.c.l.b16 %v3177
  %v3182 = vpack.c.b16 %v3181, %v3180
  %v3185 = vsel %vm455, %v3167, 0
  %v3188 = vsel %vm455, %v3168, 0
  %v3191 = vsel %vm455, %v3169, 0
  %v3194 = vsel %vm455, %v3170, 0
  %v3197 = vsel %vm455, %v3171, 0
  %v3200 = vsel %vm455, %v3172, 0
  %v3203 = vsel %vm455, %v3173, 0
  %v3206 = vsel %vm455, %v3174, 0
  %3208 = vmatprep.subr.bf16.mxu0 0
  %3209 = vmatpush1.bf16.msra.mxu0 %v3182
  %3210 = vmatprep.subr.bf16.mxu0 0
  %3211 = vmatpush1.bf16.msra.mxu0 0
  %3212 = vmatprep.subr.bf16.mxu0 0
  %3213 = vmatpush1.bf16.msra.mxu0 0
  %3214 = vmatprep.subr.bf16.mxu0 0
  %3215 = vmatpush1.bf16.msra.mxu0 0
  %3216 = vmatprep.subr.bf16.mxu0 0
  %3217 = vmatpush1.bf16.msra.mxu0 0
  %3218 = vmatprep.subr.bf16.mxu0 0
  %3219 = vmatpush1.bf16.msra.mxu0 0
  %3220 = vmatprep.subr.bf16.mxu0 0
  %3221 = vmatpush1.bf16.msra.mxu0 0
  %3222 = vmatprep.subr.bf16.mxu0 0
  %3223 = vmatpush1.bf16.msra.mxu0 0
  %3224 = vmatprep.subr.bf16.mxu0 0
  %3225 = vmatpush1.bf16.msra.mxu0 0
  %3226 = vmatprep.subr.bf16.mxu0 0
  %3227 = vmatpush1.bf16.msra.mxu0 0
  %3228 = vmatprep.subr.bf16.mxu0 0
  %3229 = vmatpush1.bf16.msra.mxu0 0
  %3230 = vmatprep.subr.bf16.mxu0 0
  %3231 = vmatpush1.bf16.msra.mxu0 0
  %3232 = vmatprep.subr.bf16.mxu0 0
  %3233 = vmatpush1.bf16.msra.mxu0 0
  %3234 = vmatprep.subr.bf16.mxu0 0
  %3235 = vmatpush1.bf16.msra.mxu0 0
  %3236 = vmatprep.subr.bf16.mxu0 0
  %3237 = vmatpush1.bf16.msra.mxu0 0
  %3238 = vmatprep.subr.bf16.mxu0 0
  %3239 = vmatpush1.bf16.msra.mxu0 0
  %3240 = vmatprep.mubr.bf16.mxu0 0
  %3241 = vmatmul.mubr.bf16.gmra.mrb[0].mxu0 %v3185
  %v3242 = vpop.f32.mrb[0].mxu0
  %v3243 = vadd.f32 0.0, %v3242
  %v3244 = vpop.f32.mrb[0].mxu0
  %v3245 = vpop.f32.mrb[0].mxu0
  %v3246 = vadd.f32 0.0, %v3245
  %v3247 = vpop.f32.mrb[0].mxu0
  %3248 = vmatprep.mubr.bf16.mxu0 0
  %3249 = vmatmul.mubr.bf16.gmra.mrb[0].mxu0 %v3188
  %v3250 = vpop.f32.mrb[0].mxu0
  %v3251 = vadd.f32 0.0, %v3250
  %v3252 = vpop.f32.mrb[0].mxu0
  %v3253 = vpop.f32.mrb[0].mxu0
  %v3254 = vadd.f32 0.0, %v3253
  %v3255 = vpop.f32.mrb[0].mxu0
  %3256 = vmatprep.mubr.bf16.mxu0 0
  %3257 = vmatmul.mubr.bf16.gmra.mrb[0].mxu0 %v3191
  %v3258 = vpop.f32.mrb[0].mxu0
  %v3259 = vadd.f32 0.0, %v3258
  %v3260 = vpop.f32.mrb[0].mxu0
  %v3261 = vpop.f32.mrb[0].mxu0
  %v3262 = vadd.f32 0.0, %v3261
  %v3263 = vpop.f32.mrb[0].mxu0
  %3264 = vmatprep.mubr.bf16.mxu0 0
  %3265 = vmatmul.mubr.bf16.gmra.mrb[0].mxu0 %v3194
  %v3266 = vpop.f32.mrb[0].mxu0
  %v3267 = vadd.f32 0.0, %v3266
  %v3268 = vpop.f32.mrb[0].mxu0
  %v3269 = vpop.f32.mrb[0].mxu0
  %v3270 = vadd.f32 0.0, %v3269
  %v3271 = vpop.f32.mrb[0].mxu0
  %3272 = vmatprep.mubr.bf16.mxu0 0
  %3273 = vmatmul.mubr.bf16.gmra.mrb[0].mxu0 %v3197
  %v3274 = vpop.f32.mrb[0].mxu0
  %v3275 = vadd.f32 0.0, %v3274
  %v3276 = vpop.f32.mrb[0].mxu0
  %v3277 = vpop.f32.mrb[0].mxu0
  %v3278 = vadd.f32 0.0, %v3277
  %v3279 = vpop.f32.mrb[0].mxu0
  %3280 = vmatprep.mubr.bf16.mxu0 0
  %3281 = vmatmul.mubr.bf16.gmra.mrb[0].mxu0 %v3200
  %v3282 = vpop.f32.mrb[0].mxu0
  %v3283 = vadd.f32 0.0, %v3282
  %v3284 = vpop.f32.mrb[0].mxu0
  %v3285 = vpop.f32.mrb[0].mxu0
  %v3286 = vadd.f32 0.0, %v3285
  %v3287 = vpop.f32.mrb[0].mxu0
  %3288 = vmatprep.mubr.bf16.mxu0 0
  %3289 = vmatmul.mubr.bf16.gmra.mrb[0].mxu0 %v3203
  %v3290 = vpop.f32.mrb[0].mxu0
  %v3291 = vadd.f32 0.0, %v3290
  %v3292 = vpop.f32.mrb[0].mxu0
  %v3293 = vpop.f32.mrb[0].mxu0
  %v3294 = vadd.f32 0.0, %v3293
  %v3295 = vpop.f32.mrb[0].mxu0
  %3296 = vmatprep.mubr.bf16.mxu0 0
  %3297 = vmatmul.mubr.bf16.gmra.mrb[0].mxu0 %v3206
  %v3298 = vpop.f32.mrb[0].mxu0
  %v3299 = vadd.f32 0.0, %v3298
  %v3300 = vpop.f32.mrb[0].mxu0
  %v3301 = vpop.f32.mrb[0].mxu0
  %v3302 = vadd.f32 0.0, %v3301
  %v3303 = vpop.f32.mrb[0].mxu0
  %3304 = vdwg.mxu0
  %v3307 = vunpack.c.l.b16 %v3068
  %v3308 = vunpack.c.l.b16 %v3069
  %v3309 = vpack.c.b16 %v3308, %v3307
  %v3312 = vsel %vm455, %v3060, 0
  %v3315 = vsel %vm455, %v3061, 0
  %v3318 = vsel %vm455, %v3062, 0
  %v3321 = vsel %vm455, %v3063, 0
  %v3324 = vsel %vm455, %v3064, 0
  %v3327 = vsel %vm455, %v3065, 0
  %v3330 = vsel %vm455, %v3066, 0
  %v3333 = vsel %vm455, %v3067, 0
  %3335 = vmatprep.subr.bf16.mxu0 0
  %3336 = vmatpush1.bf16.msra.mxu0 %v3309
  %3337 = vmatprep.subr.bf16.mxu0 0
  %3338 = vmatpush1.bf16.msra.mxu0 0
  %3339 = vmatprep.subr.bf16.mxu0 0
  %3340 = vmatpush1.bf16.msra.mxu0 0
  %3341 = vmatprep.subr.bf16.mxu0 0
  %3342 = vmatpush1.bf16.msra.mxu0 0
  %3343 = vmatprep.subr.bf16.mxu0 0
  %3344 = vmatpush1.bf16.msra.mxu0 0
  %3345 = vmatprep.subr.bf16.mxu0 0
  %3346 = vmatpush1.bf16.msra.mxu0 0
  %3347 = vmatprep.subr.bf16.mxu0 0
  %3348 = vmatpush1.bf16.msra.mxu0 0
  %3349 = vmatprep.subr.bf16.mxu0 0
  %3350 = vmatpush1.bf16.msra.mxu0 0
  %3351 = vmatprep.subr.bf16.mxu0 0
  %3352 = vmatpush1.bf16.msra.mxu0 0
  %3353 = vmatprep.subr.bf16.mxu0 0
  %3354 = vmatpush1.bf16.msra.mxu0 0
  %3355 = vmatprep.subr.bf16.mxu0 0
  %3356 = vmatpush1.bf16.msra.mxu0 0
  %3357 = vmatprep.subr.bf16.mxu0 0
  %3358 = vmatpush1.bf16.msra.mxu0 0
  %3359 = vmatprep.subr.bf16.mxu0 0
  %3360 = vmatpush1.bf16.msra.mxu0 0
  %3361 = vmatprep.subr.bf16.mxu0 0
  %3362 = vmatpush1.bf16.msra.mxu0 0
  %3363 = vmatprep.subr.bf16.mxu0 0
  %3364 = vmatpush1.bf16.msra.mxu0 0
  %3365 = vmatprep.subr.bf16.mxu0 0
  %3366 = vmatpush1.bf16.msra.mxu0 0
  %3367 = vmatprep.mubr.bf16.mxu0 0
  %3368 = vmatmul.mubr.bf16.gmra.mrb[0].mxu0 %v3312
  %v3369 = vpop.f32.mrb[0].mxu0
  %v3370 = vadd.f32 %v3243, %v3369
  %v3371 = vpop.f32.mrb[0].mxu0
  %v3372 = vpop.f32.mrb[0].mxu0
  %v3373 = vadd.f32 %v3246, %v3372
  %v3374 = vpop.f32.mrb[0].mxu0
  %3375 = vmatprep.mubr.bf16.mxu0 0
  %3376 = vmatmul.mubr.bf16.gmra.mrb[0].mxu0 %v3315
  %v3377 = vpop.f32.mrb[0].mxu0
  %v3378 = vadd.f32 %v3251, %v3377
  %v3379 = vpop.f32.mrb[0].mxu0
  %v3380 = vpop.f32.mrb[0].mxu0
  %v3381 = vadd.f32 %v3254, %v3380
  %v3382 = vpop.f32.mrb[0].mxu0
  %3383 = vmatprep.mubr.bf16.mxu0 0
  %3384 = vmatmul.mubr.bf16.gmra.mrb[0].mxu0 %v3318
  %v3385 = vpop.f32.mrb[0].mxu0
  %v3386 = vadd.f32 %v3259, %v3385
  %v3387 = vpop.f32.mrb[0].mxu0
  %v3388 = vpop.f32.mrb[0].mxu0
  %v3389 = vadd.f32 %v3262, %v3388
  %v3390 = vpop.f32.mrb[0].mxu0
  %3391 = vmatprep.mubr.bf16.mxu0 0
  %3392 = vmatmul.mubr.bf16.gmra.mrb[0].mxu0 %v3321
  %v3393 = vpop.f32.mrb[0].mxu0
  %v3394 = vadd.f32 %v3267, %v3393
  %v3395 = vpop.f32.mrb[0].mxu0
  %v3396 = vpop.f32.mrb[0].mxu0
  %v3397 = vadd.f32 %v3270, %v3396
  %v3398 = vpop.f32.mrb[0].mxu0
  %3399 = vmatprep.mubr.bf16.mxu0 0
  %3400 = vmatmul.mubr.bf16.gmra.mrb[0].mxu0 %v3324
  %v3401 = vpop.f32.mrb[0].mxu0
  %v3402 = vadd.f32 %v3275, %v3401
  %v3403 = vpop.f32.mrb[0].mxu0
  %v3404 = vpop.f32.mrb[0].mxu0
  %v3405 = vadd.f32 %v3278, %v3404
  %v3406 = vpop.f32.mrb[0].mxu0
  %3407 = vmatprep.mubr.bf16.mxu0 0
  %3408 = vmatmul.mubr.bf16.gmra.mrb[0].mxu0 %v3327
  %v3409 = vpop.f32.mrb[0].mxu0
  %v3410 = vadd.f32 %v3283, %v3409
  %v3411 = vpop.f32.mrb[0].mxu0
  %v3412 = vpop.f32.mrb[0].mxu0
  %v3413 = vadd.f32 %v3286, %v3412
  %v3414 = vpop.f32.mrb[0].mxu0
  %3415 = vmatprep.mubr.bf16.mxu0 0
  %3416 = vmatmul.mubr.bf16.gmra.mrb[0].mxu0 %v3330
  %v3417 = vpop.f32.mrb[0].mxu0
  %v3418 = vadd.f32 %v3291, %v3417
  %v3419 = vpop.f32.mrb[0].mxu0
  %v3420 = vpop.f32.mrb[0].mxu0
  %v3421 = vadd.f32 %v3294, %v3420
  %v3422 = vpop.f32.mrb[0].mxu0
  %3423 = vmatprep.mubr.bf16.mxu0 0
  %3424 = vmatmul.mubr.bf16.gmra.mrb[0].mxu0 %v3333
  %v3425 = vpop.f32.mrb[0].mxu0
  %v3426 = vadd.f32 %v3299, %v3425
  %v3427 = vpop.f32.mrb[0].mxu0
  %v3428 = vpop.f32.mrb[0].mxu0
  %v3429 = vadd.f32 %v3302, %v3428
  %v3430 = vpop.f32.mrb[0].mxu0
  %3431 = vdwg.mxu0
  %3432 = vmatprep.subr.bf16.mxu0 0
  %3433 = vmatpush1.bf16.msra.mxu0 %v2955
  %3434 = vmatprep.subr.bf16.mxu0 0
  %3435 = vmatpush1.bf16.msra.mxu0 %v2956
  %3436 = vmatprep.subr.bf16.mxu0 0
  %3437 = vmatpush1.bf16.msra.mxu0 %v2957
  %3438 = vmatprep.subr.bf16.mxu0 0
  %3439 = vmatpush1.bf16.msra.mxu0 %v2958
  %3440 = vmatprep.subr.bf16.mxu0 0
  %3441 = vmatpush1.bf16.msra.mxu0 %v2959
  %3442 = vmatprep.subr.bf16.mxu0 0
  %3443 = vmatpush1.bf16.msra.mxu0 %v2960
  %3444 = vmatprep.subr.bf16.mxu0 0
  %3445 = vmatpush1.bf16.msra.mxu0 %v2961
  %3446 = vmatprep.subr.bf16.mxu0 0
  %3447 = vmatpush1.bf16.msra.mxu0 %v2962
  %3448 = vmatprep.subr.bf16.mxu0 0
  %3449 = vmatpush1.bf16.msra.mxu0 0
  %3450 = vmatprep.subr.bf16.mxu0 0
  %3451 = vmatpush1.bf16.msra.mxu0 0
  %3452 = vmatprep.subr.bf16.mxu0 0
  %3453 = vmatpush1.bf16.msra.mxu0 0
  %3454 = vmatprep.subr.bf16.mxu0 0
  %3455 = vmatpush1.bf16.msra.mxu0 0
  %3456 = vmatprep.subr.bf16.mxu0 0
  %3457 = vmatpush1.bf16.msra.mxu0 0
  %3458 = vmatprep.subr.bf16.mxu0 0
  %3459 = vmatpush1.bf16.msra.mxu0 0
  %3460 = vmatprep.subr.bf16.mxu0 0
  %3461 = vmatpush1.bf16.msra.mxu0 0
  %3462 = vmatprep.subr.bf16.mxu0 0
  %3463 = vmatpush1.bf16.msra.mxu0 0
  %3464 = vmatprep.mubr.bf16.mxu0 0
  %3465 = vmatmul.mubr.bf16.gmra.mrb[0].mxu0 %v753
  %v3466 = vpop.f32.mrb[0].mxu0
  %v3467 = vadd.f32 0.0, %v3466
  %v3468 = vpop.f32.mrb[0].mxu0
  %v3469 = vpop.f32.mrb[0].mxu0
  %v3470 = vadd.f32 0.0, %v3469
  %v3471 = vpop.f32.mrb[0].mxu0
  %3472 = vmatprep.mubr.bf16.mxu0 0
  %3473 = vmatmul.mubr.bf16.gmra.mrb[0].mxu0 %v754
  %v3474 = vpop.f32.mrb[0].mxu0
  %v3475 = vadd.f32 0.0, %v3474
  %v3476 = vpop.f32.mrb[0].mxu0
  %v3477 = vpop.f32.mrb[0].mxu0
  %v3478 = vadd.f32 0.0, %v3477
  %v3479 = vpop.f32.mrb[0].mxu0
  %3480 = vmatprep.mubr.bf16.mxu0 0
  %3481 = vmatmul.mubr.bf16.gmra.mrb[0].mxu0 %v755
  %v3482 = vpop.f32.mrb[0].mxu0
  %v3483 = vadd.f32 0.0, %v3482
  %v3484 = vpop.f32.mrb[0].mxu0
  %v3485 = vpop.f32.mrb[0].mxu0
  %v3486 = vadd.f32 0.0, %v3485
  %v3487 = vpop.f32.mrb[0].mxu0
  %3488 = vmatprep.mubr.bf16.mxu0 0
  %3489 = vmatmul.mubr.bf16.gmra.mrb[0].mxu0 %v756
  %v3490 = vpop.f32.mrb[0].mxu0
  %v3491 = vadd.f32 0.0, %v3490
  %v3492 = vpop.f32.mrb[0].mxu0
  %v3493 = vpop.f32.mrb[0].mxu0
  %v3494 = vadd.f32 0.0, %v3493
  %v3495 = vpop.f32.mrb[0].mxu0
  %3496 = vmatprep.mubr.bf16.mxu0 0
  %3497 = vmatmul.mubr.bf16.gmra.mrb[0].mxu0 %v757
  %v3498 = vpop.f32.mrb[0].mxu0
  %v3499 = vadd.f32 0.0, %v3498
  %v3500 = vpop.f32.mrb[0].mxu0
  %v3501 = vpop.f32.mrb[0].mxu0
  %v3502 = vadd.f32 0.0, %v3501
  %v3503 = vpop.f32.mrb[0].mxu0
  %3504 = vmatprep.mubr.bf16.mxu0 0
  %3505 = vmatmul.mubr.bf16.gmra.mrb[0].mxu0 %v758
  %v3506 = vpop.f32.mrb[0].mxu0
  %v3507 = vadd.f32 0.0, %v3506
  %v3508 = vpop.f32.mrb[0].mxu0
  %v3509 = vpop.f32.mrb[0].mxu0
  %v3510 = vadd.f32 0.0, %v3509
  %v3511 = vpop.f32.mrb[0].mxu0
  %3512 = vmatprep.mubr.bf16.mxu0 0
  %3513 = vmatmul.mubr.bf16.gmra.mrb[0].mxu0 %v759
  %v3514 = vpop.f32.mrb[0].mxu0
  %v3515 = vadd.f32 0.0, %v3514
  %v3516 = vpop.f32.mrb[0].mxu0
  %v3517 = vpop.f32.mrb[0].mxu0
  %v3518 = vadd.f32 0.0, %v3517
  %v3519 = vpop.f32.mrb[0].mxu0
  %3520 = vmatprep.mubr.bf16.mxu0 0
  %3521 = vmatmul.mubr.bf16.gmra.mrb[0].mxu0 %v760
  %v3522 = vpop.f32.mrb[0].mxu0
  %v3523 = vadd.f32 0.0, %v3522
  %v3524 = vpop.f32.mrb[0].mxu0
  %v3525 = vpop.f32.mrb[0].mxu0
  %v3526 = vadd.f32 0.0, %v3525
  %v3527 = vpop.f32.mrb[0].mxu0
  %3528 = vdwg.mxu0
  %v3529 = vpack.c.bf16 %v3470, %v3467
  %v3530 = vpack.c.bf16 %v3478, %v3475
  %v3531 = vpack.c.bf16 %v3486, %v3483
  %v3532 = vpack.c.bf16 %v3494, %v3491
  %v3533 = vpack.c.bf16 %v3502, %v3499
  %v3534 = vpack.c.bf16 %v3510, %v3507
  %v3535 = vpack.c.bf16 %v3518, %v3515
  %v3536 = vpack.c.bf16 %v3526, %v3523
  %s3537 = scalar_lea.vmem %s4, 16
  %v3538 = vld [vmem:[%s3537] sm:$0xf]
  %v3539 = vld [vmem:[%s3537 + $0x4] sm:$0xf]
  %v3542 = vunpack.c.l.b16 %v3538
  %v3543 = vunpack.c.l.b16 %v3539
  %v3544 = vpack.c.b16 %v3543, %v3542
  %v3547 = vsel %vm455, %v3529, 0
  %v3550 = vsel %vm455, %v3530, 0
  %v3553 = vsel %vm455, %v3531, 0
  %v3556 = vsel %vm455, %v3532, 0
  %v3559 = vsel %vm455, %v3533, 0
  %v3562 = vsel %vm455, %v3534, 0
  %v3565 = vsel %vm455, %v3535, 0
  %v3568 = vsel %vm455, %v3536, 0
  %3570 = vmatprep.subr.bf16.mxu0 0
  %3571 = vmatpush1.bf16.msra.mxu0 %v3544
  %3572 = vmatprep.subr.bf16.mxu0 0
  %3573 = vmatpush1.bf16.msra.mxu0 0
  %3574 = vmatprep.subr.bf16.mxu0 0
  %3575 = vmatpush1.bf16.msra.mxu0 0
  %3576 = vmatprep.subr.bf16.mxu0 0
  %3577 = vmatpush1.bf16.msra.mxu0 0
  %3578 = vmatprep.subr.bf16.mxu0 0
  %3579 = vmatpush1.bf16.msra.mxu0 0
  %3580 = vmatprep.subr.bf16.mxu0 0
  %3581 = vmatpush1.bf16.msra.mxu0 0
  %3582 = vmatprep.subr.bf16.mxu0 0
  %3583 = vmatpush1.bf16.msra.mxu0 0
  %3584 = vmatprep.subr.bf16.mxu0 0
  %3585 = vmatpush1.bf16.msra.mxu0 0
  %3586 = vmatprep.subr.bf16.mxu0 0
  %3587 = vmatpush1.bf16.msra.mxu0 0
  %3588 = vmatprep.subr.bf16.mxu0 0
  %3589 = vmatpush1.bf16.msra.mxu0 0
  %3590 = vmatprep.subr.bf16.mxu0 0
  %3591 = vmatpush1.bf16.msra.mxu0 0
  %3592 = vmatprep.subr.bf16.mxu0 0
  %3593 = vmatpush1.bf16.msra.mxu0 0
  %3594 = vmatprep.subr.bf16.mxu0 0
  %3595 = vmatpush1.bf16.msra.mxu0 0
  %3596 = vmatprep.subr.bf16.mxu0 0
  %3597 = vmatpush1.bf16.msra.mxu0 0
  %3598 = vmatprep.subr.bf16.mxu0 0
  %3599 = vmatpush1.bf16.msra.mxu0 0
  %3600 = vmatprep.subr.bf16.mxu0 0
  %3601 = vmatpush1.bf16.msra.mxu0 0
  %3602 = vmatprep.mubr.bf16.mxu0 0
  %3603 = vmatmul.mubr.bf16.gmra.mrb[0].mxu0 %v3547
  %v3604 = vpop.f32.mrb[0].mxu0
  %v3605 = vadd.f32 0.0, %v3604
  %v3606 = vpop.f32.mrb[0].mxu0
  %v3607 = vpop.f32.mrb[0].mxu0
  %v3608 = vadd.f32 0.0, %v3607
  %v3609 = vpop.f32.mrb[0].mxu0
  %3610 = vmatprep.mubr.bf16.mxu0 0
  %3611 = vmatmul.mubr.bf16.gmra.mrb[0].mxu0 %v3550
  %v3612 = vpop.f32.mrb[0].mxu0
  %v3613 = vadd.f32 0.0, %v3612
  %v3614 = vpop.f32.mrb[0].mxu0
  %v3615 = vpop.f32.mrb[0].mxu0
  %v3616 = vadd.f32 0.0, %v3615
  %v3617 = vpop.f32.mrb[0].mxu0
  %3618 = vmatprep.mubr.bf16.mxu0 0
  %3619 = vmatmul.mubr.bf16.gmra.mrb[0].mxu0 %v3553
  %v3620 = vpop.f32.mrb[0].mxu0
  %v3621 = vadd.f32 0.0, %v3620
  %v3622 = vpop.f32.mrb[0].mxu0
  %v3623 = vpop.f32.mrb[0].mxu0
  %v3624 = vadd.f32 0.0, %v3623
  %v3625 = vpop.f32.mrb[0].mxu0
  %3626 = vmatprep.mubr.bf16.mxu0 0
  %3627 = vmatmul.mubr.bf16.gmra.mrb[0].mxu0 %v3556
  %v3628 = vpop.f32.mrb[0].mxu0
  %v3629 = vadd.f32 0.0, %v3628
  %v3630 = vpop.f32.mrb[0].mxu0
  %v3631 = vpop.f32.mrb[0].mxu0
  %v3632 = vadd.f32 0.0, %v3631
  %v3633 = vpop.f32.mrb[0].mxu0
  %3634 = vmatprep.mubr.bf16.mxu0 0
  %3635 = vmatmul.mubr.bf16.gmra.mrb[0].mxu0 %v3559
  %v3636 = vpop.f32.mrb[0].mxu0
  %v3637 = vadd.f32 0.0, %v3636
  %v3638 = vpop.f32.mrb[0].mxu0
  %v3639 = vpop.f32.mrb[0].mxu0
  %v3640 = vadd.f32 0.0, %v3639
  %v3641 = vpop.f32.mrb[0].mxu0
  %3642 = vmatprep.mubr.bf16.mxu0 0
  %3643 = vmatmul.mubr.bf16.gmra.mrb[0].mxu0 %v3562
  %v3644 = vpop.f32.mrb[0].mxu0
  %v3645 = vadd.f32 0.0, %v3644
  %v3646 = vpop.f32.mrb[0].mxu0
  %v3647 = vpop.f32.mrb[0].mxu0
  %v3648 = vadd.f32 0.0, %v3647
  %v3649 = vpop.f32.mrb[0].mxu0
  %3650 = vmatprep.mubr.bf16.mxu0 0
  %3651 = vmatmul.mubr.bf16.gmra.mrb[0].mxu0 %v3565
  %v3652 = vpop.f32.mrb[0].mxu0
  %v3653 = vadd.f32 0.0, %v3652
  %v3654 = vpop.f32.mrb[0].mxu0
  %v3655 = vpop.f32.mrb[0].mxu0
  %v3656 = vadd.f32 0.0, %v3655
  %v3657 = vpop.f32.mrb[0].mxu0
  %3658 = vmatprep.mubr.bf16.mxu0 0
  %3659 = vmatmul.mubr.bf16.gmra.mrb[0].mxu0 %v3568
  %v3660 = vpop.f32.mrb[0].mxu0
  %v3661 = vadd.f32 0.0, %v3660
  %v3662 = vpop.f32.mrb[0].mxu0
  %v3663 = vpop.f32.mrb[0].mxu0
  %v3664 = vadd.f32 0.0, %v3663
  %v3665 = vpop.f32.mrb[0].mxu0
  %3666 = vdwg.mxu0
  %v3667 = vadd.f32 %v3370, %v3605
  %v3668 = vadd.f32 %v3373, %v3608
  %v3669 = vadd.f32 %v3378, %v3613
  %v3670 = vadd.f32 %v3381, %v3616
  %v3671 = vadd.f32 %v3386, %v3621
  %v3672 = vadd.f32 %v3389, %v3624
  %v3673 = vadd.f32 %v3394, %v3629
  %v3674 = vadd.f32 %v3397, %v3632
  %v3675 = vadd.f32 %v3402, %v3637
  %v3676 = vadd.f32 %v3405, %v3640
  %v3677 = vadd.f32 %v3410, %v3645
  %v3678 = vadd.f32 %v3413, %v3648
  %v3679 = vadd.f32 %v3418, %v3653
  %v3680 = vadd.f32 %v3421, %v3656
  %v3681 = vadd.f32 %v3426, %v3661
  %v3682 = vadd.f32 %v3429, %v3664
  %3683 = vmatprep.subr.bf16.mxu0 0
  %3684 = vmatpush1.bf16.msra.mxu0 %v2955
  %3685 = vmatprep.subr.bf16.mxu0 0
  %3686 = vmatpush1.bf16.msra.mxu0 %v2956
  %3687 = vmatprep.subr.bf16.mxu0 0
  %3688 = vmatpush1.bf16.msra.mxu0 %v2957
  %3689 = vmatprep.subr.bf16.mxu0 0
  %3690 = vmatpush1.bf16.msra.mxu0 %v2958
  %3691 = vmatprep.subr.bf16.mxu0 0
  %3692 = vmatpush1.bf16.msra.mxu0 %v2959
  %3693 = vmatprep.subr.bf16.mxu0 0
  %3694 = vmatpush1.bf16.msra.mxu0 %v2960
  %3695 = vmatprep.subr.bf16.mxu0 0
  %3696 = vmatpush1.bf16.msra.mxu0 %v2961
  %3697 = vmatprep.subr.bf16.mxu0 0
  %3698 = vmatpush1.bf16.msra.mxu0 %v2962
  %3699 = vmatprep.subr.bf16.mxu0 0
  %3700 = vmatpush1.bf16.msra.mxu0 0
  %3701 = vmatprep.subr.bf16.mxu0 0
  %3702 = vmatpush1.bf16.msra.mxu0 0
  %3703 = vmatprep.subr.bf16.mxu0 0
  %3704 = vmatpush1.bf16.msra.mxu0 0
  %3705 = vmatprep.subr.bf16.mxu0 0
  %3706 = vmatpush1.bf16.msra.mxu0 0
  %3707 = vmatprep.subr.bf16.mxu0 0
  %3708 = vmatpush1.bf16.msra.mxu0 0
  %3709 = vmatprep.subr.bf16.mxu0 0
  %3710 = vmatpush1.bf16.msra.mxu0 0
  %3711 = vmatprep.subr.bf16.mxu0 0
  %3712 = vmatpush1.bf16.msra.mxu0 0
  %3713 = vmatprep.subr.bf16.mxu0 0
  %3714 = vmatpush1.bf16.msra.mxu0 0
  %3715 = vmatprep.mubr.bf16.mxu0 0
  %3716 = vmatmul.mubr.bf16.gmra.mrb[0].mxu0 %v1069
  %v3717 = vpop.f32.mrb[0].mxu0
  %v3718 = vadd.f32 0.0, %v3717
  %v3719 = vpop.f32.mrb[0].mxu0
  %v3720 = vpop.f32.mrb[0].mxu0
  %v3721 = vadd.f32 0.0, %v3720
  %v3722 = vpop.f32.mrb[0].mxu0
  %3723 = vmatprep.mubr.bf16.mxu0 0
  %3724 = vmatmul.mubr.bf16.gmra.mrb[0].mxu0 %v1070
  %v3725 = vpop.f32.mrb[0].mxu0
  %v3726 = vadd.f32 0.0, %v3725
  %v3727 = vpop.f32.mrb[0].mxu0
  %v3728 = vpop.f32.mrb[0].mxu0
  %v3729 = vadd.f32 0.0, %v3728
  %v3730 = vpop.f32.mrb[0].mxu0
  %3731 = vmatprep.mubr.bf16.mxu0 0
  %3732 = vmatmul.mubr.bf16.gmra.mrb[0].mxu0 %v1071
  %v3733 = vpop.f32.mrb[0].mxu0
  %v3734 = vadd.f32 0.0, %v3733
  %v3735 = vpop.f32.mrb[0].mxu0
  %v3736 = vpop.f32.mrb[0].mxu0
  %v3737 = vadd.f32 0.0, %v3736
  %v3738 = vpop.f32.mrb[0].mxu0
  %3739 = vmatprep.mubr.bf16.mxu0 0
  %3740 = vmatmul.mubr.bf16.gmra.mrb[0].mxu0 %v1072
  %v3741 = vpop.f32.mrb[0].mxu0
  %v3742 = vadd.f32 0.0, %v3741
  %v3743 = vpop.f32.mrb[0].mxu0
  %v3744 = vpop.f32.mrb[0].mxu0
  %v3745 = vadd.f32 0.0, %v3744
  %v3746 = vpop.f32.mrb[0].mxu0
  %3747 = vmatprep.mubr.bf16.mxu0 0
  %3748 = vmatmul.mubr.bf16.gmra.mrb[0].mxu0 %v1073
  %v3749 = vpop.f32.mrb[0].mxu0
  %v3750 = vadd.f32 0.0, %v3749
  %v3751 = vpop.f32.mrb[0].mxu0
  %v3752 = vpop.f32.mrb[0].mxu0
  %v3753 = vadd.f32 0.0, %v3752
  %v3754 = vpop.f32.mrb[0].mxu0
  %3755 = vmatprep.mubr.bf16.mxu0 0
  %3756 = vmatmul.mubr.bf16.gmra.mrb[0].mxu0 %v1074
  %v3757 = vpop.f32.mrb[0].mxu0
  %v3758 = vadd.f32 0.0, %v3757
  %v3759 = vpop.f32.mrb[0].mxu0
  %v3760 = vpop.f32.mrb[0].mxu0
  %v3761 = vadd.f32 0.0, %v3760
  %v3762 = vpop.f32.mrb[0].mxu0
  %3763 = vmatprep.mubr.bf16.mxu0 0
  %3764 = vmatmul.mubr.bf16.gmra.mrb[0].mxu0 %v1075
  %v3765 = vpop.f32.mrb[0].mxu0
  %v3766 = vadd.f32 0.0, %v3765
  %v3767 = vpop.f32.mrb[0].mxu0
  %v3768 = vpop.f32.mrb[0].mxu0
  %v3769 = vadd.f32 0.0, %v3768
  %v3770 = vpop.f32.mrb[0].mxu0
  %3771 = vmatprep.mubr.bf16.mxu0 0
  %3772 = vmatmul.mubr.bf16.gmra.mrb[0].mxu0 %v1076
  %v3773 = vpop.f32.mrb[0].mxu0
  %v3774 = vadd.f32 0.0, %v3773
  %v3775 = vpop.f32.mrb[0].mxu0
  %v3776 = vpop.f32.mrb[0].mxu0
  %v3777 = vadd.f32 0.0, %v3776
  %v3778 = vpop.f32.mrb[0].mxu0
  %3779 = vdwg.mxu0
  %v3780 = vpack.c.bf16 %v3721, %v3718
  %v3781 = vpack.c.bf16 %v3729, %v3726
  %v3782 = vpack.c.bf16 %v3737, %v3734
  %v3783 = vpack.c.bf16 %v3745, %v3742
  %v3784 = vpack.c.bf16 %v3753, %v3750
  %v3785 = vpack.c.bf16 %v3761, %v3758
  %v3786 = vpack.c.bf16 %v3769, %v3766
  %v3787 = vpack.c.bf16 %v3777, %v3774
  %s3788 = scalar_lea.vmem %s4, 24
  %v3789 = vld [vmem:[%s3788] sm:$0xf]
  %v3790 = vld [vmem:[%s3788 + $0x4] sm:$0xf]
  %v3793 = vunpack.c.l.b16 %v3789
  %v3794 = vunpack.c.l.b16 %v3790
  %v3795 = vpack.c.b16 %v3794, %v3793
  %v3798 = vsel %vm455, %v3780, 0
  %v3801 = vsel %vm455, %v3781, 0
  %v3804 = vsel %vm455, %v3782, 0
  %v3807 = vsel %vm455, %v3783, 0
  %v3810 = vsel %vm455, %v3784, 0
  %v3813 = vsel %vm455, %v3785, 0
  %v3816 = vsel %vm455, %v3786, 0
  %v3819 = vsel %vm455, %v3787, 0
  %3821 = vmatprep.subr.bf16.mxu0 0
  %3822 = vmatpush1.bf16.msra.mxu0 %v3795
  %3823 = vmatprep.subr.bf16.mxu0 0
  %3824 = vmatpush1.bf16.msra.mxu0 0
  %3825 = vmatprep.subr.bf16.mxu0 0
  %3826 = vmatpush1.bf16.msra.mxu0 0
  %3827 = vmatprep.subr.bf16.mxu0 0
  %3828 = vmatpush1.bf16.msra.mxu0 0
  %3829 = vmatprep.subr.bf16.mxu0 0
  %3830 = vmatpush1.bf16.msra.mxu0 0
  %3831 = vmatprep.subr.bf16.mxu0 0
  %3832 = vmatpush1.bf16.msra.mxu0 0
  %3833 = vmatprep.subr.bf16.mxu0 0
  %3834 = vmatpush1.bf16.msra.mxu0 0
  %3835 = vmatprep.subr.bf16.mxu0 0
  %3836 = vmatpush1.bf16.msra.mxu0 0
  %3837 = vmatprep.subr.bf16.mxu0 0
  %3838 = vmatpush1.bf16.msra.mxu0 0
  %3839 = vmatprep.subr.bf16.mxu0 0
  %3840 = vmatpush1.bf16.msra.mxu0 0
  %3841 = vmatprep.subr.bf16.mxu0 0
  %3842 = vmatpush1.bf16.msra.mxu0 0
  %3843 = vmatprep.subr.bf16.mxu0 0
  %3844 = vmatpush1.bf16.msra.mxu0 0
  %3845 = vmatprep.subr.bf16.mxu0 0
  %3846 = vmatpush1.bf16.msra.mxu0 0
  %3847 = vmatprep.subr.bf16.mxu0 0
  %3848 = vmatpush1.bf16.msra.mxu0 0
  %3849 = vmatprep.subr.bf16.mxu0 0
  %3850 = vmatpush1.bf16.msra.mxu0 0
  %3851 = vmatprep.subr.bf16.mxu0 0
  %3852 = vmatpush1.bf16.msra.mxu0 0
  %3853 = vmatprep.mubr.bf16.mxu0 0
  %3854 = vmatmul.mubr.bf16.gmra.mrb[0].mxu0 %v3798
  %v3855 = vpop.f32.mrb[0].mxu0
  %v3856 = vadd.f32 0.0, %v3855
  %v3857 = vpop.f32.mrb[0].mxu0
  %v3858 = vpop.f32.mrb[0].mxu0
  %v3859 = vadd.f32 0.0, %v3858
  %v3860 = vpop.f32.mrb[0].mxu0
  %3861 = vmatprep.mubr.bf16.mxu0 0
  %3862 = vmatmul.mubr.bf16.gmra.mrb[0].mxu0 %v3801
  %v3863 = vpop.f32.mrb[0].mxu0
  %v3864 = vadd.f32 0.0, %v3863
  %v3865 = vpop.f32.mrb[0].mxu0
  %v3866 = vpop.f32.mrb[0].mxu0
  %v3867 = vadd.f32 0.0, %v3866
  %v3868 = vpop.f32.mrb[0].mxu0
  %3869 = vmatprep.mubr.bf16.mxu0 0
  %3870 = vmatmul.mubr.bf16.gmra.mrb[0].mxu0 %v3804
  %v3871 = vpop.f32.mrb[0].mxu0
  %v3872 = vadd.f32 0.0, %v3871
  %v3873 = vpop.f32.mrb[0].mxu0
  %v3874 = vpop.f32.mrb[0].mxu0
  %v3875 = vadd.f32 0.0, %v3874
  %v3876 = vpop.f32.mrb[0].mxu0
  %3877 = vmatprep.mubr.bf16.mxu0 0
  %3878 = vmatmul.mubr.bf16.gmra.mrb[0].mxu0 %v3807
  %v3879 = vpop.f32.mrb[0].mxu0
  %v3880 = vadd.f32 0.0, %v3879
  %v3881 = vpop.f32.mrb[0].mxu0
  %v3882 = vpop.f32.mrb[0].mxu0
  %v3883 = vadd.f32 0.0, %v3882
  %v3884 = vpop.f32.mrb[0].mxu0
  %3885 = vmatprep.mubr.bf16.mxu0 0
  %3886 = vmatmul.mubr.bf16.gmra.mrb[0].mxu0 %v3810
  %v3887 = vpop.f32.mrb[0].mxu0
  %v3888 = vadd.f32 0.0, %v3887
  %v3889 = vpop.f32.mrb[0].mxu0
  %v3890 = vpop.f32.mrb[0].mxu0
  %v3891 = vadd.f32 0.0, %v3890
  %v3892 = vpop.f32.mrb[0].mxu0
  %3893 = vmatprep.mubr.bf16.mxu0 0
  %3894 = vmatmul.mubr.bf16.gmra.mrb[0].mxu0 %v3813
  %v3895 = vpop.f32.mrb[0].mxu0
  %v3896 = vadd.f32 0.0, %v3895
  %v3897 = vpop.f32.mrb[0].mxu0
  %v3898 = vpop.f32.mrb[0].mxu0
  %v3899 = vadd.f32 0.0, %v3898
  %v3900 = vpop.f32.mrb[0].mxu0
  %3901 = vmatprep.mubr.bf16.mxu0 0
  %3902 = vmatmul.mubr.bf16.gmra.mrb[0].mxu0 %v3816
  %v3903 = vpop.f32.mrb[0].mxu0
  %v3904 = vadd.f32 0.0, %v3903
  %v3905 = vpop.f32.mrb[0].mxu0
  %v3906 = vpop.f32.mrb[0].mxu0
  %v3907 = vadd.f32 0.0, %v3906
  %v3908 = vpop.f32.mrb[0].mxu0
  %3909 = vmatprep.mubr.bf16.mxu0 0
  %3910 = vmatmul.mubr.bf16.gmra.mrb[0].mxu0 %v3819
  %v3911 = vpop.f32.mrb[0].mxu0
  %v3912 = vadd.f32 0.0, %v3911
  %v3913 = vpop.f32.mrb[0].mxu0
  %v3914 = vpop.f32.mrb[0].mxu0
  %v3915 = vadd.f32 0.0, %v3914
  %v3916 = vpop.f32.mrb[0].mxu0
  %3917 = vdwg.mxu0
  %v3918 = vadd.f32 %v3667, %v3856
  %v3919 = vadd.f32 %v3668, %v3859
  %v3920 = vadd.f32 %v3669, %v3864
  %v3921 = vadd.f32 %v3670, %v3867
  %v3922 = vadd.f32 %v3671, %v3872
  %v3923 = vadd.f32 %v3672, %v3875
  %v3924 = vadd.f32 %v3673, %v3880
  %v3925 = vadd.f32 %v3674, %v3883
  %v3926 = vadd.f32 %v3675, %v3888
  %v3927 = vadd.f32 %v3676, %v3891
  %v3928 = vadd.f32 %v3677, %v3896
  %v3929 = vadd.f32 %v3678, %v3899
  %v3930 = vadd.f32 %v3679, %v3904
  %v3931 = vadd.f32 %v3680, %v3907
  %v3932 = vadd.f32 %v3681, %v3912
  %v3933 = vadd.f32 %v3682, %v3915
  %3934 = vmatprep.subr.bf16.mxu0 0
  %3935 = vmatpush1.bf16.msra.mxu0 %v2955
  %3936 = vmatprep.subr.bf16.mxu0 0
  %3937 = vmatpush1.bf16.msra.mxu0 %v2956
  %3938 = vmatprep.subr.bf16.mxu0 0
  %3939 = vmatpush1.bf16.msra.mxu0 %v2957
  %3940 = vmatprep.subr.bf16.mxu0 0
  %3941 = vmatpush1.bf16.msra.mxu0 %v2958
  %3942 = vmatprep.subr.bf16.mxu0 0
  %3943 = vmatpush1.bf16.msra.mxu0 %v2959
  %3944 = vmatprep.subr.bf16.mxu0 0
  %3945 = vmatpush1.bf16.msra.mxu0 %v2960
  %3946 = vmatprep.subr.bf16.mxu0 0
  %3947 = vmatpush1.bf16.msra.mxu0 %v2961
  %3948 = vmatprep.subr.bf16.mxu0 0
  %3949 = vmatpush1.bf16.msra.mxu0 %v2962
  %3950 = vmatprep.subr.bf16.mxu0 0
  %3951 = vmatpush1.bf16.msra.mxu0 0
  %3952 = vmatprep.subr.bf16.mxu0 0
  %3953 = vmatpush1.bf16.msra.mxu0 0
  %3954 = vmatprep.subr.bf16.mxu0 0
  %3955 = vmatpush1.bf16.msra.mxu0 0
  %3956 = vmatprep.subr.bf16.mxu0 0
  %3957 = vmatpush1.bf16.msra.mxu0 0
  %3958 = vmatprep.subr.bf16.mxu0 0
  %3959 = vmatpush1.bf16.msra.mxu0 0
  %3960 = vmatprep.subr.bf16.mxu0 0
  %3961 = vmatpush1.bf16.msra.mxu0 0
  %3962 = vmatprep.subr.bf16.mxu0 0
  %3963 = vmatpush1.bf16.msra.mxu0 0
  %3964 = vmatprep.subr.bf16.mxu0 0
  %3965 = vmatpush1.bf16.msra.mxu0 0
  %3966 = vmatprep.mubr.bf16.mxu0 0
  %3967 = vmatmul.mubr.bf16.gmra.mrb[0].mxu0 %v1385
  %v3968 = vpop.f32.mrb[0].mxu0
  %v3969 = vadd.f32 0.0, %v3968
  %v3970 = vpop.f32.mrb[0].mxu0
  %v3971 = vpop.f32.mrb[0].mxu0
  %v3972 = vadd.f32 0.0, %v3971
  %v3973 = vpop.f32.mrb[0].mxu0
  %3974 = vmatprep.mubr.bf16.mxu0 0
  %3975 = vmatmul.mubr.bf16.gmra.mrb[0].mxu0 %v1386
  %v3976 = vpop.f32.mrb[0].mxu0
  %v3977 = vadd.f32 0.0, %v3976
  %v3978 = vpop.f32.mrb[0].mxu0
  %v3979 = vpop.f32.mrb[0].mxu0
  %v3980 = vadd.f32 0.0, %v3979
  %v3981 = vpop.f32.mrb[0].mxu0
  %3982 = vmatprep.mubr.bf16.mxu0 0
  %3983 = vmatmul.mubr.bf16.gmra.mrb[0].mxu0 %v1387
  %v3984 = vpop.f32.mrb[0].mxu0
  %v3985 = vadd.f32 0.0, %v3984
  %v3986 = vpop.f32.mrb[0].mxu0
  %v3987 = vpop.f32.mrb[0].mxu0
  %v3988 = vadd.f32 0.0, %v3987
  %v3989 = vpop.f32.mrb[0].mxu0
  %3990 = vmatprep.mubr.bf16.mxu0 0
  %3991 = vmatmul.mubr.bf16.gmra.mrb[0].mxu0 %v1388
  %v3992 = vpop.f32.mrb[0].mxu0
  %v3993 = vadd.f32 0.0, %v3992
  %v3994 = vpop.f32.mrb[0].mxu0
  %v3995 = vpop.f32.mrb[0].mxu0
  %v3996 = vadd.f32 0.0, %v3995
  %v3997 = vpop.f32.mrb[0].mxu0
  %3998 = vmatprep.mubr.bf16.mxu0 0
  %3999 = vmatmul.mubr.bf16.gmra.mrb[0].mxu0 %v1389
  %v4000 = vpop.f32.mrb[0].mxu0
  %v4001 = vadd.f32 0.0, %v4000
  %v4002 = vpop.f32.mrb[0].mxu0
  %v4003 = vpop.f32.mrb[0].mxu0
  %v4004 = vadd.f32 0.0, %v4003
  %v4005 = vpop.f32.mrb[0].mxu0
  %4006 = vmatprep.mubr.bf16.mxu0 0
  %4007 = vmatmul.mubr.bf16.gmra.mrb[0].mxu0 %v1390
  %v4008 = vpop.f32.mrb[0].mxu0
  %v4009 = vadd.f32 0.0, %v4008
  %v4010 = vpop.f32.mrb[0].mxu0
  %v4011 = vpop.f32.mrb[0].mxu0
  %v4012 = vadd.f32 0.0, %v4011
  %v4013 = vpop.f32.mrb[0].mxu0
  %4014 = vmatprep.mubr.bf16.mxu0 0
  %4015 = vmatmul.mubr.bf16.gmra.mrb[0].mxu0 %v1391
  %v4016 = vpop.f32.mrb[0].mxu0
  %v4017 = vadd.f32 0.0, %v4016
  %v4018 = vpop.f32.mrb[0].mxu0
  %v4019 = vpop.f32.mrb[0].mxu0
  %v4020 = vadd.f32 0.0, %v4019
  %v4021 = vpop.f32.mrb[0].mxu0
  %4022 = vmatprep.mubr.bf16.mxu0 0
  %4023 = vmatmul.mubr.bf16.gmra.mrb[0].mxu0 %v1392
  %v4024 = vpop.f32.mrb[0].mxu0
  %v4025 = vadd.f32 0.0, %v4024
  %v4026 = vpop.f32.mrb[0].mxu0
  %v4027 = vpop.f32.mrb[0].mxu0
  %v4028 = vadd.f32 0.0, %v4027
  %v4029 = vpop.f32.mrb[0].mxu0
  %4030 = vdwg.mxu0
  %v4031 = vpack.c.bf16 %v3972, %v3969
  %v4032 = vpack.c.bf16 %v3980, %v3977
  %v4033 = vpack.c.bf16 %v3988, %v3985
  %v4034 = vpack.c.bf16 %v3996, %v3993
  %v4035 = vpack.c.bf16 %v4004, %v4001
  %v4036 = vpack.c.bf16 %v4012, %v4009
  %v4037 = vpack.c.bf16 %v4020, %v4017
  %v4038 = vpack.c.bf16 %v4028, %v4025
  %s4039 = scalar_lea.vmem %s4, 32
  %v4040 = vld [vmem:[%s4039] sm:$0xf]
  %v4041 = vld [vmem:[%s4039 + $0x4] sm:$0xf]
  %v4044 = vunpack.c.l.b16 %v4040
  %v4045 = vunpack.c.l.b16 %v4041
  %v4046 = vpack.c.b16 %v4045, %v4044
  %v4049 = vsel %vm455, %v4031, 0
  %v4052 = vsel %vm455, %v4032, 0
  %v4055 = vsel %vm455, %v4033, 0
  %v4058 = vsel %vm455, %v4034, 0
  %v4061 = vsel %vm455, %v4035, 0
  %v4064 = vsel %vm455, %v4036, 0
  %v4067 = vsel %vm455, %v4037, 0
  %v4070 = vsel %vm455, %v4038, 0
  %4072 = vmatprep.subr.bf16.mxu0 0
  %4073 = vmatpush1.bf16.msra.mxu0 %v4046
  %4074 = vmatprep.subr.bf16.mxu0 0
  %4075 = vmatpush1.bf16.msra.mxu0 0
  %4076 = vmatprep.subr.bf16.mxu0 0
  %4077 = vmatpush1.bf16.msra.mxu0 0
  %4078 = vmatprep.subr.bf16.mxu0 0
  %4079 = vmatpush1.bf16.msra.mxu0 0
  %4080 = vmatprep.subr.bf16.mxu0 0
  %4081 = vmatpush1.bf16.msra.mxu0 0
  %4082 = vmatprep.subr.bf16.mxu0 0
  %4083 = vmatpush1.bf16.msra.mxu0 0
  %4084 = vmatprep.subr.bf16.mxu0 0
  %4085 = vmatpush1.bf16.msra.mxu0 0
  %4086 = vmatprep.subr.bf16.mxu0 0
  %4087 = vmatpush1.bf16.msra.mxu0 0
  %4088 = vmatprep.subr.bf16.mxu0 0
  %4089 = vmatpush1.bf16.msra.mxu0 0
  %4090 = vmatprep.subr.bf16.mxu0 0
  %4091 = vmatpush1.bf16.msra.mxu0 0
  %4092 = vmatprep.subr.bf16.mxu0 0
  %4093 = vmatpush1.bf16.msra.mxu0 0
  %4094 = vmatprep.subr.bf16.mxu0 0
  %4095 = vmatpush1.bf16.msra.mxu0 0
  %4096 = vmatprep.subr.bf16.mxu0 0
  %4097 = vmatpush1.bf16.msra.mxu0 0
  %4098 = vmatprep.subr.bf16.mxu0 0
  %4099 = vmatpush1.bf16.msra.mxu0 0
  %4100 = vmatprep.subr.bf16.mxu0 0
  %4101 = vmatpush1.bf16.msra.mxu0 0
  %4102 = vmatprep.subr.bf16.mxu0 0
  %4103 = vmatpush1.bf16.msra.mxu0 0
  %4104 = vmatprep.mubr.bf16.mxu0 0
  %4105 = vmatmul.mubr.bf16.gmra.mrb[0].mxu0 %v4049
  %v4106 = vpop.f32.mrb[0].mxu0
  %v4107 = vadd.f32 0.0, %v4106
  %v4108 = vpop.f32.mrb[0].mxu0
  %v4109 = vpop.f32.mrb[0].mxu0
  %v4110 = vadd.f32 0.0, %v4109
  %v4111 = vpop.f32.mrb[0].mxu0
  %4112 = vmatprep.mubr.bf16.mxu0 0
  %4113 = vmatmul.mubr.bf16.gmra.mrb[0].mxu0 %v4052
  %v4114 = vpop.f32.mrb[0].mxu0
  %v4115 = vadd.f32 0.0, %v4114
  %v4116 = vpop.f32.mrb[0].mxu0
  %v4117 = vpop.f32.mrb[0].mxu0
  %v4118 = vadd.f32 0.0, %v4117
  %v4119 = vpop.f32.mrb[0].mxu0
  %4120 = vmatprep.mubr.bf16.mxu0 0
  %4121 = vmatmul.mubr.bf16.gmra.mrb[0].mxu0 %v4055
  %v4122 = vpop.f32.mrb[0].mxu0
  %v4123 = vadd.f32 0.0, %v4122
  %v4124 = vpop.f32.mrb[0].mxu0
  %v4125 = vpop.f32.mrb[0].mxu0
  %v4126 = vadd.f32 0.0, %v4125
  %v4127 = vpop.f32.mrb[0].mxu0
  %4128 = vmatprep.mubr.bf16.mxu0 0
  %4129 = vmatmul.mubr.bf16.gmra.mrb[0].mxu0 %v4058
  %v4130 = vpop.f32.mrb[0].mxu0
  %v4131 = vadd.f32 0.0, %v4130
  %v4132 = vpop.f32.mrb[0].mxu0
  %v4133 = vpop.f32.mrb[0].mxu0
  %v4134 = vadd.f32 0.0, %v4133
  %v4135 = vpop.f32.mrb[0].mxu0
  %4136 = vmatprep.mubr.bf16.mxu0 0
  %4137 = vmatmul.mubr.bf16.gmra.mrb[0].mxu0 %v4061
  %v4138 = vpop.f32.mrb[0].mxu0
  %v4139 = vadd.f32 0.0, %v4138
  %v4140 = vpop.f32.mrb[0].mxu0
  %v4141 = vpop.f32.mrb[0].mxu0
  %v4142 = vadd.f32 0.0, %v4141
  %v4143 = vpop.f32.mrb[0].mxu0
  %4144 = vmatprep.mubr.bf16.mxu0 0
  %4145 = vmatmul.mubr.bf16.gmra.mrb[0].mxu0 %v4064
  %v4146 = vpop.f32.mrb[0].mxu0
  %v4147 = vadd.f32 0.0, %v4146
  %v4148 = vpop.f32.mrb[0].mxu0
  %v4149 = vpop.f32.mrb[0].mxu0
  %v4150 = vadd.f32 0.0, %v4149
  %v4151 = vpop.f32.mrb[0].mxu0
  %4152 = vmatprep.mubr.bf16.mxu0 0
  %4153 = vmatmul.mubr.bf16.gmra.mrb[0].mxu0 %v4067
  %v4154 = vpop.f32.mrb[0].mxu0
  %v4155 = vadd.f32 0.0, %v4154
  %v4156 = vpop.f32.mrb[0].mxu0
  %v4157 = vpop.f32.mrb[0].mxu0
  %v4158 = vadd.f32 0.0, %v4157
  %v4159 = vpop.f32.mrb[0].mxu0
  %4160 = vmatprep.mubr.bf16.mxu0 0
  %4161 = vmatmul.mubr.bf16.gmra.mrb[0].mxu0 %v4070
  %v4162 = vpop.f32.mrb[0].mxu0
  %v4163 = vadd.f32 0.0, %v4162
  %v4164 = vpop.f32.mrb[0].mxu0
  %v4165 = vpop.f32.mrb[0].mxu0
  %v4166 = vadd.f32 0.0, %v4165
  %v4167 = vpop.f32.mrb[0].mxu0
  %4168 = vdwg.mxu0
  %v4169 = vadd.f32 %v3918, %v4107
  %v4170 = vadd.f32 %v3919, %v4110
  %v4171 = vadd.f32 %v3920, %v4115
  %v4172 = vadd.f32 %v3921, %v4118
  %v4173 = vadd.f32 %v3922, %v4123
  %v4174 = vadd.f32 %v3923, %v4126
  %v4175 = vadd.f32 %v3924, %v4131
  %v4176 = vadd.f32 %v3925, %v4134
  %v4177 = vadd.f32 %v3926, %v4139
  %v4178 = vadd.f32 %v3927, %v4142
  %v4179 = vadd.f32 %v3928, %v4147
  %v4180 = vadd.f32 %v3929, %v4150
  %v4181 = vadd.f32 %v3930, %v4155
  %v4182 = vadd.f32 %v3931, %v4158
  %v4183 = vadd.f32 %v3932, %v4163
  %v4184 = vadd.f32 %v3933, %v4166
  %4185 = vmatprep.subr.bf16.mxu0 0
  %4186 = vmatpush1.bf16.msra.mxu0 %v2955
  %4187 = vmatprep.subr.bf16.mxu0 0
  %4188 = vmatpush1.bf16.msra.mxu0 %v2956
  %4189 = vmatprep.subr.bf16.mxu0 0
  %4190 = vmatpush1.bf16.msra.mxu0 %v2957
  %4191 = vmatprep.subr.bf16.mxu0 0
  %4192 = vmatpush1.bf16.msra.mxu0 %v2958
  %4193 = vmatprep.subr.bf16.mxu0 0
  %4194 = vmatpush1.bf16.msra.mxu0 %v2959
  %4195 = vmatprep.subr.bf16.mxu0 0
  %4196 = vmatpush1.bf16.msra.mxu0 %v2960
  %4197 = vmatprep.subr.bf16.mxu0 0
  %4198 = vmatpush1.bf16.msra.mxu0 %v2961
  %4199 = vmatprep.subr.bf16.mxu0 0
  %4200 = vmatpush1.bf16.msra.mxu0 %v2962
  %4201 = vmatprep.subr.bf16.mxu0 0
  %4202 = vmatpush1.bf16.msra.mxu0 0
  %4203 = vmatprep.subr.bf16.mxu0 0
  %4204 = vmatpush1.bf16.msra.mxu0 0
  %4205 = vmatprep.subr.bf16.mxu0 0
  %4206 = vmatpush1.bf16.msra.mxu0 0
  %4207 = vmatprep.subr.bf16.mxu0 0
  %4208 = vmatpush1.bf16.msra.mxu0 0
  %4209 = vmatprep.subr.bf16.mxu0 0
  %4210 = vmatpush1.bf16.msra.mxu0 0
  %4211 = vmatprep.subr.bf16.mxu0 0
  %4212 = vmatpush1.bf16.msra.mxu0 0
  %4213 = vmatprep.subr.bf16.mxu0 0
  %4214 = vmatpush1.bf16.msra.mxu0 0
  %4215 = vmatprep.subr.bf16.mxu0 0
  %4216 = vmatpush1.bf16.msra.mxu0 0
  %4217 = vmatprep.mubr.bf16.mxu0 0
  %4218 = vmatmul.mubr.bf16.gmra.mrb[0].mxu0 %v1701
  %v4219 = vpop.f32.mrb[0].mxu0
  %v4220 = vadd.f32 0.0, %v4219
  %v4221 = vpop.f32.mrb[0].mxu0
  %v4222 = vpop.f32.mrb[0].mxu0
  %v4223 = vadd.f32 0.0, %v4222
  %v4224 = vpop.f32.mrb[0].mxu0
  %4225 = vmatprep.mubr.bf16.mxu0 0
  %4226 = vmatmul.mubr.bf16.gmra.mrb[0].mxu0 %v1702
  %v4227 = vpop.f32.mrb[0].mxu0
  %v4228 = vadd.f32 0.0, %v4227
  %v4229 = vpop.f32.mrb[0].mxu0
  %v4230 = vpop.f32.mrb[0].mxu0
  %v4231 = vadd.f32 0.0, %v4230
  %v4232 = vpop.f32.mrb[0].mxu0
  %4233 = vmatprep.mubr.bf16.mxu0 0
  %4234 = vmatmul.mubr.bf16.gmra.mrb[0].mxu0 %v1703
  %v4235 = vpop.f32.mrb[0].mxu0
  %v4236 = vadd.f32 0.0, %v4235
  %v4237 = vpop.f32.mrb[0].mxu0
  %v4238 = vpop.f32.mrb[0].mxu0
  %v4239 = vadd.f32 0.0, %v4238
  %v4240 = vpop.f32.mrb[0].mxu0
  %4241 = vmatprep.mubr.bf16.mxu0 0
  %4242 = vmatmul.mubr.bf16.gmra.mrb[0].mxu0 %v1704
  %v4243 = vpop.f32.mrb[0].mxu0
  %v4244 = vadd.f32 0.0, %v4243
  %v4245 = vpop.f32.mrb[0].mxu0
  %v4246 = vpop.f32.mrb[0].mxu0
  %v4247 = vadd.f32 0.0, %v4246
  %v4248 = vpop.f32.mrb[0].mxu0
  %4249 = vmatprep.mubr.bf16.mxu0 0
  %4250 = vmatmul.mubr.bf16.gmra.mrb[0].mxu0 %v1705
  %v4251 = vpop.f32.mrb[0].mxu0
  %v4252 = vadd.f32 0.0, %v4251
  %v4253 = vpop.f32.mrb[0].mxu0
  %v4254 = vpop.f32.mrb[0].mxu0
  %v4255 = vadd.f32 0.0, %v4254
  %v4256 = vpop.f32.mrb[0].mxu0
  %4257 = vmatprep.mubr.bf16.mxu0 0
  %4258 = vmatmul.mubr.bf16.gmra.mrb[0].mxu0 %v1706
  %v4259 = vpop.f32.mrb[0].mxu0
  %v4260 = vadd.f32 0.0, %v4259
  %v4261 = vpop.f32.mrb[0].mxu0
  %v4262 = vpop.f32.mrb[0].mxu0
  %v4263 = vadd.f32 0.0, %v4262
  %v4264 = vpop.f32.mrb[0].mxu0
  %4265 = vmatprep.mubr.bf16.mxu0 0
  %4266 = vmatmul.mubr.bf16.gmra.mrb[0].mxu0 %v1707
  %v4267 = vpop.f32.mrb[0].mxu0
  %v4268 = vadd.f32 0.0, %v4267
  %v4269 = vpop.f32.mrb[0].mxu0
  %v4270 = vpop.f32.mrb[0].mxu0
  %v4271 = vadd.f32 0.0, %v4270
  %v4272 = vpop.f32.mrb[0].mxu0
  %4273 = vmatprep.mubr.bf16.mxu0 0
  %4274 = vmatmul.mubr.bf16.gmra.mrb[0].mxu0 %v1708
  %v4275 = vpop.f32.mrb[0].mxu0
  %v4276 = vadd.f32 0.0, %v4275
  %v4277 = vpop.f32.mrb[0].mxu0
  %v4278 = vpop.f32.mrb[0].mxu0
  %v4279 = vadd.f32 0.0, %v4278
  %v4280 = vpop.f32.mrb[0].mxu0
  %4281 = vdwg.mxu0
  %v4282 = vpack.c.bf16 %v4223, %v4220
  %v4283 = vpack.c.bf16 %v4231, %v4228
  %v4284 = vpack.c.bf16 %v4239, %v4236
  %v4285 = vpack.c.bf16 %v4247, %v4244
  %v4286 = vpack.c.bf16 %v4255, %v4252
  %v4287 = vpack.c.bf16 %v4263, %v4260
  %v4288 = vpack.c.bf16 %v4271, %v4268
  %v4289 = vpack.c.bf16 %v4279, %v4276
  %s4290 = scalar_lea.vmem %s4, 40
  %v4291 = vld [vmem:[%s4290] sm:$0xf]
  %v4292 = vld [vmem:[%s4290 + $0x4] sm:$0xf]
  %v4295 = vunpack.c.l.b16 %v4291
  %v4296 = vunpack.c.l.b16 %v4292
  %v4297 = vpack.c.b16 %v4296, %v4295
  %v4300 = vsel %vm455, %v4282, 0
  %v4303 = vsel %vm455, %v4283, 0
  %v4306 = vsel %vm455, %v4284, 0
  %v4309 = vsel %vm455, %v4285, 0
  %v4312 = vsel %vm455, %v4286, 0
  %v4315 = vsel %vm455, %v4287, 0
  %v4318 = vsel %vm455, %v4288, 0
  %v4321 = vsel %vm455, %v4289, 0
  %4323 = vmatprep.subr.bf16.mxu0 0
  %4324 = vmatpush1.bf16.msra.mxu0 %v4297
  %4325 = vmatprep.subr.bf16.mxu0 0
  %4326 = vmatpush1.bf16.msra.mxu0 0
  %4327 = vmatprep.subr.bf16.mxu0 0
  %4328 = vmatpush1.bf16.msra.mxu0 0
  %4329 = vmatprep.subr.bf16.mxu0 0
  %4330 = vmatpush1.bf16.msra.mxu0 0
  %4331 = vmatprep.subr.bf16.mxu0 0
  %4332 = vmatpush1.bf16.msra.mxu0 0
  %4333 = vmatprep.subr.bf16.mxu0 0
  %4334 = vmatpush1.bf16.msra.mxu0 0
  %4335 = vmatprep.subr.bf16.mxu0 0
  %4336 = vmatpush1.bf16.msra.mxu0 0
  %4337 = vmatprep.subr.bf16.mxu0 0
  %4338 = vmatpush1.bf16.msra.mxu0 0
  %4339 = vmatprep.subr.bf16.mxu0 0
  %4340 = vmatpush1.bf16.msra.mxu0 0
  %4341 = vmatprep.subr.bf16.mxu0 0
  %4342 = vmatpush1.bf16.msra.mxu0 0
  %4343 = vmatprep.subr.bf16.mxu0 0
  %4344 = vmatpush1.bf16.msra.mxu0 0
  %4345 = vmatprep.subr.bf16.mxu0 0
  %4346 = vmatpush1.bf16.msra.mxu0 0
  %4347 = vmatprep.subr.bf16.mxu0 0
  %4348 = vmatpush1.bf16.msra.mxu0 0
  %4349 = vmatprep.subr.bf16.mxu0 0
  %4350 = vmatpush1.bf16.msra.mxu0 0
  %4351 = vmatprep.subr.bf16.mxu0 0
  %4352 = vmatpush1.bf16.msra.mxu0 0
  %4353 = vmatprep.subr.bf16.mxu0 0
  %4354 = vmatpush1.bf16.msra.mxu0 0
  %4355 = vmatprep.mubr.bf16.mxu0 0
  %4356 = vmatmul.mubr.bf16.gmra.mrb[0].mxu0 %v4300
  %v4357 = vpop.f32.mrb[0].mxu0
  %v4358 = vadd.f32 0.0, %v4357
  %v4359 = vpop.f32.mrb[0].mxu0
  %v4360 = vpop.f32.mrb[0].mxu0
  %v4361 = vadd.f32 0.0, %v4360
  %v4362 = vpop.f32.mrb[0].mxu0
  %4363 = vmatprep.mubr.bf16.mxu0 0
  %4364 = vmatmul.mubr.bf16.gmra.mrb[0].mxu0 %v4303
  %v4365 = vpop.f32.mrb[0].mxu0
  %v4366 = vadd.f32 0.0, %v4365
  %v4367 = vpop.f32.mrb[0].mxu0
  %v4368 = vpop.f32.mrb[0].mxu0
  %v4369 = vadd.f32 0.0, %v4368
  %v4370 = vpop.f32.mrb[0].mxu0
  %4371 = vmatprep.mubr.bf16.mxu0 0
  %4372 = vmatmul.mubr.bf16.gmra.mrb[0].mxu0 %v4306
  %v4373 = vpop.f32.mrb[0].mxu0
  %v4374 = vadd.f32 0.0, %v4373
  %v4375 = vpop.f32.mrb[0].mxu0
  %v4376 = vpop.f32.mrb[0].mxu0
  %v4377 = vadd.f32 0.0, %v4376
  %v4378 = vpop.f32.mrb[0].mxu0
  %4379 = vmatprep.mubr.bf16.mxu0 0
  %4380 = vmatmul.mubr.bf16.gmra.mrb[0].mxu0 %v4309
  %v4381 = vpop.f32.mrb[0].mxu0
  %v4382 = vadd.f32 0.0, %v4381
  %v4383 = vpop.f32.mrb[0].mxu0
  %v4384 = vpop.f32.mrb[0].mxu0
  %v4385 = vadd.f32 0.0, %v4384
  %v4386 = vpop.f32.mrb[0].mxu0
  %4387 = vmatprep.mubr.bf16.mxu0 0
  %4388 = vmatmul.mubr.bf16.gmra.mrb[0].mxu0 %v4312
  %v4389 = vpop.f32.mrb[0].mxu0
  %v4390 = vadd.f32 0.0, %v4389
  %v4391 = vpop.f32.mrb[0].mxu0
  %v4392 = vpop.f32.mrb[0].mxu0
  %v4393 = vadd.f32 0.0, %v4392
  %v4394 = vpop.f32.mrb[0].mxu0
  %4395 = vmatprep.mubr.bf16.mxu0 0
  %4396 = vmatmul.mubr.bf16.gmra.mrb[0].mxu0 %v4315
  %v4397 = vpop.f32.mrb[0].mxu0
  %v4398 = vadd.f32 0.0, %v4397
  %v4399 = vpop.f32.mrb[0].mxu0
  %v4400 = vpop.f32.mrb[0].mxu0
  %v4401 = vadd.f32 0.0, %v4400
  %v4402 = vpop.f32.mrb[0].mxu0
  %4403 = vmatprep.mubr.bf16.mxu0 0
  %4404 = vmatmul.mubr.bf16.gmra.mrb[0].mxu0 %v4318
  %v4405 = vpop.f32.mrb[0].mxu0
  %v4406 = vadd.f32 0.0, %v4405
  %v4407 = vpop.f32.mrb[0].mxu0
  %v4408 = vpop.f32.mrb[0].mxu0
  %v4409 = vadd.f32 0.0, %v4408
  %v4410 = vpop.f32.mrb[0].mxu0
  %4411 = vmatprep.mubr.bf16.mxu0 0
  %4412 = vmatmul.mubr.bf16.gmra.mrb[0].mxu0 %v4321
  %v4413 = vpop.f32.mrb[0].mxu0
  %v4414 = vadd.f32 0.0, %v4413
  %v4415 = vpop.f32.mrb[0].mxu0
  %v4416 = vpop.f32.mrb[0].mxu0
  %v4417 = vadd.f32 0.0, %v4416
  %v4418 = vpop.f32.mrb[0].mxu0
  %4419 = vdwg.mxu0
  %v4420 = vadd.f32 %v4169, %v4358
  %v4421 = vadd.f32 %v4170, %v4361
  %v4422 = vadd.f32 %v4171, %v4366
  %v4423 = vadd.f32 %v4172, %v4369
  %v4424 = vadd.f32 %v4173, %v4374
  %v4425 = vadd.f32 %v4174, %v4377
  %v4426 = vadd.f32 %v4175, %v4382
  %v4427 = vadd.f32 %v4176, %v4385
  %v4428 = vadd.f32 %v4177, %v4390
  %v4429 = vadd.f32 %v4178, %v4393
  %v4430 = vadd.f32 %v4179, %v4398
  %v4431 = vadd.f32 %v4180, %v4401
  %v4432 = vadd.f32 %v4181, %v4406
  %v4433 = vadd.f32 %v4182, %v4409
  %v4434 = vadd.f32 %v4183, %v4414
  %v4435 = vadd.f32 %v4184, %v4417
  %4436 = vmatprep.subr.bf16.mxu0 0
  %4437 = vmatpush1.bf16.msra.mxu0 %v2955
  %4438 = vmatprep.subr.bf16.mxu0 0
  %4439 = vmatpush1.bf16.msra.mxu0 %v2956
  %4440 = vmatprep.subr.bf16.mxu0 0
  %4441 = vmatpush1.bf16.msra.mxu0 %v2957
  %4442 = vmatprep.subr.bf16.mxu0 0
  %4443 = vmatpush1.bf16.msra.mxu0 %v2958
  %4444 = vmatprep.subr.bf16.mxu0 0
  %4445 = vmatpush1.bf16.msra.mxu0 %v2959
  %4446 = vmatprep.subr.bf16.mxu0 0
  %4447 = vmatpush1.bf16.msra.mxu0 %v2960
  %4448 = vmatprep.subr.bf16.mxu0 0
  %4449 = vmatpush1.bf16.msra.mxu0 %v2961
  %4450 = vmatprep.subr.bf16.mxu0 0
  %4451 = vmatpush1.bf16.msra.mxu0 %v2962
  %4452 = vmatprep.subr.bf16.mxu0 0
  %4453 = vmatpush1.bf16.msra.mxu0 0
  %4454 = vmatprep.subr.bf16.mxu0 0
  %4455 = vmatpush1.bf16.msra.mxu0 0
  %4456 = vmatprep.subr.bf16.mxu0 0
  %4457 = vmatpush1.bf16.msra.mxu0 0
  %4458 = vmatprep.subr.bf16.mxu0 0
  %4459 = vmatpush1.bf16.msra.mxu0 0
  %4460 = vmatprep.subr.bf16.mxu0 0
  %4461 = vmatpush1.bf16.msra.mxu0 0
  %4462 = vmatprep.subr.bf16.mxu0 0
  %4463 = vmatpush1.bf16.msra.mxu0 0
  %4464 = vmatprep.subr.bf16.mxu0 0
  %4465 = vmatpush1.bf16.msra.mxu0 0
  %4466 = vmatprep.subr.bf16.mxu0 0
  %4467 = vmatpush1.bf16.msra.mxu0 0
  %4468 = vmatprep.mubr.bf16.mxu0 0
  %4469 = vmatmul.mubr.bf16.gmra.mrb[0].mxu0 %v2017
  %v4470 = vpop.f32.mrb[0].mxu0
  %v4471 = vadd.f32 0.0, %v4470
  %v4472 = vpop.f32.mrb[0].mxu0
  %v4473 = vpop.f32.mrb[0].mxu0
  %v4474 = vadd.f32 0.0, %v4473
  %v4475 = vpop.f32.mrb[0].mxu0
  %4476 = vmatprep.mubr.bf16.mxu0 0
  %4477 = vmatmul.mubr.bf16.gmra.mrb[0].mxu0 %v2018
  %v4478 = vpop.f32.mrb[0].mxu0
  %v4479 = vadd.f32 0.0, %v4478
  %v4480 = vpop.f32.mrb[0].mxu0
  %v4481 = vpop.f32.mrb[0].mxu0
  %v4482 = vadd.f32 0.0, %v4481
  %v4483 = vpop.f32.mrb[0].mxu0
  %4484 = vmatprep.mubr.bf16.mxu0 0
  %4485 = vmatmul.mubr.bf16.gmra.mrb[0].mxu0 %v2019
  %v4486 = vpop.f32.mrb[0].mxu0
  %v4487 = vadd.f32 0.0, %v4486
  %v4488 = vpop.f32.mrb[0].mxu0
  %v4489 = vpop.f32.mrb[0].mxu0
  %v4490 = vadd.f32 0.0, %v4489
  %v4491 = vpop.f32.mrb[0].mxu0
  %4492 = vmatprep.mubr.bf16.mxu0 0
  %4493 = vmatmul.mubr.bf16.gmra.mrb[0].mxu0 %v2020
  %v4494 = vpop.f32.mrb[0].mxu0
  %v4495 = vadd.f32 0.0, %v4494
  %v4496 = vpop.f32.mrb[0].mxu0
  %v4497 = vpop.f32.mrb[0].mxu0
  %v4498 = vadd.f32 0.0, %v4497
  %v4499 = vpop.f32.mrb[0].mxu0
  %4500 = vmatprep.mubr.bf16.mxu0 0
  %4501 = vmatmul.mubr.bf16.gmra.mrb[0].mxu0 %v2021
  %v4502 = vpop.f32.mrb[0].mxu0
  %v4503 = vadd.f32 0.0, %v4502
  %v4504 = vpop.f32.mrb[0].mxu0
  %v4505 = vpop.f32.mrb[0].mxu0
  %v4506 = vadd.f32 0.0, %v4505
  %v4507 = vpop.f32.mrb[0].mxu0
  %4508 = vmatprep.mubr.bf16.mxu0 0
  %4509 = vmatmul.mubr.bf16.gmra.mrb[0].mxu0 %v2022
  %v4510 = vpop.f32.mrb[0].mxu0
  %v4511 = vadd.f32 0.0, %v4510
  %v4512 = vpop.f32.mrb[0].mxu0
  %v4513 = vpop.f32.mrb[0].mxu0
  %v4514 = vadd.f32 0.0, %v4513
  %v4515 = vpop.f32.mrb[0].mxu0
  %4516 = vmatprep.mubr.bf16.mxu0 0
  %4517 = vmatmul.mubr.bf16.gmra.mrb[0].mxu0 %v2023
  %v4518 = vpop.f32.mrb[0].mxu0
  %v4519 = vadd.f32 0.0, %v4518
  %v4520 = vpop.f32.mrb[0].mxu0
  %v4521 = vpop.f32.mrb[0].mxu0
  %v4522 = vadd.f32 0.0, %v4521
  %v4523 = vpop.f32.mrb[0].mxu0
  %4524 = vmatprep.mubr.bf16.mxu0 0
  %4525 = vmatmul.mubr.bf16.gmra.mrb[0].mxu0 %v2024
  %v4526 = vpop.f32.mrb[0].mxu0
  %v4527 = vadd.f32 0.0, %v4526
  %v4528 = vpop.f32.mrb[0].mxu0
  %v4529 = vpop.f32.mrb[0].mxu0
  %v4530 = vadd.f32 0.0, %v4529
  %v4531 = vpop.f32.mrb[0].mxu0
  %4532 = vdwg.mxu0
  %v4533 = vpack.c.bf16 %v4474, %v4471
  %v4534 = vpack.c.bf16 %v4482, %v4479
  %v4535 = vpack.c.bf16 %v4490, %v4487
  %v4536 = vpack.c.bf16 %v4498, %v4495
  %v4537 = vpack.c.bf16 %v4506, %v4503
  %v4538 = vpack.c.bf16 %v4514, %v4511
  %v4539 = vpack.c.bf16 %v4522, %v4519
  %v4540 = vpack.c.bf16 %v4530, %v4527
  %s4541 = scalar_lea.vmem %s4, 48
  %v4542 = vld [vmem:[%s4541] sm:$0xf]
  %v4543 = vld [vmem:[%s4541 + $0x4] sm:$0xf]
  %v4546 = vunpack.c.l.b16 %v4542
  %v4547 = vunpack.c.l.b16 %v4543
  %v4548 = vpack.c.b16 %v4547, %v4546
  %v4551 = vsel %vm455, %v4533, 0
  %v4554 = vsel %vm455, %v4534, 0
  %v4557 = vsel %vm455, %v4535, 0
  %v4560 = vsel %vm455, %v4536, 0
  %v4563 = vsel %vm455, %v4537, 0
  %v4566 = vsel %vm455, %v4538, 0
  %v4569 = vsel %vm455, %v4539, 0
  %v4572 = vsel %vm455, %v4540, 0
  %4574 = vmatprep.subr.bf16.mxu0 0
  %4575 = vmatpush1.bf16.msra.mxu0 %v4548
  %4576 = vmatprep.subr.bf16.mxu0 0
  %4577 = vmatpush1.bf16.msra.mxu0 0
  %4578 = vmatprep.subr.bf16.mxu0 0
  %4579 = vmatpush1.bf16.msra.mxu0 0
  %4580 = vmatprep.subr.bf16.mxu0 0
  %4581 = vmatpush1.bf16.msra.mxu0 0
  %4582 = vmatprep.subr.bf16.mxu0 0
  %4583 = vmatpush1.bf16.msra.mxu0 0
  %4584 = vmatprep.subr.bf16.mxu0 0
  %4585 = vmatpush1.bf16.msra.mxu0 0
  %4586 = vmatprep.subr.bf16.mxu0 0
  %4587 = vmatpush1.bf16.msra.mxu0 0
  %4588 = vmatprep.subr.bf16.mxu0 0
  %4589 = vmatpush1.bf16.msra.mxu0 0
  %4590 = vmatprep.subr.bf16.mxu0 0
  %4591 = vmatpush1.bf16.msra.mxu0 0
  %4592 = vmatprep.subr.bf16.mxu0 0
  %4593 = vmatpush1.bf16.msra.mxu0 0
  %4594 = vmatprep.subr.bf16.mxu0 0
  %4595 = vmatpush1.bf16.msra.mxu0 0
  %4596 = vmatprep.subr.bf16.mxu0 0
  %4597 = vmatpush1.bf16.msra.mxu0 0
  %4598 = vmatprep.subr.bf16.mxu0 0
  %4599 = vmatpush1.bf16.msra.mxu0 0
  %4600 = vmatprep.subr.bf16.mxu0 0
  %4601 = vmatpush1.bf16.msra.mxu0 0
  %4602 = vmatprep.subr.bf16.mxu0 0
  %4603 = vmatpush1.bf16.msra.mxu0 0
  %4604 = vmatprep.subr.bf16.mxu0 0
  %4605 = vmatpush1.bf16.msra.mxu0 0
  %4606 = vmatprep.mubr.bf16.mxu0 0
  %4607 = vmatmul.mubr.bf16.gmra.mrb[0].mxu0 %v4551
  %v4608 = vpop.f32.mrb[0].mxu0
  %v4609 = vadd.f32 0.0, %v4608
  %v4610 = vpop.f32.mrb[0].mxu0
  %v4611 = vpop.f32.mrb[0].mxu0
  %v4612 = vadd.f32 0.0, %v4611
  %v4613 = vpop.f32.mrb[0].mxu0
  %4614 = vmatprep.mubr.bf16.mxu0 0
  %4615 = vmatmul.mubr.bf16.gmra.mrb[0].mxu0 %v4554
  %v4616 = vpop.f32.mrb[0].mxu0
  %v4617 = vadd.f32 0.0, %v4616
  %v4618 = vpop.f32.mrb[0].mxu0
  %v4619 = vpop.f32.mrb[0].mxu0
  %v4620 = vadd.f32 0.0, %v4619
  %v4621 = vpop.f32.mrb[0].mxu0
  %4622 = vmatprep.mubr.bf16.mxu0 0
  %4623 = vmatmul.mubr.bf16.gmra.mrb[0].mxu0 %v4557
  %v4624 = vpop.f32.mrb[0].mxu0
  %v4625 = vadd.f32 0.0, %v4624
  %v4626 = vpop.f32.mrb[0].mxu0
  %v4627 = vpop.f32.mrb[0].mxu0
  %v4628 = vadd.f32 0.0, %v4627
  %v4629 = vpop.f32.mrb[0].mxu0
  %4630 = vmatprep.mubr.bf16.mxu0 0
  %4631 = vmatmul.mubr.bf16.gmra.mrb[0].mxu0 %v4560
  %v4632 = vpop.f32.mrb[0].mxu0
  %v4633 = vadd.f32 0.0, %v4632
  %v4634 = vpop.f32.mrb[0].mxu0
  %v4635 = vpop.f32.mrb[0].mxu0
  %v4636 = vadd.f32 0.0, %v4635
  %v4637 = vpop.f32.mrb[0].mxu0
  %4638 = vmatprep.mubr.bf16.mxu0 0
  %4639 = vmatmul.mubr.bf16.gmra.mrb[0].mxu0 %v4563
  %v4640 = vpop.f32.mrb[0].mxu0
  %v4641 = vadd.f32 0.0, %v4640
  %v4642 = vpop.f32.mrb[0].mxu0
  %v4643 = vpop.f32.mrb[0].mxu0
  %v4644 = vadd.f32 0.0, %v4643
  %v4645 = vpop.f32.mrb[0].mxu0
  %4646 = vmatprep.mubr.bf16.mxu0 0
  %4647 = vmatmul.mubr.bf16.gmra.mrb[0].mxu0 %v4566
  %v4648 = vpop.f32.mrb[0].mxu0
  %v4649 = vadd.f32 0.0, %v4648
  %v4650 = vpop.f32.mrb[0].mxu0
  %v4651 = vpop.f32.mrb[0].mxu0
  %v4652 = vadd.f32 0.0, %v4651
  %v4653 = vpop.f32.mrb[0].mxu0
  %4654 = vmatprep.mubr.bf16.mxu0 0
  %4655 = vmatmul.mubr.bf16.gmra.mrb[0].mxu0 %v4569
  %v4656 = vpop.f32.mrb[0].mxu0
  %v4657 = vadd.f32 0.0, %v4656
  %v4658 = vpop.f32.mrb[0].mxu0
  %v4659 = vpop.f32.mrb[0].mxu0
  %v4660 = vadd.f32 0.0, %v4659
  %v4661 = vpop.f32.mrb[0].mxu0
  %4662 = vmatprep.mubr.bf16.mxu0 0
  %4663 = vmatmul.mubr.bf16.gmra.mrb[0].mxu0 %v4572
  %v4664 = vpop.f32.mrb[0].mxu0
  %v4665 = vadd.f32 0.0, %v4664
  %v4666 = vpop.f32.mrb[0].mxu0
  %v4667 = vpop.f32.mrb[0].mxu0
  %v4668 = vadd.f32 0.0, %v4667
  %v4669 = vpop.f32.mrb[0].mxu0
  %4670 = vdwg.mxu0
  %v4671 = vadd.f32 %v4420, %v4609
  %v4672 = vadd.f32 %v4421, %v4612
  %v4673 = vadd.f32 %v4422, %v4617
  %v4674 = vadd.f32 %v4423, %v4620
  %v4675 = vadd.f32 %v4424, %v4625
  %v4676 = vadd.f32 %v4425, %v4628
  %v4677 = vadd.f32 %v4426, %v4633
  %v4678 = vadd.f32 %v4427, %v4636
  %v4679 = vadd.f32 %v4428, %v4641
  %v4680 = vadd.f32 %v4429, %v4644
  %v4681 = vadd.f32 %v4430, %v4649
  %v4682 = vadd.f32 %v4431, %v4652
  %v4683 = vadd.f32 %v4432, %v4657
  %v4684 = vadd.f32 %v4433, %v4660
  %v4685 = vadd.f32 %v4434, %v4665
  %v4686 = vadd.f32 %v4435, %v4668
  %4687 = vmatprep.subr.bf16.mxu0 0
  %4688 = vmatpush1.bf16.msra.mxu0 %v2955
  %4689 = vmatprep.subr.bf16.mxu0 0
  %4690 = vmatpush1.bf16.msra.mxu0 %v2956
  %4691 = vmatprep.subr.bf16.mxu0 0
  %4692 = vmatpush1.bf16.msra.mxu0 %v2957
  %4693 = vmatprep.subr.bf16.mxu0 0
  %4694 = vmatpush1.bf16.msra.mxu0 %v2958
  %4695 = vmatprep.subr.bf16.mxu0 0
  %4696 = vmatpush1.bf16.msra.mxu0 %v2959
  %4697 = vmatprep.subr.bf16.mxu0 0
  %4698 = vmatpush1.bf16.msra.mxu0 %v2960
  %4699 = vmatprep.subr.bf16.mxu0 0
  %4700 = vmatpush1.bf16.msra.mxu0 %v2961
  %4701 = vmatprep.subr.bf16.mxu0 0
  %4702 = vmatpush1.bf16.msra.mxu0 %v2962
  %4703 = vmatprep.subr.bf16.mxu0 0
  %4704 = vmatpush1.bf16.msra.mxu0 0
  %4705 = vmatprep.subr.bf16.mxu0 0
  %4706 = vmatpush1.bf16.msra.mxu0 0
  %4707 = vmatprep.subr.bf16.mxu0 0
  %4708 = vmatpush1.bf16.msra.mxu0 0
  %4709 = vmatprep.subr.bf16.mxu0 0
  %4710 = vmatpush1.bf16.msra.mxu0 0
  %4711 = vmatprep.subr.bf16.mxu0 0
  %4712 = vmatpush1.bf16.msra.mxu0 0
  %4713 = vmatprep.subr.bf16.mxu0 0
  %4714 = vmatpush1.bf16.msra.mxu0 0
  %4715 = vmatprep.subr.bf16.mxu0 0
  %4716 = vmatpush1.bf16.msra.mxu0 0
  %4717 = vmatprep.subr.bf16.mxu0 0
  %4718 = vmatpush1.bf16.msra.mxu0 0
  %4719 = vmatprep.mubr.bf16.mxu0 0
  %4720 = vmatmul.mubr.bf16.gmra.mrb[0].mxu0 %v2333
  %v4721 = vpop.f32.mrb[0].mxu0
  %v4722 = vadd.f32 0.0, %v4721
  %v4723 = vpop.f32.mrb[0].mxu0
  %v4724 = vpop.f32.mrb[0].mxu0
  %v4725 = vadd.f32 0.0, %v4724
  %v4726 = vpop.f32.mrb[0].mxu0
  %4727 = vmatprep.mubr.bf16.mxu0 0
  %4728 = vmatmul.mubr.bf16.gmra.mrb[0].mxu0 %v2334
  %v4729 = vpop.f32.mrb[0].mxu0
  %v4730 = vadd.f32 0.0, %v4729
  %v4731 = vpop.f32.mrb[0].mxu0
  %v4732 = vpop.f32.mrb[0].mxu0
  %v4733 = vadd.f32 0.0, %v4732
  %v4734 = vpop.f32.mrb[0].mxu0
  %4735 = vmatprep.mubr.bf16.mxu0 0
  %4736 = vmatmul.mubr.bf16.gmra.mrb[0].mxu0 %v2335
  %v4737 = vpop.f32.mrb[0].mxu0
  %v4738 = vadd.f32 0.0, %v4737
  %v4739 = vpop.f32.mrb[0].mxu0
  %v4740 = vpop.f32.mrb[0].mxu0
  %v4741 = vadd.f32 0.0, %v4740
  %v4742 = vpop.f32.mrb[0].mxu0
  %4743 = vmatprep.mubr.bf16.mxu0 0
  %4744 = vmatmul.mubr.bf16.gmra.mrb[0].mxu0 %v2336
  %v4745 = vpop.f32.mrb[0].mxu0
  %v4746 = vadd.f32 0.0, %v4745
  %v4747 = vpop.f32.mrb[0].mxu0
  %v4748 = vpop.f32.mrb[0].mxu0
  %v4749 = vadd.f32 0.0, %v4748
  %v4750 = vpop.f32.mrb[0].mxu0
  %4751 = vmatprep.mubr.bf16.mxu0 0
  %4752 = vmatmul.mubr.bf16.gmra.mrb[0].mxu0 %v2337
  %v4753 = vpop.f32.mrb[0].mxu0
  %v4754 = vadd.f32 0.0, %v4753
  %v4755 = vpop.f32.mrb[0].mxu0
  %v4756 = vpop.f32.mrb[0].mxu0
  %v4757 = vadd.f32 0.0, %v4756
  %v4758 = vpop.f32.mrb[0].mxu0
  %4759 = vmatprep.mubr.bf16.mxu0 0
  %4760 = vmatmul.mubr.bf16.gmra.mrb[0].mxu0 %v2338
  %v4761 = vpop.f32.mrb[0].mxu0
  %v4762 = vadd.f32 0.0, %v4761
  %v4763 = vpop.f32.mrb[0].mxu0
  %v4764 = vpop.f32.mrb[0].mxu0
  %v4765 = vadd.f32 0.0, %v4764
  %v4766 = vpop.f32.mrb[0].mxu0
  %4767 = vmatprep.mubr.bf16.mxu0 0
  %4768 = vmatmul.mubr.bf16.gmra.mrb[0].mxu0 %v2339
  %v4769 = vpop.f32.mrb[0].mxu0
  %v4770 = vadd.f32 0.0, %v4769
  %v4771 = vpop.f32.mrb[0].mxu0
  %v4772 = vpop.f32.mrb[0].mxu0
  %v4773 = vadd.f32 0.0, %v4772
  %v4774 = vpop.f32.mrb[0].mxu0
  %4775 = vmatprep.mubr.bf16.mxu0 0
  %4776 = vmatmul.mubr.bf16.gmra.mrb[0].mxu0 %v2340
  %v4777 = vpop.f32.mrb[0].mxu0
  %v4778 = vadd.f32 0.0, %v4777
  %v4779 = vpop.f32.mrb[0].mxu0
  %v4780 = vpop.f32.mrb[0].mxu0
  %v4781 = vadd.f32 0.0, %v4780
  %v4782 = vpop.f32.mrb[0].mxu0
  %4783 = vdwg.mxu0
  %v4784 = vpack.c.bf16 %v4725, %v4722
  %v4785 = vpack.c.bf16 %v4733, %v4730
  %v4786 = vpack.c.bf16 %v4741, %v4738
  %v4787 = vpack.c.bf16 %v4749, %v4746
  %v4788 = vpack.c.bf16 %v4757, %v4754
  %v4789 = vpack.c.bf16 %v4765, %v4762
  %v4790 = vpack.c.bf16 %v4773, %v4770
  %v4791 = vpack.c.bf16 %v4781, %v4778
  %s4792 = scalar_lea.vmem %s4, 56
  %v4793 = vld [vmem:[%s4792] sm:$0xf]
  %v4794 = vld [vmem:[%s4792 + $0x4] sm:$0xf]
  %v4797 = vunpack.c.l.b16 %v4793
  %v4798 = vunpack.c.l.b16 %v4794
  %v4799 = vpack.c.b16 %v4798, %v4797
  %v4802 = vsel %vm455, %v4784, 0
  %v4805 = vsel %vm455, %v4785, 0
  %v4808 = vsel %vm455, %v4786, 0
  %v4811 = vsel %vm455, %v4787, 0
  %v4814 = vsel %vm455, %v4788, 0
  %v4817 = vsel %vm455, %v4789, 0
  %v4820 = vsel %vm455, %v4790, 0
  %v4823 = vsel %vm455, %v4791, 0
  %4825 = vmatprep.subr.bf16.mxu0 0
  %4826 = vmatpush1.bf16.msra.mxu0 %v4799
  %4827 = vmatprep.subr.bf16.mxu0 0
  %4828 = vmatpush1.bf16.msra.mxu0 0
  %4829 = vmatprep.subr.bf16.mxu0 0
  %4830 = vmatpush1.bf16.msra.mxu0 0
  %4831 = vmatprep.subr.bf16.mxu0 0
  %4832 = vmatpush1.bf16.msra.mxu0 0
  %4833 = vmatprep.subr.bf16.mxu0 0
  %4834 = vmatpush1.bf16.msra.mxu0 0
  %4835 = vmatprep.subr.bf16.mxu0 0
  %4836 = vmatpush1.bf16.msra.mxu0 0
  %4837 = vmatprep.subr.bf16.mxu0 0
  %4838 = vmatpush1.bf16.msra.mxu0 0
  %4839 = vmatprep.subr.bf16.mxu0 0
  %4840 = vmatpush1.bf16.msra.mxu0 0
  %4841 = vmatprep.subr.bf16.mxu0 0
  %4842 = vmatpush1.bf16.msra.mxu0 0
  %4843 = vmatprep.subr.bf16.mxu0 0
  %4844 = vmatpush1.bf16.msra.mxu0 0
  %4845 = vmatprep.subr.bf16.mxu0 0
  %4846 = vmatpush1.bf16.msra.mxu0 0
  %4847 = vmatprep.subr.bf16.mxu0 0
  %4848 = vmatpush1.bf16.msra.mxu0 0
  %4849 = vmatprep.subr.bf16.mxu0 0
  %4850 = vmatpush1.bf16.msra.mxu0 0
  %4851 = vmatprep.subr.bf16.mxu0 0
  %4852 = vmatpush1.bf16.msra.mxu0 0
  %4853 = vmatprep.subr.bf16.mxu0 0
  %4854 = vmatpush1.bf16.msra.mxu0 0
  %4855 = vmatprep.subr.bf16.mxu0 0
  %4856 = vmatpush1.bf16.msra.mxu0 0
  %4857 = vmatprep.mubr.bf16.mxu0 0
  %4858 = vmatmul.mubr.bf16.gmra.mrb[0].mxu0 %v4802
  %v4859 = vpop.f32.mrb[0].mxu0
  %v4860 = vadd.f32 0.0, %v4859
  %v4861 = vpop.f32.mrb[0].mxu0
  %v4862 = vpop.f32.mrb[0].mxu0
  %v4863 = vadd.f32 0.0, %v4862
  %v4864 = vpop.f32.mrb[0].mxu0
  %4865 = vmatprep.mubr.bf16.mxu0 0
  %4866 = vmatmul.mubr.bf16.gmra.mrb[0].mxu0 %v4805
  %v4867 = vpop.f32.mrb[0].mxu0
  %v4868 = vadd.f32 0.0, %v4867
  %v4869 = vpop.f32.mrb[0].mxu0
  %v4870 = vpop.f32.mrb[0].mxu0
  %v4871 = vadd.f32 0.0, %v4870
  %v4872 = vpop.f32.mrb[0].mxu0
  %4873 = vmatprep.mubr.bf16.mxu0 0
  %4874 = vmatmul.mubr.bf16.gmra.mrb[0].mxu0 %v4808
  %v4875 = vpop.f32.mrb[0].mxu0
  %v4876 = vadd.f32 0.0, %v4875
  %v4877 = vpop.f32.mrb[0].mxu0
  %v4878 = vpop.f32.mrb[0].mxu0
  %v4879 = vadd.f32 0.0, %v4878
  %v4880 = vpop.f32.mrb[0].mxu0
  %4881 = vmatprep.mubr.bf16.mxu0 0
  %4882 = vmatmul.mubr.bf16.gmra.mrb[0].mxu0 %v4811
  %v4883 = vpop.f32.mrb[0].mxu0
  %v4884 = vadd.f32 0.0, %v4883
  %v4885 = vpop.f32.mrb[0].mxu0
  %v4886 = vpop.f32.mrb[0].mxu0
  %v4887 = vadd.f32 0.0, %v4886
  %v4888 = vpop.f32.mrb[0].mxu0
  %4889 = vmatprep.mubr.bf16.mxu0 0
  %4890 = vmatmul.mubr.bf16.gmra.mrb[0].mxu0 %v4814
  %v4891 = vpop.f32.mrb[0].mxu0
  %v4892 = vadd.f32 0.0, %v4891
  %v4893 = vpop.f32.mrb[0].mxu0
  %v4894 = vpop.f32.mrb[0].mxu0
  %v4895 = vadd.f32 0.0, %v4894
  %v4896 = vpop.f32.mrb[0].mxu0
  %4897 = vmatprep.mubr.bf16.mxu0 0
  %4898 = vmatmul.mubr.bf16.gmra.mrb[0].mxu0 %v4817
  %v4899 = vpop.f32.mrb[0].mxu0
  %v4900 = vadd.f32 0.0, %v4899
  %v4901 = vpop.f32.mrb[0].mxu0
  %v4902 = vpop.f32.mrb[0].mxu0
  %v4903 = vadd.f32 0.0, %v4902
  %v4904 = vpop.f32.mrb[0].mxu0
  %4905 = vmatprep.mubr.bf16.mxu0 0
  %4906 = vmatmul.mubr.bf16.gmra.mrb[0].mxu0 %v4820
  %v4907 = vpop.f32.mrb[0].mxu0
  %v4908 = vadd.f32 0.0, %v4907
  %v4909 = vpop.f32.mrb[0].mxu0
  %v4910 = vpop.f32.mrb[0].mxu0
  %v4911 = vadd.f32 0.0, %v4910
  %v4912 = vpop.f32.mrb[0].mxu0
  %4913 = vmatprep.mubr.bf16.mxu0 0
  %4914 = vmatmul.mubr.bf16.gmra.mrb[0].mxu0 %v4823
  %v4915 = vpop.f32.mrb[0].mxu0
  %v4916 = vadd.f32 0.0, %v4915
  %v4917 = vpop.f32.mrb[0].mxu0
  %v4918 = vpop.f32.mrb[0].mxu0
  %v4919 = vadd.f32 0.0, %v4918
  %v4920 = vpop.f32.mrb[0].mxu0
  %4921 = vdwg.mxu0
  %v4922 = vadd.f32 %v4671, %v4860
  %v4923 = vadd.f32 %v4672, %v4863
  %v4924 = vadd.f32 %v4673, %v4868
  %v4925 = vadd.f32 %v4674, %v4871
  %v4926 = vadd.f32 %v4675, %v4876
  %v4927 = vadd.f32 %v4676, %v4879
  %v4928 = vadd.f32 %v4677, %v4884
  %v4929 = vadd.f32 %v4678, %v4887
  %v4930 = vadd.f32 %v4679, %v4892
  %v4931 = vadd.f32 %v4680, %v4895
  %v4932 = vadd.f32 %v4681, %v4900
  %v4933 = vadd.f32 %v4682, %v4903
  %v4934 = vadd.f32 %v4683, %v4908
  %v4935 = vadd.f32 %v4684, %v4911
  %v4936 = vadd.f32 %v4685, %v4916
  %v4937 = vadd.f32 %v4686, %v4919
  %4938 = vmatprep.subr.bf16.mxu0 0
  %4939 = vmatpush1.bf16.msra.mxu0 %v2955
  %4940 = vmatprep.subr.bf16.mxu0 0
  %4941 = vmatpush1.bf16.msra.mxu0 %v2956
  %4942 = vmatprep.subr.bf16.mxu0 0
  %4943 = vmatpush1.bf16.msra.mxu0 %v2957
  %4944 = vmatprep.subr.bf16.mxu0 0
  %4945 = vmatpush1.bf16.msra.mxu0 %v2958
  %4946 = vmatprep.subr.bf16.mxu0 0
  %4947 = vmatpush1.bf16.msra.mxu0 %v2959
  %4948 = vmatprep.subr.bf16.mxu0 0
  %4949 = vmatpush1.bf16.msra.mxu0 %v2960
  %4950 = vmatprep.subr.bf16.mxu0 0
  %4951 = vmatpush1.bf16.msra.mxu0 %v2961
  %4952 = vmatprep.subr.bf16.mxu0 0
  %4953 = vmatpush1.bf16.msra.mxu0 %v2962
  %4954 = vmatprep.subr.bf16.mxu0 0
  %4955 = vmatpush1.bf16.msra.mxu0 0
  %4956 = vmatprep.subr.bf16.mxu0 0
  %4957 = vmatpush1.bf16.msra.mxu0 0
  %4958 = vmatprep.subr.bf16.mxu0 0
  %4959 = vmatpush1.bf16.msra.mxu0 0
  %4960 = vmatprep.subr.bf16.mxu0 0
  %4961 = vmatpush1.bf16.msra.mxu0 0
  %4962 = vmatprep.subr.bf16.mxu0 0
  %4963 = vmatpush1.bf16.msra.mxu0 0
  %4964 = vmatprep.subr.bf16.mxu0 0
  %4965 = vmatpush1.bf16.msra.mxu0 0
  %4966 = vmatprep.subr.bf16.mxu0 0
  %4967 = vmatpush1.bf16.msra.mxu0 0
  %4968 = vmatprep.subr.bf16.mxu0 0
  %4969 = vmatpush1.bf16.msra.mxu0 0
  %4970 = vmatprep.mubr.bf16.mxu0 0
  %4971 = vmatmul.mubr.bf16.gmra.mrb[0].mxu0 %v2649
  %v4972 = vpop.f32.mrb[0].mxu0
  %v4973 = vadd.f32 0.0, %v4972
  %v4974 = vpop.f32.mrb[0].mxu0
  %v4975 = vpop.f32.mrb[0].mxu0
  %v4976 = vadd.f32 0.0, %v4975
  %v4977 = vpop.f32.mrb[0].mxu0
  %4978 = vmatprep.mubr.bf16.mxu0 0
  %4979 = vmatmul.mubr.bf16.gmra.mrb[0].mxu0 %v2650
  %v4980 = vpop.f32.mrb[0].mxu0
  %v4981 = vadd.f32 0.0, %v4980
  %v4982 = vpop.f32.mrb[0].mxu0
  %v4983 = vpop.f32.mrb[0].mxu0
  %v4984 = vadd.f32 0.0, %v4983
  %v4985 = vpop.f32.mrb[0].mxu0
  %4986 = vmatprep.mubr.bf16.mxu0 0
  %4987 = vmatmul.mubr.bf16.gmra.mrb[0].mxu0 %v2651
  %v4988 = vpop.f32.mrb[0].mxu0
  %v4989 = vadd.f32 0.0, %v4988
  %v4990 = vpop.f32.mrb[0].mxu0
  %v4991 = vpop.f32.mrb[0].mxu0
  %v4992 = vadd.f32 0.0, %v4991
  %v4993 = vpop.f32.mrb[0].mxu0
  %4994 = vmatprep.mubr.bf16.mxu0 0
  %4995 = vmatmul.mubr.bf16.gmra.mrb[0].mxu0 %v2652
  %v4996 = vpop.f32.mrb[0].mxu0
  %v4997 = vadd.f32 0.0, %v4996
  %v4998 = vpop.f32.mrb[0].mxu0
  %v4999 = vpop.f32.mrb[0].mxu0
  %v5000 = vadd.f32 0.0, %v4999
  %v5001 = vpop.f32.mrb[0].mxu0
  %5002 = vmatprep.mubr.bf16.mxu0 0
  %5003 = vmatmul.mubr.bf16.gmra.mrb[0].mxu0 %v2653
  %v5004 = vpop.f32.mrb[0].mxu0
  %v5005 = vadd.f32 0.0, %v5004
  %v5006 = vpop.f32.mrb[0].mxu0
  %v5007 = vpop.f32.mrb[0].mxu0
  %v5008 = vadd.f32 0.0, %v5007
  %v5009 = vpop.f32.mrb[0].mxu0
  %5010 = vmatprep.mubr.bf16.mxu0 0
  %5011 = vmatmul.mubr.bf16.gmra.mrb[0].mxu0 %v2654
  %v5012 = vpop.f32.mrb[0].mxu0
  %v5013 = vadd.f32 0.0, %v5012
  %v5014 = vpop.f32.mrb[0].mxu0
  %v5015 = vpop.f32.mrb[0].mxu0
  %v5016 = vadd.f32 0.0, %v5015
  %v5017 = vpop.f32.mrb[0].mxu0
  %5018 = vmatprep.mubr.bf16.mxu0 0
  %5019 = vmatmul.mubr.bf16.gmra.mrb[0].mxu0 %v2655
  %v5020 = vpop.f32.mrb[0].mxu0
  %v5021 = vadd.f32 0.0, %v5020
  %v5022 = vpop.f32.mrb[0].mxu0
  %v5023 = vpop.f32.mrb[0].mxu0
  %v5024 = vadd.f32 0.0, %v5023
  %v5025 = vpop.f32.mrb[0].mxu0
  %5026 = vmatprep.mubr.bf16.mxu0 0
  %5027 = vmatmul.mubr.bf16.gmra.mrb[0].mxu0 %v2656
  %v5028 = vpop.f32.mrb[0].mxu0
  %v5029 = vadd.f32 0.0, %v5028
  %v5030 = vpop.f32.mrb[0].mxu0
  %v5031 = vpop.f32.mrb[0].mxu0
  %v5032 = vadd.f32 0.0, %v5031
  %v5033 = vpop.f32.mrb[0].mxu0
  %5034 = vdwg.mxu0
  %v5035 = vpack.c.bf16 %v4976, %v4973
  %v5036 = vpack.c.bf16 %v4984, %v4981
  %v5037 = vpack.c.bf16 %v4992, %v4989
  %v5038 = vpack.c.bf16 %v5000, %v4997
  %v5039 = vpack.c.bf16 %v5008, %v5005
  %v5040 = vpack.c.bf16 %v5016, %v5013
  %v5041 = vpack.c.bf16 %v5024, %v5021
  %v5042 = vpack.c.bf16 %v5032, %v5029
  %s5043 = scalar_lea.vmem %s4, 64
  %v5044 = vld [vmem:[%s5043] sm:$0xf]
  %v5045 = vld [vmem:[%s5043 + $0x4] sm:$0xf]
  %v5048 = vunpack.c.l.b16 %v5044
  %v5049 = vunpack.c.l.b16 %v5045
  %v5050 = vpack.c.b16 %v5049, %v5048
  %v5053 = vsel %vm455, %v5035, 0
  %v5056 = vsel %vm455, %v5036, 0
  %v5059 = vsel %vm455, %v5037, 0
  %v5062 = vsel %vm455, %v5038, 0
  %v5065 = vsel %vm455, %v5039, 0
  %v5068 = vsel %vm455, %v5040, 0
  %v5071 = vsel %vm455, %v5041, 0
  %v5074 = vsel %vm455, %v5042, 0
  %5076 = vmatprep.subr.bf16.mxu0 0
  %5077 = vmatpush1.bf16.msra.mxu0 %v5050
  %5078 = vmatprep.subr.bf16.mxu0 0
  %5079 = vmatpush1.bf16.msra.mxu0 0
  %5080 = vmatprep.subr.bf16.mxu0 0
  %5081 = vmatpush1.bf16.msra.mxu0 0
  %5082 = vmatprep.subr.bf16.mxu0 0
  %5083 = vmatpush1.bf16.msra.mxu0 0
  %5084 = vmatprep.subr.bf16.mxu0 0
  %5085 = vmatpush1.bf16.msra.mxu0 0
  %5086 = vmatprep.subr.bf16.mxu0 0
  %5087 = vmatpush1.bf16.msra.mxu0 0
  %5088 = vmatprep.subr.bf16.mxu0 0
  %5089 = vmatpush1.bf16.msra.mxu0 0
  %5090 = vmatprep.subr.bf16.mxu0 0
  %5091 = vmatpush1.bf16.msra.mxu0 0
  %5092 = vmatprep.subr.bf16.mxu0 0
  %5093 = vmatpush1.bf16.msra.mxu0 0
  %5094 = vmatprep.subr.bf16.mxu0 0
  %5095 = vmatpush1.bf16.msra.mxu0 0
  %5096 = vmatprep.subr.bf16.mxu0 0
  %5097 = vmatpush1.bf16.msra.mxu0 0
  %5098 = vmatprep.subr.bf16.mxu0 0
  %5099 = vmatpush1.bf16.msra.mxu0 0
  %5100 = vmatprep.subr.bf16.mxu0 0
  %5101 = vmatpush1.bf16.msra.mxu0 0
  %5102 = vmatprep.subr.bf16.mxu0 0
  %5103 = vmatpush1.bf16.msra.mxu0 0
  %5104 = vmatprep.subr.bf16.mxu0 0
  %5105 = vmatpush1.bf16.msra.mxu0 0
  %5106 = vmatprep.subr.bf16.mxu0 0
  %5107 = vmatpush1.bf16.msra.mxu0 0
  %5108 = vmatprep.mubr.bf16.mxu0 0
  %5109 = vmatmul.mubr.bf16.gmra.mrb[0].mxu0 %v5053
  %v5110 = vpop.f32.mrb[0].mxu0
  %v5111 = vadd.f32 0.0, %v5110
  %v5112 = vpop.f32.mrb[0].mxu0
  %v5113 = vpop.f32.mrb[0].mxu0
  %v5114 = vadd.f32 0.0, %v5113
  %v5115 = vpop.f32.mrb[0].mxu0
  %5116 = vmatprep.mubr.bf16.mxu0 0
  %5117 = vmatmul.mubr.bf16.gmra.mrb[0].mxu0 %v5056
  %v5118 = vpop.f32.mrb[0].mxu0
  %v5119 = vadd.f32 0.0, %v5118
  %v5120 = vpop.f32.mrb[0].mxu0
  %v5121 = vpop.f32.mrb[0].mxu0
  %v5122 = vadd.f32 0.0, %v5121
  %v5123 = vpop.f32.mrb[0].mxu0
  %5124 = vmatprep.mubr.bf16.mxu0 0
  %5125 = vmatmul.mubr.bf16.gmra.mrb[0].mxu0 %v5059
  %v5126 = vpop.f32.mrb[0].mxu0
  %v5127 = vadd.f32 0.0, %v5126
  %v5128 = vpop.f32.mrb[0].mxu0
  %v5129 = vpop.f32.mrb[0].mxu0
  %v5130 = vadd.f32 0.0, %v5129
  %v5131 = vpop.f32.mrb[0].mxu0
  %5132 = vmatprep.mubr.bf16.mxu0 0
  %5133 = vmatmul.mubr.bf16.gmra.mrb[0].mxu0 %v5062
  %v5134 = vpop.f32.mrb[0].mxu0
  %v5135 = vadd.f32 0.0, %v5134
  %v5136 = vpop.f32.mrb[0].mxu0
  %v5137 = vpop.f32.mrb[0].mxu0
  %v5138 = vadd.f32 0.0, %v5137
  %v5139 = vpop.f32.mrb[0].mxu0
  %5140 = vmatprep.mubr.bf16.mxu0 0
  %5141 = vmatmul.mubr.bf16.gmra.mrb[0].mxu0 %v5065
  %v5142 = vpop.f32.mrb[0].mxu0
  %v5143 = vadd.f32 0.0, %v5142
  %v5144 = vpop.f32.mrb[0].mxu0
  %v5145 = vpop.f32.mrb[0].mxu0
  %v5146 = vadd.f32 0.0, %v5145
  %v5147 = vpop.f32.mrb[0].mxu0
  %5148 = vmatprep.mubr.bf16.mxu0 0
  %5149 = vmatmul.mubr.bf16.gmra.mrb[0].mxu0 %v5068
  %v5150 = vpop.f32.mrb[0].mxu0
  %v5151 = vadd.f32 0.0, %v5150
  %v5152 = vpop.f32.mrb[0].mxu0
  %v5153 = vpop.f32.mrb[0].mxu0
  %v5154 = vadd.f32 0.0, %v5153
  %v5155 = vpop.f32.mrb[0].mxu0
  %5156 = vmatprep.mubr.bf16.mxu0 0
  %5157 = vmatmul.mubr.bf16.gmra.mrb[0].mxu0 %v5071
  %v5158 = vpop.f32.mrb[0].mxu0
  %v5159 = vadd.f32 0.0, %v5158
  %v5160 = vpop.f32.mrb[0].mxu0
  %v5161 = vpop.f32.mrb[0].mxu0
  %v5162 = vadd.f32 0.0, %v5161
  %v5163 = vpop.f32.mrb[0].mxu0
  %5164 = vmatprep.mubr.bf16.mxu0 0
  %5165 = vmatmul.mubr.bf16.gmra.mrb[0].mxu0 %v5074
  %v5166 = vpop.f32.mrb[0].mxu0
  %v5167 = vadd.f32 0.0, %v5166
  %v5168 = vpop.f32.mrb[0].mxu0
  %v5169 = vpop.f32.mrb[0].mxu0
  %v5170 = vadd.f32 0.0, %v5169
  %v5171 = vpop.f32.mrb[0].mxu0
  %5172 = vdwg.mxu0
  %v5173 = vadd.f32 %v4922, %v5111
  %v5174 = vadd.f32 %v4923, %v5114
  %v5175 = vadd.f32 %v4924, %v5119
  %v5176 = vadd.f32 %v4925, %v5122
  %v5177 = vadd.f32 %v4926, %v5127
  %v5178 = vadd.f32 %v4927, %v5130
  %v5179 = vadd.f32 %v4928, %v5135
  %v5180 = vadd.f32 %v4929, %v5138
  %v5181 = vadd.f32 %v4930, %v5143
  %v5182 = vadd.f32 %v4931, %v5146
  %v5183 = vadd.f32 %v4932, %v5151
  %v5184 = vadd.f32 %v4933, %v5154
  %v5185 = vadd.f32 %v4934, %v5159
  %v5186 = vadd.f32 %v4935, %v5162
  %v5187 = vadd.f32 %v4936, %v5167
  %v5188 = vadd.f32 %v4937, %v5170
  %v5189 = vld [vmem:[%s5] sm:$0x1]
  %v5191 = vlaneseq
  %v5192 = vshrl.u32 %v5191, 7
  %v5193 = vsub.s32 0, %v5192
  %v5194 = vrot.slane %v5189, %v5193
  %v5196 = vadd.f32 %v5173, %v5194
  %v5197 = vadd.f32 %v5174, %v5194
  %v5198 = vadd.f32 %v5175, %v5194
  %v5199 = vadd.f32 %v5176, %v5194
  %v5200 = vadd.f32 %v5177, %v5194
  %v5201 = vadd.f32 %v5178, %v5194
  %v5202 = vadd.f32 %v5179, %v5194
  %v5203 = vadd.f32 %v5180, %v5194
  %v5204 = vadd.f32 %v5181, %v5194
  %v5205 = vadd.f32 %v5182, %v5194
  %v5206 = vadd.f32 %v5183, %v5194
  %v5207 = vadd.f32 %v5184, %v5194
  %v5208 = vadd.f32 %v5185, %v5194
  %v5209 = vadd.f32 %v5186, %v5194
  %v5210 = vadd.f32 %v5187, %v5194
  %v5211 = vadd.f32 %v5188, %v5194
  %v5212 = vmax.f32 %v5196, 0.0
  %v5213 = vmax.f32 %v5197, 0.0
  %v5214 = vmax.f32 %v5198, 0.0
  %v5215 = vmax.f32 %v5199, 0.0
  %v5216 = vmax.f32 %v5200, 0.0
  %v5217 = vmax.f32 %v5201, 0.0
  %v5218 = vmax.f32 %v5202, 0.0
  %v5219 = vmax.f32 %v5203, 0.0
  %v5220 = vmax.f32 %v5204, 0.0
  %v5221 = vmax.f32 %v5205, 0.0
  %v5222 = vmax.f32 %v5206, 0.0
  %v5223 = vmax.f32 %v5207, 0.0
  %v5224 = vmax.f32 %v5208, 0.0
  %v5225 = vmax.f32 %v5209, 0.0
  %v5226 = vmax.f32 %v5210, 0.0
  %v5227 = vmax.f32 %v5211, 0.0
  %v5228 = vpack.c.bf16 %v5213, %v5212
  %v5229 = vpack.c.bf16 %v5215, %v5214
  %v5230 = vpack.c.bf16 %v5217, %v5216
  %v5231 = vpack.c.bf16 %v5219, %v5218
  %v5232 = vpack.c.bf16 %v5221, %v5220
  %v5233 = vpack.c.bf16 %v5223, %v5222
  %v5234 = vpack.c.bf16 %v5225, %v5224
  %v5235 = vpack.c.bf16 %v5227, %v5226
  %5236 = vmatprep.subr.bf16.mxu0 0
  %5237 = vmatpush1.bf16.msra.mxu0 %v5228
  %5238 = vmatprep.subr.bf16.mxu0 0
  %5239 = vmatpush1.bf16.msra.mxu0 %v5229
  %5240 = vmatprep.subr.bf16.mxu0 0
  %5241 = vmatpush1.bf16.msra.mxu0 %v5230
  %5242 = vmatprep.subr.bf16.mxu0 0
  %5243 = vmatpush1.bf16.msra.mxu0 %v5231
  %5244 = vmatprep.subr.bf16.mxu0 0
  %5245 = vmatpush1.bf16.msra.mxu0 %v5232
  %5246 = vmatprep.subr.bf16.mxu0 0
  %5247 = vmatpush1.bf16.msra.mxu0 %v5233
  %5248 = vmatprep.subr.bf16.mxu0 0
  %5249 = vmatpush1.bf16.msra.mxu0 %v5234
  %5250 = vmatprep.subr.bf16.mxu0 0
  %5251 = vmatpush1.bf16.msra.mxu0 %v5235
  %5252 = vmatprep.subr.bf16.mxu0 0
  %5253 = vmatpush1.bf16.msra.mxu0 0
  %5254 = vmatprep.subr.bf16.mxu0 0
  %5255 = vmatpush1.bf16.msra.mxu0 0
  %5256 = vmatprep.subr.bf16.mxu0 0
  %5257 = vmatpush1.bf16.msra.mxu0 0
  %5258 = vmatprep.subr.bf16.mxu0 0
  %5259 = vmatpush1.bf16.msra.mxu0 0
  %5260 = vmatprep.subr.bf16.mxu0 0
  %5261 = vmatpush1.bf16.msra.mxu0 0
  %5262 = vmatprep.subr.bf16.mxu0 0
  %5263 = vmatpush1.bf16.msra.mxu0 0
  %5264 = vmatprep.subr.bf16.mxu0 0
  %5265 = vmatpush1.bf16.msra.mxu0 0
  %5266 = vmatprep.subr.bf16.mxu0 0
  %5267 = vmatpush1.bf16.msra.mxu0 0
  %5268 = vmatprep.mubr.bf16.mxu0 0
  %5269 = vmatmul.mubr.bf16.gmra.mrb[0].mxu0 %v105
  %v5270 = vpop.f32.mrb[0].mxu0
  %v5271 = vadd.f32 0.0, %v5270
  %v5272 = vpop.f32.mrb[0].mxu0
  %v5273 = vpop.f32.mrb[0].mxu0
  %v5274 = vadd.f32 0.0, %v5273
  %v5275 = vpop.f32.mrb[0].mxu0
  %5276 = vmatprep.mubr.bf16.mxu0 0
  %5277 = vmatmul.mubr.bf16.gmra.mrb[0].mxu0 %v106
  %v5278 = vpop.f32.mrb[0].mxu0
  %v5279 = vadd.f32 0.0, %v5278
  %v5280 = vpop.f32.mrb[0].mxu0
  %v5281 = vpop.f32.mrb[0].mxu0
  %v5282 = vadd.f32 0.0, %v5281
  %v5283 = vpop.f32.mrb[0].mxu0
  %5284 = vmatprep.mubr.bf16.mxu0 0
  %5285 = vmatmul.mubr.bf16.gmra.mrb[0].mxu0 %v107
  %v5286 = vpop.f32.mrb[0].mxu0
  %v5287 = vadd.f32 0.0, %v5286
  %v5288 = vpop.f32.mrb[0].mxu0
  %v5289 = vpop.f32.mrb[0].mxu0
  %v5290 = vadd.f32 0.0, %v5289
  %v5291 = vpop.f32.mrb[0].mxu0
  %5292 = vmatprep.mubr.bf16.mxu0 0
  %5293 = vmatmul.mubr.bf16.gmra.mrb[0].mxu0 %v108
  %v5294 = vpop.f32.mrb[0].mxu0
  %v5295 = vadd.f32 0.0, %v5294
  %v5296 = vpop.f32.mrb[0].mxu0
  %v5297 = vpop.f32.mrb[0].mxu0
  %v5298 = vadd.f32 0.0, %v5297
  %v5299 = vpop.f32.mrb[0].mxu0
  %5300 = vmatprep.mubr.bf16.mxu0 0
  %5301 = vmatmul.mubr.bf16.gmra.mrb[0].mxu0 %v109
  %v5302 = vpop.f32.mrb[0].mxu0
  %v5303 = vadd.f32 0.0, %v5302
  %v5304 = vpop.f32.mrb[0].mxu0
  %v5305 = vpop.f32.mrb[0].mxu0
  %v5306 = vadd.f32 0.0, %v5305
  %v5307 = vpop.f32.mrb[0].mxu0
  %5308 = vmatprep.mubr.bf16.mxu0 0
  %5309 = vmatmul.mubr.bf16.gmra.mrb[0].mxu0 %v110
  %v5310 = vpop.f32.mrb[0].mxu0
  %v5311 = vadd.f32 0.0, %v5310
  %v5312 = vpop.f32.mrb[0].mxu0
  %v5313 = vpop.f32.mrb[0].mxu0
  %v5314 = vadd.f32 0.0, %v5313
  %v5315 = vpop.f32.mrb[0].mxu0
  %5316 = vmatprep.mubr.bf16.mxu0 0
  %5317 = vmatmul.mubr.bf16.gmra.mrb[0].mxu0 %v111
  %v5318 = vpop.f32.mrb[0].mxu0
  %v5319 = vadd.f32 0.0, %v5318
  %v5320 = vpop.f32.mrb[0].mxu0
  %v5321 = vpop.f32.mrb[0].mxu0
  %v5322 = vadd.f32 0.0, %v5321
  %v5323 = vpop.f32.mrb[0].mxu0
  %5324 = vmatprep.mubr.bf16.mxu0 0
  %5325 = vmatmul.mubr.bf16.gmra.mrb[0].mxu0 %v112
  %v5326 = vpop.f32.mrb[0].mxu0
  %v5327 = vadd.f32 0.0, %v5326
  %v5328 = vpop.f32.mrb[0].mxu0
  %v5329 = vpop.f32.mrb[0].mxu0
  %v5330 = vadd.f32 0.0, %v5329
  %v5331 = vpop.f32.mrb[0].mxu0
  %5332 = vdwg.mxu0
  %v5333 = vpack.c.bf16 %v5274, %v5271
  %v5334 = vpack.c.bf16 %v5282, %v5279
  %v5335 = vpack.c.bf16 %v5290, %v5287
  %v5336 = vpack.c.bf16 %v5298, %v5295
  %v5337 = vpack.c.bf16 %v5306, %v5303
  %v5338 = vpack.c.bf16 %v5314, %v5311
  %v5339 = vpack.c.bf16 %v5322, %v5319
  %v5340 = vpack.c.bf16 %v5330, %v5327
  %v5341 = vld [vmem:[%s6] sm:$0xf]
  %v5342 = vld [vmem:[%s6 + $0x4] sm:$0xf]
  %v5343 = vld [vmem:[%s6 + $0x8] sm:$0xf]
  %v5344 = vld [vmem:[%s6 + $0xc] sm:$0xf]
  %5345 = vmatprep.subr.bf16.mxu0 0
  %5346 = vmatpush1.bf16.msra.mxu0 %v5228
  %5347 = vmatprep.subr.bf16.mxu0 0
  %5348 = vmatpush1.bf16.msra.mxu0 %v5229
  %5349 = vmatprep.subr.bf16.mxu0 0
  %5350 = vmatpush1.bf16.msra.mxu0 %v5230
  %5351 = vmatprep.subr.bf16.mxu0 0
  %5352 = vmatpush1.bf16.msra.mxu0 %v5231
  %5353 = vmatprep.subr.bf16.mxu0 0
  %5354 = vmatpush1.bf16.msra.mxu0 %v5232
  %5355 = vmatprep.subr.bf16.mxu0 0
  %5356 = vmatpush1.bf16.msra.mxu0 %v5233
  %5357 = vmatprep.subr.bf16.mxu0 0
  %5358 = vmatpush1.bf16.msra.mxu0 %v5234
  %5359 = vmatprep.subr.bf16.mxu0 0
  %5360 = vmatpush1.bf16.msra.mxu0 %v5235
  %5361 = vmatprep.subr.bf16.mxu0 0
  %5362 = vmatpush1.bf16.msra.mxu0 0
  %5363 = vmatprep.subr.bf16.mxu0 0
  %5364 = vmatpush1.bf16.msra.mxu0 0
  %5365 = vmatprep.subr.bf16.mxu0 0
  %5366 = vmatpush1.bf16.msra.mxu0 0
  %5367 = vmatprep.subr.bf16.mxu0 0
  %5368 = vmatpush1.bf16.msra.mxu0 0
  %5369 = vmatprep.subr.bf16.mxu0 0
  %5370 = vmatpush1.bf16.msra.mxu0 0
  %5371 = vmatprep.subr.bf16.mxu0 0
  %5372 = vmatpush1.bf16.msra.mxu0 0
  %5373 = vmatprep.subr.bf16.mxu0 0
  %5374 = vmatpush1.bf16.msra.mxu0 0
  %5375 = vmatprep.subr.bf16.mxu0 0
  %5376 = vmatpush1.bf16.msra.mxu0 0
  %5377 = vmatprep.mubr.bf16.mxu0 0
  %5378 = vmatmul.mubr.bf16.gmra.mrb[0].mxu0 %v325
  %v5379 = vpop.f32.mrb[0].mxu0
  %v5380 = vadd.f32 0.0, %v5379
  %v5381 = vpop.f32.mrb[0].mxu0
  %v5382 = vpop.f32.mrb[0].mxu0
  %v5383 = vadd.f32 0.0, %v5382
  %v5384 = vpop.f32.mrb[0].mxu0
  %5385 = vmatprep.mubr.bf16.mxu0 0
  %5386 = vmatmul.mubr.bf16.gmra.mrb[0].mxu0 %v326
  %v5387 = vpop.f32.mrb[0].mxu0
  %v5388 = vadd.f32 0.0, %v5387
  %v5389 = vpop.f32.mrb[0].mxu0
  %v5390 = vpop.f32.mrb[0].mxu0
  %v5391 = vadd.f32 0.0, %v5390
  %v5392 = vpop.f32.mrb[0].mxu0
  %5393 = vmatprep.mubr.bf16.mxu0 0
  %5394 = vmatmul.mubr.bf16.gmra.mrb[0].mxu0 %v327
  %v5395 = vpop.f32.mrb[0].mxu0
  %v5396 = vadd.f32 0.0, %v5395
  %v5397 = vpop.f32.mrb[0].mxu0
  %v5398 = vpop.f32.mrb[0].mxu0
  %v5399 = vadd.f32 0.0, %v5398
  %v5400 = vpop.f32.mrb[0].mxu0
  %5401 = vmatprep.mubr.bf16.mxu0 0
  %5402 = vmatmul.mubr.bf16.gmra.mrb[0].mxu0 %v328
  %v5403 = vpop.f32.mrb[0].mxu0
  %v5404 = vadd.f32 0.0, %v5403
  %v5405 = vpop.f32.mrb[0].mxu0
  %v5406 = vpop.f32.mrb[0].mxu0
  %v5407 = vadd.f32 0.0, %v5406
  %v5408 = vpop.f32.mrb[0].mxu0
  %5409 = vmatprep.mubr.bf16.mxu0 0
  %5410 = vmatmul.mubr.bf16.gmra.mrb[0].mxu0 %v329
  %v5411 = vpop.f32.mrb[0].mxu0
  %v5412 = vadd.f32 0.0, %v5411
  %v5413 = vpop.f32.mrb[0].mxu0
  %v5414 = vpop.f32.mrb[0].mxu0
  %v5415 = vadd.f32 0.0, %v5414
  %v5416 = vpop.f32.mrb[0].mxu0
  %5417 = vmatprep.mubr.bf16.mxu0 0
  %5418 = vmatmul.mubr.bf16.gmra.mrb[0].mxu0 %v330
  %v5419 = vpop.f32.mrb[0].mxu0
  %v5420 = vadd.f32 0.0, %v5419
  %v5421 = vpop.f32.mrb[0].mxu0
  %v5422 = vpop.f32.mrb[0].mxu0
  %v5423 = vadd.f32 0.0, %v5422
  %v5424 = vpop.f32.mrb[0].mxu0
  %5425 = vmatprep.mubr.bf16.mxu0 0
  %5426 = vmatmul.mubr.bf16.gmra.mrb[0].mxu0 %v331
  %v5427 = vpop.f32.mrb[0].mxu0
  %v5428 = vadd.f32 0.0, %v5427
  %v5429 = vpop.f32.mrb[0].mxu0
  %v5430 = vpop.f32.mrb[0].mxu0
  %v5431 = vadd.f32 0.0, %v5430
  %v5432 = vpop.f32.mrb[0].mxu0
  %5433 = vmatprep.mubr.bf16.mxu0 0
  %5434 = vmatmul.mubr.bf16.gmra.mrb[0].mxu0 %v332
  %v5435 = vpop.f32.mrb[0].mxu0
  %v5436 = vadd.f32 0.0, %v5435
  %v5437 = vpop.f32.mrb[0].mxu0
  %v5438 = vpop.f32.mrb[0].mxu0
  %v5439 = vadd.f32 0.0, %v5438
  %v5440 = vpop.f32.mrb[0].mxu0
  %5441 = vdwg.mxu0
  %v5442 = vpack.c.bf16 %v5383, %v5380
  %v5443 = vpack.c.bf16 %v5391, %v5388
  %v5444 = vpack.c.bf16 %v5399, %v5396
  %v5445 = vpack.c.bf16 %v5407, %v5404
  %v5446 = vpack.c.bf16 %v5415, %v5412
  %v5447 = vpack.c.bf16 %v5423, %v5420
  %v5448 = vpack.c.bf16 %v5431, %v5428
  %v5449 = vpack.c.bf16 %v5439, %v5436
  %s5450 = scalar_lea.vmem %s6, 16
  %v5451 = vld [vmem:[%s5450] sm:$0xf]
  %v5452 = vld [vmem:[%s5450 + $0x4] sm:$0xf]
  %v5453 = vld [vmem:[%s5450 + $0x8] sm:$0xf]
  %v5454 = vld [vmem:[%s5450 + $0xc] sm:$0xf]
  %v5459 = vunpack.c.l.b16 %v5451
  %v5460 = vunpack.c.l.b16 %v5452
  %v5461 = vunpack.c.l.b16 %v5453
  %v5462 = vunpack.c.l.b16 %v5454
  %v5463 = vpack.c.b16 %v5460, %v5459
  %v5464 = vpack.c.b16 %v5462, %v5461
  %vm5467 = vcmask 261120
  %v5469 = vsel %vm5467, %v5442, 0
  %v5472 = vsel %vm5467, %v5443, 0
  %v5475 = vsel %vm5467, %v5444, 0
  %v5478 = vsel %vm5467, %v5445, 0
  %v5481 = vsel %vm5467, %v5446, 0
  %v5484 = vsel %vm5467, %v5447, 0
  %v5487 = vsel %vm5467, %v5448, 0
  %v5490 = vsel %vm5467, %v5449, 0
  %5492 = vmatprep.subr.bf16.mxu0 0
  %5493 = vmatpush1.bf16.msra.mxu0 %v5463
  %5494 = vmatprep.subr.bf16.mxu0 0
  %5495 = vmatpush1.bf16.msra.mxu0 %v5464
  %5496 = vmatprep.subr.bf16.mxu0 0
  %5497 = vmatpush1.bf16.msra.mxu0 0
  %5498 = vmatprep.subr.bf16.mxu0 0
  %5499 = vmatpush1.bf16.msra.mxu0 0
  %5500 = vmatprep.subr.bf16.mxu0 0
  %5501 = vmatpush1.bf16.msra.mxu0 0
  %5502 = vmatprep.subr.bf16.mxu0 0
  %5503 = vmatpush1.bf16.msra.mxu0 0
  %5504 = vmatprep.subr.bf16.mxu0 0
  %5505 = vmatpush1.bf16.msra.mxu0 0
  %5506 = vmatprep.subr.bf16.mxu0 0
  %5507 = vmatpush1.bf16.msra.mxu0 0
  %5508 = vmatprep.subr.bf16.mxu0 0
  %5509 = vmatpush1.bf16.msra.mxu0 0
  %5510 = vmatprep.subr.bf16.mxu0 0
  %5511 = vmatpush1.bf16.msra.mxu0 0
  %5512 = vmatprep.subr.bf16.mxu0 0
  %5513 = vmatpush1.bf16.msra.mxu0 0
  %5514 = vmatprep.subr.bf16.mxu0 0
  %5515 = vmatpush1.bf16.msra.mxu0 0
  %5516 = vmatprep.subr.bf16.mxu0 0
  %5517 = vmatpush1.bf16.msra.mxu0 0
  %5518 = vmatprep.subr.bf16.mxu0 0
  %5519 = vmatpush1.bf16.msra.mxu0 0
  %5520 = vmatprep.subr.bf16.mxu0 0
  %5521 = vmatpush1.bf16.msra.mxu0 0
  %5522 = vmatprep.subr.bf16.mxu0 0
  %5523 = vmatpush1.bf16.msra.mxu0 0
  %5524 = vmatprep.mubr.bf16.mxu0 0
  %5525 = vmatmul.mubr.bf16.gmra.mrb[0].mxu0 %v5469
  %v5526 = vpop.f32.mrb[0].mxu0
  %v5527 = vadd.f32 0.0, %v5526
  %v5528 = vpop.f32.mrb[0].mxu0
  %v5529 = vpop.f32.mrb[0].mxu0
  %v5530 = vadd.f32 0.0, %v5529
  %v5531 = vpop.f32.mrb[0].mxu0
  %5532 = vmatprep.mubr.bf16.mxu0 0
  %5533 = vmatmul.mubr.bf16.gmra.mrb[0].mxu0 %v5472
  %v5534 = vpop.f32.mrb[0].mxu0
  %v5535 = vadd.f32 0.0, %v5534
  %v5536 = vpop.f32.mrb[0].mxu0
  %v5537 = vpop.f32.mrb[0].mxu0
  %v5538 = vadd.f32 0.0, %v5537
  %v5539 = vpop.f32.mrb[0].mxu0
  %5540 = vmatprep.mubr.bf16.mxu0 0
  %5541 = vmatmul.mubr.bf16.gmra.mrb[0].mxu0 %v5475
  %v5542 = vpop.f32.mrb[0].mxu0
  %v5543 = vadd.f32 0.0, %v5542
  %v5544 = vpop.f32.mrb[0].mxu0
  %v5545 = vpop.f32.mrb[0].mxu0
  %v5546 = vadd.f32 0.0, %v5545
  %v5547 = vpop.f32.mrb[0].mxu0
  %5548 = vmatprep.mubr.bf16.mxu0 0
  %5549 = vmatmul.mubr.bf16.gmra.mrb[0].mxu0 %v5478
  %v5550 = vpop.f32.mrb[0].mxu0
  %v5551 = vadd.f32 0.0, %v5550
  %v5552 = vpop.f32.mrb[0].mxu0
  %v5553 = vpop.f32.mrb[0].mxu0
  %v5554 = vadd.f32 0.0, %v5553
  %v5555 = vpop.f32.mrb[0].mxu0
  %5556 = vmatprep.mubr.bf16.mxu0 0
  %5557 = vmatmul.mubr.bf16.gmra.mrb[0].mxu0 %v5481
  %v5558 = vpop.f32.mrb[0].mxu0
  %v5559 = vadd.f32 0.0, %v5558
  %v5560 = vpop.f32.mrb[0].mxu0
  %v5561 = vpop.f32.mrb[0].mxu0
  %v5562 = vadd.f32 0.0, %v5561
  %v5563 = vpop.f32.mrb[0].mxu0
  %5564 = vmatprep.mubr.bf16.mxu0 0
  %5565 = vmatmul.mubr.bf16.gmra.mrb[0].mxu0 %v5484
  %v5566 = vpop.f32.mrb[0].mxu0
  %v5567 = vadd.f32 0.0, %v5566
  %v5568 = vpop.f32.mrb[0].mxu0
  %v5569 = vpop.f32.mrb[0].mxu0
  %v5570 = vadd.f32 0.0, %v5569
  %v5571 = vpop.f32.mrb[0].mxu0
  %5572 = vmatprep.mubr.bf16.mxu0 0
  %5573 = vmatmul.mubr.bf16.gmra.mrb[0].mxu0 %v5487
  %v5574 = vpop.f32.mrb[0].mxu0
  %v5575 = vadd.f32 0.0, %v5574
  %v5576 = vpop.f32.mrb[0].mxu0
  %v5577 = vpop.f32.mrb[0].mxu0
  %v5578 = vadd.f32 0.0, %v5577
  %v5579 = vpop.f32.mrb[0].mxu0
  %5580 = vmatprep.mubr.bf16.mxu0 0
  %5581 = vmatmul.mubr.bf16.gmra.mrb[0].mxu0 %v5490
  %v5582 = vpop.f32.mrb[0].mxu0
  %v5583 = vadd.f32 0.0, %v5582
  %v5584 = vpop.f32.mrb[0].mxu0
  %v5585 = vpop.f32.mrb[0].mxu0
  %v5586 = vadd.f32 0.0, %v5585
  %v5587 = vpop.f32.mrb[0].mxu0
  %5588 = vdwg.mxu0
  %v5593 = vunpack.c.l.b16 %v5341
  %v5594 = vunpack.c.l.b16 %v5342
  %v5595 = vunpack.c.l.b16 %v5343
  %v5596 = vunpack.c.l.b16 %v5344
  %v5597 = vpack.c.b16 %v5594, %v5593
  %v5598 = vpack.c.b16 %v5596, %v5595
  %v5602 = vsel %vm5467, %v5333, 0
  %v5605 = vsel %vm5467, %v5334, 0
  %v5608 = vsel %vm5467, %v5335, 0
  %v5611 = vsel %vm5467, %v5336, 0
  %v5614 = vsel %vm5467, %v5337, 0
  %v5617 = vsel %vm5467, %v5338, 0
  %v5620 = vsel %vm5467, %v5339, 0
  %v5623 = vsel %vm5467, %v5340, 0
  %5625 = vmatprep.subr.bf16.mxu0 0
  %5626 = vmatpush1.bf16.msra.mxu0 %v5597
  %5627 = vmatprep.subr.bf16.mxu0 0
  %5628 = vmatpush1.bf16.msra.mxu0 %v5598
  %5629 = vmatprep.subr.bf16.mxu0 0
  %5630 = vmatpush1.bf16.msra.mxu0 0
  %5631 = vmatprep.subr.bf16.mxu0 0
  %5632 = vmatpush1.bf16.msra.mxu0 0
  %5633 = vmatprep.subr.bf16.mxu0 0
  %5634 = vmatpush1.bf16.msra.mxu0 0
  %5635 = vmatprep.subr.bf16.mxu0 0
  %5636 = vmatpush1.bf16.msra.mxu0 0
  %5637 = vmatprep.subr.bf16.mxu0 0
  %5638 = vmatpush1.bf16.msra.mxu0 0
  %5639 = vmatprep.subr.bf16.mxu0 0
  %5640 = vmatpush1.bf16.msra.mxu0 0
  %5641 = vmatprep.subr.bf16.mxu0 0
  %5642 = vmatpush1.bf16.msra.mxu0 0
  %5643 = vmatprep.subr.bf16.mxu0 0
  %5644 = vmatpush1.bf16.msra.mxu0 0
  %5645 = vmatprep.subr.bf16.mxu0 0
  %5646 = vmatpush1.bf16.msra.mxu0 0
  %5647 = vmatprep.subr.bf16.mxu0 0
  %5648 = vmatpush1.bf16.msra.mxu0 0
  %5649 = vmatprep.subr.bf16.mxu0 0
  %5650 = vmatpush1.bf16.msra.mxu0 0
  %5651 = vmatprep.subr.bf16.mxu0 0
  %5652 = vmatpush1.bf16.msra.mxu0 0
  %5653 = vmatprep.subr.bf16.mxu0 0
  %5654 = vmatpush1.bf16.msra.mxu0 0
  %5655 = vmatprep.subr.bf16.mxu0 0
  %5656 = vmatpush1.bf16.msra.mxu0 0
  %5657 = vmatprep.mubr.bf16.mxu0 0
  %5658 = vmatmul.mubr.bf16.gmra.mrb[0].mxu0 %v5602
  %v5659 = vpop.f32.mrb[0].mxu0
  %v5660 = vadd.f32 %v5527, %v5659
  %v5661 = vpop.f32.mrb[0].mxu0
  %v5662 = vpop.f32.mrb[0].mxu0
  %v5663 = vadd.f32 %v5530, %v5662
  %v5664 = vpop.f32.mrb[0].mxu0
  %5665 = vmatprep.mubr.bf16.mxu0 0
  %5666 = vmatmul.mubr.bf16.gmra.mrb[0].mxu0 %v5605
  %v5667 = vpop.f32.mrb[0].mxu0
  %v5668 = vadd.f32 %v5535, %v5667
  %v5669 = vpop.f32.mrb[0].mxu0
  %v5670 = vpop.f32.mrb[0].mxu0
  %v5671 = vadd.f32 %v5538, %v5670
  %v5672 = vpop.f32.mrb[0].mxu0
  %5673 = vmatprep.mubr.bf16.mxu0 0
  %5674 = vmatmul.mubr.bf16.gmra.mrb[0].mxu0 %v5608
  %v5675 = vpop.f32.mrb[0].mxu0
  %v5676 = vadd.f32 %v5543, %v5675
  %v5677 = vpop.f32.mrb[0].mxu0
  %v5678 = vpop.f32.mrb[0].mxu0
  %v5679 = vadd.f32 %v5546, %v5678
  %v5680 = vpop.f32.mrb[0].mxu0
  %5681 = vmatprep.mubr.bf16.mxu0 0
  %5682 = vmatmul.mubr.bf16.gmra.mrb[0].mxu0 %v5611
  %v5683 = vpop.f32.mrb[0].mxu0
  %v5684 = vadd.f32 %v5551, %v5683
  %v5685 = vpop.f32.mrb[0].mxu0
  %v5686 = vpop.f32.mrb[0].mxu0
  %v5687 = vadd.f32 %v5554, %v5686
  %v5688 = vpop.f32.mrb[0].mxu0
  %5689 = vmatprep.mubr.bf16.mxu0 0
  %5690 = vmatmul.mubr.bf16.gmra.mrb[0].mxu0 %v5614
  %v5691 = vpop.f32.mrb[0].mxu0
  %v5692 = vadd.f32 %v5559, %v5691
  %v5693 = vpop.f32.mrb[0].mxu0
  %v5694 = vpop.f32.mrb[0].mxu0
  %v5695 = vadd.f32 %v5562, %v5694
  %v5696 = vpop.f32.mrb[0].mxu0
  %5697 = vmatprep.mubr.bf16.mxu0 0
  %5698 = vmatmul.mubr.bf16.gmra.mrb[0].mxu0 %v5617
  %v5699 = vpop.f32.mrb[0].mxu0
  %v5700 = vadd.f32 %v5567, %v5699
  %v5701 = vpop.f32.mrb[0].mxu0
  %v5702 = vpop.f32.mrb[0].mxu0
  %v5703 = vadd.f32 %v5570, %v5702
  %v5704 = vpop.f32.mrb[0].mxu0
  %5705 = vmatprep.mubr.bf16.mxu0 0
  %5706 = vmatmul.mubr.bf16.gmra.mrb[0].mxu0 %v5620
  %v5707 = vpop.f32.mrb[0].mxu0
  %v5708 = vadd.f32 %v5575, %v5707
  %v5709 = vpop.f32.mrb[0].mxu0
  %v5710 = vpop.f32.mrb[0].mxu0
  %v5711 = vadd.f32 %v5578, %v5710
  %v5712 = vpop.f32.mrb[0].mxu0
  %5713 = vmatprep.mubr.bf16.mxu0 0
  %5714 = vmatmul.mubr.bf16.gmra.mrb[0].mxu0 %v5623
  %v5715 = vpop.f32.mrb[0].mxu0
  %v5716 = vadd.f32 %v5583, %v5715
  %v5717 = vpop.f32.mrb[0].mxu0
  %v5718 = vpop.f32.mrb[0].mxu0
  %v5719 = vadd.f32 %v5586, %v5718
  %v5720 = vpop.f32.mrb[0].mxu0
  %5721 = vdwg.mxu0
  %5722 = vmatprep.subr.bf16.mxu0 0
  %5723 = vmatpush1.bf16.msra.mxu0 %v5228
  %5724 = vmatprep.subr.bf16.mxu0 0
  %5725 = vmatpush1.bf16.msra.mxu0 %v5229
  %5726 = vmatprep.subr.bf16.mxu0 0
  %5727 = vmatpush1.bf16.msra.mxu0 %v5230
  %5728 = vmatprep.subr.bf16.mxu0 0
  %5729 = vmatpush1.bf16.msra.mxu0 %v5231
  %5730 = vmatprep.subr.bf16.mxu0 0
  %5731 = vmatpush1.bf16.msra.mxu0 %v5232
  %5732 = vmatprep.subr.bf16.mxu0 0
  %5733 = vmatpush1.bf16.msra.mxu0 %v5233
  %5734 = vmatprep.subr.bf16.mxu0 0
  %5735 = vmatpush1.bf16.msra.mxu0 %v5234
  %5736 = vmatprep.subr.bf16.mxu0 0
  %5737 = vmatpush1.bf16.msra.mxu0 %v5235
  %5738 = vmatprep.subr.bf16.mxu0 0
  %5739 = vmatpush1.bf16.msra.mxu0 0
  %5740 = vmatprep.subr.bf16.mxu0 0
  %5741 = vmatpush1.bf16.msra.mxu0 0
  %5742 = vmatprep.subr.bf16.mxu0 0
  %5743 = vmatpush1.bf16.msra.mxu0 0
  %5744 = vmatprep.subr.bf16.mxu0 0
  %5745 = vmatpush1.bf16.msra.mxu0 0
  %5746 = vmatprep.subr.bf16.mxu0 0
  %5747 = vmatpush1.bf16.msra.mxu0 0
  %5748 = vmatprep.subr.bf16.mxu0 0
  %5749 = vmatpush1.bf16.msra.mxu0 0
  %5750 = vmatprep.subr.bf16.mxu0 0
  %5751 = vmatpush1.bf16.msra.mxu0 0
  %5752 = vmatprep.subr.bf16.mxu0 0
  %5753 = vmatpush1.bf16.msra.mxu0 0
  %5754 = vmatprep.mubr.bf16.mxu0 0
  %5755 = vmatmul.mubr.bf16.gmra.mrb[0].mxu0 %v753
  %v5756 = vpop.f32.mrb[0].mxu0
  %v5757 = vadd.f32 0.0, %v5756
  %v5758 = vpop.f32.mrb[0].mxu0
  %v5759 = vpop.f32.mrb[0].mxu0
  %v5760 = vadd.f32 0.0, %v5759
  %v5761 = vpop.f32.mrb[0].mxu0
  %5762 = vmatprep.mubr.bf16.mxu0 0
  %5763 = vmatmul.mubr.bf16.gmra.mrb[0].mxu0 %v754
  %v5764 = vpop.f32.mrb[0].mxu0
  %v5765 = vadd.f32 0.0, %v5764
  %v5766 = vpop.f32.mrb[0].mxu0
  %v5767 = vpop.f32.mrb[0].mxu0
  %v5768 = vadd.f32 0.0, %v5767
  %v5769 = vpop.f32.mrb[0].mxu0
  %5770 = vmatprep.mubr.bf16.mxu0 0
  %5771 = vmatmul.mubr.bf16.gmra.mrb[0].mxu0 %v755
  %v5772 = vpop.f32.mrb[0].mxu0
  %v5773 = vadd.f32 0.0, %v5772
  %v5774 = vpop.f32.mrb[0].mxu0
  %v5775 = vpop.f32.mrb[0].mxu0
  %v5776 = vadd.f32 0.0, %v5775
  %v5777 = vpop.f32.mrb[0].mxu0
  %5778 = vmatprep.mubr.bf16.mxu0 0
  %5779 = vmatmul.mubr.bf16.gmra.mrb[0].mxu0 %v756
  %v5780 = vpop.f32.mrb[0].mxu0
  %v5781 = vadd.f32 0.0, %v5780
  %v5782 = vpop.f32.mrb[0].mxu0
  %v5783 = vpop.f32.mrb[0].mxu0
  %v5784 = vadd.f32 0.0, %v5783
  %v5785 = vpop.f32.mrb[0].mxu0
  %5786 = vmatprep.mubr.bf16.mxu0 0
  %5787 = vmatmul.mubr.bf16.gmra.mrb[0].mxu0 %v757
  %v5788 = vpop.f32.mrb[0].mxu0
  %v5789 = vadd.f32 0.0, %v5788
  %v5790 = vpop.f32.mrb[0].mxu0
  %v5791 = vpop.f32.mrb[0].mxu0
  %v5792 = vadd.f32 0.0, %v5791
  %v5793 = vpop.f32.mrb[0].mxu0
  %5794 = vmatprep.mubr.bf16.mxu0 0
  %5795 = vmatmul.mubr.bf16.gmra.mrb[0].mxu0 %v758
  %v5796 = vpop.f32.mrb[0].mxu0
  %v5797 = vadd.f32 0.0, %v5796
  %v5798 = vpop.f32.mrb[0].mxu0
  %v5799 = vpop.f32.mrb[0].mxu0
  %v5800 = vadd.f32 0.0, %v5799
  %v5801 = vpop.f32.mrb[0].mxu0
  %5802 = vmatprep.mubr.bf16.mxu0 0
  %5803 = vmatmul.mubr.bf16.gmra.mrb[0].mxu0 %v759
  %v5804 = vpop.f32.mrb[0].mxu0
  %v5805 = vadd.f32 0.0, %v5804
  %v5806 = vpop.f32.mrb[0].mxu0
  %v5807 = vpop.f32.mrb[0].mxu0
  %v5808 = vadd.f32 0.0, %v5807
  %v5809 = vpop.f32.mrb[0].mxu0
  %5810 = vmatprep.mubr.bf16.mxu0 0
  %5811 = vmatmul.mubr.bf16.gmra.mrb[0].mxu0 %v760
  %v5812 = vpop.f32.mrb[0].mxu0
  %v5813 = vadd.f32 0.0, %v5812
  %v5814 = vpop.f32.mrb[0].mxu0
  %v5815 = vpop.f32.mrb[0].mxu0
  %v5816 = vadd.f32 0.0, %v5815
  %v5817 = vpop.f32.mrb[0].mxu0
  %5818 = vdwg.mxu0
  %v5819 = vpack.c.bf16 %v5760, %v5757
  %v5820 = vpack.c.bf16 %v5768, %v5765
  %v5821 = vpack.c.bf16 %v5776, %v5773
  %v5822 = vpack.c.bf16 %v5784, %v5781
  %v5823 = vpack.c.bf16 %v5792, %v5789
  %v5824 = vpack.c.bf16 %v5800, %v5797
  %v5825 = vpack.c.bf16 %v5808, %v5805
  %v5826 = vpack.c.bf16 %v5816, %v5813
  %s5827 = scalar_lea.vmem %s6, 32
  %v5828 = vld [vmem:[%s5827] sm:$0xf]
  %v5829 = vld [vmem:[%s5827 + $0x4] sm:$0xf]
  %v5830 = vld [vmem:[%s5827 + $0x8] sm:$0xf]
  %v5831 = vld [vmem:[%s5827 + $0xc] sm:$0xf]
  %v5836 = vunpack.c.l.b16 %v5828
  %v5837 = vunpack.c.l.b16 %v5829
  %v5838 = vunpack.c.l.b16 %v5830
  %v5839 = vunpack.c.l.b16 %v5831
  %v5840 = vpack.c.b16 %v5837, %v5836
  %v5841 = vpack.c.b16 %v5839, %v5838
  %v5845 = vsel %vm5467, %v5819, 0
  %v5848 = vsel %vm5467, %v5820, 0
  %v5851 = vsel %vm5467, %v5821, 0
  %v5854 = vsel %vm5467, %v5822, 0
  %v5857 = vsel %vm5467, %v5823, 0
  %v5860 = vsel %vm5467, %v5824, 0
  %v5863 = vsel %vm5467, %v5825, 0
  %v5866 = vsel %vm5467, %v5826, 0
  %5868 = vmatprep.subr.bf16.mxu0 0
  %5869 = vmatpush1.bf16.msra.mxu0 %v5840
  %5870 = vmatprep.subr.bf16.mxu0 0
  %5871 = vmatpush1.bf16.msra.mxu0 %v5841
  %5872 = vmatprep.subr.bf16.mxu0 0
  %5873 = vmatpush1.bf16.msra.mxu0 0
  %5874 = vmatprep.subr.bf16.mxu0 0
  %5875 = vmatpush1.bf16.msra.mxu0 0
  %5876 = vmatprep.subr.bf16.mxu0 0
  %5877 = vmatpush1.bf16.msra.mxu0 0
  %5878 = vmatprep.subr.bf16.mxu0 0
  %5879 = vmatpush1.bf16.msra.mxu0 0
  %5880 = vmatprep.subr.bf16.mxu0 0
  %5881 = vmatpush1.bf16.msra.mxu0 0
  %5882 = vmatprep.subr.bf16.mxu0 0
  %5883 = vmatpush1.bf16.msra.mxu0 0
  %5884 = vmatprep.subr.bf16.mxu0 0
  %5885 = vmatpush1.bf16.msra.mxu0 0
  %5886 = vmatprep.subr.bf16.mxu0 0
  %5887 = vmatpush1.bf16.msra.mxu0 0
  %5888 = vmatprep.subr.bf16.mxu0 0
  %5889 = vmatpush1.bf16.msra.mxu0 0
  %5890 = vmatprep.subr.bf16.mxu0 0
  %5891 = vmatpush1.bf16.msra.mxu0 0
  %5892 = vmatprep.subr.bf16.mxu0 0
  %5893 = vmatpush1.bf16.msra.mxu0 0
  %5894 = vmatprep.subr.bf16.mxu0 0
  %5895 = vmatpush1.bf16.msra.mxu0 0
  %5896 = vmatprep.subr.bf16.mxu0 0
  %5897 = vmatpush1.bf16.msra.mxu0 0
  %5898 = vmatprep.subr.bf16.mxu0 0
  %5899 = vmatpush1.bf16.msra.mxu0 0
  %5900 = vmatprep.mubr.bf16.mxu0 0
  %5901 = vmatmul.mubr.bf16.gmra.mrb[0].mxu0 %v5845
  %v5902 = vpop.f32.mrb[0].mxu0
  %v5903 = vadd.f32 0.0, %v5902
  %v5904 = vpop.f32.mrb[0].mxu0
  %v5905 = vpop.f32.mrb[0].mxu0
  %v5906 = vadd.f32 0.0, %v5905
  %v5907 = vpop.f32.mrb[0].mxu0
  %5908 = vmatprep.mubr.bf16.mxu0 0
  %5909 = vmatmul.mubr.bf16.gmra.mrb[0].mxu0 %v5848
  %v5910 = vpop.f32.mrb[0].mxu0
  %v5911 = vadd.f32 0.0, %v5910
  %v5912 = vpop.f32.mrb[0].mxu0
  %v5913 = vpop.f32.mrb[0].mxu0
  %v5914 = vadd.f32 0.0, %v5913
  %v5915 = vpop.f32.mrb[0].mxu0
  %5916 = vmatprep.mubr.bf16.mxu0 0
  %5917 = vmatmul.mubr.bf16.gmra.mrb[0].mxu0 %v5851
  %v5918 = vpop.f32.mrb[0].mxu0
  %v5919 = vadd.f32 0.0, %v5918
  %v5920 = vpop.f32.mrb[0].mxu0
  %v5921 = vpop.f32.mrb[0].mxu0
  %v5922 = vadd.f32 0.0, %v5921
  %v5923 = vpop.f32.mrb[0].mxu0
  %5924 = vmatprep.mubr.bf16.mxu0 0
  %5925 = vmatmul.mubr.bf16.gmra.mrb[0].mxu0 %v5854
  %v5926 = vpop.f32.mrb[0].mxu0
  %v5927 = vadd.f32 0.0, %v5926
  %v5928 = vpop.f32.mrb[0].mxu0
  %v5929 = vpop.f32.mrb[0].mxu0
  %v5930 = vadd.f32 0.0, %v5929
  %v5931 = vpop.f32.mrb[0].mxu0
  %5932 = vmatprep.mubr.bf16.mxu0 0
  %5933 = vmatmul.mubr.bf16.gmra.mrb[0].mxu0 %v5857
  %v5934 = vpop.f32.mrb[0].mxu0
  %v5935 = vadd.f32 0.0, %v5934
  %v5936 = vpop.f32.mrb[0].mxu0
  %v5937 = vpop.f32.mrb[0].mxu0
  %v5938 = vadd.f32 0.0, %v5937
  %v5939 = vpop.f32.mrb[0].mxu0
  %5940 = vmatprep.mubr.bf16.mxu0 0
  %5941 = vmatmul.mubr.bf16.gmra.mrb[0].mxu0 %v5860
  %v5942 = vpop.f32.mrb[0].mxu0
  %v5943 = vadd.f32 0.0, %v5942
  %v5944 = vpop.f32.mrb[0].mxu0
  %v5945 = vpop.f32.mrb[0].mxu0
  %v5946 = vadd.f32 0.0, %v5945
  %v5947 = vpop.f32.mrb[0].mxu0
  %5948 = vmatprep.mubr.bf16.mxu0 0
  %5949 = vmatmul.mubr.bf16.gmra.mrb[0].mxu0 %v5863
  %v5950 = vpop.f32.mrb[0].mxu0
  %v5951 = vadd.f32 0.0, %v5950
  %v5952 = vpop.f32.mrb[0].mxu0
  %v5953 = vpop.f32.mrb[0].mxu0
  %v5954 = vadd.f32 0.0, %v5953
  %v5955 = vpop.f32.mrb[0].mxu0
  %5956 = vmatprep.mubr.bf16.mxu0 0
  %5957 = vmatmul.mubr.bf16.gmra.mrb[0].mxu0 %v5866
  %v5958 = vpop.f32.mrb[0].mxu0
  %v5959 = vadd.f32 0.0, %v5958
  %v5960 = vpop.f32.mrb[0].mxu0
  %v5961 = vpop.f32.mrb[0].mxu0
  %v5962 = vadd.f32 0.0, %v5961
  %v5963 = vpop.f32.mrb[0].mxu0
  %5964 = vdwg.mxu0
  %v5965 = vadd.f32 %v5660, %v5903
  %v5966 = vadd.f32 %v5663, %v5906
  %v5967 = vadd.f32 %v5668, %v5911
  %v5968 = vadd.f32 %v5671, %v5914
  %v5969 = vadd.f32 %v5676, %v5919
  %v5970 = vadd.f32 %v5679, %v5922
  %v5971 = vadd.f32 %v5684, %v5927
  %v5972 = vadd.f32 %v5687, %v5930
  %v5973 = vadd.f32 %v5692, %v5935
  %v5974 = vadd.f32 %v5695, %v5938
  %v5975 = vadd.f32 %v5700, %v5943
  %v5976 = vadd.f32 %v5703, %v5946
  %v5977 = vadd.f32 %v5708, %v5951
  %v5978 = vadd.f32 %v5711, %v5954
  %v5979 = vadd.f32 %v5716, %v5959
  %v5980 = vadd.f32 %v5719, %v5962
  %5981 = vmatprep.subr.bf16.mxu0 0
  %5982 = vmatpush1.bf16.msra.mxu0 %v5228
  %5983 = vmatprep.subr.bf16.mxu0 0
  %5984 = vmatpush1.bf16.msra.mxu0 %v5229
  %5985 = vmatprep.subr.bf16.mxu0 0
  %5986 = vmatpush1.bf16.msra.mxu0 %v5230
  %5987 = vmatprep.subr.bf16.mxu0 0
  %5988 = vmatpush1.bf16.msra.mxu0 %v5231
  %5989 = vmatprep.subr.bf16.mxu0 0
  %5990 = vmatpush1.bf16.msra.mxu0 %v5232
  %5991 = vmatprep.subr.bf16.mxu0 0
  %5992 = vmatpush1.bf16.msra.mxu0 %v5233
  %5993 = vmatprep.subr.bf16.mxu0 0
  %5994 = vmatpush1.bf16.msra.mxu0 %v5234
  %5995 = vmatprep.subr.bf16.mxu0 0
  %5996 = vmatpush1.bf16.msra.mxu0 %v5235
  %5997 = vmatprep.subr.bf16.mxu0 0
  %5998 = vmatpush1.bf16.msra.mxu0 0
  %5999 = vmatprep.subr.bf16.mxu0 0
  %6000 = vmatpush1.bf16.msra.mxu0 0
  %6001 = vmatprep.subr.bf16.mxu0 0
  %6002 = vmatpush1.bf16.msra.mxu0 0
  %6003 = vmatprep.subr.bf16.mxu0 0
  %6004 = vmatpush1.bf16.msra.mxu0 0
  %6005 = vmatprep.subr.bf16.mxu0 0
  %6006 = vmatpush1.bf16.msra.mxu0 0
  %6007 = vmatprep.subr.bf16.mxu0 0
  %6008 = vmatpush1.bf16.msra.mxu0 0
  %6009 = vmatprep.subr.bf16.mxu0 0
  %6010 = vmatpush1.bf16.msra.mxu0 0
  %6011 = vmatprep.subr.bf16.mxu0 0
  %6012 = vmatpush1.bf16.msra.mxu0 0
  %6013 = vmatprep.mubr.bf16.mxu0 0
  %6014 = vmatmul.mubr.bf16.gmra.mrb[0].mxu0 %v1069
  %v6015 = vpop.f32.mrb[0].mxu0
  %v6016 = vadd.f32 0.0, %v6015
  %v6017 = vpop.f32.mrb[0].mxu0
  %v6018 = vpop.f32.mrb[0].mxu0
  %v6019 = vadd.f32 0.0, %v6018
  %v6020 = vpop.f32.mrb[0].mxu0
  %6021 = vmatprep.mubr.bf16.mxu0 0
  %6022 = vmatmul.mubr.bf16.gmra.mrb[0].mxu0 %v1070
  %v6023 = vpop.f32.mrb[0].mxu0
  %v6024 = vadd.f32 0.0, %v6023
  %v6025 = vpop.f32.mrb[0].mxu0
  %v6026 = vpop.f32.mrb[0].mxu0
  %v6027 = vadd.f32 0.0, %v6026
  %v6028 = vpop.f32.mrb[0].mxu0
  %6029 = vmatprep.mubr.bf16.mxu0 0
  %6030 = vmatmul.mubr.bf16.gmra.mrb[0].mxu0 %v1071
  %v6031 = vpop.f32.mrb[0].mxu0
  %v6032 = vadd.f32 0.0, %v6031
  %v6033 = vpop.f32.mrb[0].mxu0
  %v6034 = vpop.f32.mrb[0].mxu0
  %v6035 = vadd.f32 0.0, %v6034
  %v6036 = vpop.f32.mrb[0].mxu0
  %6037 = vmatprep.mubr.bf16.mxu0 0
  %6038 = vmatmul.mubr.bf16.gmra.mrb[0].mxu0 %v1072
  %v6039 = vpop.f32.mrb[0].mxu0
  %v6040 = vadd.f32 0.0, %v6039
  %v6041 = vpop.f32.mrb[0].mxu0
  %v6042 = vpop.f32.mrb[0].mxu0
  %v6043 = vadd.f32 0.0, %v6042
  %v6044 = vpop.f32.mrb[0].mxu0
  %6045 = vmatprep.mubr.bf16.mxu0 0
  %6046 = vmatmul.mubr.bf16.gmra.mrb[0].mxu0 %v1073
  %v6047 = vpop.f32.mrb[0].mxu0
  %v6048 = vadd.f32 0.0, %v6047
  %v6049 = vpop.f32.mrb[0].mxu0
  %v6050 = vpop.f32.mrb[0].mxu0
  %v6051 = vadd.f32 0.0, %v6050
  %v6052 = vpop.f32.mrb[0].mxu0
  %6053 = vmatprep.mubr.bf16.mxu0 0
  %6054 = vmatmul.mubr.bf16.gmra.mrb[0].mxu0 %v1074
  %v6055 = vpop.f32.mrb[0].mxu0
  %v6056 = vadd.f32 0.0, %v6055
  %v6057 = vpop.f32.mrb[0].mxu0
  %v6058 = vpop.f32.mrb[0].mxu0
  %v6059 = vadd.f32 0.0, %v6058
  %v6060 = vpop.f32.mrb[0].mxu0
  %6061 = vmatprep.mubr.bf16.mxu0 0
  %6062 = vmatmul.mubr.bf16.gmra.mrb[0].mxu0 %v1075
  %v6063 = vpop.f32.mrb[0].mxu0
  %v6064 = vadd.f32 0.0, %v6063
  %v6065 = vpop.f32.mrb[0].mxu0
  %v6066 = vpop.f32.mrb[0].mxu0
  %v6067 = vadd.f32 0.0, %v6066
  %v6068 = vpop.f32.mrb[0].mxu0
  %6069 = vmatprep.mubr.bf16.mxu0 0
  %6070 = vmatmul.mubr.bf16.gmra.mrb[0].mxu0 %v1076
  %v6071 = vpop.f32.mrb[0].mxu0
  %v6072 = vadd.f32 0.0, %v6071
  %v6073 = vpop.f32.mrb[0].mxu0
  %v6074 = vpop.f32.mrb[0].mxu0
  %v6075 = vadd.f32 0.0, %v6074
  %v6076 = vpop.f32.mrb[0].mxu0
  %6077 = vdwg.mxu0
  %v6078 = vpack.c.bf16 %v6019, %v6016
  %v6079 = vpack.c.bf16 %v6027, %v6024
  %v6080 = vpack.c.bf16 %v6035, %v6032
  %v6081 = vpack.c.bf16 %v6043, %v6040
  %v6082 = vpack.c.bf16 %v6051, %v6048
  %v6083 = vpack.c.bf16 %v6059, %v6056
  %v6084 = vpack.c.bf16 %v6067, %v6064
  %v6085 = vpack.c.bf16 %v6075, %v6072
  %s6086 = scalar_lea.vmem %s6, 48
  %v6087 = vld [vmem:[%s6086] sm:$0xf]
  %v6088 = vld [vmem:[%s6086 + $0x4] sm:$0xf]
  %v6089 = vld [vmem:[%s6086 + $0x8] sm:$0xf]
  %v6090 = vld [vmem:[%s6086 + $0xc] sm:$0xf]
  %v6095 = vunpack.c.l.b16 %v6087
  %v6096 = vunpack.c.l.b16 %v6088
  %v6097 = vunpack.c.l.b16 %v6089
  %v6098 = vunpack.c.l.b16 %v6090
  %v6099 = vpack.c.b16 %v6096, %v6095
  %v6100 = vpack.c.b16 %v6098, %v6097
  %v6104 = vsel %vm5467, %v6078, 0
  %v6107 = vsel %vm5467, %v6079, 0
  %v6110 = vsel %vm5467, %v6080, 0
  %v6113 = vsel %vm5467, %v6081, 0
  %v6116 = vsel %vm5467, %v6082, 0
  %v6119 = vsel %vm5467, %v6083, 0
  %v6122 = vsel %vm5467, %v6084, 0
  %v6125 = vsel %vm5467, %v6085, 0
  %6127 = vmatprep.subr.bf16.mxu0 0
  %6128 = vmatpush1.bf16.msra.mxu0 %v6099
  %6129 = vmatprep.subr.bf16.mxu0 0
  %6130 = vmatpush1.bf16.msra.mxu0 %v6100
  %6131 = vmatprep.subr.bf16.mxu0 0
  %6132 = vmatpush1.bf16.msra.mxu0 0
  %6133 = vmatprep.subr.bf16.mxu0 0
  %6134 = vmatpush1.bf16.msra.mxu0 0
  %6135 = vmatprep.subr.bf16.mxu0 0
  %6136 = vmatpush1.bf16.msra.mxu0 0
  %6137 = vmatprep.subr.bf16.mxu0 0
  %6138 = vmatpush1.bf16.msra.mxu0 0
  %6139 = vmatprep.subr.bf16.mxu0 0
  %6140 = vmatpush1.bf16.msra.mxu0 0
  %6141 = vmatprep.subr.bf16.mxu0 0
  %6142 = vmatpush1.bf16.msra.mxu0 0
  %6143 = vmatprep.subr.bf16.mxu0 0
  %6144 = vmatpush1.bf16.msra.mxu0 0
  %6145 = vmatprep.subr.bf16.mxu0 0
  %6146 = vmatpush1.bf16.msra.mxu0 0
  %6147 = vmatprep.subr.bf16.mxu0 0
  %6148 = vmatpush1.bf16.msra.mxu0 0
  %6149 = vmatprep.subr.bf16.mxu0 0
  %6150 = vmatpush1.bf16.msra.mxu0 0
  %6151 = vmatprep.subr.bf16.mxu0 0
  %6152 = vmatpush1.bf16.msra.mxu0 0
  %6153 = vmatprep.subr.bf16.mxu0 0
  %6154 = vmatpush1.bf16.msra.mxu0 0
  %6155 = vmatprep.subr.bf16.mxu0 0
  %6156 = vmatpush1.bf16.msra.mxu0 0
  %6157 = vmatprep.subr.bf16.mxu0 0
  %6158 = vmatpush1.bf16.msra.mxu0 0
  %6159 = vmatprep.mubr.bf16.mxu0 0
  %6160 = vmatmul.mubr.bf16.gmra.mrb[0].mxu0 %v6104
  %v6161 = vpop.f32.mrb[0].mxu0
  %v6162 = vadd.f32 0.0, %v6161
  %v6163 = vpop.f32.mrb[0].mxu0
  %v6164 = vpop.f32.mrb[0].mxu0
  %v6165 = vadd.f32 0.0, %v6164
  %v6166 = vpop.f32.mrb[0].mxu0
  %6167 = vmatprep.mubr.bf16.mxu0 0
  %6168 = vmatmul.mubr.bf16.gmra.mrb[0].mxu0 %v6107
  %v6169 = vpop.f32.mrb[0].mxu0
  %v6170 = vadd.f32 0.0, %v6169
  %v6171 = vpop.f32.mrb[0].mxu0
  %v6172 = vpop.f32.mrb[0].mxu0
  %v6173 = vadd.f32 0.0, %v6172
  %v6174 = vpop.f32.mrb[0].mxu0
  %6175 = vmatprep.mubr.bf16.mxu0 0
  %6176 = vmatmul.mubr.bf16.gmra.mrb[0].mxu0 %v6110
  %v6177 = vpop.f32.mrb[0].mxu0
  %v6178 = vadd.f32 0.0, %v6177
  %v6179 = vpop.f32.mrb[0].mxu0
  %v6180 = vpop.f32.mrb[0].mxu0
  %v6181 = vadd.f32 0.0, %v6180
  %v6182 = vpop.f32.mrb[0].mxu0
  %6183 = vmatprep.mubr.bf16.mxu0 0
  %6184 = vmatmul.mubr.bf16.gmra.mrb[0].mxu0 %v6113
  %v6185 = vpop.f32.mrb[0].mxu0
  %v6186 = vadd.f32 0.0, %v6185
  %v6187 = vpop.f32.mrb[0].mxu0
  %v6188 = vpop.f32.mrb[0].mxu0
  %v6189 = vadd.f32 0.0, %v6188
  %v6190 = vpop.f32.mrb[0].mxu0
  %6191 = vmatprep.mubr.bf16.mxu0 0
  %6192 = vmatmul.mubr.bf16.gmra.mrb[0].mxu0 %v6116
  %v6193 = vpop.f32.mrb[0].mxu0
  %v6194 = vadd.f32 0.0, %v6193
  %v6195 = vpop.f32.mrb[0].mxu0
  %v6196 = vpop.f32.mrb[0].mxu0
  %v6197 = vadd.f32 0.0, %v6196
  %v6198 = vpop.f32.mrb[0].mxu0
  %6199 = vmatprep.mubr.bf16.mxu0 0
  %6200 = vmatmul.mubr.bf16.gmra.mrb[0].mxu0 %v6119
  %v6201 = vpop.f32.mrb[0].mxu0
  %v6202 = vadd.f32 0.0, %v6201
  %v6203 = vpop.f32.mrb[0].mxu0
  %v6204 = vpop.f32.mrb[0].mxu0
  %v6205 = vadd.f32 0.0, %v6204
  %v6206 = vpop.f32.mrb[0].mxu0
  %6207 = vmatprep.mubr.bf16.mxu0 0
  %6208 = vmatmul.mubr.bf16.gmra.mrb[0].mxu0 %v6122
  %v6209 = vpop.f32.mrb[0].mxu0
  %v6210 = vadd.f32 0.0, %v6209
  %v6211 = vpop.f32.mrb[0].mxu0
  %v6212 = vpop.f32.mrb[0].mxu0
  %v6213 = vadd.f32 0.0, %v6212
  %v6214 = vpop.f32.mrb[0].mxu0
  %6215 = vmatprep.mubr.bf16.mxu0 0
  %6216 = vmatmul.mubr.bf16.gmra.mrb[0].mxu0 %v6125
  %v6217 = vpop.f32.mrb[0].mxu0
  %v6218 = vadd.f32 0.0, %v6217
  %v6219 = vpop.f32.mrb[0].mxu0
  %v6220 = vpop.f32.mrb[0].mxu0
  %v6221 = vadd.f32 0.0, %v6220
  %v6222 = vpop.f32.mrb[0].mxu0
  %6223 = vdwg.mxu0
  %v6224 = vadd.f32 %v5965, %v6162
  %v6225 = vadd.f32 %v5966, %v6165
  %v6226 = vadd.f32 %v5967, %v6170
  %v6227 = vadd.f32 %v5968, %v6173
  %v6228 = vadd.f32 %v5969, %v6178
  %v6229 = vadd.f32 %v5970, %v6181
  %v6230 = vadd.f32 %v5971, %v6186
  %v6231 = vadd.f32 %v5972, %v6189
  %v6232 = vadd.f32 %v5973, %v6194
  %v6233 = vadd.f32 %v5974, %v6197
  %v6234 = vadd.f32 %v5975, %v6202
  %v6235 = vadd.f32 %v5976, %v6205
  %v6236 = vadd.f32 %v5977, %v6210
  %v6237 = vadd.f32 %v5978, %v6213
  %v6238 = vadd.f32 %v5979, %v6218
  %v6239 = vadd.f32 %v5980, %v6221
  %6240 = vmatprep.subr.bf16.mxu0 0
  %6241 = vmatpush1.bf16.msra.mxu0 %v5228
  %6242 = vmatprep.subr.bf16.mxu0 0
  %6243 = vmatpush1.bf16.msra.mxu0 %v5229
  %6244 = vmatprep.subr.bf16.mxu0 0
  %6245 = vmatpush1.bf16.msra.mxu0 %v5230
  %6246 = vmatprep.subr.bf16.mxu0 0
  %6247 = vmatpush1.bf16.msra.mxu0 %v5231
  %6248 = vmatprep.subr.bf16.mxu0 0
  %6249 = vmatpush1.bf16.msra.mxu0 %v5232
  %6250 = vmatprep.subr.bf16.mxu0 0
  %6251 = vmatpush1.bf16.msra.mxu0 %v5233
  %6252 = vmatprep.subr.bf16.mxu0 0
  %6253 = vmatpush1.bf16.msra.mxu0 %v5234
  %6254 = vmatprep.subr.bf16.mxu0 0
  %6255 = vmatpush1.bf16.msra.mxu0 %v5235
  %6256 = vmatprep.subr.bf16.mxu0 0
  %6257 = vmatpush1.bf16.msra.mxu0 0
  %6258 = vmatprep.subr.bf16.mxu0 0
  %6259 = vmatpush1.bf16.msra.mxu0 0
  %6260 = vmatprep.subr.bf16.mxu0 0
  %6261 = vmatpush1.bf16.msra.mxu0 0
  %6262 = vmatprep.subr.bf16.mxu0 0
  %6263 = vmatpush1.bf16.msra.mxu0 0
  %6264 = vmatprep.subr.bf16.mxu0 0
  %6265 = vmatpush1.bf16.msra.mxu0 0
  %6266 = vmatprep.subr.bf16.mxu0 0
  %6267 = vmatpush1.bf16.msra.mxu0 0
  %6268 = vmatprep.subr.bf16.mxu0 0
  %6269 = vmatpush1.bf16.msra.mxu0 0
  %6270 = vmatprep.subr.bf16.mxu0 0
  %6271 = vmatpush1.bf16.msra.mxu0 0
  %6272 = vmatprep.mubr.bf16.mxu0 0
  %6273 = vmatmul.mubr.bf16.gmra.mrb[0].mxu0 %v1385
  %v6274 = vpop.f32.mrb[0].mxu0
  %v6275 = vadd.f32 0.0, %v6274
  %v6276 = vpop.f32.mrb[0].mxu0
  %v6277 = vpop.f32.mrb[0].mxu0
  %v6278 = vadd.f32 0.0, %v6277
  %v6279 = vpop.f32.mrb[0].mxu0
  %6280 = vmatprep.mubr.bf16.mxu0 0
  %6281 = vmatmul.mubr.bf16.gmra.mrb[0].mxu0 %v1386
  %v6282 = vpop.f32.mrb[0].mxu0
  %v6283 = vadd.f32 0.0, %v6282
  %v6284 = vpop.f32.mrb[0].mxu0
  %v6285 = vpop.f32.mrb[0].mxu0
  %v6286 = vadd.f32 0.0, %v6285
  %v6287 = vpop.f32.mrb[0].mxu0
  %6288 = vmatprep.mubr.bf16.mxu0 0
  %6289 = vmatmul.mubr.bf16.gmra.mrb[0].mxu0 %v1387
  %v6290 = vpop.f32.mrb[0].mxu0
  %v6291 = vadd.f32 0.0, %v6290
  %v6292 = vpop.f32.mrb[0].mxu0
  %v6293 = vpop.f32.mrb[0].mxu0
  %v6294 = vadd.f32 0.0, %v6293
  %v6295 = vpop.f32.mrb[0].mxu0
  %6296 = vmatprep.mubr.bf16.mxu0 0
  %6297 = vmatmul.mubr.bf16.gmra.mrb[0].mxu0 %v1388
  %v6298 = vpop.f32.mrb[0].mxu0
  %v6299 = vadd.f32 0.0, %v6298
  %v6300 = vpop.f32.mrb[0].mxu0
  %v6301 = vpop.f32.mrb[0].mxu0
  %v6302 = vadd.f32 0.0, %v6301
  %v6303 = vpop.f32.mrb[0].mxu0
  %6304 = vmatprep.mubr.bf16.mxu0 0
  %6305 = vmatmul.mubr.bf16.gmra.mrb[0].mxu0 %v1389
  %v6306 = vpop.f32.mrb[0].mxu0
  %v6307 = vadd.f32 0.0, %v6306
  %v6308 = vpop.f32.mrb[0].mxu0
  %v6309 = vpop.f32.mrb[0].mxu0
  %v6310 = vadd.f32 0.0, %v6309
  %v6311 = vpop.f32.mrb[0].mxu0
  %6312 = vmatprep.mubr.bf16.mxu0 0
  %6313 = vmatmul.mubr.bf16.gmra.mrb[0].mxu0 %v1390
  %v6314 = vpop.f32.mrb[0].mxu0
  %v6315 = vadd.f32 0.0, %v6314
  %v6316 = vpop.f32.mrb[0].mxu0
  %v6317 = vpop.f32.mrb[0].mxu0
  %v6318 = vadd.f32 0.0, %v6317
  %v6319 = vpop.f32.mrb[0].mxu0
  %6320 = vmatprep.mubr.bf16.mxu0 0
  %6321 = vmatmul.mubr.bf16.gmra.mrb[0].mxu0 %v1391
  %v6322 = vpop.f32.mrb[0].mxu0
  %v6323 = vadd.f32 0.0, %v6322
  %v6324 = vpop.f32.mrb[0].mxu0
  %v6325 = vpop.f32.mrb[0].mxu0
  %v6326 = vadd.f32 0.0, %v6325
  %v6327 = vpop.f32.mrb[0].mxu0
  %6328 = vmatprep.mubr.bf16.mxu0 0
  %6329 = vmatmul.mubr.bf16.gmra.mrb[0].mxu0 %v1392
  %v6330 = vpop.f32.mrb[0].mxu0
  %v6331 = vadd.f32 0.0, %v6330
  %v6332 = vpop.f32.mrb[0].mxu0
  %v6333 = vpop.f32.mrb[0].mxu0
  %v6334 = vadd.f32 0.0, %v6333
  %v6335 = vpop.f32.mrb[0].mxu0
  %6336 = vdwg.mxu0
  %v6337 = vpack.c.bf16 %v6278, %v6275
  %v6338 = vpack.c.bf16 %v6286, %v6283
  %v6339 = vpack.c.bf16 %v6294, %v6291
  %v6340 = vpack.c.bf16 %v6302, %v6299
  %v6341 = vpack.c.bf16 %v6310, %v6307
  %v6342 = vpack.c.bf16 %v6318, %v6315
  %v6343 = vpack.c.bf16 %v6326, %v6323
  %v6344 = vpack.c.bf16 %v6334, %v6331
  %s6345 = scalar_lea.vmem %s6, 64
  %v6346 = vld [vmem:[%s6345] sm:$0xf]
  %v6347 = vld [vmem:[%s6345 + $0x4] sm:$0xf]
  %v6348 = vld [vmem:[%s6345 + $0x8] sm:$0xf]
  %v6349 = vld [vmem:[%s6345 + $0xc] sm:$0xf]
  %v6354 = vunpack.c.l.b16 %v6346
  %v6355 = vunpack.c.l.b16 %v6347
  %v6356 = vunpack.c.l.b16 %v6348
  %v6357 = vunpack.c.l.b16 %v6349
  %v6358 = vpack.c.b16 %v6355, %v6354
  %v6359 = vpack.c.b16 %v6357, %v6356
  %v6363 = vsel %vm5467, %v6337, 0
  %v6366 = vsel %vm5467, %v6338, 0
  %v6369 = vsel %vm5467, %v6339, 0
  %v6372 = vsel %vm5467, %v6340, 0
  %v6375 = vsel %vm5467, %v6341, 0
  %v6378 = vsel %vm5467, %v6342, 0
  %v6381 = vsel %vm5467, %v6343, 0
  %v6384 = vsel %vm5467, %v6344, 0
  %6386 = vmatprep.subr.bf16.mxu0 0
  %6387 = vmatpush1.bf16.msra.mxu0 %v6358
  %6388 = vmatprep.subr.bf16.mxu0 0
  %6389 = vmatpush1.bf16.msra.mxu0 %v6359
  %6390 = vmatprep.subr.bf16.mxu0 0
  %6391 = vmatpush1.bf16.msra.mxu0 0
  %6392 = vmatprep.subr.bf16.mxu0 0
  %6393 = vmatpush1.bf16.msra.mxu0 0
  %6394 = vmatprep.subr.bf16.mxu0 0
  %6395 = vmatpush1.bf16.msra.mxu0 0
  %6396 = vmatprep.subr.bf16.mxu0 0
  %6397 = vmatpush1.bf16.msra.mxu0 0
  %6398 = vmatprep.subr.bf16.mxu0 0
  %6399 = vmatpush1.bf16.msra.mxu0 0
  %6400 = vmatprep.subr.bf16.mxu0 0
  %6401 = vmatpush1.bf16.msra.mxu0 0
  %6402 = vmatprep.subr.bf16.mxu0 0
  %6403 = vmatpush1.bf16.msra.mxu0 0
  %6404 = vmatprep.subr.bf16.mxu0 0
  %6405 = vmatpush1.bf16.msra.mxu0 0
  %6406 = vmatprep.subr.bf16.mxu0 0
  %6407 = vmatpush1.bf16.msra.mxu0 0
  %6408 = vmatprep.subr.bf16.mxu0 0
  %6409 = vmatpush1.bf16.msra.mxu0 0
  %6410 = vmatprep.subr.bf16.mxu0 0
  %6411 = vmatpush1.bf16.msra.mxu0 0
  %6412 = vmatprep.subr.bf16.mxu0 0
  %6413 = vmatpush1.bf16.msra.mxu0 0
  %6414 = vmatprep.subr.bf16.mxu0 0
  %6415 = vmatpush1.bf16.msra.mxu0 0
  %6416 = vmatprep.subr.bf16.mxu0 0
  %6417 = vmatpush1.bf16.msra.mxu0 0
  %6418 = vmatprep.mubr.bf16.mxu0 0
  %6419 = vmatmul.mubr.bf16.gmra.mrb[0].mxu0 %v6363
  %v6420 = vpop.f32.mrb[0].mxu0
  %v6421 = vadd.f32 0.0, %v6420
  %v6422 = vpop.f32.mrb[0].mxu0
  %v6423 = vpop.f32.mrb[0].mxu0
  %v6424 = vadd.f32 0.0, %v6423
  %v6425 = vpop.f32.mrb[0].mxu0
  %6426 = vmatprep.mubr.bf16.mxu0 0
  %6427 = vmatmul.mubr.bf16.gmra.mrb[0].mxu0 %v6366
  %v6428 = vpop.f32.mrb[0].mxu0
  %v6429 = vadd.f32 0.0, %v6428
  %v6430 = vpop.f32.mrb[0].mxu0
  %v6431 = vpop.f32.mrb[0].mxu0
  %v6432 = vadd.f32 0.0, %v6431
  %v6433 = vpop.f32.mrb[0].mxu0
  %6434 = vmatprep.mubr.bf16.mxu0 0
  %6435 = vmatmul.mubr.bf16.gmra.mrb[0].mxu0 %v6369
  %v6436 = vpop.f32.mrb[0].mxu0
  %v6437 = vadd.f32 0.0, %v6436
  %v6438 = vpop.f32.mrb[0].mxu0
  %v6439 = vpop.f32.mrb[0].mxu0
  %v6440 = vadd.f32 0.0, %v6439
  %v6441 = vpop.f32.mrb[0].mxu0
  %6442 = vmatprep.mubr.bf16.mxu0 0
  %6443 = vmatmul.mubr.bf16.gmra.mrb[0].mxu0 %v6372
  %v6444 = vpop.f32.mrb[0].mxu0
  %v6445 = vadd.f32 0.0, %v6444
  %v6446 = vpop.f32.mrb[0].mxu0
  %v6447 = vpop.f32.mrb[0].mxu0
  %v6448 = vadd.f32 0.0, %v6447
  %v6449 = vpop.f32.mrb[0].mxu0
  %6450 = vmatprep.mubr.bf16.mxu0 0
  %6451 = vmatmul.mubr.bf16.gmra.mrb[0].mxu0 %v6375
  %v6452 = vpop.f32.mrb[0].mxu0
  %v6453 = vadd.f32 0.0, %v6452
  %v6454 = vpop.f32.mrb[0].mxu0
  %v6455 = vpop.f32.mrb[0].mxu0
  %v6456 = vadd.f32 0.0, %v6455
  %v6457 = vpop.f32.mrb[0].mxu0
  %6458 = vmatprep.mubr.bf16.mxu0 0
  %6459 = vmatmul.mubr.bf16.gmra.mrb[0].mxu0 %v6378
  %v6460 = vpop.f32.mrb[0].mxu0
  %v6461 = vadd.f32 0.0, %v6460
  %v6462 = vpop.f32.mrb[0].mxu0
  %v6463 = vpop.f32.mrb[0].mxu0
  %v6464 = vadd.f32 0.0, %v6463
  %v6465 = vpop.f32.mrb[0].mxu0
  %6466 = vmatprep.mubr.bf16.mxu0 0
  %6467 = vmatmul.mubr.bf16.gmra.mrb[0].mxu0 %v6381
  %v6468 = vpop.f32.mrb[0].mxu0
  %v6469 = vadd.f32 0.0, %v6468
  %v6470 = vpop.f32.mrb[0].mxu0
  %v6471 = vpop.f32.mrb[0].mxu0
  %v6472 = vadd.f32 0.0, %v6471
  %v6473 = vpop.f32.mrb[0].mxu0
  %6474 = vmatprep.mubr.bf16.mxu0 0
  %6475 = vmatmul.mubr.bf16.gmra.mrb[0].mxu0 %v6384
  %v6476 = vpop.f32.mrb[0].mxu0
  %v6477 = vadd.f32 0.0, %v6476
  %v6478 = vpop.f32.mrb[0].mxu0
  %v6479 = vpop.f32.mrb[0].mxu0
  %v6480 = vadd.f32 0.0, %v6479
  %v6481 = vpop.f32.mrb[0].mxu0
  %6482 = vdwg.mxu0
  %v6483 = vadd.f32 %v6224, %v6421
  %v6484 = vadd.f32 %v6225, %v6424
  %v6485 = vadd.f32 %v6226, %v6429
  %v6486 = vadd.f32 %v6227, %v6432
  %v6487 = vadd.f32 %v6228, %v6437
  %v6488 = vadd.f32 %v6229, %v6440
  %v6489 = vadd.f32 %v6230, %v6445
  %v6490 = vadd.f32 %v6231, %v6448
  %v6491 = vadd.f32 %v6232, %v6453
  %v6492 = vadd.f32 %v6233, %v6456
  %v6493 = vadd.f32 %v6234, %v6461
  %v6494 = vadd.f32 %v6235, %v6464
  %v6495 = vadd.f32 %v6236, %v6469
  %v6496 = vadd.f32 %v6237, %v6472
  %v6497 = vadd.f32 %v6238, %v6477
  %v6498 = vadd.f32 %v6239, %v6480
  %6499 = vmatprep.subr.bf16.mxu0 0
  %6500 = vmatpush1.bf16.msra.mxu0 %v5228
  %6501 = vmatprep.subr.bf16.mxu0 0
  %6502 = vmatpush1.bf16.msra.mxu0 %v5229
  %6503 = vmatprep.subr.bf16.mxu0 0
  %6504 = vmatpush1.bf16.msra.mxu0 %v5230
  %6505 = vmatprep.subr.bf16.mxu0 0
  %6506 = vmatpush1.bf16.msra.mxu0 %v5231
  %6507 = vmatprep.subr.bf16.mxu0 0
  %6508 = vmatpush1.bf16.msra.mxu0 %v5232
  %6509 = vmatprep.subr.bf16.mxu0 0
  %6510 = vmatpush1.bf16.msra.mxu0 %v5233
  %6511 = vmatprep.subr.bf16.mxu0 0
  %6512 = vmatpush1.bf16.msra.mxu0 %v5234
  %6513 = vmatprep.subr.bf16.mxu0 0
  %6514 = vmatpush1.bf16.msra.mxu0 %v5235
  %6515 = vmatprep.subr.bf16.mxu0 0
  %6516 = vmatpush1.bf16.msra.mxu0 0
  %6517 = vmatprep.subr.bf16.mxu0 0
  %6518 = vmatpush1.bf16.msra.mxu0 0
  %6519 = vmatprep.subr.bf16.mxu0 0
  %6520 = vmatpush1.bf16.msra.mxu0 0
  %6521 = vmatprep.subr.bf16.mxu0 0
  %6522 = vmatpush1.bf16.msra.mxu0 0
  %6523 = vmatprep.subr.bf16.mxu0 0
  %6524 = vmatpush1.bf16.msra.mxu0 0
  %6525 = vmatprep.subr.bf16.mxu0 0
  %6526 = vmatpush1.bf16.msra.mxu0 0
  %6527 = vmatprep.subr.bf16.mxu0 0
  %6528 = vmatpush1.bf16.msra.mxu0 0
  %6529 = vmatprep.subr.bf16.mxu0 0
  %6530 = vmatpush1.bf16.msra.mxu0 0
  %6531 = vmatprep.mubr.bf16.mxu0 0
  %6532 = vmatmul.mubr.bf16.gmra.mrb[0].mxu0 %v1701
  %v6533 = vpop.f32.mrb[0].mxu0
  %v6534 = vadd.f32 0.0, %v6533
  %v6535 = vpop.f32.mrb[0].mxu0
  %v6536 = vpop.f32.mrb[0].mxu0
  %v6537 = vadd.f32 0.0, %v6536
  %v6538 = vpop.f32.mrb[0].mxu0
  %6539 = vmatprep.mubr.bf16.mxu0 0
  %6540 = vmatmul.mubr.bf16.gmra.mrb[0].mxu0 %v1702
  %v6541 = vpop.f32.mrb[0].mxu0
  %v6542 = vadd.f32 0.0, %v6541
  %v6543 = vpop.f32.mrb[0].mxu0
  %v6544 = vpop.f32.mrb[0].mxu0
  %v6545 = vadd.f32 0.0, %v6544
  %v6546 = vpop.f32.mrb[0].mxu0
  %6547 = vmatprep.mubr.bf16.mxu0 0
  %6548 = vmatmul.mubr.bf16.gmra.mrb[0].mxu0 %v1703
  %v6549 = vpop.f32.mrb[0].mxu0
  %v6550 = vadd.f32 0.0, %v6549
  %v6551 = vpop.f32.mrb[0].mxu0
  %v6552 = vpop.f32.mrb[0].mxu0
  %v6553 = vadd.f32 0.0, %v6552
  %v6554 = vpop.f32.mrb[0].mxu0
  %6555 = vmatprep.mubr.bf16.mxu0 0
  %6556 = vmatmul.mubr.bf16.gmra.mrb[0].mxu0 %v1704
  %v6557 = vpop.f32.mrb[0].mxu0
  %v6558 = vadd.f32 0.0, %v6557
  %v6559 = vpop.f32.mrb[0].mxu0
  %v6560 = vpop.f32.mrb[0].mxu0
  %v6561 = vadd.f32 0.0, %v6560
  %v6562 = vpop.f32.mrb[0].mxu0
  %6563 = vmatprep.mubr.bf16.mxu0 0
  %6564 = vmatmul.mubr.bf16.gmra.mrb[0].mxu0 %v1705
  %v6565 = vpop.f32.mrb[0].mxu0
  %v6566 = vadd.f32 0.0, %v6565
  %v6567 = vpop.f32.mrb[0].mxu0
  %v6568 = vpop.f32.mrb[0].mxu0
  %v6569 = vadd.f32 0.0, %v6568
  %v6570 = vpop.f32.mrb[0].mxu0
  %6571 = vmatprep.mubr.bf16.mxu0 0
  %6572 = vmatmul.mubr.bf16.gmra.mrb[0].mxu0 %v1706
  %v6573 = vpop.f32.mrb[0].mxu0
  %v6574 = vadd.f32 0.0, %v6573
  %v6575 = vpop.f32.mrb[0].mxu0
  %v6576 = vpop.f32.mrb[0].mxu0
  %v6577 = vadd.f32 0.0, %v6576
  %v6578 = vpop.f32.mrb[0].mxu0
  %6579 = vmatprep.mubr.bf16.mxu0 0
  %6580 = vmatmul.mubr.bf16.gmra.mrb[0].mxu0 %v1707
  %v6581 = vpop.f32.mrb[0].mxu0
  %v6582 = vadd.f32 0.0, %v6581
  %v6583 = vpop.f32.mrb[0].mxu0
  %v6584 = vpop.f32.mrb[0].mxu0
  %v6585 = vadd.f32 0.0, %v6584
  %v6586 = vpop.f32.mrb[0].mxu0
  %6587 = vmatprep.mubr.bf16.mxu0 0
  %6588 = vmatmul.mubr.bf16.gmra.mrb[0].mxu0 %v1708
  %v6589 = vpop.f32.mrb[0].mxu0
  %v6590 = vadd.f32 0.0, %v6589
  %v6591 = vpop.f32.mrb[0].mxu0
  %v6592 = vpop.f32.mrb[0].mxu0
  %v6593 = vadd.f32 0.0, %v6592
  %v6594 = vpop.f32.mrb[0].mxu0
  %6595 = vdwg.mxu0
  %v6596 = vpack.c.bf16 %v6537, %v6534
  %v6597 = vpack.c.bf16 %v6545, %v6542
  %v6598 = vpack.c.bf16 %v6553, %v6550
  %v6599 = vpack.c.bf16 %v6561, %v6558
  %v6600 = vpack.c.bf16 %v6569, %v6566
  %v6601 = vpack.c.bf16 %v6577, %v6574
  %v6602 = vpack.c.bf16 %v6585, %v6582
  %v6603 = vpack.c.bf16 %v6593, %v6590
  %s6604 = scalar_lea.vmem %s6, 80
  %v6605 = vld [vmem:[%s6604] sm:$0xf]
  %v6606 = vld [vmem:[%s6604 + $0x4] sm:$0xf]
  %v6607 = vld [vmem:[%s6604 + $0x8] sm:$0xf]
  %v6608 = vld [vmem:[%s6604 + $0xc] sm:$0xf]
  %v6613 = vunpack.c.l.b16 %v6605
  %v6614 = vunpack.c.l.b16 %v6606
  %v6615 = vunpack.c.l.b16 %v6607
  %v6616 = vunpack.c.l.b16 %v6608
  %v6617 = vpack.c.b16 %v6614, %v6613
  %v6618 = vpack.c.b16 %v6616, %v6615
  %v6622 = vsel %vm5467, %v6596, 0
  %v6625 = vsel %vm5467, %v6597, 0
  %v6628 = vsel %vm5467, %v6598, 0
  %v6631 = vsel %vm5467, %v6599, 0
  %v6634 = vsel %vm5467, %v6600, 0
  %v6637 = vsel %vm5467, %v6601, 0
  %v6640 = vsel %vm5467, %v6602, 0
  %v6643 = vsel %vm5467, %v6603, 0
  %6645 = vmatprep.subr.bf16.mxu0 0
  %6646 = vmatpush1.bf16.msra.mxu0 %v6617
  %6647 = vmatprep.subr.bf16.mxu0 0
  %6648 = vmatpush1.bf16.msra.mxu0 %v6618
  %6649 = vmatprep.subr.bf16.mxu0 0
  %6650 = vmatpush1.bf16.msra.mxu0 0
  %6651 = vmatprep.subr.bf16.mxu0 0
  %6652 = vmatpush1.bf16.msra.mxu0 0
  %6653 = vmatprep.subr.bf16.mxu0 0
  %6654 = vmatpush1.bf16.msra.mxu0 0
  %6655 = vmatprep.subr.bf16.mxu0 0
  %6656 = vmatpush1.bf16.msra.mxu0 0
  %6657 = vmatprep.subr.bf16.mxu0 0
  %6658 = vmatpush1.bf16.msra.mxu0 0
  %6659 = vmatprep.subr.bf16.mxu0 0
  %6660 = vmatpush1.bf16.msra.mxu0 0
  %6661 = vmatprep.subr.bf16.mxu0 0
  %6662 = vmatpush1.bf16.msra.mxu0 0
  %6663 = vmatprep.subr.bf16.mxu0 0
  %6664 = vmatpush1.bf16.msra.mxu0 0
  %6665 = vmatprep.subr.bf16.mxu0 0
  %6666 = vmatpush1.bf16.msra.mxu0 0
  %6667 = vmatprep.subr.bf16.mxu0 0
  %6668 = vmatpush1.bf16.msra.mxu0 0
  %6669 = vmatprep.subr.bf16.mxu0 0
  %6670 = vmatpush1.bf16.msra.mxu0 0
  %6671 = vmatprep.subr.bf16.mxu0 0
  %6672 = vmatpush1.bf16.msra.mxu0 0
  %6673 = vmatprep.subr.bf16.mxu0 0
  %6674 = vmatpush1.bf16.msra.mxu0 0
  %6675 = vmatprep.subr.bf16.mxu0 0
  %6676 = vmatpush1.bf16.msra.mxu0 0
  %6677 = vmatprep.mubr.bf16.mxu0 0
  %6678 = vmatmul.mubr.bf16.gmra.mrb[0].mxu0 %v6622
  %v6679 = vpop.f32.mrb[0].mxu0
  %v6680 = vadd.f32 0.0, %v6679
  %v6681 = vpop.f32.mrb[0].mxu0
  %v6682 = vpop.f32.mrb[0].mxu0
  %v6683 = vadd.f32 0.0, %v6682
  %v6684 = vpop.f32.mrb[0].mxu0
  %6685 = vmatprep.mubr.bf16.mxu0 0
  %6686 = vmatmul.mubr.bf16.gmra.mrb[0].mxu0 %v6625
  %v6687 = vpop.f32.mrb[0].mxu0
  %v6688 = vadd.f32 0.0, %v6687
  %v6689 = vpop.f32.mrb[0].mxu0
  %v6690 = vpop.f32.mrb[0].mxu0
  %v6691 = vadd.f32 0.0, %v6690
  %v6692 = vpop.f32.mrb[0].mxu0
  %6693 = vmatprep.mubr.bf16.mxu0 0
  %6694 = vmatmul.mubr.bf16.gmra.mrb[0].mxu0 %v6628
  %v6695 = vpop.f32.mrb[0].mxu0
  %v6696 = vadd.f32 0.0, %v6695
  %v6697 = vpop.f32.mrb[0].mxu0
  %v6698 = vpop.f32.mrb[0].mxu0
  %v6699 = vadd.f32 0.0, %v6698
  %v6700 = vpop.f32.mrb[0].mxu0
  %6701 = vmatprep.mubr.bf16.mxu0 0
  %6702 = vmatmul.mubr.bf16.gmra.mrb[0].mxu0 %v6631
  %v6703 = vpop.f32.mrb[0].mxu0
  %v6704 = vadd.f32 0.0, %v6703
  %v6705 = vpop.f32.mrb[0].mxu0
  %v6706 = vpop.f32.mrb[0].mxu0
  %v6707 = vadd.f32 0.0, %v6706
  %v6708 = vpop.f32.mrb[0].mxu0
  %6709 = vmatprep.mubr.bf16.mxu0 0
  %6710 = vmatmul.mubr.bf16.gmra.mrb[0].mxu0 %v6634
  %v6711 = vpop.f32.mrb[0].mxu0
  %v6712 = vadd.f32 0.0, %v6711
  %v6713 = vpop.f32.mrb[0].mxu0
  %v6714 = vpop.f32.mrb[0].mxu0
  %v6715 = vadd.f32 0.0, %v6714
  %v6716 = vpop.f32.mrb[0].mxu0
  %6717 = vmatprep.mubr.bf16.mxu0 0
  %6718 = vmatmul.mubr.bf16.gmra.mrb[0].mxu0 %v6637
  %v6719 = vpop.f32.mrb[0].mxu0
  %v6720 = vadd.f32 0.0, %v6719
  %v6721 = vpop.f32.mrb[0].mxu0
  %v6722 = vpop.f32.mrb[0].mxu0
  %v6723 = vadd.f32 0.0, %v6722
  %v6724 = vpop.f32.mrb[0].mxu0
  %6725 = vmatprep.mubr.bf16.mxu0 0
  %6726 = vmatmul.mubr.bf16.gmra.mrb[0].mxu0 %v6640
  %v6727 = vpop.f32.mrb[0].mxu0
  %v6728 = vadd.f32 0.0, %v6727
  %v6729 = vpop.f32.mrb[0].mxu0
  %v6730 = vpop.f32.mrb[0].mxu0
  %v6731 = vadd.f32 0.0, %v6730
  %v6732 = vpop.f32.mrb[0].mxu0
  %6733 = vmatprep.mubr.bf16.mxu0 0
  %6734 = vmatmul.mubr.bf16.gmra.mrb[0].mxu0 %v6643
  %v6735 = vpop.f32.mrb[0].mxu0
  %v6736 = vadd.f32 0.0, %v6735
  %v6737 = vpop.f32.mrb[0].mxu0
  %v6738 = vpop.f32.mrb[0].mxu0
  %v6739 = vadd.f32 0.0, %v6738
  %v6740 = vpop.f32.mrb[0].mxu0
  %6741 = vdwg.mxu0
  %v6742 = vadd.f32 %v6483, %v6680
  %v6743 = vadd.f32 %v6484, %v6683
  %v6744 = vadd.f32 %v6485, %v6688
  %v6745 = vadd.f32 %v6486, %v6691
  %v6746 = vadd.f32 %v6487, %v6696
  %v6747 = vadd.f32 %v6488, %v6699
  %v6748 = vadd.f32 %v6489, %v6704
  %v6749 = vadd.f32 %v6490, %v6707
  %v6750 = vadd.f32 %v6491, %v6712
  %v6751 = vadd.f32 %v6492, %v6715
  %v6752 = vadd.f32 %v6493, %v6720
  %v6753 = vadd.f32 %v6494, %v6723
  %v6754 = vadd.f32 %v6495, %v6728
  %v6755 = vadd.f32 %v6496, %v6731
  %v6756 = vadd.f32 %v6497, %v6736
  %v6757 = vadd.f32 %v6498, %v6739
  %6758 = vmatprep.subr.bf16.mxu0 0
  %6759 = vmatpush1.bf16.msra.mxu0 %v5228
  %6760 = vmatprep.subr.bf16.mxu0 0
  %6761 = vmatpush1.bf16.msra.mxu0 %v5229
  %6762 = vmatprep.subr.bf16.mxu0 0
  %6763 = vmatpush1.bf16.msra.mxu0 %v5230
  %6764 = vmatprep.subr.bf16.mxu0 0
  %6765 = vmatpush1.bf16.msra.mxu0 %v5231
  %6766 = vmatprep.subr.bf16.mxu0 0
  %6767 = vmatpush1.bf16.msra.mxu0 %v5232
  %6768 = vmatprep.subr.bf16.mxu0 0
  %6769 = vmatpush1.bf16.msra.mxu0 %v5233
  %6770 = vmatprep.subr.bf16.mxu0 0
  %6771 = vmatpush1.bf16.msra.mxu0 %v5234
  %6772 = vmatprep.subr.bf16.mxu0 0
  %6773 = vmatpush1.bf16.msra.mxu0 %v5235
  %6774 = vmatprep.subr.bf16.mxu0 0
  %6775 = vmatpush1.bf16.msra.mxu0 0
  %6776 = vmatprep.subr.bf16.mxu0 0
  %6777 = vmatpush1.bf16.msra.mxu0 0
  %6778 = vmatprep.subr.bf16.mxu0 0
  %6779 = vmatpush1.bf16.msra.mxu0 0
  %6780 = vmatprep.subr.bf16.mxu0 0
  %6781 = vmatpush1.bf16.msra.mxu0 0
  %6782 = vmatprep.subr.bf16.mxu0 0
  %6783 = vmatpush1.bf16.msra.mxu0 0
  %6784 = vmatprep.subr.bf16.mxu0 0
  %6785 = vmatpush1.bf16.msra.mxu0 0
  %6786 = vmatprep.subr.bf16.mxu0 0
  %6787 = vmatpush1.bf16.msra.mxu0 0
  %6788 = vmatprep.subr.bf16.mxu0 0
  %6789 = vmatpush1.bf16.msra.mxu0 0
  %6790 = vmatprep.mubr.bf16.mxu0 0
  %6791 = vmatmul.mubr.bf16.gmra.mrb[0].mxu0 %v2017
  %v6792 = vpop.f32.mrb[0].mxu0
  %v6793 = vadd.f32 0.0, %v6792
  %v6794 = vpop.f32.mrb[0].mxu0
  %v6795 = vpop.f32.mrb[0].mxu0
  %v6796 = vadd.f32 0.0, %v6795
  %v6797 = vpop.f32.mrb[0].mxu0
  %6798 = vmatprep.mubr.bf16.mxu0 0
  %6799 = vmatmul.mubr.bf16.gmra.mrb[0].mxu0 %v2018
  %v6800 = vpop.f32.mrb[0].mxu0
  %v6801 = vadd.f32 0.0, %v6800
  %v6802 = vpop.f32.mrb[0].mxu0
  %v6803 = vpop.f32.mrb[0].mxu0
  %v6804 = vadd.f32 0.0, %v6803
  %v6805 = vpop.f32.mrb[0].mxu0
  %6806 = vmatprep.mubr.bf16.mxu0 0
  %6807 = vmatmul.mubr.bf16.gmra.mrb[0].mxu0 %v2019
  %v6808 = vpop.f32.mrb[0].mxu0
  %v6809 = vadd.f32 0.0, %v6808
  %v6810 = vpop.f32.mrb[0].mxu0
  %v6811 = vpop.f32.mrb[0].mxu0
  %v6812 = vadd.f32 0.0, %v6811
  %v6813 = vpop.f32.mrb[0].mxu0
  %6814 = vmatprep.mubr.bf16.mxu0 0
  %6815 = vmatmul.mubr.bf16.gmra.mrb[0].mxu0 %v2020
  %v6816 = vpop.f32.mrb[0].mxu0
  %v6817 = vadd.f32 0.0, %v6816
  %v6818 = vpop.f32.mrb[0].mxu0
  %v6819 = vpop.f32.mrb[0].mxu0
  %v6820 = vadd.f32 0.0, %v6819
  %v6821 = vpop.f32.mrb[0].mxu0
  %6822 = vmatprep.mubr.bf16.mxu0 0
  %6823 = vmatmul.mubr.bf16.gmra.mrb[0].mxu0 %v2021
  %v6824 = vpop.f32.mrb[0].mxu0
  %v6825 = vadd.f32 0.0, %v6824
  %v6826 = vpop.f32.mrb[0].mxu0
  %v6827 = vpop.f32.mrb[0].mxu0
  %v6828 = vadd.f32 0.0, %v6827
  %v6829 = vpop.f32.mrb[0].mxu0
  %6830 = vmatprep.mubr.bf16.mxu0 0
  %6831 = vmatmul.mubr.bf16.gmra.mrb[0].mxu0 %v2022
  %v6832 = vpop.f32.mrb[0].mxu0
  %v6833 = vadd.f32 0.0, %v6832
  %v6834 = vpop.f32.mrb[0].mxu0
  %v6835 = vpop.f32.mrb[0].mxu0
  %v6836 = vadd.f32 0.0, %v6835
  %v6837 = vpop.f32.mrb[0].mxu0
  %6838 = vmatprep.mubr.bf16.mxu0 0
  %6839 = vmatmul.mubr.bf16.gmra.mrb[0].mxu0 %v2023
  %v6840 = vpop.f32.mrb[0].mxu0
  %v6841 = vadd.f32 0.0, %v6840
  %v6842 = vpop.f32.mrb[0].mxu0
  %v6843 = vpop.f32.mrb[0].mxu0
  %v6844 = vadd.f32 0.0, %v6843
  %v6845 = vpop.f32.mrb[0].mxu0
  %6846 = vmatprep.mubr.bf16.mxu0 0
  %6847 = vmatmul.mubr.bf16.gmra.mrb[0].mxu0 %v2024
  %v6848 = vpop.f32.mrb[0].mxu0
  %v6849 = vadd.f32 0.0, %v6848
  %v6850 = vpop.f32.mrb[0].mxu0
  %v6851 = vpop.f32.mrb[0].mxu0
  %v6852 = vadd.f32 0.0, %v6851
  %v6853 = vpop.f32.mrb[0].mxu0
  %6854 = vdwg.mxu0
  %v6855 = vpack.c.bf16 %v6796, %v6793
  %v6856 = vpack.c.bf16 %v6804, %v6801
  %v6857 = vpack.c.bf16 %v6812, %v6809
  %v6858 = vpack.c.bf16 %v6820, %v6817
  %v6859 = vpack.c.bf16 %v6828, %v6825
  %v6860 = vpack.c.bf16 %v6836, %v6833
  %v6861 = vpack.c.bf16 %v6844, %v6841
  %v6862 = vpack.c.bf16 %v6852, %v6849
  %s6863 = scalar_lea.vmem %s6, 96
  %v6864 = vld [vmem:[%s6863] sm:$0xf]
  %v6865 = vld [vmem:[%s6863 + $0x4] sm:$0xf]
  %v6866 = vld [vmem:[%s6863 + $0x8] sm:$0xf]
  %v6867 = vld [vmem:[%s6863 + $0xc] sm:$0xf]
  %v6872 = vunpack.c.l.b16 %v6864
  %v6873 = vunpack.c.l.b16 %v6865
  %v6874 = vunpack.c.l.b16 %v6866
  %v6875 = vunpack.c.l.b16 %v6867
  %v6876 = vpack.c.b16 %v6873, %v6872
  %v6877 = vpack.c.b16 %v6875, %v6874
  %v6881 = vsel %vm5467, %v6855, 0
  %v6884 = vsel %vm5467, %v6856, 0
  %v6887 = vsel %vm5467, %v6857, 0
  %v6890 = vsel %vm5467, %v6858, 0
  %v6893 = vsel %vm5467, %v6859, 0
  %v6896 = vsel %vm5467, %v6860, 0
  %v6899 = vsel %vm5467, %v6861, 0
  %v6902 = vsel %vm5467, %v6862, 0
  %6904 = vmatprep.subr.bf16.mxu0 0
  %6905 = vmatpush1.bf16.msra.mxu0 %v6876
  %6906 = vmatprep.subr.bf16.mxu0 0
  %6907 = vmatpush1.bf16.msra.mxu0 %v6877
  %6908 = vmatprep.subr.bf16.mxu0 0
  %6909 = vmatpush1.bf16.msra.mxu0 0
  %6910 = vmatprep.subr.bf16.mxu0 0
  %6911 = vmatpush1.bf16.msra.mxu0 0
  %6912 = vmatprep.subr.bf16.mxu0 0
  %6913 = vmatpush1.bf16.msra.mxu0 0
  %6914 = vmatprep.subr.bf16.mxu0 0
  %6915 = vmatpush1.bf16.msra.mxu0 0
  %6916 = vmatprep.subr.bf16.mxu0 0
  %6917 = vmatpush1.bf16.msra.mxu0 0
  %6918 = vmatprep.subr.bf16.mxu0 0
  %6919 = vmatpush1.bf16.msra.mxu0 0
  %6920 = vmatprep.subr.bf16.mxu0 0
  %6921 = vmatpush1.bf16.msra.mxu0 0
  %6922 = vmatprep.subr.bf16.mxu0 0
  %6923 = vmatpush1.bf16.msra.mxu0 0
  %6924 = vmatprep.subr.bf16.mxu0 0
  %6925 = vmatpush1.bf16.msra.mxu0 0
  %6926 = vmatprep.subr.bf16.mxu0 0
  %6927 = vmatpush1.bf16.msra.mxu0 0
  %6928 = vmatprep.subr.bf16.mxu0 0
  %6929 = vmatpush1.bf16.msra.mxu0 0
  %6930 = vmatprep.subr.bf16.mxu0 0
  %6931 = vmatpush1.bf16.msra.mxu0 0
  %6932 = vmatprep.subr.bf16.mxu0 0
  %6933 = vmatpush1.bf16.msra.mxu0 0
  %6934 = vmatprep.subr.bf16.mxu0 0
  %6935 = vmatpush1.bf16.msra.mxu0 0
  %6936 = vmatprep.mubr.bf16.mxu0 0
  %6937 = vmatmul.mubr.bf16.gmra.mrb[0].mxu0 %v6881
  %v6938 = vpop.f32.mrb[0].mxu0
  %v6939 = vadd.f32 0.0, %v6938
  %v6940 = vpop.f32.mrb[0].mxu0
  %v6941 = vpop.f32.mrb[0].mxu0
  %v6942 = vadd.f32 0.0, %v6941
  %v6943 = vpop.f32.mrb[0].mxu0
  %6944 = vmatprep.mubr.bf16.mxu0 0
  %6945 = vmatmul.mubr.bf16.gmra.mrb[0].mxu0 %v6884
  %v6946 = vpop.f32.mrb[0].mxu0
  %v6947 = vadd.f32 0.0, %v6946
  %v6948 = vpop.f32.mrb[0].mxu0
  %v6949 = vpop.f32.mrb[0].mxu0
  %v6950 = vadd.f32 0.0, %v6949
  %v6951 = vpop.f32.mrb[0].mxu0
  %6952 = vmatprep.mubr.bf16.mxu0 0
  %6953 = vmatmul.mubr.bf16.gmra.mrb[0].mxu0 %v6887
  %v6954 = vpop.f32.mrb[0].mxu0
  %v6955 = vadd.f32 0.0, %v6954
  %v6956 = vpop.f32.mrb[0].mxu0
  %v6957 = vpop.f32.mrb[0].mxu0
  %v6958 = vadd.f32 0.0, %v6957
  %v6959 = vpop.f32.mrb[0].mxu0
  %6960 = vmatprep.mubr.bf16.mxu0 0
  %6961 = vmatmul.mubr.bf16.gmra.mrb[0].mxu0 %v6890
  %v6962 = vpop.f32.mrb[0].mxu0
  %v6963 = vadd.f32 0.0, %v6962
  %v6964 = vpop.f32.mrb[0].mxu0
  %v6965 = vpop.f32.mrb[0].mxu0
  %v6966 = vadd.f32 0.0, %v6965
  %v6967 = vpop.f32.mrb[0].mxu0
  %6968 = vmatprep.mubr.bf16.mxu0 0
  %6969 = vmatmul.mubr.bf16.gmra.mrb[0].mxu0 %v6893
  %v6970 = vpop.f32.mrb[0].mxu0
  %v6971 = vadd.f32 0.0, %v6970
  %v6972 = vpop.f32.mrb[0].mxu0
  %v6973 = vpop.f32.mrb[0].mxu0
  %v6974 = vadd.f32 0.0, %v6973
  %v6975 = vpop.f32.mrb[0].mxu0
  %6976 = vmatprep.mubr.bf16.mxu0 0
  %6977 = vmatmul.mubr.bf16.gmra.mrb[0].mxu0 %v6896
  %v6978 = vpop.f32.mrb[0].mxu0
  %v6979 = vadd.f32 0.0, %v6978
  %v6980 = vpop.f32.mrb[0].mxu0
  %v6981 = vpop.f32.mrb[0].mxu0
  %v6982 = vadd.f32 0.0, %v6981
  %v6983 = vpop.f32.mrb[0].mxu0
  %6984 = vmatprep.mubr.bf16.mxu0 0
  %6985 = vmatmul.mubr.bf16.gmra.mrb[0].mxu0 %v6899
  %v6986 = vpop.f32.mrb[0].mxu0
  %v6987 = vadd.f32 0.0, %v6986
  %v6988 = vpop.f32.mrb[0].mxu0
  %v6989 = vpop.f32.mrb[0].mxu0
  %v6990 = vadd.f32 0.0, %v6989
  %v6991 = vpop.f32.mrb[0].mxu0
  %6992 = vmatprep.mubr.bf16.mxu0 0
  %6993 = vmatmul.mubr.bf16.gmra.mrb[0].mxu0 %v6902
  %v6994 = vpop.f32.mrb[0].mxu0
  %v6995 = vadd.f32 0.0, %v6994
  %v6996 = vpop.f32.mrb[0].mxu0
  %v6997 = vpop.f32.mrb[0].mxu0
  %v6998 = vadd.f32 0.0, %v6997
  %v6999 = vpop.f32.mrb[0].mxu0
  %7000 = vdwg.mxu0
  %v7001 = vadd.f32 %v6742, %v6939
  %v7002 = vadd.f32 %v6743, %v6942
  %v7003 = vadd.f32 %v6744, %v6947
  %v7004 = vadd.f32 %v6745, %v6950
  %v7005 = vadd.f32 %v6746, %v6955
  %v7006 = vadd.f32 %v6747, %v6958
  %v7007 = vadd.f32 %v6748, %v6963
  %v7008 = vadd.f32 %v6749, %v6966
  %v7009 = vadd.f32 %v6750, %v6971
  %v7010 = vadd.f32 %v6751, %v6974
  %v7011 = vadd.f32 %v6752, %v6979
  %v7012 = vadd.f32 %v6753, %v6982
  %v7013 = vadd.f32 %v6754, %v6987
  %v7014 = vadd.f32 %v6755, %v6990
  %v7015 = vadd.f32 %v6756, %v6995
  %v7016 = vadd.f32 %v6757, %v6998
  %7017 = vmatprep.subr.bf16.mxu0 0
  %7018 = vmatpush1.bf16.msra.mxu0 %v5228
  %7019 = vmatprep.subr.bf16.mxu0 0
  %7020 = vmatpush1.bf16.msra.mxu0 %v5229
  %7021 = vmatprep.subr.bf16.mxu0 0
  %7022 = vmatpush1.bf16.msra.mxu0 %v5230
  %7023 = vmatprep.subr.bf16.mxu0 0
  %7024 = vmatpush1.bf16.msra.mxu0 %v5231
  %7025 = vmatprep.subr.bf16.mxu0 0
  %7026 = vmatpush1.bf16.msra.mxu0 %v5232
  %7027 = vmatprep.subr.bf16.mxu0 0
  %7028 = vmatpush1.bf16.msra.mxu0 %v5233
  %7029 = vmatprep.subr.bf16.mxu0 0
  %7030 = vmatpush1.bf16.msra.mxu0 %v5234
  %7031 = vmatprep.subr.bf16.mxu0 0
  %7032 = vmatpush1.bf16.msra.mxu0 %v5235
  %7033 = vmatprep.subr.bf16.mxu0 0
  %7034 = vmatpush1.bf16.msra.mxu0 0
  %7035 = vmatprep.subr.bf16.mxu0 0
  %7036 = vmatpush1.bf16.msra.mxu0 0
  %7037 = vmatprep.subr.bf16.mxu0 0
  %7038 = vmatpush1.bf16.msra.mxu0 0
  %7039 = vmatprep.subr.bf16.mxu0 0
  %7040 = vmatpush1.bf16.msra.mxu0 0
  %7041 = vmatprep.subr.bf16.mxu0 0
  %7042 = vmatpush1.bf16.msra.mxu0 0
  %7043 = vmatprep.subr.bf16.mxu0 0
  %7044 = vmatpush1.bf16.msra.mxu0 0
  %7045 = vmatprep.subr.bf16.mxu0 0
  %7046 = vmatpush1.bf16.msra.mxu0 0
  %7047 = vmatprep.subr.bf16.mxu0 0
  %7048 = vmatpush1.bf16.msra.mxu0 0
  %7049 = vmatprep.mubr.bf16.mxu0 0
  %7050 = vmatmul.mubr.bf16.gmra.mrb[0].mxu0 %v2333
  %v7051 = vpop.f32.mrb[0].mxu0
  %v7052 = vadd.f32 0.0, %v7051
  %v7053 = vpop.f32.mrb[0].mxu0
  %v7054 = vpop.f32.mrb[0].mxu0
  %v7055 = vadd.f32 0.0, %v7054
  %v7056 = vpop.f32.mrb[0].mxu0
  %7057 = vmatprep.mubr.bf16.mxu0 0
  %7058 = vmatmul.mubr.bf16.gmra.mrb[0].mxu0 %v2334
  %v7059 = vpop.f32.mrb[0].mxu0
  %v7060 = vadd.f32 0.0, %v7059
  %v7061 = vpop.f32.mrb[0].mxu0
  %v7062 = vpop.f32.mrb[0].mxu0
  %v7063 = vadd.f32 0.0, %v7062
  %v7064 = vpop.f32.mrb[0].mxu0
  %7065 = vmatprep.mubr.bf16.mxu0 0
  %7066 = vmatmul.mubr.bf16.gmra.mrb[0].mxu0 %v2335
  %v7067 = vpop.f32.mrb[0].mxu0
  %v7068 = vadd.f32 0.0, %v7067
  %v7069 = vpop.f32.mrb[0].mxu0
  %v7070 = vpop.f32.mrb[0].mxu0
  %v7071 = vadd.f32 0.0, %v7070
  %v7072 = vpop.f32.mrb[0].mxu0
  %7073 = vmatprep.mubr.bf16.mxu0 0
  %7074 = vmatmul.mubr.bf16.gmra.mrb[0].mxu0 %v2336
  %v7075 = vpop.f32.mrb[0].mxu0
  %v7076 = vadd.f32 0.0, %v7075
  %v7077 = vpop.f32.mrb[0].mxu0
  %v7078 = vpop.f32.mrb[0].mxu0
  %v7079 = vadd.f32 0.0, %v7078
  %v7080 = vpop.f32.mrb[0].mxu0
  %7081 = vmatprep.mubr.bf16.mxu0 0
  %7082 = vmatmul.mubr.bf16.gmra.mrb[0].mxu0 %v2337
  %v7083 = vpop.f32.mrb[0].mxu0
  %v7084 = vadd.f32 0.0, %v7083
  %v7085 = vpop.f32.mrb[0].mxu0
  %v7086 = vpop.f32.mrb[0].mxu0
  %v7087 = vadd.f32 0.0, %v7086
  %v7088 = vpop.f32.mrb[0].mxu0
  %7089 = vmatprep.mubr.bf16.mxu0 0
  %7090 = vmatmul.mubr.bf16.gmra.mrb[0].mxu0 %v2338
  %v7091 = vpop.f32.mrb[0].mxu0
  %v7092 = vadd.f32 0.0, %v7091
  %v7093 = vpop.f32.mrb[0].mxu0
  %v7094 = vpop.f32.mrb[0].mxu0
  %v7095 = vadd.f32 0.0, %v7094
  %v7096 = vpop.f32.mrb[0].mxu0
  %7097 = vmatprep.mubr.bf16.mxu0 0
  %7098 = vmatmul.mubr.bf16.gmra.mrb[0].mxu0 %v2339
  %v7099 = vpop.f32.mrb[0].mxu0
  %v7100 = vadd.f32 0.0, %v7099
  %v7101 = vpop.f32.mrb[0].mxu0
  %v7102 = vpop.f32.mrb[0].mxu0
  %v7103 = vadd.f32 0.0, %v7102
  %v7104 = vpop.f32.mrb[0].mxu0
  %7105 = vmatprep.mubr.bf16.mxu0 0
  %7106 = vmatmul.mubr.bf16.gmra.mrb[0].mxu0 %v2340
  %v7107 = vpop.f32.mrb[0].mxu0
  %v7108 = vadd.f32 0.0, %v7107
  %v7109 = vpop.f32.mrb[0].mxu0
  %v7110 = vpop.f32.mrb[0].mxu0
  %v7111 = vadd.f32 0.0, %v7110
  %v7112 = vpop.f32.mrb[0].mxu0
  %7113 = vdwg.mxu0
  %v7114 = vpack.c.bf16 %v7055, %v7052
  %v7115 = vpack.c.bf16 %v7063, %v7060
  %v7116 = vpack.c.bf16 %v7071, %v7068
  %v7117 = vpack.c.bf16 %v7079, %v7076
  %v7118 = vpack.c.bf16 %v7087, %v7084
  %v7119 = vpack.c.bf16 %v7095, %v7092
  %v7120 = vpack.c.bf16 %v7103, %v7100
  %v7121 = vpack.c.bf16 %v7111, %v7108
  %s7122 = scalar_lea.vmem %s6, 112
  %v7123 = vld [vmem:[%s7122] sm:$0xf]
  %v7124 = vld [vmem:[%s7122 + $0x4] sm:$0xf]
  %v7125 = vld [vmem:[%s7122 + $0x8] sm:$0xf]
  %v7126 = vld [vmem:[%s7122 + $0xc] sm:$0xf]
  %v7131 = vunpack.c.l.b16 %v7123
  %v7132 = vunpack.c.l.b16 %v7124
  %v7133 = vunpack.c.l.b16 %v7125
  %v7134 = vunpack.c.l.b16 %v7126
  %v7135 = vpack.c.b16 %v7132, %v7131
  %v7136 = vpack.c.b16 %v7134, %v7133
  %v7140 = vsel %vm5467, %v7114, 0
  %v7143 = vsel %vm5467, %v7115, 0
  %v7146 = vsel %vm5467, %v7116, 0
  %v7149 = vsel %vm5467, %v7117, 0
  %v7152 = vsel %vm5467, %v7118, 0
  %v7155 = vsel %vm5467, %v7119, 0
  %v7158 = vsel %vm5467, %v7120, 0
  %v7161 = vsel %vm5467, %v7121, 0
  %7163 = vmatprep.subr.bf16.mxu0 0
  %7164 = vmatpush1.bf16.msra.mxu0 %v7135
  %7165 = vmatprep.subr.bf16.mxu0 0
  %7166 = vmatpush1.bf16.msra.mxu0 %v7136
  %7167 = vmatprep.subr.bf16.mxu0 0
  %7168 = vmatpush1.bf16.msra.mxu0 0
  %7169 = vmatprep.subr.bf16.mxu0 0
  %7170 = vmatpush1.bf16.msra.mxu0 0
  %7171 = vmatprep.subr.bf16.mxu0 0
  %7172 = vmatpush1.bf16.msra.mxu0 0
  %7173 = vmatprep.subr.bf16.mxu0 0
  %7174 = vmatpush1.bf16.msra.mxu0 0
  %7175 = vmatprep.subr.bf16.mxu0 0
  %7176 = vmatpush1.bf16.msra.mxu0 0
  %7177 = vmatprep.subr.bf16.mxu0 0
  %7178 = vmatpush1.bf16.msra.mxu0 0
  %7179 = vmatprep.subr.bf16.mxu0 0
  %7180 = vmatpush1.bf16.msra.mxu0 0
  %7181 = vmatprep.subr.bf16.mxu0 0
  %7182 = vmatpush1.bf16.msra.mxu0 0
  %7183 = vmatprep.subr.bf16.mxu0 0
  %7184 = vmatpush1.bf16.msra.mxu0 0
  %7185 = vmatprep.subr.bf16.mxu0 0
  %7186 = vmatpush1.bf16.msra.mxu0 0
  %7187 = vmatprep.subr.bf16.mxu0 0
  %7188 = vmatpush1.bf16.msra.mxu0 0
  %7189 = vmatprep.subr.bf16.mxu0 0
  %7190 = vmatpush1.bf16.msra.mxu0 0
  %7191 = vmatprep.subr.bf16.mxu0 0
  %7192 = vmatpush1.bf16.msra.mxu0 0
  %7193 = vmatprep.subr.bf16.mxu0 0
  %7194 = vmatpush1.bf16.msra.mxu0 0
  %7195 = vmatprep.mubr.bf16.mxu0 0
  %7196 = vmatmul.mubr.bf16.gmra.mrb[0].mxu0 %v7140
  %v7197 = vpop.f32.mrb[0].mxu0
  %v7198 = vadd.f32 0.0, %v7197
  %v7199 = vpop.f32.mrb[0].mxu0
  %v7200 = vpop.f32.mrb[0].mxu0
  %v7201 = vadd.f32 0.0, %v7200
  %v7202 = vpop.f32.mrb[0].mxu0
  %7203 = vmatprep.mubr.bf16.mxu0 0
  %7204 = vmatmul.mubr.bf16.gmra.mrb[0].mxu0 %v7143
  %v7205 = vpop.f32.mrb[0].mxu0
  %v7206 = vadd.f32 0.0, %v7205
  %v7207 = vpop.f32.mrb[0].mxu0
  %v7208 = vpop.f32.mrb[0].mxu0
  %v7209 = vadd.f32 0.0, %v7208
  %v7210 = vpop.f32.mrb[0].mxu0
  %7211 = vmatprep.mubr.bf16.mxu0 0
  %7212 = vmatmul.mubr.bf16.gmra.mrb[0].mxu0 %v7146
  %v7213 = vpop.f32.mrb[0].mxu0
  %v7214 = vadd.f32 0.0, %v7213
  %v7215 = vpop.f32.mrb[0].mxu0
  %v7216 = vpop.f32.mrb[0].mxu0
  %v7217 = vadd.f32 0.0, %v7216
  %v7218 = vpop.f32.mrb[0].mxu0
  %7219 = vmatprep.mubr.bf16.mxu0 0
  %7220 = vmatmul.mubr.bf16.gmra.mrb[0].mxu0 %v7149
  %v7221 = vpop.f32.mrb[0].mxu0
  %v7222 = vadd.f32 0.0, %v7221
  %v7223 = vpop.f32.mrb[0].mxu0
  %v7224 = vpop.f32.mrb[0].mxu0
  %v7225 = vadd.f32 0.0, %v7224
  %v7226 = vpop.f32.mrb[0].mxu0
  %7227 = vmatprep.mubr.bf16.mxu0 0
  %7228 = vmatmul.mubr.bf16.gmra.mrb[0].mxu0 %v7152
  %v7229 = vpop.f32.mrb[0].mxu0
  %v7230 = vadd.f32 0.0, %v7229
  %v7231 = vpop.f32.mrb[0].mxu0
  %v7232 = vpop.f32.mrb[0].mxu0
  %v7233 = vadd.f32 0.0, %v7232
  %v7234 = vpop.f32.mrb[0].mxu0
  %7235 = vmatprep.mubr.bf16.mxu0 0
  %7236 = vmatmul.mubr.bf16.gmra.mrb[0].mxu0 %v7155
  %v7237 = vpop.f32.mrb[0].mxu0
  %v7238 = vadd.f32 0.0, %v7237
  %v7239 = vpop.f32.mrb[0].mxu0
  %v7240 = vpop.f32.mrb[0].mxu0
  %v7241 = vadd.f32 0.0, %v7240
  %v7242 = vpop.f32.mrb[0].mxu0
  %7243 = vmatprep.mubr.bf16.mxu0 0
  %7244 = vmatmul.mubr.bf16.gmra.mrb[0].mxu0 %v7158
  %v7245 = vpop.f32.mrb[0].mxu0
  %v7246 = vadd.f32 0.0, %v7245
  %v7247 = vpop.f32.mrb[0].mxu0
  %v7248 = vpop.f32.mrb[0].mxu0
  %v7249 = vadd.f32 0.0, %v7248
  %v7250 = vpop.f32.mrb[0].mxu0
  %7251 = vmatprep.mubr.bf16.mxu0 0
  %7252 = vmatmul.mubr.bf16.gmra.mrb[0].mxu0 %v7161
  %v7253 = vpop.f32.mrb[0].mxu0
  %v7254 = vadd.f32 0.0, %v7253
  %v7255 = vpop.f32.mrb[0].mxu0
  %v7256 = vpop.f32.mrb[0].mxu0
  %v7257 = vadd.f32 0.0, %v7256
  %v7258 = vpop.f32.mrb[0].mxu0
  %7259 = vdwg.mxu0
  %v7260 = vadd.f32 %v7001, %v7198
  %v7261 = vadd.f32 %v7002, %v7201
  %v7262 = vadd.f32 %v7003, %v7206
  %v7263 = vadd.f32 %v7004, %v7209
  %v7264 = vadd.f32 %v7005, %v7214
  %v7265 = vadd.f32 %v7006, %v7217
  %v7266 = vadd.f32 %v7007, %v7222
  %v7267 = vadd.f32 %v7008, %v7225
  %v7268 = vadd.f32 %v7009, %v7230
  %v7269 = vadd.f32 %v7010, %v7233
  %v7270 = vadd.f32 %v7011, %v7238
  %v7271 = vadd.f32 %v7012, %v7241
  %v7272 = vadd.f32 %v7013, %v7246
  %v7273 = vadd.f32 %v7014, %v7249
  %v7274 = vadd.f32 %v7015, %v7254
  %v7275 = vadd.f32 %v7016, %v7257
  %7276 = vmatprep.subr.bf16.mxu0 0
  %7277 = vmatpush1.bf16.msra.mxu0 %v5228
  %7278 = vmatprep.subr.bf16.mxu0 0
  %7279 = vmatpush1.bf16.msra.mxu0 %v5229
  %7280 = vmatprep.subr.bf16.mxu0 0
  %7281 = vmatpush1.bf16.msra.mxu0 %v5230
  %7282 = vmatprep.subr.bf16.mxu0 0
  %7283 = vmatpush1.bf16.msra.mxu0 %v5231
  %7284 = vmatprep.subr.bf16.mxu0 0
  %7285 = vmatpush1.bf16.msra.mxu0 %v5232
  %7286 = vmatprep.subr.bf16.mxu0 0
  %7287 = vmatpush1.bf16.msra.mxu0 %v5233
  %7288 = vmatprep.subr.bf16.mxu0 0
  %7289 = vmatpush1.bf16.msra.mxu0 %v5234
  %7290 = vmatprep.subr.bf16.mxu0 0
  %7291 = vmatpush1.bf16.msra.mxu0 %v5235
  %7292 = vmatprep.subr.bf16.mxu0 0
  %7293 = vmatpush1.bf16.msra.mxu0 0
  %7294 = vmatprep.subr.bf16.mxu0 0
  %7295 = vmatpush1.bf16.msra.mxu0 0
  %7296 = vmatprep.subr.bf16.mxu0 0
  %7297 = vmatpush1.bf16.msra.mxu0 0
  %7298 = vmatprep.subr.bf16.mxu0 0
  %7299 = vmatpush1.bf16.msra.mxu0 0
  %7300 = vmatprep.subr.bf16.mxu0 0
  %7301 = vmatpush1.bf16.msra.mxu0 0
  %7302 = vmatprep.subr.bf16.mxu0 0
  %7303 = vmatpush1.bf16.msra.mxu0 0
  %7304 = vmatprep.subr.bf16.mxu0 0
  %7305 = vmatpush1.bf16.msra.mxu0 0
  %7306 = vmatprep.subr.bf16.mxu0 0
  %7307 = vmatpush1.bf16.msra.mxu0 0
  %7308 = vmatprep.mubr.bf16.mxu0 0
  %7309 = vmatmul.mubr.bf16.gmra.mrb[0].mxu0 %v2649
  %v7310 = vpop.f32.mrb[0].mxu0
  %v7311 = vadd.f32 0.0, %v7310
  %v7312 = vpop.f32.mrb[0].mxu0
  %v7313 = vpop.f32.mrb[0].mxu0
  %v7314 = vadd.f32 0.0, %v7313
  %v7315 = vpop.f32.mrb[0].mxu0
  %7316 = vmatprep.mubr.bf16.mxu0 0
  %7317 = vmatmul.mubr.bf16.gmra.mrb[0].mxu0 %v2650
  %v7318 = vpop.f32.mrb[0].mxu0
  %v7319 = vadd.f32 0.0, %v7318
  %v7320 = vpop.f32.mrb[0].mxu0
  %v7321 = vpop.f32.mrb[0].mxu0
  %v7322 = vadd.f32 0.0, %v7321
  %v7323 = vpop.f32.mrb[0].mxu0
  %7324 = vmatprep.mubr.bf16.mxu0 0
  %7325 = vmatmul.mubr.bf16.gmra.mrb[0].mxu0 %v2651
  %v7326 = vpop.f32.mrb[0].mxu0
  %v7327 = vadd.f32 0.0, %v7326
  %v7328 = vpop.f32.mrb[0].mxu0
  %v7329 = vpop.f32.mrb[0].mxu0
  %v7330 = vadd.f32 0.0, %v7329
  %v7331 = vpop.f32.mrb[0].mxu0
  %7332 = vmatprep.mubr.bf16.mxu0 0
  %7333 = vmatmul.mubr.bf16.gmra.mrb[0].mxu0 %v2652
  %v7334 = vpop.f32.mrb[0].mxu0
  %v7335 = vadd.f32 0.0, %v7334
  %v7336 = vpop.f32.mrb[0].mxu0
  %v7337 = vpop.f32.mrb[0].mxu0
  %v7338 = vadd.f32 0.0, %v7337
  %v7339 = vpop.f32.mrb[0].mxu0
  %7340 = vmatprep.mubr.bf16.mxu0 0
  %7341 = vmatmul.mubr.bf16.gmra.mrb[0].mxu0 %v2653
  %v7342 = vpop.f32.mrb[0].mxu0
  %v7343 = vadd.f32 0.0, %v7342
  %v7344 = vpop.f32.mrb[0].mxu0
  %v7345 = vpop.f32.mrb[0].mxu0
  %v7346 = vadd.f32 0.0, %v7345
  %v7347 = vpop.f32.mrb[0].mxu0
  %7348 = vmatprep.mubr.bf16.mxu0 0
  %7349 = vmatmul.mubr.bf16.gmra.mrb[0].mxu0 %v2654
  %v7350 = vpop.f32.mrb[0].mxu0
  %v7351 = vadd.f32 0.0, %v7350
  %v7352 = vpop.f32.mrb[0].mxu0
  %v7353 = vpop.f32.mrb[0].mxu0
  %v7354 = vadd.f32 0.0, %v7353
  %v7355 = vpop.f32.mrb[0].mxu0
  %7356 = vmatprep.mubr.bf16.mxu0 0
  %7357 = vmatmul.mubr.bf16.gmra.mrb[0].mxu0 %v2655
  %v7358 = vpop.f32.mrb[0].mxu0
  %v7359 = vadd.f32 0.0, %v7358
  %v7360 = vpop.f32.mrb[0].mxu0
  %v7361 = vpop.f32.mrb[0].mxu0
  %v7362 = vadd.f32 0.0, %v7361
  %v7363 = vpop.f32.mrb[0].mxu0
  %7364 = vmatprep.mubr.bf16.mxu0 0
  %7365 = vmatmul.mubr.bf16.gmra.mrb[0].mxu0 %v2656
  %v7366 = vpop.f32.mrb[0].mxu0
  %v7367 = vadd.f32 0.0, %v7366
  %v7368 = vpop.f32.mrb[0].mxu0
  %v7369 = vpop.f32.mrb[0].mxu0
  %v7370 = vadd.f32 0.0, %v7369
  %v7371 = vpop.f32.mrb[0].mxu0
  %7372 = vdwg.mxu0
  %v7373 = vpack.c.bf16 %v7314, %v7311
  %v7374 = vpack.c.bf16 %v7322, %v7319
  %v7375 = vpack.c.bf16 %v7330, %v7327
  %v7376 = vpack.c.bf16 %v7338, %v7335
  %v7377 = vpack.c.bf16 %v7346, %v7343
  %v7378 = vpack.c.bf16 %v7354, %v7351
  %v7379 = vpack.c.bf16 %v7362, %v7359
  %v7380 = vpack.c.bf16 %v7370, %v7367
  %s7381 = scalar_lea.vmem %s6, 128
  %v7382 = vld [vmem:[%s7381] sm:$0xf]
  %v7383 = vld [vmem:[%s7381 + $0x4] sm:$0xf]
  %v7384 = vld [vmem:[%s7381 + $0x8] sm:$0xf]
  %v7385 = vld [vmem:[%s7381 + $0xc] sm:$0xf]
  %v7390 = vunpack.c.l.b16 %v7382
  %v7391 = vunpack.c.l.b16 %v7383
  %v7392 = vunpack.c.l.b16 %v7384
  %v7393 = vunpack.c.l.b16 %v7385
  %v7394 = vpack.c.b16 %v7391, %v7390
  %v7395 = vpack.c.b16 %v7393, %v7392
  %v7399 = vsel %vm5467, %v7373, 0
  %v7402 = vsel %vm5467, %v7374, 0
  %v7405 = vsel %vm5467, %v7375, 0
  %v7408 = vsel %vm5467, %v7376, 0
  %v7411 = vsel %vm5467, %v7377, 0
  %v7414 = vsel %vm5467, %v7378, 0
  %v7417 = vsel %vm5467, %v7379, 0
  %v7420 = vsel %vm5467, %v7380, 0
  %7422 = vmatprep.subr.bf16.mxu0 0
  %7423 = vmatpush1.bf16.msra.mxu0 %v7394
  %7424 = vmatprep.subr.bf16.mxu0 0
  %7425 = vmatpush1.bf16.msra.mxu0 %v7395
  %7426 = vmatprep.subr.bf16.mxu0 0
  %7427 = vmatpush1.bf16.msra.mxu0 0
  %7428 = vmatprep.subr.bf16.mxu0 0
  %7429 = vmatpush1.bf16.msra.mxu0 0
  %7430 = vmatprep.subr.bf16.mxu0 0
  %7431 = vmatpush1.bf16.msra.mxu0 0
  %7432 = vmatprep.subr.bf16.mxu0 0
  %7433 = vmatpush1.bf16.msra.mxu0 0
  %7434 = vmatprep.subr.bf16.mxu0 0
  %7435 = vmatpush1.bf16.msra.mxu0 0
  %7436 = vmatprep.subr.bf16.mxu0 0
  %7437 = vmatpush1.bf16.msra.mxu0 0
  %7438 = vmatprep.subr.bf16.mxu0 0
  %7439 = vmatpush1.bf16.msra.mxu0 0
  %7440 = vmatprep.subr.bf16.mxu0 0
  %7441 = vmatpush1.bf16.msra.mxu0 0
  %7442 = vmatprep.subr.bf16.mxu0 0
  %7443 = vmatpush1.bf16.msra.mxu0 0
  %7444 = vmatprep.subr.bf16.mxu0 0
  %7445 = vmatpush1.bf16.msra.mxu0 0
  %7446 = vmatprep.subr.bf16.mxu0 0
  %7447 = vmatpush1.bf16.msra.mxu0 0
  %7448 = vmatprep.subr.bf16.mxu0 0
  %7449 = vmatpush1.bf16.msra.mxu0 0
  %7450 = vmatprep.subr.bf16.mxu0 0
  %7451 = vmatpush1.bf16.msra.mxu0 0
  %7452 = vmatprep.subr.bf16.mxu0 0
  %7453 = vmatpush1.bf16.msra.mxu0 0
  %7454 = vmatprep.mubr.bf16.mxu0 0
  %7455 = vmatmul.mubr.bf16.gmra.mrb[0].mxu0 %v7399
  %v7456 = vpop.f32.mrb[0].mxu0
  %v7457 = vadd.f32 0.0, %v7456
  %v7458 = vpop.f32.mrb[0].mxu0
  %v7459 = vpop.f32.mrb[0].mxu0
  %v7460 = vadd.f32 0.0, %v7459
  %v7461 = vpop.f32.mrb[0].mxu0
  %7462 = vmatprep.mubr.bf16.mxu0 0
  %7463 = vmatmul.mubr.bf16.gmra.mrb[0].mxu0 %v7402
  %v7464 = vpop.f32.mrb[0].mxu0
  %v7465 = vadd.f32 0.0, %v7464
  %v7466 = vpop.f32.mrb[0].mxu0
  %v7467 = vpop.f32.mrb[0].mxu0
  %v7468 = vadd.f32 0.0, %v7467
  %v7469 = vpop.f32.mrb[0].mxu0
  %7470 = vmatprep.mubr.bf16.mxu0 0
  %7471 = vmatmul.mubr.bf16.gmra.mrb[0].mxu0 %v7405
  %v7472 = vpop.f32.mrb[0].mxu0
  %v7473 = vadd.f32 0.0, %v7472
  %v7474 = vpop.f32.mrb[0].mxu0
  %v7475 = vpop.f32.mrb[0].mxu0
  %v7476 = vadd.f32 0.0, %v7475
  %v7477 = vpop.f32.mrb[0].mxu0
  %7478 = vmatprep.mubr.bf16.mxu0 0
  %7479 = vmatmul.mubr.bf16.gmra.mrb[0].mxu0 %v7408
  %v7480 = vpop.f32.mrb[0].mxu0
  %v7481 = vadd.f32 0.0, %v7480
  %v7482 = vpop.f32.mrb[0].mxu0
  %v7483 = vpop.f32.mrb[0].mxu0
  %v7484 = vadd.f32 0.0, %v7483
  %v7485 = vpop.f32.mrb[0].mxu0
  %7486 = vmatprep.mubr.bf16.mxu0 0
  %7487 = vmatmul.mubr.bf16.gmra.mrb[0].mxu0 %v7411
  %v7488 = vpop.f32.mrb[0].mxu0
  %v7489 = vadd.f32 0.0, %v7488
  %v7490 = vpop.f32.mrb[0].mxu0
  %v7491 = vpop.f32.mrb[0].mxu0
  %v7492 = vadd.f32 0.0, %v7491
  %v7493 = vpop.f32.mrb[0].mxu0
  %7494 = vmatprep.mubr.bf16.mxu0 0
  %7495 = vmatmul.mubr.bf16.gmra.mrb[0].mxu0 %v7414
  %v7496 = vpop.f32.mrb[0].mxu0
  %v7497 = vadd.f32 0.0, %v7496
  %v7498 = vpop.f32.mrb[0].mxu0
  %v7499 = vpop.f32.mrb[0].mxu0
  %v7500 = vadd.f32 0.0, %v7499
  %v7501 = vpop.f32.mrb[0].mxu0
  %7502 = vmatprep.mubr.bf16.mxu0 0
  %7503 = vmatmul.mubr.bf16.gmra.mrb[0].mxu0 %v7417
  %v7504 = vpop.f32.mrb[0].mxu0
  %v7505 = vadd.f32 0.0, %v7504
  %v7506 = vpop.f32.mrb[0].mxu0
  %v7507 = vpop.f32.mrb[0].mxu0
  %v7508 = vadd.f32 0.0, %v7507
  %v7509 = vpop.f32.mrb[0].mxu0
  %7510 = vmatprep.mubr.bf16.mxu0 0
  %7511 = vmatmul.mubr.bf16.gmra.mrb[0].mxu0 %v7420
  %v7512 = vpop.f32.mrb[0].mxu0
  %v7513 = vadd.f32 0.0, %v7512
  %v7514 = vpop.f32.mrb[0].mxu0
  %v7515 = vpop.f32.mrb[0].mxu0
  %v7516 = vadd.f32 0.0, %v7515
  %v7517 = vpop.f32.mrb[0].mxu0
  %7518 = vdwg.mxu0
  %v7519 = vadd.f32 %v7260, %v7457
  %v7520 = vadd.f32 %v7261, %v7460
  %v7521 = vadd.f32 %v7262, %v7465
  %v7522 = vadd.f32 %v7263, %v7468
  %v7523 = vadd.f32 %v7264, %v7473
  %v7524 = vadd.f32 %v7265, %v7476
  %v7525 = vadd.f32 %v7266, %v7481
  %v7526 = vadd.f32 %v7267, %v7484
  %v7527 = vadd.f32 %v7268, %v7489
  %v7528 = vadd.f32 %v7269, %v7492
  %v7529 = vadd.f32 %v7270, %v7497
  %v7530 = vadd.f32 %v7271, %v7500
  %v7531 = vadd.f32 %v7272, %v7505
  %v7532 = vadd.f32 %v7273, %v7508
  %v7533 = vadd.f32 %v7274, %v7513
  %v7534 = vadd.f32 %v7275, %v7516
  %v7535 = vld [vmem:[%s7] sm:$0x1]
  %v7537 = vlaneseq
  %v7538 = vshrl.u32 %v7537, 7
  %v7539 = vsub.s32 0, %v7538
  %v7540 = vrot.slane %v7535, %v7539
  %v7542 = vadd.f32 %v7519, %v7540
  %v7543 = vadd.f32 %v7520, %v7540
  %v7544 = vadd.f32 %v7521, %v7540
  %v7545 = vadd.f32 %v7522, %v7540
  %v7546 = vadd.f32 %v7523, %v7540
  %v7547 = vadd.f32 %v7524, %v7540
  %v7548 = vadd.f32 %v7525, %v7540
  %v7549 = vadd.f32 %v7526, %v7540
  %v7550 = vadd.f32 %v7527, %v7540
  %v7551 = vadd.f32 %v7528, %v7540
  %v7552 = vadd.f32 %v7529, %v7540
  %v7553 = vadd.f32 %v7530, %v7540
  %v7554 = vadd.f32 %v7531, %v7540
  %v7555 = vadd.f32 %v7532, %v7540
  %v7556 = vadd.f32 %v7533, %v7540
  %v7557 = vadd.f32 %v7534, %v7540
  %v7558 = vmax.f32 %v7542, 0.0
  %v7559 = vmax.f32 %v7543, 0.0
  %v7560 = vmax.f32 %v7544, 0.0
  %v7561 = vmax.f32 %v7545, 0.0
  %v7562 = vmax.f32 %v7546, 0.0
  %v7563 = vmax.f32 %v7547, 0.0
  %v7564 = vmax.f32 %v7548, 0.0
  %v7565 = vmax.f32 %v7549, 0.0
  %v7566 = vmax.f32 %v7550, 0.0
  %v7567 = vmax.f32 %v7551, 0.0
  %v7568 = vmax.f32 %v7552, 0.0
  %v7569 = vmax.f32 %v7553, 0.0
  %v7570 = vmax.f32 %v7554, 0.0
  %v7571 = vmax.f32 %v7555, 0.0
  %v7572 = vmax.f32 %v7556, 0.0
  %v7573 = vmax.f32 %v7557, 0.0
  %v7574 = vld [vmem:[%s8] sm:$0xff]
  %v7575 = vld [vmem:[%s8 + $0x8] sm:$0xff]
  %v7576 = vld [vmem:[%s8 + $0x10] sm:$0xff]
  %v7577 = vld [vmem:[%s8 + $0x18] sm:$0xff]
  %v7578 = vld [vmem:[%s8 + $0x20] sm:$0xff]
  %v7579 = vld [vmem:[%s8 + $0x28] sm:$0xff]
  %v7580 = vld [vmem:[%s8 + $0x30] sm:$0xff]
  %v7581 = vld [vmem:[%s8 + $0x38] sm:$0xff]
  %v7582 = vld [vmem:[%s8 + $0x40] sm:$0xff]
  %v7583 = vld [vmem:[%s8 + $0x48] sm:$0xff]
  %v7584 = vld [vmem:[%s8 + $0x50] sm:$0xff]
  %v7585 = vld [vmem:[%s8 + $0x58] sm:$0xff]
  %v7586 = vld [vmem:[%s8 + $0x60] sm:$0xff]
  %v7587 = vld [vmem:[%s8 + $0x68] sm:$0xff]
  %v7588 = vld [vmem:[%s8 + $0x70] sm:$0xff]
  %v7589 = vld [vmem:[%s8 + $0x78] sm:$0xff]
  %v7590 = vmul.f32 %v7558, %v7574
  %v7591 = vmul.f32 %v7559, %v7575
  %v7592 = vmul.f32 %v7560, %v7576
  %v7593 = vmul.f32 %v7561, %v7577
  %v7594 = vmul.f32 %v7562, %v7578
  %v7595 = vmul.f32 %v7563, %v7579
  %v7596 = vmul.f32 %v7564, %v7580
  %v7597 = vmul.f32 %v7565, %v7581
  %v7598 = vmul.f32 %v7566, %v7582
  %v7599 = vmul.f32 %v7567, %v7583
  %v7600 = vmul.f32 %v7568, %v7584
  %v7601 = vmul.f32 %v7569, %v7585
  %v7602 = vmul.f32 %v7570, %v7586
  %v7603 = vmul.f32 %v7571, %v7587
  %v7604 = vmul.f32 %v7572, %v7588
  %v7605 = vmul.f32 %v7573, %v7589
  %v7606 = vld [vmem:[%s9] sm:$0x3]
  %7607 = vmatprep.subr.mxu0 0.0
  %7608 = vmatpush1.msra.mxu0 %v7590
  %7609 = vmatprep.subr.mxu0 0.0
  %7610 = vmatpush1.msra.mxu0 %v7591
  %7611 = vmatprep.subr.mxu0 0.0
  %7612 = vmatpush1.msra.mxu0 %v7592
  %7613 = vmatprep.subr.mxu0 0.0
  %7614 = vmatpush1.msra.mxu0 %v7593
  %7615 = vmatprep.subr.mxu0 0.0
  %7616 = vmatpush1.msra.mxu0 %v7594
  %7617 = vmatprep.subr.mxu0 0.0
  %7618 = vmatpush1.msra.mxu0 %v7595
  %7619 = vmatprep.subr.mxu0 0.0
  %7620 = vmatpush1.msra.mxu0 %v7596
  %7621 = vmatprep.subr.mxu0 0.0
  %7622 = vmatpush1.msra.mxu0 %v7597
  %7623 = vmatprep.subr.mxu0 0.0
  %7624 = vmatpush1.msra.mxu0 %v7598
  %7625 = vmatprep.subr.mxu0 0.0
  %7626 = vmatpush1.msra.mxu0 %v7599
  %7627 = vmatprep.subr.mxu0 0.0
  %7628 = vmatpush1.msra.mxu0 %v7600
  %7629 = vmatprep.subr.mxu0 0.0
  %7630 = vmatpush1.msra.mxu0 %v7601
  %7631 = vmatprep.subr.mxu0 0.0
  %7632 = vmatpush1.msra.mxu0 %v7602
  %7633 = vmatprep.subr.mxu0 0.0
  %7634 = vmatpush1.msra.mxu0 %v7603
  %7635 = vmatprep.subr.mxu0 0.0
  %7636 = vmatpush1.msra.mxu0 %v7604
  %7637 = vmatprep.subr.mxu0 0.0
  %7638 = vmatpush1.msra.mxu0 %v7605
  %7639 = vmatprep.subr.mxu0 0.0
  %7640 = vmatpush1.msra.mxu0 0.0
  %7641 = vmatprep.subr.mxu0 0.0
  %7642 = vmatpush1.msra.mxu0 0.0
  %7643 = vmatprep.subr.mxu0 0.0
  %7644 = vmatpush1.msra.mxu0 0.0
  %7645 = vmatprep.subr.mxu0 0.0
  %7646 = vmatpush1.msra.mxu0 0.0
  %7647 = vmatprep.subr.mxu0 0.0
  %7648 = vmatpush1.msra.mxu0 0.0
  %7649 = vmatprep.subr.mxu0 0.0
  %7650 = vmatpush1.msra.mxu0 0.0
  %7651 = vmatprep.subr.mxu0 0.0
  %7652 = vmatpush1.msra.mxu0 0.0
  %7653 = vmatprep.subr.mxu0 0.0
  %7654 = vmatpush1.msra.mxu0 0.0
  %7655 = vmatprep.subr.mxu0 0.0
  %7656 = vmatpush1.msra.mxu0 0.0
  %7657 = vmatprep.subr.mxu0 0.0
  %7658 = vmatpush1.msra.mxu0 0.0
  %7659 = vmatprep.subr.mxu0 0.0
  %7660 = vmatpush1.msra.mxu0 0.0
  %7661 = vmatprep.subr.mxu0 0.0
  %7662 = vmatpush1.msra.mxu0 0.0
  %7663 = vmatprep.subr.mxu0 0.0
  %7664 = vmatpush1.msra.mxu0 0.0
  %7665 = vmatprep.subr.mxu0 0.0
  %7666 = vmatpush1.msra.mxu0 0.0
  %7667 = vmatprep.subr.mxu0 0.0
  %7668 = vmatpush1.msra.mxu0 0.0
  %7669 = vmatprep.subr.mxu0 0.0
  %7670 = vmatpush1.msra.mxu0 0.0
  %7671 = vmatprep.mubr.f32.mxu0 0.0
  %7672 = vmatmul.mubr.f32.gmra.mrb[0].mxu0 %v7606
  %v7673 = vpop.f32.mrb[0].mxu0
  %v7674 = vadd.f32 0.0, %v7673
  %v7675 = vpop.f32.mrb[0].mxu0
  %7676 = vdwg.mxu0
  %vm7677 = vcmask 517120
  %v7678 = vsel %vm7677, %v7674, 0.0
  %7679 = vadd.xlane.f32.xlu0 %v7678
  %v7680 = vpop.xlane.xlu0 %7679
  %v7681 = vld [vmem:[#allocation2] sm:$0x1]
  %v7683 = vlaneseq
  %v7684 = vshrl.u32 %v7683, 7
  %v7685 = vsub.s32 0, %v7684
  %v7686 = vrot.slane %v7681, %v7685
  %v7688 = vadd.f32 %v7680, %v7686
  %v7689 = vxor.u32 %v7688, 2147483648
  %v7690 = vmul.f32 %v7689, 1.442695
  %v7691 = vpow.pop %v7690
  %v7692 = vadd.f32 %v7691, 1.0
  %v7693 = vrcp.pop %v7692
  %v7694 = vmul.f32 1.0, %v7693
  %vm7695 = vcmask 1024
  %7696 = vst.msk [vmem:[%s11] sm:$0x3] %vm7695, %v7694
  // Predicated region
  $region46: #{eval_func_convo_net.1} parent=0 // pred_check
    _
  $region47: #{eval_func_convo_net.1} parent=0 // pred_check_branch
    %7698 = sbr.rel (0) target = $region49
  $region48: #{eval_func_convo_net.1} parent=0 // pred_region
    _
  $region49: #{eval_func_convo_net.1} parent=0 // pred_fallthru
    _
  // Predicated region
  $region50: #{eval_func_convo_net.1} parent=0 // pred_check
    _
  $region51: #{eval_func_convo_net.1} parent=0 // pred_check_branch
    %7700 = sbr.rel (0) target = $region53
  $region52: #{eval_func_convo_net.1} parent=0 // pred_region
    _
  $region53: #{eval_func_convo_net.1} parent=0 // pred_fallthru
    _

</llo_original>
